<compile_context>
chip_gen: v6e
topology: v6e:2x2x1
jax: 0.10.0
libtpu: 0.0.40
codegen_flags: <defaults>
</compile_context>

<pallas_src>
import numpy as np
import jax
import jax.numpy as jnp
from jax import lax
from jax.experimental import pallas as pl
from jax.experimental.pallas import tpu as pltpu

# ----------------------------------------------------------------------------
# Architecture constants (DotsGenerator: 40x40x3 crops -> 17 dots x 3 coords)
# ----------------------------------------------------------------------------
H0, W0, C0 = 40, 40, 3          # input
H1, W1, C1 = 20, 20, 17         # after CBR1 (k=3, stride=2, pad=1)
H2, W2, C2 = 10, 10, 51         # after CBR2
H3, W3, C3 = 5, 5, 51           # after CBR3
FC_IN, FC_OUT = C3 * H3 * W3, 51

K1 = W0 * C0                    # 120  columns of the row-major input (w, c)
N1 = W1 * C1                    # 340  columns of CBR1 output (wo, cout)
N2 = W2 * C2                    # 510
N3 = W3 * C3                    # 255


def _rup(x, m):
    return (x + m - 1) // m * m


N1P, N2P, N3P = _rup(N1, 128), _rup(N2, 128), _rup(N3, 128)   # 384, 512, 256
FCP = _rup(FC_OUT, 64)                                        # 64


# ----------------------------------------------------------------------------
# Fused kernel: 3x CBR + FC + sigmoid*255, B images per grid step
# ----------------------------------------------------------------------------
def _dots_kernel(x_ref, t1_ref, t2_ref, t3_ref, wfc_ref,
                 b1_ref, b2_ref, b3_ref, bfc_ref,
                 o_ref, a2_ref, a3_ref):
    f32, bf16 = jnp.float32, jnp.bfloat16
    B = x_ref.shape[2]

    # Zero the halo slabs of the persistent VMEM scratch.  This must happen
    # every grid step (NOT under pl.when(program_id==0)): with megacore
    # "parallel" semantics each TensorCore has its own scratch instance.
    a2_ref[0:1] = jnp.zeros((1, 2, B, N1P), bf16)
    a2_ref[H1 // 2 + 1:H1 // 2 + 2] = jnp.zeros((1, 2, B, N1P), bf16)
    a3_ref[0:1] = jnp.zeros((1, 2, B, N2P), bf16)
    a3_ref[H2 // 2 + 1:H2 // 2 + 2] = jnp.zeros((1, 2, B, N2P), bf16)

    # ---- CBR1 ---------------------------------------------------------------
    # x_ref is [H0//2, 2, B, K1]: even / odd input rows.  For output row ho
    # the kh tap reads input row 2*ho + kh - 1:
    #   kh=1 -> even rows, kh=2 -> odd rows, kh=0 -> odd rows shifted by one
    #   (row -1 is the zero H-pad, handled by a prepended zero row).
    ev = x_ref[:, 0]                                  # [H1, B, K1]
    od = x_ref[:, 1]                                  # [H1, B, K1]
    od_m1 = jnp.concatenate(
        [jnp.zeros((1, B, K1), bf16), od[:-1]], axis=0)
    acc = jnp.dot(od_m1.reshape(H1 * B, K1), t1_ref[0],
                  preferred_element_type=f32)
    acc += jnp.dot(ev.reshape(H1 * B, K1), t1_ref[1],
                   preferred_element_type=f32)
    acc += jnp.dot(od.reshape(H1 * B, K1), t1_ref[2],
                   preferred_element_type=f32)
    y1 = jnp.maximum(acc + b1_ref[...], 0.0).astype(bf16)     # [H1*B, N1P]
    # Store into rows 2..21 of the (2+H1+2)-row padded even/odd buffer.
    a2_ref[1:H1 // 2 + 1] = y1.reshape(H1 // 2, 2, B, N1P)

    # ---- CBR2 ---------------------------------------------------------------
    # a2_ref is [H1//2+2, 2, B, N1P]; padded row p = r + 2, so the kh taps of
    # output row ho are p = 2*ho + kh + 1 -> plain slices of the even/odd view.
    acc = jnp.dot(a2_ref[0:H2, 1].reshape(H2 * B, N1P), t2_ref[0],
                  preferred_element_type=f32)
    acc += jnp.dot(a2_ref[1:H2 + 1, 0].reshape(H2 * B, N1P), t2_ref[1],
                   preferred_element_type=f32)
    acc += jnp.dot(a2_ref[1:H2 + 1, 1].reshape(H2 * B, N1P), t2_ref[2],
                   preferred_element_type=f32)
    y2 = jnp.maximum(acc + b2_ref[...], 0.0).astype(bf16)     # [H2*B, N2P]
    a3_ref[1:H2 // 2 + 1] = y2.reshape(H2 // 2, 2, B, N2P)

    # ---- CBR3 ---------------------------------------------------------------
    acc = jnp.dot(a3_ref[0:H3, 1].reshape(H3 * B, N2P), t3_ref[0],
                  preferred_element_type=f32)
    acc += jnp.dot(a3_ref[1:H3 + 1, 0].reshape(H3 * B, N2P), t3_ref[1],
                   preferred_element_type=f32)
    acc += jnp.dot(a3_ref[1:H3 + 1, 1].reshape(H3 * B, N2P), t3_ref[2],
                   preferred_element_type=f32)
    y3 = jnp.maximum(acc + b3_ref[...], 0.0).astype(bf16)     # [H3*B, N3P]

    # ---- FC (PyTorch NCHW flatten order baked into wfc) + sigmoid*255 -------
    y3 = y3.reshape(H3, B, N3P)
    accf = jnp.zeros((B, FCP), f32)
    for h in range(H3):                                        # 5 matmuls, M=B
        accf += jnp.dot(y3[h], wfc_ref[h], preferred_element_type=f32)
    o_ref[...] = (jax.nn.sigmoid(accf + bfc_ref[...]) * 255.0).astype(o_ref.dtype)


def _fused_forward_call(n_pad, block_b):
    per_batch_x = lambda i: (0, 0, i, 0)
    per_batch_o = lambda i: (i, 0)
    fixed3 = lambda i: (0, 0, 0)
    fixed2 = lambda i: (0, 0)

    flops = n_pad * (2 * 3 * (H1 * K1 * N1 + H2 * N1 * N2 + H3 * N2 * N3)
                     + 2 * H3 * N3 * FC_OUT)
    weight_bytes = 2 * (3 * K1 * N1P + 3 * N1P * N2P + 3 * N2P * N3P
                        + H3 * N3P * FCP)
    bytes_accessed = n_pad * (H0 * K1 * 2 + FCP * 4) + weight_bytes

    return pl.pallas_call(
        _dots_kernel,
        out_shape=jax.ShapeDtypeStruct((n_pad, FCP), jnp.float32),
        grid=(n_pad // block_b,),
        in_specs=[
            pl.BlockSpec((H0 // 2, 2, block_b, K1), per_batch_x),  # input (bf16)
            pl.BlockSpec((3, K1, N1P), fixed3),                    # T1 (BN-folded)
            pl.BlockSpec((3, N1P, N2P), fixed3),                   # T2
            pl.BlockSpec((3, N2P, N3P), fixed3),                   # T3
            pl.BlockSpec((H3, N3P, FCP), fixed3),                  # FC weight
            pl.BlockSpec((1, N1P), fixed2),                        # b1
            pl.BlockSpec((1, N2P), fixed2),                        # b2
            pl.BlockSpec((1, N3P), fixed2),                        # b3
            pl.BlockSpec((1, FCP), fixed2),                        # b_fc
        ],
        out_specs=pl.BlockSpec((block_b, FCP), per_batch_o),
        scratch_shapes=[
            pltpu.VMEM((H1 // 2 + 2, 2, block_b, N1P), jnp.bfloat16),  # CBR1 out
            pltpu.VMEM((H2 // 2 + 2, 2, block_b, N2P), jnp.bfloat16),  # CBR2 out
        ],
        compiler_params=pltpu.CompilerParams(
            dimension_semantics=("parallel",)),
        cost_estimate=pl.CostEstimate(
            flops=flops, transcendentals=n_pad * FC_OUT,
            bytes_accessed=bytes_accessed),
    )


def _pick_block_b(n):
    # Multiple of 8 (clean sublane layout), large enough to fill MXU rows,
    # but keeping >= 2 grid steps for megacore when n allows it.
    if n >= 64:
        return 32
    if n >= 32:
        return 16
    return 8


def dots_generator_forward(prep, gt_crops_nchw, block_b=None):
    """[num_gts, 3, 40, 40] -> [num_gts, 17, 3] (CBR x3 + FC + sigmoid*255)."""
    n = gt_crops_nchw.shape[0]
    if block_b is None:
        block_b = _pick_block_b(n)
    n_pad = _rup(n, block_b)
    x = gt_crops_nchw.astype(jnp.bfloat16)            # halve input HBM traffic
    if n_pad != n:
        x = jnp.pad(x, ((0, n_pad - n), (0, 0), (0, 0), (0, 0)))
    # Single wrapper transform: NCHW -> [H/2, 2, n, W*C] (even/odd H rows,
    # (w, c)-interleaved columns).  No f32 round trip and no jnp.pad.
    x = jnp.transpose(x, (2, 0, 3, 1)).reshape(H0 // 2, 2, n_pad, W0 * C0)
    out = _fused_forward_call(n_pad, block_b)(
        x, prep["t1"], prep["t2"], prep["t3"], prep["wfc"],
        prep["b1"], prep["b2"], prep["b3"], prep["bfc"])
    return out[:n, :FC_OUT].reshape(n, 17, 3)


# ----------------------------------------------------------------------------
# One-time parameter preparation (host side): fold BN, build tap matrices
# ----------------------------------------------------------------------------
def _build_tap_matrices(conv_w, w_in, stride=2, pad=1):
    """T[kh, w*Cin+ci, wo*Cout+co] = conv_w[co, ci, kh, w - stride*wo + pad]."""
    cout, cin, k, _ = conv_w.shape
    w_out = (w_in + 2 * pad - k) // stride + 1
    t = np.zeros((k, w_in * cin, w_out * cout), np.float32)
    for kh in range(k):
        for wo in range(w_out):
            for kw in range(k):
                w = stride * wo + kw - pad
                if 0 <= w < w_in:
                    t[kh, w * cin:(w + 1) * cin,
                      wo * cout:(wo + 1) * cout] = conv_w[:, :, kh, kw].T
    return t, w_out


def prepare_params(params):
    prep = {}
    layer_cfg = [("conv1_w", "bn1", W0, K1, N1P),
                 ("conv2_w", "bn2", W1, N1P, N2P),
                 ("conv3_w", "bn3", W2, N2P, N3P)]
    for idx, (wname, bname, w_in, k_pad, n_padded) in enumerate(layer_cfg, 1):
        cw = np.asarray(params[wname], np.float32)
        bn = params[bname]
        gamma = np.asarray(bn["gamma"], np.float32)
        beta = np.asarray(bn["beta"], np.float32)
        mean = np.asarray(bn["mean"], np.float32)
        var = np.asarray(bn["var"], np.float32)
        scale = gamma / np.sqrt(var + bn["eps"])
        bias = beta - mean * scale
        t, w_out = _build_tap_matrices(cw, w_in)
        t = t * np.tile(scale, w_out)[None, None, :]           # fold BN scale
        tp = np.zeros((3, k_pad, n_padded), np.float32)        # lane-pad
        tp[:, :t.shape[1], :t.shape[2]] = t
        bp = np.zeros((1, n_padded), np.float32)
        bp[0, :t.shape[2]] = np.tile(bias, w_out)
        prep[f"t{idx}"] = jnp.asarray(tp, jnp.bfloat16)
        prep[f"b{idx}"] = jnp.asarray(bp, jnp.float32)
    # FC: PyTorch flattens NCHW (c, h, w); our CBR3 rows are [h, (w, c)].
    fc_w = np.asarray(params["fc_w"], np.float32)              # [51, 1275]
    wfc = fc_w.reshape(FC_OUT, C3, H3, W3).transpose(2, 3, 1, 0)
    wfc = wfc.reshape(H3, W3 * C3, FC_OUT)
    wfcp = np.zeros((H3, N3P, FCP), np.float32)
    wfcp[:, :W3 * C3, :FC_OUT] = wfc
    bfcp = np.zeros((1, FCP), np.float32)
    bfcp[0, :FC_OUT] = np.asarray(params["fc_b"], np.float32)
    prep["wfc"] = jnp.asarray(wfcp, jnp.bfloat16)
    prep["bfc"] = jnp.asarray(bfcp, jnp.float32)
    return prep


# ----------------------------------------------------------------------------
# Test parameters, XLA reference, and self-check
# ----------------------------------------------------------------------------
def init_params(key):
    """Deterministic test parameters with non-trivial BN running stats."""
    ks = jax.random.split(key, 8)
    params = {
        "conv1_w": 0.10 * jax.random.normal(ks[0], (C1, C0, 3, 3), jnp.float32),
        "conv2_w": 0.05 * jax.random.normal(ks[1], (C2, C1, 3, 3), jnp.float32),
        "conv3_w": 0.05 * jax.random.normal(ks[2], (C3, C2, 3, 3), jnp.float32),
        "fc_w": 0.02 * jax.random.normal(ks[3], (FC_OUT, FC_IN), jnp.float32),
        "fc_b": 0.10 * jax.random.normal(ks[4], (FC_OUT,), jnp.float32),
    }
    for i, (name, c) in enumerate([("bn1", C1), ("bn2", C2), ("bn3", C3)]):
        kg, kb, km, kv = jax.random.split(ks[5 + i], 4)
        params[name] = dict(
            gamma=1.0 + 0.2 * jax.random.normal(kg, (c,), jnp.float32),
            beta=0.1 * jax.random.normal(kb, (c,), jnp.float32),
            mean=0.1 * jax.random.normal(km, (c,), jnp.float32),
            var=1.0 + 0.5 * jax.random.uniform(kv, (c,), jnp.float32),
            eps=1e-5,
        )
    return params


def reference_forward(params, gt_crops_nchw):
    """Pure-XLA f32 reference of the same forward pass (for the self-check)."""
    def cbr_ref(x, w, bn):
        y = lax.conv_general_dilated(
            x, w, window_strides=(2, 2), padding=((1, 1), (1, 1)),
            dimension_numbers=("NCHW", "OIHW", "NCHW"))
        scale = bn["gamma"] / jnp.sqrt(bn["var"] + bn["eps"])
        bias = bn["beta"] - bn["mean"] * scale
        return jnp.maximum(y * scale[None, :, None, None]
                           + bias[None, :, None, None], 0.0)

    x = gt_crops_nchw.astype(jnp.float32)
    x = cbr_ref(x, params["conv1_w"], params["bn1"])
    x = cbr_ref(x, params["conv2_w"], params["bn2"])
    x = cbr_ref(x, params["conv3_w"], params["bn3"])
    n = x.shape[0]
    x = x.reshape(n, FC_IN)                        # NCHW flatten, like PyTorch
    y = jax.nn.sigmoid(x @ params["fc_w"].T + params["fc_b"]) * 255.0
    return y.reshape(n, 17, 3)


if __name__ == "__main__":
    key = jax.random.PRNGKey(0)
    pkey, xkey = jax.random.split(key)
    params = init_params(pkey)
    prep = prepare_params(params)

    # 16 crops -> block_b = 8 -> grid of 2 steps (exercises scratch reuse).
    gt_crops = jax.random.normal(xkey, (16, 3, 40, 40), jnp.float32)

    fwd = jax.jit(dots_generator_forward)
    out = jax.block_until_ready(fwd(prep, gt_crops))

    assert out.shape == (16, 17, 3) and out.dtype == jnp.float32
    assert bool(jnp.all(jnp.isfinite(out)))
    assert bool(jnp.all(out >= 0.0)) and bool(jnp.all(out <= 255.0))

    ref = jax.block_until_ready(reference_forward(params, gt_crops))
    # bf16 matmul operands with f32 accumulation -> small deviation vs f32 ref
    # on the 0..255 output scale.
    assert bool(jnp.allclose(out, ref, atol=3.0, rtol=0.0)), (
        float(jnp.max(jnp.abs(out - ref))))

    print("KERNEL_OK")
</pallas_src>

<mosaic_0001>
module attributes {stable_mosaic.version = 11 : i64} {
  func.func @_dots_kernel(%arg0: i32, %arg1: memref<20x2x8x120xbf16, #tpu.memory_space<vmem>>, %arg2: memref<3x120x384xbf16, #tpu.memory_space<vmem>>, %arg3: memref<3x384x512xbf16, #tpu.memory_space<vmem>>, %arg4: memref<3x512x256xbf16, #tpu.memory_space<vmem>>, %arg5: memref<5x256x64xbf16, #tpu.memory_space<vmem>>, %arg6: memref<1x384xf32, #tpu.memory_space<vmem>>, %arg7: memref<1x512xf32, #tpu.memory_space<vmem>>, %arg8: memref<1x256xf32, #tpu.memory_space<vmem>>, %arg9: memref<1x64xf32, #tpu.memory_space<vmem>>, %arg10: memref<8x64xf32, #tpu.memory_space<vmem>>, %arg11: memref<12x2x8x384xbf16, #tpu.memory_space<vmem>>, %arg12: memref<7x2x8x512xbf16, #tpu.memory_space<vmem>>) attributes {dimension_semantics = [#tpu.dimension_semantics<parallel>], iteration_bounds = array<i64: 2>, scalar_prefetch = 0 : i64, scratch_operands = 2 : i64, tpu.core_type = #tpu.core_type<tc>, window_params = [{transform_indices = @transform_0, window_bounds = array<i64: 20, 2, 8, 120>}, {pipeline_mode = #tpu.pipeline_mode<synchronous>, transform_indices = @transform_1, window_bounds = array<i64: 3, 120, 384>}, {pipeline_mode = #tpu.pipeline_mode<synchronous>, transform_indices = @transform_2, window_bounds = array<i64: 3, 384, 512>}, {pipeline_mode = #tpu.pipeline_mode<synchronous>, transform_indices = @transform_3, window_bounds = array<i64: 3, 512, 256>}, {pipeline_mode = #tpu.pipeline_mode<synchronous>, transform_indices = @transform_4, window_bounds = array<i64: 5, 256, 64>}, {pipeline_mode = #tpu.pipeline_mode<synchronous>, transform_indices = @transform_5, window_bounds = array<i64: 1, 384>}, {pipeline_mode = #tpu.pipeline_mode<synchronous>, transform_indices = @transform_6, window_bounds = array<i64: 1, 512>}, {pipeline_mode = #tpu.pipeline_mode<synchronous>, transform_indices = @transform_7, window_bounds = array<i64: 1, 256>}, {pipeline_mode = #tpu.pipeline_mode<synchronous>, transform_indices = @transform_8, window_bounds = array<i64: 1, 64>}, {transform_indices = @transform_9, window_bounds = array<i64: 8, 64>}]} {
    %cst = arith.constant 0.000000e+00 : bf16
    %0 = vector.broadcast %cst : bf16 to vector<1x2x8x384xbf16>
    %c0 = arith.constant 0 : index
    %c0_0 = arith.constant 0 : index
    %c0_1 = arith.constant 0 : index
    %c0_2 = arith.constant 0 : index
    %1 = vector.load %arg11[%c0, %c0_0, %c0_1, %c0_2] : memref<12x2x8x384xbf16, #tpu.memory_space<vmem>>, vector<1x2x8x384xbf16>
    tpu.vector_store %arg11[%c0, %c0_0, %c0_1, %c0_2], %0 {strides = array<i32>} : memref<12x2x8x384xbf16, #tpu.memory_space<vmem>>, vector<1x2x8x384xbf16>,
    %cst_3 = arith.constant 0.000000e+00 : bf16
    %2 = vector.broadcast %cst_3 : bf16 to vector<1x2x8x384xbf16>
    %c11 = arith.constant 11 : index
    %c0_4 = arith.constant 0 : index
    %c0_5 = arith.constant 0 : index
    %c0_6 = arith.constant 0 : index
    %3 = vector.load %arg11[%c11, %c0_4, %c0_5, %c0_6] : memref<12x2x8x384xbf16, #tpu.memory_space<vmem>>, vector<1x2x8x384xbf16>
    tpu.vector_store %arg11[%c11, %c0_4, %c0_5, %c0_6], %2 {strides = array<i32>} : memref<12x2x8x384xbf16, #tpu.memory_space<vmem>>, vector<1x2x8x384xbf16>,
    %cst_7 = arith.constant 0.000000e+00 : bf16
    %4 = vector.broadcast %cst_7 : bf16 to vector<1x2x8x512xbf16>
    %c0_8 = arith.constant 0 : index
    %c0_9 = arith.constant 0 : index
    %c0_10 = arith.constant 0 : index
    %c0_11 = arith.constant 0 : index
    %5 = vector.load %arg12[%c0_8, %c0_9, %c0_10, %c0_11] : memref<7x2x8x512xbf16, #tpu.memory_space<vmem>>, vector<1x2x8x512xbf16>
    tpu.vector_store %arg12[%c0_8, %c0_9, %c0_10, %c0_11], %4 {strides = array<i32>} : memref<7x2x8x512xbf16, #tpu.memory_space<vmem>>, vector<1x2x8x512xbf16>,
    %cst_12 = arith.constant 0.000000e+00 : bf16
    %6 = vector.broadcast %cst_12 : bf16 to vector<1x2x8x512xbf16>
    %c6 = arith.constant 6 : index
    %c0_13 = arith.constant 0 : index
    %c0_14 = arith.constant 0 : index
    %c0_15 = arith.constant 0 : index
    %7 = vector.load %arg12[%c6, %c0_13, %c0_14, %c0_15] : memref<7x2x8x512xbf16, #tpu.memory_space<vmem>>, vector<1x2x8x512xbf16>
    tpu.vector_store %arg12[%c6, %c0_13, %c0_14, %c0_15], %6 {strides = array<i32>} : memref<7x2x8x512xbf16, #tpu.memory_space<vmem>>, vector<1x2x8x512xbf16>,
    %c0_16 = arith.constant 0 : index
    %c0_17 = arith.constant 0 : index
    %c0_18 = arith.constant 0 : index
    %c0_19 = arith.constant 0 : index
    %8 = vector.load %arg1[%c0_16, %c0_17, %c0_18, %c0_19] : memref<20x2x8x120xbf16, #tpu.memory_space<vmem>>, vector<20x1x8x120xbf16>
    %9 = vector.shape_cast %8 : vector<20x1x8x120xbf16> to vector<20x8x120xbf16>
    %c0_20 = arith.constant 0 : index
    %c1 = arith.constant 1 : index
    %c0_21 = arith.constant 0 : index
    %c0_22 = arith.constant 0 : index
    %10 = vector.load %arg1[%c0_20, %c1, %c0_21, %c0_22] : memref<20x2x8x120xbf16, #tpu.memory_space<vmem>>, vector<20x1x8x120xbf16>
    %11 = vector.shape_cast %10 : vector<20x1x8x120xbf16> to vector<20x8x120xbf16>
    %cst_23 = arith.constant 0.000000e+00 : bf16
    %12 = vector.broadcast %cst_23 : bf16 to vector<1x8x120xbf16>
    %13 = vector.extract_strided_slice %11 {offsets = [0, 0, 0], sizes = [19, 8, 120], strides = [1, 1, 1]} : vector<20x8x120xbf16> to vector<19x8x120xbf16>
    %14 = tpu.concatenate %12, %13 in 0 : vector<1x8x120xbf16>, vector<19x8x120xbf16> -> vector<20x8x120xbf16>
    %15 = vector.shape_cast %14 : vector<20x8x120xbf16> to vector<160x120xbf16>
    %c0_24 = arith.constant 0 : index
    %c0_25 = arith.constant 0 : index
    %c0_26 = arith.constant 0 : index
    %16 = vector.load %arg2[%c0_24, %c0_25, %c0_26] : memref<3x120x384xbf16, #tpu.memory_space<vmem>>, vector<1x120x384xbf16>
    %17 = vector.shape_cast %16 : vector<1x120x384xbf16> to vector<120x384xbf16>
    %cst_27 = arith.constant dense<0.000000e+00> : vector<160x384xf32>
    %18 = tpu.matmul %15, %17, %cst_27 {dimension_numbers = #tpu.dot_dimension_numbers<[1], [0], [0], [1], [0, 0, 1, 1], [], []>} : vector<160x120xbf16>, vector<120x384xbf16>, vector<160x384xf32> -> vector<160x384xf32>
    %19 = vector.shape_cast %9 : vector<20x8x120xbf16> to vector<160x120xbf16>
    %c1_28 = arith.constant 1 : index
    %c0_29 = arith.constant 0 : index
    %c0_30 = arith.constant 0 : index
    %20 = vector.load %arg2[%c1_28, %c0_29, %c0_30] : memref<3x120x384xbf16, #tpu.memory_space<vmem>>, vector<1x120x384xbf16>
    %21 = vector.shape_cast %20 : vector<1x120x384xbf16> to vector<120x384xbf16>
    %cst_31 = arith.constant dense<0.000000e+00> : vector<160x384xf32>
    %22 = tpu.matmul %19, %21, %cst_31 {dimension_numbers = #tpu.dot_dimension_numbers<[1], [0], [0], [1], [0, 0, 1, 1], [], []>} : vector<160x120xbf16>, vector<120x384xbf16>, vector<160x384xf32> -> vector<160x384xf32>
    %23 = arith.addf %18, %22 : vector<160x384xf32>
    %24 = vector.shape_cast %11 : vector<20x8x120xbf16> to vector<160x120xbf16>
    %c2 = arith.constant 2 : index
    %c0_32 = arith.constant 0 : index
    %c0_33 = arith.constant 0 : index
    %25 = vector.load %arg2[%c2, %c0_32, %c0_33] : memref<3x120x384xbf16, #tpu.memory_space<vmem>>, vector<1x120x384xbf16>
    %26 = vector.shape_cast %25 : vector<1x120x384xbf16> to vector<120x384xbf16>
    %cst_34 = arith.constant dense<0.000000e+00> : vector<160x384xf32>
    %27 = tpu.matmul %24, %26, %cst_34 {dimension_numbers = #tpu.dot_dimension_numbers<[1], [0], [0], [1], [0, 0, 1, 1], [], []>} : vector<160x120xbf16>, vector<120x384xbf16>, vector<160x384xf32> -> vector<160x384xf32>
    %28 = arith.addf %23, %27 : vector<160x384xf32>
    %c0_35 = arith.constant 0 : index
    %c0_36 = arith.constant 0 : index
    %29 = vector.load %arg6[%c0_35, %c0_36] : memref<1x384xf32, #tpu.memory_space<vmem>>, vector<1x384xf32>
    %30 = vector.broadcast %29 : vector<1x384xf32> to vector<160x384xf32>
    %31 = arith.addf %28, %30 : vector<160x384xf32>
    %cst_37 = arith.constant 0.000000e+00 : f32
    %32 = vector.broadcast %cst_37 : f32 to vector<160x384xf32>
    %33 = arith.maximumf %31, %32 : vector<160x384xf32>
    %34 = arith.truncf %33 : vector<160x384xf32> to vector<160x384xbf16>
    %35 = vector.shape_cast %34 : vector<160x384xbf16> to vector<10x2x8x384xbf16>
    %c1_38 = arith.constant 1 : index
    %c0_39 = arith.constant 0 : index
    %c0_40 = arith.constant 0 : index
    %c0_41 = arith.constant 0 : index
    %36 = vector.load %arg11[%c1_38, %c0_39, %c0_40, %c0_41] : memref<12x2x8x384xbf16, #tpu.memory_space<vmem>>, vector<10x2x8x384xbf16>
    tpu.vector_store %arg11[%c1_38, %c0_39, %c0_40, %c0_41], %35 {strides = array<i32>} : memref<12x2x8x384xbf16, #tpu.memory_space<vmem>>, vector<10x2x8x384xbf16>,
    %c0_42 = arith.constant 0 : index
    %c1_43 = arith.constant 1 : index
    %c0_44 = arith.constant 0 : index
    %c0_45 = arith.constant 0 : index
    %37 = vector.load %arg11[%c0_42, %c1_43, %c0_44, %c0_45] : memref<12x2x8x384xbf16, #tpu.memory_space<vmem>>, vector<10x1x8x384xbf16>
    %38 = vector.shape_cast %37 : vector<10x1x8x384xbf16> to vector<10x8x384xbf16>
    %39 = vector.shape_cast %38 : vector<10x8x384xbf16> to vector<80x384xbf16>
    %c0_46 = arith.constant 0 : index
    %c0_47 = arith.constant 0 : index
    %c0_48 = arith.constant 0 : index
    %40 = vector.load %arg3[%c0_46, %c0_47, %c0_48] : memref<3x384x512xbf16, #tpu.memory_space<vmem>>, vector<1x384x512xbf16>
    %41 = vector.shape_cast %40 : vector<1x384x512xbf16> to vector<384x512xbf16>
    %cst_49 = arith.constant dense<0.000000e+00> : vector<80x512xf32>
    %42 = tpu.matmul %39, %41, %cst_49 {dimension_numbers = #tpu.dot_dimension_numbers<[1], [0], [0], [1], [0, 0, 1, 1], [], []>} : vector<80x384xbf16>, vector<384x512xbf16>, vector<80x512xf32> -> vector<80x512xf32>
    %c1_50 = arith.constant 1 : index
    %c0_51 = arith.constant 0 : index
    %c0_52 = arith.constant 0 : index
    %c0_53 = arith.constant 0 : index
    %43 = vector.load %arg11[%c1_50, %c0_51, %c0_52, %c0_53] : memref<12x2x8x384xbf16, #tpu.memory_space<vmem>>, vector<10x1x8x384xbf16>
    %44 = vector.shape_cast %43 : vector<10x1x8x384xbf16> to vector<10x8x384xbf16>
    %45 = vector.shape_cast %44 : vector<10x8x384xbf16> to vector<80x384xbf16>
    %c1_54 = arith.constant 1 : index
    %c0_55 = arith.constant 0 : index
    %c0_56 = arith.constant 0 : index
    %46 = vector.load %arg3[%c1_54, %c0_55, %c0_56] : memref<3x384x512xbf16, #tpu.memory_space<vmem>>, vector<1x384x512xbf16>
    %47 = vector.shape_cast %46 : vector<1x384x512xbf16> to vector<384x512xbf16>
    %cst_57 = arith.constant dense<0.000000e+00> : vector<80x512xf32>
    %48 = tpu.matmul %45, %47, %cst_57 {dimension_numbers = #tpu.dot_dimension_numbers<[1], [0], [0], [1], [0, 0, 1, 1], [], []>} : vector<80x384xbf16>, vector<384x512xbf16>, vector<80x512xf32> -> vector<80x512xf32>
    %49 = arith.addf %42, %48 : vector<80x512xf32>
    %c1_58 = arith.constant 1 : index
    %c1_59 = arith.constant 1 : index
    %c0_60 = arith.constant 0 : index
    %c0_61 = arith.constant 0 : index
    %50 = vector.load %arg11[%c1_58, %c1_59, %c0_60, %c0_61] : memref<12x2x8x384xbf16, #tpu.memory_space<vmem>>, vector<10x1x8x384xbf16>
    %51 = vector.shape_cast %50 : vector<10x1x8x384xbf16> to vector<10x8x384xbf16>
    %52 = vector.shape_cast %51 : vector<10x8x384xbf16> to vector<80x384xbf16>
    %c2_62 = arith.constant 2 : index
    %c0_63 = arith.constant 0 : index
    %c0_64 = arith.constant 0 : index
    %53 = vector.load %arg3[%c2_62, %c0_63, %c0_64] : memref<3x384x512xbf16, #tpu.memory_space<vmem>>, vector<1x384x512xbf16>
    %54 = vector.shape_cast %53 : vector<1x384x512xbf16> to vector<384x512xbf16>
    %cst_65 = arith.constant dense<0.000000e+00> : vector<80x512xf32>
    %55 = tpu.matmul %52, %54, %cst_65 {dimension_numbers = #tpu.dot_dimension_numbers<[1], [0], [0], [1], [0, 0, 1, 1], [], []>} : vector<80x384xbf16>, vector<384x512xbf16>, vector<80x512xf32> -> vector<80x512xf32>
    %56 = arith.addf %49, %55 : vector<80x512xf32>
    %c0_66 = arith.constant 0 : index
    %c0_67 = arith.constant 0 : index
    %57 = vector.load %arg7[%c0_66, %c0_67] : memref<1x512xf32, #tpu.memory_space<vmem>>, vector<1x512xf32>
    %58 = vector.broadcast %57 : vector<1x512xf32> to vector<80x512xf32>
    %59 = arith.addf %56, %58 : vector<80x512xf32>
    %cst_68 = arith.constant 0.000000e+00 : f32
    %60 = vector.broadcast %cst_68 : f32 to vector<80x512xf32>
    %61 = arith.maximumf %59, %60 : vector<80x512xf32>
    %62 = arith.truncf %61 : vector<80x512xf32> to vector<80x512xbf16>
    %63 = vector.shape_cast %62 : vector<80x512xbf16> to vector<5x2x8x512xbf16>
    %c1_69 = arith.constant 1 : index
    %c0_70 = arith.constant 0 : index
    %c0_71 = arith.constant 0 : index
    %c0_72 = arith.constant 0 : index
    %64 = vector.load %arg12[%c1_69, %c0_70, %c0_71, %c0_72] : memref<7x2x8x512xbf16, #tpu.memory_space<vmem>>, vector<5x2x8x512xbf16>
    tpu.vector_store %arg12[%c1_69, %c0_70, %c0_71, %c0_72], %63 {strides = array<i32>} : memref<7x2x8x512xbf16, #tpu.memory_space<vmem>>, vector<5x2x8x512xbf16>,
    %c0_73 = arith.constant 0 : index
    %c1_74 = arith.constant 1 : index
    %c0_75 = arith.constant 0 : index
    %c0_76 = arith.constant 0 : index
    %65 = vector.load %arg12[%c0_73, %c1_74, %c0_75, %c0_76] : memref<7x2x8x512xbf16, #tpu.memory_space<vmem>>, vector<5x1x8x512xbf16>
    %66 = vector.shape_cast %65 : vector<5x1x8x512xbf16> to vector<5x8x512xbf16>
    %67 = vector.shape_cast %66 : vector<5x8x512xbf16> to vector<40x512xbf16>
    %c0_77 = arith.constant 0 : index
    %c0_78 = arith.constant 0 : index
    %c0_79 = arith.constant 0 : index
    %68 = vector.load %arg4[%c0_77, %c0_78, %c0_79] : memref<3x512x256xbf16, #tpu.memory_space<vmem>>, vector<1x512x256xbf16>
    %69 = vector.shape_cast %68 : vector<1x512x256xbf16> to vector<512x256xbf16>
    %cst_80 = arith.constant dense<0.000000e+00> : vector<40x256xf32>
    %70 = tpu.matmul %67, %69, %cst_80 {dimension_numbers = #tpu.dot_dimension_numbers<[1], [0], [0], [1], [0, 0, 1, 1], [], []>} : vector<40x512xbf16>, vector<512x256xbf16>, vector<40x256xf32> -> vector<40x256xf32>
    %c1_81 = arith.constant 1 : index
    %c0_82 = arith.constant 0 : index
    %c0_83 = arith.constant 0 : index
    %c0_84 = arith.constant 0 : index
    %71 = vector.load %arg12[%c1_81, %c0_82, %c0_83, %c0_84] : memref<7x2x8x512xbf16, #tpu.memory_space<vmem>>, vector<5x1x8x512xbf16>
    %72 = vector.shape_cast %71 : vector<5x1x8x512xbf16> to vector<5x8x512xbf16>
    %73 = vector.shape_cast %72 : vector<5x8x512xbf16> to vector<40x512xbf16>
    %c1_85 = arith.constant 1 : index
    %c0_86 = arith.constant 0 : index
    %c0_87 = arith.constant 0 : index
    %74 = vector.load %arg4[%c1_85, %c0_86, %c0_87] : memref<3x512x256xbf16, #tpu.memory_space<vmem>>, vector<1x512x256xbf16>
    %75 = vector.shape_cast %74 : vector<1x512x256xbf16> to vector<512x256xbf16>
    %cst_88 = arith.constant dense<0.000000e+00> : vector<40x256xf32>
    %76 = tpu.matmul %73, %75, %cst_88 {dimension_numbers = #tpu.dot_dimension_numbers<[1], [0], [0], [1], [0, 0, 1, 1], [], []>} : vector<40x512xbf16>, vector<512x256xbf16>, vector<40x256xf32> -> vector<40x256xf32>
    %77 = arith.addf %70, %76 : vector<40x256xf32>
    %c1_89 = arith.constant 1 : index
    %c1_90 = arith.constant 1 : index
    %c0_91 = arith.constant 0 : index
    %c0_92 = arith.constant 0 : index
    %78 = vector.load %arg12[%c1_89, %c1_90, %c0_91, %c0_92] : memref<7x2x8x512xbf16, #tpu.memory_space<vmem>>, vector<5x1x8x512xbf16>
    %79 = vector.shape_cast %78 : vector<5x1x8x512xbf16> to vector<5x8x512xbf16>
    %80 = vector.shape_cast %79 : vector<5x8x512xbf16> to vector<40x512xbf16>
    %c2_93 = arith.constant 2 : index
    %c0_94 = arith.constant 0 : index
    %c0_95 = arith.constant 0 : index
    %81 = vector.load %arg4[%c2_93, %c0_94, %c0_95] : memref<3x512x256xbf16, #tpu.memory_space<vmem>>, vector<1x512x256xbf16>
    %82 = vector.shape_cast %81 : vector<1x512x256xbf16> to vector<512x256xbf16>
    %cst_96 = arith.constant dense<0.000000e+00> : vector<40x256xf32>
    %83 = tpu.matmul %80, %82, %cst_96 {dimension_numbers = #tpu.dot_dimension_numbers<[1], [0], [0], [1], [0, 0, 1, 1], [], []>} : vector<40x512xbf16>, vector<512x256xbf16>, vector<40x256xf32> -> vector<40x256xf32>
    %84 = arith.addf %77, %83 : vector<40x256xf32>
    %c0_97 = arith.constant 0 : index
    %c0_98 = arith.constant 0 : index
    %85 = vector.load %arg8[%c0_97, %c0_98] : memref<1x256xf32, #tpu.memory_space<vmem>>, vector<1x256xf32>
    %86 = vector.broadcast %85 : vector<1x256xf32> to vector<40x256xf32>
    %87 = arith.addf %84, %86 : vector<40x256xf32>
    %cst_99 = arith.constant 0.000000e+00 : f32
    %88 = vector.broadcast %cst_99 : f32 to vector<40x256xf32>
    %89 = arith.maximumf %87, %88 : vector<40x256xf32>
    %90 = arith.truncf %89 : vector<40x256xf32> to vector<40x256xbf16>
    %91 = vector.shape_cast %90 : vector<40x256xbf16> to vector<5x8x256xbf16>
    %cst_100 = arith.constant 0.000000e+00 : f32
    %92 = vector.broadcast %cst_100 : f32 to vector<8x64xf32>
    %93 = vector.extract_strided_slice %91 {offsets = [0, 0, 0], sizes = [1, 8, 256], strides = [1, 1, 1]} : vector<5x8x256xbf16> to vector<1x8x256xbf16>
    %94 = vector.shape_cast %93 : vector<1x8x256xbf16> to vector<8x256xbf16>
    %c0_101 = arith.constant 0 : index
    %c0_102 = arith.constant 0 : index
    %c0_103 = arith.constant 0 : index
    %95 = vector.load %arg5[%c0_101, %c0_102, %c0_103] : memref<5x256x64xbf16, #tpu.memory_space<vmem>>, vector<1x256x64xbf16>
    %96 = vector.shape_cast %95 : vector<1x256x64xbf16> to vector<256x64xbf16>
    %cst_104 = arith.constant dense<0.000000e+00> : vector<8x64xf32>
    %97 = tpu.matmul %94, %96, %cst_104 {dimension_numbers = #tpu.dot_dimension_numbers<[1], [0], [0], [1], [0, 0, 1, 1], [], []>} : vector<8x256xbf16>, vector<256x64xbf16>, vector<8x64xf32> -> vector<8x64xf32>
    %98 = arith.addf %92, %97 : vector<8x64xf32>
    %99 = vector.extract_strided_slice %91 {offsets = [1, 0, 0], sizes = [1, 8, 256], strides = [1, 1, 1]} : vector<5x8x256xbf16> to vector<1x8x256xbf16>
    %100 = vector.shape_cast %99 : vector<1x8x256xbf16> to vector<8x256xbf16>
    %c1_105 = arith.constant 1 : index
    %c0_106 = arith.constant 0 : index
    %c0_107 = arith.constant 0 : index
    %101 = vector.load %arg5[%c1_105, %c0_106, %c0_107] : memref<5x256x64xbf16, #tpu.memory_space<vmem>>, vector<1x256x64xbf16>
    %102 = vector.shape_cast %101 : vector<1x256x64xbf16> to vector<256x64xbf16>
    %cst_108 = arith.constant dense<0.000000e+00> : vector<8x64xf32>
    %103 = tpu.matmul %100, %102, %cst_108 {dimension_numbers = #tpu.dot_dimension_numbers<[1], [0], [0], [1], [0, 0, 1, 1], [], []>} : vector<8x256xbf16>, vector<256x64xbf16>, vector<8x64xf32> -> vector<8x64xf32>
    %104 = arith.addf %98, %103 : vector<8x64xf32>
    %105 = vector.extract_strided_slice %91 {offsets = [2, 0, 0], sizes = [1, 8, 256], strides = [1, 1, 1]} : vector<5x8x256xbf16> to vector<1x8x256xbf16>
    %106 = vector.shape_cast %105 : vector<1x8x256xbf16> to vector<8x256xbf16>
    %c2_109 = arith.constant 2 : index
    %c0_110 = arith.constant 0 : index
    %c0_111 = arith.constant 0 : index
    %107 = vector.load %arg5[%c2_109, %c0_110, %c0_111] : memref<5x256x64xbf16, #tpu.memory_space<vmem>>, vector<1x256x64xbf16>
    %108 = vector.shape_cast %107 : vector<1x256x64xbf16> to vector<256x64xbf16>
    %cst_112 = arith.constant dense<0.000000e+00> : vector<8x64xf32>
    %109 = tpu.matmul %106, %108, %cst_112 {dimension_numbers = #tpu.dot_dimension_numbers<[1], [0], [0], [1], [0, 0, 1, 1], [], []>} : vector<8x256xbf16>, vector<256x64xbf16>, vector<8x64xf32> -> vector<8x64xf32>
    %110 = arith.addf %104, %109 : vector<8x64xf32>
    %111 = vector.extract_strided_slice %91 {offsets = [3, 0, 0], sizes = [1, 8, 256], strides = [1, 1, 1]} : vector<5x8x256xbf16> to vector<1x8x256xbf16>
    %112 = vector.shape_cast %111 : vector<1x8x256xbf16> to vector<8x256xbf16>
    %c3 = arith.constant 3 : index
    %c0_113 = arith.constant 0 : index
    %c0_114 = arith.constant 0 : index
    %113 = vector.load %arg5[%c3, %c0_113, %c0_114] : memref<5x256x64xbf16, #tpu.memory_space<vmem>>, vector<1x256x64xbf16>
    %114 = vector.shape_cast %113 : vector<1x256x64xbf16> to vector<256x64xbf16>
    %cst_115 = arith.constant dense<0.000000e+00> : vector<8x64xf32>
    %115 = tpu.matmul %112, %114, %cst_115 {dimension_numbers = #tpu.dot_dimension_numbers<[1], [0], [0], [1], [0, 0, 1, 1], [], []>} : vector<8x256xbf16>, vector<256x64xbf16>, vector<8x64xf32> -> vector<8x64xf32>
    %116 = arith.addf %110, %115 : vector<8x64xf32>
    %117 = vector.extract_strided_slice %91 {offsets = [4, 0, 0], sizes = [1, 8, 256], strides = [1, 1, 1]} : vector<5x8x256xbf16> to vector<1x8x256xbf16>
    %118 = vector.shape_cast %117 : vector<1x8x256xbf16> to vector<8x256xbf16>
    %c4 = arith.constant 4 : index
    %c0_116 = arith.constant 0 : index
    %c0_117 = arith.constant 0 : index
    %119 = vector.load %arg5[%c4, %c0_116, %c0_117] : memref<5x256x64xbf16, #tpu.memory_space<vmem>>, vector<1x256x64xbf16>
    %120 = vector.shape_cast %119 : vector<1x256x64xbf16> to vector<256x64xbf16>
    %cst_118 = arith.constant dense<0.000000e+00> : vector<8x64xf32>
    %121 = tpu.matmul %118, %120, %cst_118 {dimension_numbers = #tpu.dot_dimension_numbers<[1], [0], [0], [1], [0, 0, 1, 1], [], []>} : vector<8x256xbf16>, vector<256x64xbf16>, vector<8x64xf32> -> vector<8x64xf32>
    %122 = arith.addf %116, %121 : vector<8x64xf32>
    %c0_119 = arith.constant 0 : index
    %c0_120 = arith.constant 0 : index
    %123 = vector.load %arg9[%c0_119, %c0_120] : memref<1x64xf32, #tpu.memory_space<vmem>>, vector<1x64xf32>
    %124 = vector.broadcast %123 : vector<1x64xf32> to vector<8x64xf32>
    %125 = arith.addf %122, %124 : vector<8x64xf32>
    %126 = arith.negf %125 : vector<8x64xf32>
    %127 = math.exp %126 : vector<8x64xf32>
    %cst_121 = arith.constant 1.000000e+00 : f32
    %128 = vector.broadcast %cst_121 : f32 to vector<8x64xf32>
    %129 = arith.addf %128, %127 : vector<8x64xf32>
    %130 = arith.divf %128, %129 : vector<8x64xf32>
    %cst_122 = arith.constant 2.550000e+02 : f32
    %131 = vector.broadcast %cst_122 : f32 to vector<8x64xf32>
    %132 = arith.mulf %130, %131 : vector<8x64xf32>
    %c0_123 = arith.constant 0 : index
    %c0_124 = arith.constant 0 : index
    %133 = vector.load %arg10[%c0_123, %c0_124] : memref<8x64xf32, #tpu.memory_space<vmem>>, vector<8x64xf32>
    tpu.vector_store %arg10[%c0_123, %c0_124], %132 {strides = array<i32>} : memref<8x64xf32, #tpu.memory_space<vmem>>, vector<8x64xf32>,
    return
  }
  func.func @transform_0(%arg0: i32) -> (i32, i32, i32, i32) {
    %c0_i32 = arith.constant 0 : i32
    %c0_i32_0 = arith.constant 0 : i32
    %c0_i32_1 = arith.constant 0 : i32
    %c0_i32_2 = arith.constant 0 : i32
    return %c0_i32, %c0_i32_0, %arg0, %c0_i32_1 : i32, i32, i32, i32
  }
  func.func @transform_1(%arg0: i32) -> (i32, i32, i32) {
    %c0_i32 = arith.constant 0 : i32
    %c0_i32_0 = arith.constant 0 : i32
    %c0_i32_1 = arith.constant 0 : i32
    %c0_i32_2 = arith.constant 0 : i32
    return %c0_i32, %c0_i32_0, %c0_i32_1 : i32, i32, i32
  }
  func.func @transform_2(%arg0: i32) -> (i32, i32, i32) {
    %c0_i32 = arith.constant 0 : i32
    %c0_i32_0 = arith.constant 0 : i32
    %c0_i32_1 = arith.constant 0 : i32
    %c0_i32_2 = arith.constant 0 : i32
    return %c0_i32, %c0_i32_0, %c0_i32_1 : i32, i32, i32
  }
  func.func @transform_3(%arg0: i32) -> (i32, i32, i32) {
    %c0_i32 = arith.constant 0 : i32
    %c0_i32_0 = arith.constant 0 : i32
    %c0_i32_1 = arith.constant 0 : i32
    %c0_i32_2 = arith.constant 0 : i32
    return %c0_i32, %c0_i32_0, %c0_i32_1 : i32, i32, i32
  }
  func.func @transform_4(%arg0: i32) -> (i32, i32, i32) {
    %c0_i32 = arith.constant 0 : i32
    %c0_i32_0 = arith.constant 0 : i32
    %c0_i32_1 = arith.constant 0 : i32
    %c0_i32_2 = arith.constant 0 : i32
    return %c0_i32, %c0_i32_0, %c0_i32_1 : i32, i32, i32
  }
  func.func @transform_5(%arg0: i32) -> (i32, i32) {
    %c0_i32 = arith.constant 0 : i32
    %c0_i32_0 = arith.constant 0 : i32
    %c0_i32_1 = arith.constant 0 : i32
    return %c0_i32, %c0_i32_0 : i32, i32
  }
  func.func @transform_6(%arg0: i32) -> (i32, i32) {
    %c0_i32 = arith.constant 0 : i32
    %c0_i32_0 = arith.constant 0 : i32
    %c0_i32_1 = arith.constant 0 : i32
    return %c0_i32, %c0_i32_0 : i32, i32
  }
  func.func @transform_7(%arg0: i32) -> (i32, i32) {
    %c0_i32 = arith.constant 0 : i32
    %c0_i32_0 = arith.constant 0 : i32
    %c0_i32_1 = arith.constant 0 : i32
    return %c0_i32, %c0_i32_0 : i32, i32
  }
  func.func @transform_8(%arg0: i32) -> (i32, i32) {
    %c0_i32 = arith.constant 0 : i32
    %c0_i32_0 = arith.constant 0 : i32
    %c0_i32_1 = arith.constant 0 : i32
    return %c0_i32, %c0_i32_0 : i32, i32
  }
  func.func @transform_9(%arg0: i32) -> (i32, i32) {
    %c0_i32 = arith.constant 0 : i32
    %c0_i32_0 = arith.constant 0 : i32
    return %arg0, %c0_i32 : i32, i32
  }
}

</mosaic_0001>

<llo_original>
// kernel: dots_generator_forward.1
$region0: #{dots_generator_forward.1}
  #allocation0 [shape = 'u32[]', space=smem, size = 0x4, offset = 0x4, fixed_abs, tag = 'smem constant byte address 0x4 - core index']
  #allocation1 [shape = 'u32[144,128]{1,0:T(1,128)}', space=vmem, size = 0x12000, scoped, tag = 'internal scratch']
  #allocation2 [shape = 'bf16[12,2,8,384]{3,2,1,0:T(8,128)(2,1)}', space=vmem, size = 0x24000, scoped, tag = 'scratch operand']
  #allocation3 [shape = 'bf16[7,2,8,512]{3,2,1,0:T(8,128)(2,1)}', space=vmem, size = 0x1c000, scoped, tag = 'scratch operand']
  %s0 = inlined_call_operand.vmem [shape: bf16[20,2,16,120], index: 0, kind: input, shape index: {}]
  %s1 = inlined_call_operand.vmem [shape: bf16[3,120,384], index: 1, kind: input, shape index: {}]
  %s2 = inlined_call_operand.vmem [shape: bf16[3,384,512], index: 2, kind: input, shape index: {}]
  %s3 = inlined_call_operand.vmem [shape: bf16[3,512,256], index: 3, kind: input, shape index: {}]
  %s4 = inlined_call_operand.vmem [shape: bf16[5,256,64], index: 4, kind: input, shape index: {}]
  %s5 = inlined_call_operand.vmem [shape: f32[1,384], index: 5, kind: input, shape index: {}]
  %s6 = inlined_call_operand.vmem [shape: f32[1,512], index: 6, kind: input, shape index: {}]
  %s7 = inlined_call_operand.vmem [shape: f32[1,256], index: 7, kind: input, shape index: {}]
  %s8 = inlined_call_operand.vmem [shape: f32[1,64], index: 8, kind: input, shape index: {}]
  %s9 = inlined_call_operand.vmem [shape: f32[16,64], index: 9, kind: output, shape index: {}]
  %s10 = sld [smem:[#allocation0]]
  $region110: #{dots_generator_forward.1} parent=0
    _
  %s12 = ssub.s32 1, %s10
  %s13 = scalar_select 0, %s12, %s10
  $region1: #{dots_generator_forward.1} parent=0
    #allocation4 [shape = 'u8[163840]{0}', space=vmem, size = 0x28000, scoped, tag = 'input window, operand 0']
    loop: start=0, step=1, limit=4
    $region2: #{dots_generator_forward.1} parent=1 // loop_pre_header
      _
    $region3: #{dots_generator_forward.1} parent=1 // loop_header
      %s15 = sphi 0, %s19
      %p16 = scmp.ge.s32.totalorder %s15, 4
      %s25 = sphi 0, %s27
      %s28 = sphi 0, %s25
      %s29 = sphi 0, %s28
      %s45 = sphi 0, %s29
      %s49 = sphi 0, %s49
      %s51 = sphi 0, %s49
      %s52 = sphi 0, %s51
      %s66 = sphi 0, %s52
      %s70 = sphi 0, %s70
      %s72 = sphi 0, %s70
      %s73 = sphi 0, %s72
      %s87 = sphi 0, %s73
      %s91 = sphi 0, %s91
      %s93 = sphi 0, %s91
      %s94 = sphi 0, %s93
      %s108 = sphi 0, %s94
      %s112 = sphi 0, %s112
      %s114 = sphi 0, %s112
      %s115 = sphi 0, %s114
      %s129 = sphi 0, %s115
      %s133 = sphi 0, %s133
      %s135 = sphi 0, %s133
      %s136 = sphi 0, %s135
      %s150 = sphi 0, %s136
      %s154 = sphi 0, %s154
      %s156 = sphi 0, %s154
      %s157 = sphi 0, %s156
      %s171 = sphi 0, %s157
      %s175 = sphi 0, %s175
      %s177 = sphi 0, %s175
      %s178 = sphi 0, %s177
      %s192 = sphi 0, %s178
      %s196 = sphi 0, %s196
      %s198 = sphi 0, %s196
      %s199 = sphi 0, %s198
      %s213 = sphi 0, %s199
      %s219 = sphi 0, %s221
      %s222 = sphi 0, %s219
      %s223 = sphi 0, %s222
      %s239 = sphi 0, %s223
    $region4: #{dots_generator_forward.1} parent=1 // loop_header_branch
      %18 = sbr.rel (%p16) target = $region8
    $region5: #{dots_generator_forward.1} parent=1 // loop_body
      %s20 = ssub.s32 %s15, 1
      %s21 = ssub.s32 %s15, 2
      %s22 = sadd.s32 %s15, 1
      %s23 = ssub.s32 %s15, %s22
      %p24 = scmp.eq.s32.totalorder %s23, 0
      %s26 = sadd.s32 %s25, 1
      %s27 = scalar_select %p24, %s25, %s26
      %p30 = pneg %p24
      %p31 = scmp.eq.s32.totalorder %s15, 1
      %p32 = por %p30, %p31
      %p33 = scmp.ne.s32.totalorder %s25, %s28
      %p34 = scmp.eq.s32.totalorder %s15, 0
      %p35 = por %p33, %p34
      %p36 = scmp.ne.s32.totalorder %s25, %s28
      %p37 = scmp.eq.s32.totalorder %s20, 1
      %p38 = por %p36, %p37
      %p39 = scmp.ne.s32.totalorder %s28, %s29
      %p40 = scmp.eq.s32.totalorder %s20, 0
      %p41 = por %p39, %p40
      %p42 = scmp.ne.s32.totalorder %s28, %s29
      %p43 = scmp.eq.s32.totalorder %s21, 1
      %p44 = por %p42, %p43
      %p46 = scmp.ne.s32.totalorder %s29, %s45
      %p47 = scmp.eq.s32.totalorder %s21, 0
      %p48 = por %p46, %p47
      %s50 = sadd.s32 %s49, 1
      %p53 = scmp.eq.s32.totalorder %s15, 1
      %p54 = scmp.ne.s32.totalorder %s49, %s51
      %p55 = scmp.eq.s32.totalorder %s15, 0
      %p56 = por %p54, %p55
      %p57 = scmp.ne.s32.totalorder %s49, %s51
      %p58 = scmp.eq.s32.totalorder %s20, 1
      %p59 = por %p57, %p58
      %p60 = scmp.ne.s32.totalorder %s51, %s52
      %p61 = scmp.eq.s32.totalorder %s20, 0
      %p62 = por %p60, %p61
      %p63 = scmp.ne.s32.totalorder %s51, %s52
      %p64 = scmp.eq.s32.totalorder %s21, 1
      %p65 = por %p63, %p64
      %p67 = scmp.ne.s32.totalorder %s52, %s66
      %p68 = scmp.eq.s32.totalorder %s21, 0
      %p69 = por %p67, %p68
      %s71 = sadd.s32 %s70, 1
      %p74 = scmp.eq.s32.totalorder %s15, 1
      %p75 = scmp.ne.s32.totalorder %s70, %s72
      %p76 = scmp.eq.s32.totalorder %s15, 0
      %p77 = por %p75, %p76
      %p78 = scmp.ne.s32.totalorder %s70, %s72
      %p79 = scmp.eq.s32.totalorder %s20, 1
      %p80 = por %p78, %p79
      %p81 = scmp.ne.s32.totalorder %s72, %s73
      %p82 = scmp.eq.s32.totalorder %s20, 0
      %p83 = por %p81, %p82
      %p84 = scmp.ne.s32.totalorder %s72, %s73
      %p85 = scmp.eq.s32.totalorder %s21, 1
      %p86 = por %p84, %p85
      %p88 = scmp.ne.s32.totalorder %s73, %s87
      %p89 = scmp.eq.s32.totalorder %s21, 0
      %p90 = por %p88, %p89
      %s92 = sadd.s32 %s91, 1
      %p95 = scmp.eq.s32.totalorder %s15, 1
      %p96 = scmp.ne.s32.totalorder %s91, %s93
      %p97 = scmp.eq.s32.totalorder %s15, 0
      %p98 = por %p96, %p97
      %p99 = scmp.ne.s32.totalorder %s91, %s93
      %p100 = scmp.eq.s32.totalorder %s20, 1
      %p101 = por %p99, %p100
      %p102 = scmp.ne.s32.totalorder %s93, %s94
      %p103 = scmp.eq.s32.totalorder %s20, 0
      %p104 = por %p102, %p103
      %p105 = scmp.ne.s32.totalorder %s93, %s94
      %p106 = scmp.eq.s32.totalorder %s21, 1
      %p107 = por %p105, %p106
      %p109 = scmp.ne.s32.totalorder %s94, %s108
      %p110 = scmp.eq.s32.totalorder %s21, 0
      %p111 = por %p109, %p110
      %s113 = sadd.s32 %s112, 1
      %p116 = scmp.eq.s32.totalorder %s15, 1
      %p117 = scmp.ne.s32.totalorder %s112, %s114
      %p118 = scmp.eq.s32.totalorder %s15, 0
      %p119 = por %p117, %p118
      %p120 = scmp.ne.s32.totalorder %s112, %s114
      %p121 = scmp.eq.s32.totalorder %s20, 1
      %p122 = por %p120, %p121
      %p123 = scmp.ne.s32.totalorder %s114, %s115
      %p124 = scmp.eq.s32.totalorder %s20, 0
      %p125 = por %p123, %p124
      %p126 = scmp.ne.s32.totalorder %s114, %s115
      %p127 = scmp.eq.s32.totalorder %s21, 1
      %p128 = por %p126, %p127
      %p130 = scmp.ne.s32.totalorder %s115, %s129
      %p131 = scmp.eq.s32.totalorder %s21, 0
      %p132 = por %p130, %p131
      %s134 = sadd.s32 %s133, 1
      %p137 = scmp.eq.s32.totalorder %s15, 1
      %p138 = scmp.ne.s32.totalorder %s133, %s135
      %p139 = scmp.eq.s32.totalorder %s15, 0
      %p140 = por %p138, %p139
      %p141 = scmp.ne.s32.totalorder %s133, %s135
      %p142 = scmp.eq.s32.totalorder %s20, 1
      %p143 = por %p141, %p142
      %p144 = scmp.ne.s32.totalorder %s135, %s136
      %p145 = scmp.eq.s32.totalorder %s20, 0
      %p146 = por %p144, %p145
      %p147 = scmp.ne.s32.totalorder %s135, %s136
      %p148 = scmp.eq.s32.totalorder %s21, 1
      %p149 = por %p147, %p148
      %p151 = scmp.ne.s32.totalorder %s136, %s150
      %p152 = scmp.eq.s32.totalorder %s21, 0
      %p153 = por %p151, %p152
      %s155 = sadd.s32 %s154, 1
      %p158 = scmp.eq.s32.totalorder %s15, 1
      %p159 = scmp.ne.s32.totalorder %s154, %s156
      %p160 = scmp.eq.s32.totalorder %s15, 0
      %p161 = por %p159, %p160
      %p162 = scmp.ne.s32.totalorder %s154, %s156
      %p163 = scmp.eq.s32.totalorder %s20, 1
      %p164 = por %p162, %p163
      %p165 = scmp.ne.s32.totalorder %s156, %s157
      %p166 = scmp.eq.s32.totalorder %s20, 0
      %p167 = por %p165, %p166
      %p168 = scmp.ne.s32.totalorder %s156, %s157
      %p169 = scmp.eq.s32.totalorder %s21, 1
      %p170 = por %p168, %p169
      %p172 = scmp.ne.s32.totalorder %s157, %s171
      %p173 = scmp.eq.s32.totalorder %s21, 0
      %p174 = por %p172, %p173
      %s176 = sadd.s32 %s175, 1
      %p179 = scmp.eq.s32.totalorder %s15, 1
      %p180 = scmp.ne.s32.totalorder %s175, %s177
      %p181 = scmp.eq.s32.totalorder %s15, 0
      %p182 = por %p180, %p181
      %p183 = scmp.ne.s32.totalorder %s175, %s177
      %p184 = scmp.eq.s32.totalorder %s20, 1
      %p185 = por %p183, %p184
      %p186 = scmp.ne.s32.totalorder %s177, %s178
      %p187 = scmp.eq.s32.totalorder %s20, 0
      %p188 = por %p186, %p187
      %p189 = scmp.ne.s32.totalorder %s177, %s178
      %p190 = scmp.eq.s32.totalorder %s21, 1
      %p191 = por %p189, %p190
      %p193 = scmp.ne.s32.totalorder %s178, %s192
      %p194 = scmp.eq.s32.totalorder %s21, 0
      %p195 = por %p193, %p194
      %s197 = sadd.s32 %s196, 1
      %p200 = scmp.eq.s32.totalorder %s15, 1
      %p201 = scmp.ne.s32.totalorder %s196, %s198
      %p202 = scmp.eq.s32.totalorder %s15, 0
      %p203 = por %p201, %p202
      %p204 = scmp.ne.s32.totalorder %s196, %s198
      %p205 = scmp.eq.s32.totalorder %s20, 1
      %p206 = por %p204, %p205
      %p207 = scmp.ne.s32.totalorder %s198, %s199
      %p208 = scmp.eq.s32.totalorder %s20, 0
      %p209 = por %p207, %p208
      %p210 = scmp.ne.s32.totalorder %s198, %s199
      %p211 = scmp.eq.s32.totalorder %s21, 1
      %p212 = por %p210, %p211
      %p214 = scmp.ne.s32.totalorder %s199, %s213
      %p215 = scmp.eq.s32.totalorder %s21, 0
      %p216 = por %p214, %p215
      %s217 = ssub.s32 %s15, %s22
      %p218 = scmp.eq.s32.totalorder %s217, 0
      %s220 = sadd.s32 %s219, 1
      %s221 = scalar_select %p218, %s219, %s220
      %p224 = pneg %p218
      %p225 = scmp.eq.s32.totalorder %s15, 1
      %p226 = por %p224, %p225
      %p227 = scmp.ne.s32.totalorder %s219, %s222
      %p228 = scmp.eq.s32.totalorder %s15, 0
      %p229 = por %p227, %p228
      %p230 = scmp.ne.s32.totalorder %s219, %s222
      %p231 = scmp.eq.s32.totalorder %s20, 1
      %p232 = por %p230, %p231
      %p233 = scmp.ne.s32.totalorder %s222, %s223
      %p234 = scmp.eq.s32.totalorder %s20, 0
      %p235 = por %p233, %p234
      %p236 = scmp.ne.s32.totalorder %s222, %s223
      %p237 = scmp.eq.s32.totalorder %s21, 1
      %p238 = por %p236, %p237
      %p240 = scmp.ne.s32.totalorder %s223, %s239
      %p241 = scmp.eq.s32.totalorder %s21, 0
      %p242 = por %p240, %p241
      %p243 = scmp.le.s32.totalorder 1, %s15
      %p244 = scmp.lt.s32.totalorder %s15, 3
      %p245 = pnand %p243, %p244
      %p246 = pneg %p245
      // Predicated region
      $region9: #{dots_generator_forward.1} parent=5 // pred_check
        _
      $region10: #{dots_generator_forward.1} parent=5 // pred_check_branch
        %248 = sbr.rel (%p245) target = $region12
      $region11: #{dots_generator_forward.1} parent=5 // pred_region
        %s249 = ssub.s32 %s15, 1
        // Predicated region
        $region13: #{dots_generator_forward.1} parent=11 // pred_check
          %p250 = pneg %p62
        $region14: #{dots_generator_forward.1} parent=11 // pred_check_branch
          %252 = sbr.rel (%p250) target = $region16
        $region15: #{dots_generator_forward.1} parent=11 // pred_region
          _
        $region16: #{dots_generator_forward.1} parent=11 // pred_fallthru
          _
        // Predicated region
        $region17: #{dots_generator_forward.1} parent=11 // pred_check
          %p253 = pneg %p83
        $region18: #{dots_generator_forward.1} parent=11 // pred_check_branch
          %255 = sbr.rel (%p253) target = $region20
        $region19: #{dots_generator_forward.1} parent=11 // pred_region
          _
        $region20: #{dots_generator_forward.1} parent=11 // pred_fallthru
          _
        // Predicated region
        $region21: #{dots_generator_forward.1} parent=11 // pred_check
          %p256 = pneg %p104
        $region22: #{dots_generator_forward.1} parent=11 // pred_check_branch
          %258 = sbr.rel (%p256) target = $region24
        $region23: #{dots_generator_forward.1} parent=11 // pred_region
          _
        $region24: #{dots_generator_forward.1} parent=11 // pred_fallthru
          _
        // Predicated region
        $region25: #{dots_generator_forward.1} parent=11 // pred_check
          %p259 = pneg %p125
        $region26: #{dots_generator_forward.1} parent=11 // pred_check_branch
          %261 = sbr.rel (%p259) target = $region28
        $region27: #{dots_generator_forward.1} parent=11 // pred_region
          _
        $region28: #{dots_generator_forward.1} parent=11 // pred_fallthru
          _
        // Predicated region
        $region29: #{dots_generator_forward.1} parent=11 // pred_check
          %p262 = pneg %p146
        $region30: #{dots_generator_forward.1} parent=11 // pred_check_branch
          %264 = sbr.rel (%p262) target = $region32
        $region31: #{dots_generator_forward.1} parent=11 // pred_region
          _
        $region32: #{dots_generator_forward.1} parent=11 // pred_fallthru
          _
        // Predicated region
        $region33: #{dots_generator_forward.1} parent=11 // pred_check
          %p265 = pneg %p167
        $region34: #{dots_generator_forward.1} parent=11 // pred_check_branch
          %267 = sbr.rel (%p265) target = $region36
        $region35: #{dots_generator_forward.1} parent=11 // pred_region
          _
        $region36: #{dots_generator_forward.1} parent=11 // pred_fallthru
          _
        // Predicated region
        $region37: #{dots_generator_forward.1} parent=11 // pred_check
          %p268 = pneg %p188
        $region38: #{dots_generator_forward.1} parent=11 // pred_check_branch
          %270 = sbr.rel (%p268) target = $region40
        $region39: #{dots_generator_forward.1} parent=11 // pred_region
          _
        $region40: #{dots_generator_forward.1} parent=11 // pred_fallthru
          _
        // Predicated region
        $region41: #{dots_generator_forward.1} parent=11 // pred_check
          %p271 = pneg %p209
        $region42: #{dots_generator_forward.1} parent=11 // pred_check_branch
          %273 = sbr.rel (%p271) target = $region44
        $region43: #{dots_generator_forward.1} parent=11 // pred_region
          _
        $region44: #{dots_generator_forward.1} parent=11 // pred_fallthru
          _
      $region12: #{dots_generator_forward.1} parent=5 // pred_fallthru
        _
      %p274 = scmp.lt.s32.totalorder %s15, 2
      // Predicated region
      $region45: #{dots_generator_forward.1} parent=5 // pred_check
        %p275 = pneg %p274
      $region46: #{dots_generator_forward.1} parent=5 // pred_check_branch
        %277 = sbr.rel (%p275) target = $region48
      $region47: #{dots_generator_forward.1} parent=5 // pred_region
        // Predicated region
        $region49: #{dots_generator_forward.1} parent=47 // pred_check
          %p278 = pneg %p35
        $region50: #{dots_generator_forward.1} parent=47 // pred_check_branch
          %280 = sbr.rel (%p278) target = $region52
        $region51: #{dots_generator_forward.1} parent=47 // pred_region
          %s281 = sand.u32 %s25, 1
          %s282 = sand.u32 %s25, 1
          %s283 = smul.addr %s282, 160
          %s284 = scalar_lea.vmem [#allocation4], %s283
          %s285 = smul.addr %s15, 4
          %s286 = scalar_lea.vmem %s0, %s285
          // Predicated region
          $region53: #{dots_generator_forward.1} parent=51 // pred_check
            _
          $region54: #{dots_generator_forward.1} parent=51 // pred_check_branch
            %288 = sbr.rel (0) target = $region56
          $region55: #{dots_generator_forward.1} parent=51 // pred_region
            // Predicated region
            $region57: #{dots_generator_forward.1} parent=55 // pred_check
              _
            $region58: #{dots_generator_forward.1} parent=55 // pred_check_branch
              %290 = sbr.rel target = $region60
            $region59: #{dots_generator_forward.1} parent=55 // pred_region
              // Predicated region
              $region72: #{dots_generator_forward.1} parent=59 // pred_check
                _
              $region73: #{dots_generator_forward.1} parent=59 // pred_check_branch
                %384 = sbr.rel (0) target = $region75
              $region74: #{dots_generator_forward.1} parent=59 // pred_region
                loop: start=0, step=1, limit=1
                $region76: #{dots_generator_forward.1} parent=74 // loop_pre_header
                  _
                $region77: #{dots_generator_forward.1} parent=74 // loop_header
                  %s386 = sphi 0, %s390
                  %p387 = scmp.ge.s32.totalorder %s386, 1
                  %s391 = sphi %s286, %s286
                  %s392 = sphi %s284, %s284
                $region78: #{dots_generator_forward.1} parent=74 // loop_header_branch
                  %389 = sbr.rel (%p387) target = $region82
                $region79: #{dots_generator_forward.1} parent=74 // loop_body
                  _
                $region80: #{dots_generator_forward.1} parent=74 // loop_footer
                  %s390 = sadd.s32 1, %s386
                $region81: #{dots_generator_forward.1} parent=74 // loop_footer_branch
                  %385 = sbr.rel target = $region77
                $region82: #{dots_generator_forward.1} parent=74 // loop_exit
                  _
                %s394 = ssub.s32 16, 1
                loop: start=0, step=1, limit=1
                $region83: #{dots_generator_forward.1} parent=74 // loop_pre_header
                  _
                $region84: #{dots_generator_forward.1} parent=74 // loop_header
                  %s396 = sphi 0, %s400
                  %p397 = scmp.ge.s32.totalorder %s396, 1
                  %s401 = sphi %s286, %s286
                  %s402 = sphi %s284, %s284
                $region85: #{dots_generator_forward.1} parent=74 // loop_header_branch
                  %399 = sbr.rel (%p397) target = $region89
                $region86: #{dots_generator_forward.1} parent=74 // loop_body
                  %v403 = vld [vmem:[%s401] sm:%s394]
                  %404 = vst [vmem:[%s402] sm:%s394] %v403
                  %v405 = vld [vmem:[%s401 + $0x8] sm:%s394]
                  %406 = vst [vmem:[%s402 + $0x4] sm:%s394] %v405
                  %v407 = vld [vmem:[%s401 + $0x10] sm:%s394]
                  %408 = vst [vmem:[%s402 + $0x8] sm:%s394] %v407
                  %v409 = vld [vmem:[%s401 + $0x18] sm:%s394]
                  %410 = vst [vmem:[%s402 + $0xc] sm:%s394] %v409
                  %v411 = vld [vmem:[%s401 + $0x20] sm:%s394]
                  %412 = vst [vmem:[%s402 + $0x10] sm:%s394] %v411
                  %v413 = vld [vmem:[%s401 + $0x28] sm:%s394]
                  %414 = vst [vmem:[%s402 + $0x14] sm:%s394] %v413
                  %v415 = vld [vmem:[%s401 + $0x30] sm:%s394]
                  %416 = vst [vmem:[%s402 + $0x18] sm:%s394] %v415
                  %v417 = vld [vmem:[%s401 + $0x38] sm:%s394]
                  %418 = vst [vmem:[%s402 + $0x1c] sm:%s394] %v417
                  %v419 = vld [vmem:[%s401 + $0x40] sm:%s394]
                  %420 = vst [vmem:[%s402 + $0x20] sm:%s394] %v419
                  %v421 = vld [vmem:[%s401 + $0x48] sm:%s394]
                  %422 = vst [vmem:[%s402 + $0x24] sm:%s394] %v421
                  %v423 = vld [vmem:[%s401 + $0x50] sm:%s394]
                  %424 = vst [vmem:[%s402 + $0x28] sm:%s394] %v423
                  %v425 = vld [vmem:[%s401 + $0x58] sm:%s394]
                  %426 = vst [vmem:[%s402 + $0x2c] sm:%s394] %v425
                  %v427 = vld [vmem:[%s401 + $0x60] sm:%s394]
                  %428 = vst [vmem:[%s402 + $0x30] sm:%s394] %v427
                  %v429 = vld [vmem:[%s401 + $0x68] sm:%s394]
                  %430 = vst [vmem:[%s402 + $0x34] sm:%s394] %v429
                  %v431 = vld [vmem:[%s401 + $0x70] sm:%s394]
                  %432 = vst [vmem:[%s402 + $0x38] sm:%s394] %v431
                  %v433 = vld [vmem:[%s401 + $0x78] sm:%s394]
                  %434 = vst [vmem:[%s402 + $0x3c] sm:%s394] %v433
                  %v435 = vld [vmem:[%s401 + $0x80] sm:%s394]
                  %436 = vst [vmem:[%s402 + $0x40] sm:%s394] %v435
                  %v437 = vld [vmem:[%s401 + $0x88] sm:%s394]
                  %438 = vst [vmem:[%s402 + $0x44] sm:%s394] %v437
                  %v439 = vld [vmem:[%s401 + $0x90] sm:%s394]
                  %440 = vst [vmem:[%s402 + $0x48] sm:%s394] %v439
                  %v441 = vld [vmem:[%s401 + $0x98] sm:%s394]
                  %442 = vst [vmem:[%s402 + $0x4c] sm:%s394] %v441
                  %v443 = vld [vmem:[%s401 + $0xa0] sm:%s394]
                  %444 = vst [vmem:[%s402 + $0x50] sm:%s394] %v443
                  %v445 = vld [vmem:[%s401 + $0xa8] sm:%s394]
                  %446 = vst [vmem:[%s402 + $0x54] sm:%s394] %v445
                  %v447 = vld [vmem:[%s401 + $0xb0] sm:%s394]
                  %448 = vst [vmem:[%s402 + $0x58] sm:%s394] %v447
                  %v449 = vld [vmem:[%s401 + $0xb8] sm:%s394]
                  %450 = vst [vmem:[%s402 + $0x5c] sm:%s394] %v449
                  %v451 = vld [vmem:[%s401 + $0xc0] sm:%s394]
                  %452 = vst [vmem:[%s402 + $0x60] sm:%s394] %v451
                  %v453 = vld [vmem:[%s401 + $0xc8] sm:%s394]
                  %454 = vst [vmem:[%s402 + $0x64] sm:%s394] %v453
                  %v455 = vld [vmem:[%s401 + $0xd0] sm:%s394]
                  %456 = vst [vmem:[%s402 + $0x68] sm:%s394] %v455
                  %v457 = vld [vmem:[%s401 + $0xd8] sm:%s394]
                  %458 = vst [vmem:[%s402 + $0x6c] sm:%s394] %v457
                  %v459 = vld [vmem:[%s401 + $0xe0] sm:%s394]
                  %460 = vst [vmem:[%s402 + $0x70] sm:%s394] %v459
                  %v461 = vld [vmem:[%s401 + $0xe8] sm:%s394]
                  %462 = vst [vmem:[%s402 + $0x74] sm:%s394] %v461
                  %v463 = vld [vmem:[%s401 + $0xf0] sm:%s394]
                  %464 = vst [vmem:[%s402 + $0x78] sm:%s394] %v463
                  %v465 = vld [vmem:[%s401 + $0xf8] sm:%s394]
                  %466 = vst [vmem:[%s402 + $0x7c] sm:%s394] %v465
                  %v467 = vld [vmem:[%s401 + $0x100] sm:%s394]
                  %468 = vst [vmem:[%s402 + $0x80] sm:%s394] %v467
                  %v469 = vld [vmem:[%s401 + $0x108] sm:%s394]
                  %470 = vst [vmem:[%s402 + $0x84] sm:%s394] %v469
                  %v471 = vld [vmem:[%s401 + $0x110] sm:%s394]
                  %472 = vst [vmem:[%s402 + $0x88] sm:%s394] %v471
                  %v473 = vld [vmem:[%s401 + $0x118] sm:%s394]
                  %474 = vst [vmem:[%s402 + $0x8c] sm:%s394] %v473
                  %v475 = vld [vmem:[%s401 + $0x120] sm:%s394]
                  %476 = vst [vmem:[%s402 + $0x90] sm:%s394] %v475
                  %v477 = vld [vmem:[%s401 + $0x128] sm:%s394]
                  %478 = vst [vmem:[%s402 + $0x94] sm:%s394] %v477
                  %v479 = vld [vmem:[%s401 + $0x130] sm:%s394]
                  %480 = vst [vmem:[%s402 + $0x98] sm:%s394] %v479
                  %v481 = vld [vmem:[%s401 + $0x138] sm:%s394]
                  %482 = vst [vmem:[%s402 + $0x9c] sm:%s394] %v481
                $region87: #{dots_generator_forward.1} parent=74 // loop_footer
                  %s400 = sadd.s32 1, %s396
                $region88: #{dots_generator_forward.1} parent=74 // loop_footer_branch
                  %395 = sbr.rel target = $region84
                $region89: #{dots_generator_forward.1} parent=74 // loop_exit
                  _
              $region75: #{dots_generator_forward.1} parent=59 // pred_fallthru
                _
            $region60: #{dots_generator_forward.1} parent=55 // pred_fallthru
              _
            // Predicated region
            $region61: #{dots_generator_forward.1} parent=55 // pred_check
              _
            $region62: #{dots_generator_forward.1} parent=55 // pred_check_branch
              %292 = sbr.rel (0) target = $region64
            $region63: #{dots_generator_forward.1} parent=55 // pred_region
              %s294 = ssub.s32 16, 1
              loop: start=0, step=1, limit=1
              $region65: #{dots_generator_forward.1} parent=63 // loop_pre_header
                _
              $region66: #{dots_generator_forward.1} parent=63 // loop_header
                %s296 = sphi 0, %s300
                %p297 = scmp.ge.s32.totalorder %s296, 1
                %s301 = sphi %s286, %s286
                %s302 = sphi %s284, %s284
              $region67: #{dots_generator_forward.1} parent=63 // loop_header_branch
                %299 = sbr.rel (%p297) target = $region71
              $region68: #{dots_generator_forward.1} parent=63 // loop_body
                %v303 = vld [vmem:[%s301] sm:%s294]
                %304 = vst [vmem:[%s302] sm:%s294] %v303
                %v305 = vld [vmem:[%s301 + $0x8] sm:%s294]
                %306 = vst [vmem:[%s302 + $0x4] sm:%s294] %v305
                %v307 = vld [vmem:[%s301 + $0x10] sm:%s294]
                %308 = vst [vmem:[%s302 + $0x8] sm:%s294] %v307
                %v309 = vld [vmem:[%s301 + $0x18] sm:%s294]
                %310 = vst [vmem:[%s302 + $0xc] sm:%s294] %v309
                %v311 = vld [vmem:[%s301 + $0x20] sm:%s294]
                %312 = vst [vmem:[%s302 + $0x10] sm:%s294] %v311
                %v313 = vld [vmem:[%s301 + $0x28] sm:%s294]
                %314 = vst [vmem:[%s302 + $0x14] sm:%s294] %v313
                %v315 = vld [vmem:[%s301 + $0x30] sm:%s294]
                %316 = vst [vmem:[%s302 + $0x18] sm:%s294] %v315
                %v317 = vld [vmem:[%s301 + $0x38] sm:%s294]
                %318 = vst [vmem:[%s302 + $0x1c] sm:%s294] %v317
                %v319 = vld [vmem:[%s301 + $0x40] sm:%s294]
                %320 = vst [vmem:[%s302 + $0x20] sm:%s294] %v319
                %v321 = vld [vmem:[%s301 + $0x48] sm:%s294]
                %322 = vst [vmem:[%s302 + $0x24] sm:%s294] %v321
                %v323 = vld [vmem:[%s301 + $0x50] sm:%s294]
                %324 = vst [vmem:[%s302 + $0x28] sm:%s294] %v323
                %v325 = vld [vmem:[%s301 + $0x58] sm:%s294]
                %326 = vst [vmem:[%s302 + $0x2c] sm:%s294] %v325
                %v327 = vld [vmem:[%s301 + $0x60] sm:%s294]
                %328 = vst [vmem:[%s302 + $0x30] sm:%s294] %v327
                %v329 = vld [vmem:[%s301 + $0x68] sm:%s294]
                %330 = vst [vmem:[%s302 + $0x34] sm:%s294] %v329
                %v331 = vld [vmem:[%s301 + $0x70] sm:%s294]
                %332 = vst [vmem:[%s302 + $0x38] sm:%s294] %v331
                %v333 = vld [vmem:[%s301 + $0x78] sm:%s294]
                %334 = vst [vmem:[%s302 + $0x3c] sm:%s294] %v333
                %v335 = vld [vmem:[%s301 + $0x80] sm:%s294]
                %336 = vst [vmem:[%s302 + $0x40] sm:%s294] %v335
                %v337 = vld [vmem:[%s301 + $0x88] sm:%s294]
                %338 = vst [vmem:[%s302 + $0x44] sm:%s294] %v337
                %v339 = vld [vmem:[%s301 + $0x90] sm:%s294]
                %340 = vst [vmem:[%s302 + $0x48] sm:%s294] %v339
                %v341 = vld [vmem:[%s301 + $0x98] sm:%s294]
                %342 = vst [vmem:[%s302 + $0x4c] sm:%s294] %v341
                %v343 = vld [vmem:[%s301 + $0xa0] sm:%s294]
                %344 = vst [vmem:[%s302 + $0x50] sm:%s294] %v343
                %v345 = vld [vmem:[%s301 + $0xa8] sm:%s294]
                %346 = vst [vmem:[%s302 + $0x54] sm:%s294] %v345
                %v347 = vld [vmem:[%s301 + $0xb0] sm:%s294]
                %348 = vst [vmem:[%s302 + $0x58] sm:%s294] %v347
                %v349 = vld [vmem:[%s301 + $0xb8] sm:%s294]
                %350 = vst [vmem:[%s302 + $0x5c] sm:%s294] %v349
                %v351 = vld [vmem:[%s301 + $0xc0] sm:%s294]
                %352 = vst [vmem:[%s302 + $0x60] sm:%s294] %v351
                %v353 = vld [vmem:[%s301 + $0xc8] sm:%s294]
                %354 = vst [vmem:[%s302 + $0x64] sm:%s294] %v353
                %v355 = vld [vmem:[%s301 + $0xd0] sm:%s294]
                %356 = vst [vmem:[%s302 + $0x68] sm:%s294] %v355
                %v357 = vld [vmem:[%s301 + $0xd8] sm:%s294]
                %358 = vst [vmem:[%s302 + $0x6c] sm:%s294] %v357
                %v359 = vld [vmem:[%s301 + $0xe0] sm:%s294]
                %360 = vst [vmem:[%s302 + $0x70] sm:%s294] %v359
                %v361 = vld [vmem:[%s301 + $0xe8] sm:%s294]
                %362 = vst [vmem:[%s302 + $0x74] sm:%s294] %v361
                %v363 = vld [vmem:[%s301 + $0xf0] sm:%s294]
                %364 = vst [vmem:[%s302 + $0x78] sm:%s294] %v363
                %v365 = vld [vmem:[%s301 + $0xf8] sm:%s294]
                %366 = vst [vmem:[%s302 + $0x7c] sm:%s294] %v365
                %v367 = vld [vmem:[%s301 + $0x100] sm:%s294]
                %368 = vst [vmem:[%s302 + $0x80] sm:%s294] %v367
                %v369 = vld [vmem:[%s301 + $0x108] sm:%s294]
                %370 = vst [vmem:[%s302 + $0x84] sm:%s294] %v369
                %v371 = vld [vmem:[%s301 + $0x110] sm:%s294]
                %372 = vst [vmem:[%s302 + $0x88] sm:%s294] %v371
                %v373 = vld [vmem:[%s301 + $0x118] sm:%s294]
                %374 = vst [vmem:[%s302 + $0x8c] sm:%s294] %v373
                %v375 = vld [vmem:[%s301 + $0x120] sm:%s294]
                %376 = vst [vmem:[%s302 + $0x90] sm:%s294] %v375
                %v377 = vld [vmem:[%s301 + $0x128] sm:%s294]
                %378 = vst [vmem:[%s302 + $0x94] sm:%s294] %v377
                %v379 = vld [vmem:[%s301 + $0x130] sm:%s294]
                %380 = vst [vmem:[%s302 + $0x98] sm:%s294] %v379
                %v381 = vld [vmem:[%s301 + $0x138] sm:%s294]
                %382 = vst [vmem:[%s302 + $0x9c] sm:%s294] %v381
              $region69: #{dots_generator_forward.1} parent=63 // loop_footer
                %s300 = sadd.s32 1, %s296
              $region70: #{dots_generator_forward.1} parent=63 // loop_footer_branch
                %295 = sbr.rel target = $region66
              $region71: #{dots_generator_forward.1} parent=63 // loop_exit
                _
            $region64: #{dots_generator_forward.1} parent=55 // pred_fallthru
              _
          $region56: #{dots_generator_forward.1} parent=51 // pred_fallthru
            _
          %483 = vnop
        $region52: #{dots_generator_forward.1} parent=47 // pred_fallthru
          _
      $region48: #{dots_generator_forward.1} parent=5 // pred_fallthru
        _
      %p484 = scmp.le.s32.totalorder 1, %s15
      %p485 = scmp.lt.s32.totalorder %s15, 3
      %p486 = pnand %p484, %p485
      %p487 = pneg %p486
      // Predicated region
      $region90: #{dots_generator_forward.1} parent=5 // pred_check
        _
      $region91: #{dots_generator_forward.1} parent=5 // pred_check_branch
        %489 = sbr.rel (%p486) target = $region93
      $region92: #{dots_generator_forward.1} parent=5 // pred_region
        %s490 = ssub.s32 %s15, 1
        %s491 = sand.u32 %s28, 1
        %s492 = sand.u32 %s28, 1
        %s493 = smul.addr %s492, 160
        %s494 = scalar_lea.vmem [#allocation4], %s493
        // Predicated region
        $region94: #{dots_generator_forward.1} parent=92 // pred_check
          %p495 = pneg %p41
        $region95: #{dots_generator_forward.1} parent=92 // pred_check_branch
          %497 = sbr.rel (%p495) target = $region97
        $region96: #{dots_generator_forward.1} parent=92 // pred_region
          _
        $region97: #{dots_generator_forward.1} parent=92 // pred_fallthru
          _
        %s498 = sand.u32 %s28, 1
        %s499 = sand.u32 %s28, 1
        %s500 = smul.addr %s499, 160
        %s501 = scalar_lea.vmem [#allocation4], %s500
        %p502 = pneg %p41
        %p503 = pneg %p38
        %p504 = pneg %p62
        %p505 = pneg %p59
        %p506 = pneg %p83
        %p507 = pneg %p80
        %p508 = pneg %p104
        %p509 = pneg %p101
        %p510 = pneg %p125
        %p511 = pneg %p122
        %p512 = pneg %p146
        %p513 = pneg %p143
        %p514 = pneg %p167
        %p515 = pneg %p164
        %p516 = pneg %p188
        %p517 = pneg %p185
        %p518 = pneg %p209
        %p519 = pneg %p206
        %p520 = pneg %p235
        %p521 = pneg %p232
        %p522 = scmp.lt.s32.totalorder %s20, 1
        %s523 = scalar_select %p522, %s20, 1
        %s524 = smul.addr %s523, 8
        %s525 = scalar_lea.vmem %s9, %s524
        %p526 = scmp.lt.s32.totalorder %s20, 1
        %s527 = scalar_select %p526, %s20, 1
        %s528 = smul.addr %s527, 8
        %s529 = scalar_lea.vmem %s9, %s528
        %531 = vst [vmem:[#allocation2] sm:$0xff] 0
        %532 = vst [vmem:[#allocation2 + $0x8] sm:$0xf] 0
        %533 = vst [vmem:[#allocation2 + $0xc] sm:$0xff] 0
        %534 = vst [vmem:[#allocation2 + $0x14] sm:$0xf] 0
        %s535 = scalar_lea.vmem [#allocation2], 264
        %536 = vst [vmem:[%s535] sm:$0xff] 0
        %537 = vst [vmem:[%s535 + $0x8] sm:$0xf] 0
        %538 = vst [vmem:[%s535 + $0xc] sm:$0xff] 0
        %539 = vst [vmem:[%s535 + $0x14] sm:$0xf] 0
        %540 = vst [vmem:[#allocation3] sm:$0xff] 0
        %541 = vst [vmem:[#allocation3 + $0x8] sm:$0xff] 0
        %542 = vst [vmem:[#allocation3 + $0x10] sm:$0xff] 0
        %543 = vst [vmem:[#allocation3 + $0x18] sm:$0xff] 0
        %s544 = scalar_lea.vmem [#allocation3], 192
        %545 = vst [vmem:[%s544] sm:$0xff] 0
        %546 = vst [vmem:[%s544 + $0x8] sm:$0xff] 0
        %547 = vst [vmem:[%s544 + $0x10] sm:$0xff] 0
        %548 = vst [vmem:[%s544 + $0x18] sm:$0xff] 0
        %v549 = vld [vmem:[%s494] sm:$0xf]
        %v550 = vld [vmem:[%s494 + $0x8] sm:$0xf]
        %v551 = vld [vmem:[%s494 + $0x10] sm:$0xf]
        %v552 = vld [vmem:[%s494 + $0x18] sm:$0xf]
        %v553 = vld [vmem:[%s494 + $0x20] sm:$0xf]
        %v554 = vld [vmem:[%s494 + $0x28] sm:$0xf]
        %v555 = vld [vmem:[%s494 + $0x30] sm:$0xf]
        %v556 = vld [vmem:[%s494 + $0x38] sm:$0xf]
        %v557 = vld [vmem:[%s494 + $0x40] sm:$0xf]
        %v558 = vld [vmem:[%s494 + $0x48] sm:$0xf]
        %v559 = vld [vmem:[%s494 + $0x50] sm:$0xf]
        %v560 = vld [vmem:[%s494 + $0x58] sm:$0xf]
        %v561 = vld [vmem:[%s494 + $0x60] sm:$0xf]
        %v562 = vld [vmem:[%s494 + $0x68] sm:$0xf]
        %v563 = vld [vmem:[%s494 + $0x70] sm:$0xf]
        %v564 = vld [vmem:[%s494 + $0x78] sm:$0xf]
        %v565 = vld [vmem:[%s494 + $0x80] sm:$0xf]
        %v566 = vld [vmem:[%s494 + $0x88] sm:$0xf]
        %v567 = vld [vmem:[%s494 + $0x90] sm:$0xf]
        %v568 = vld [vmem:[%s494 + $0x98] sm:$0xf]
        %s569 = scalar_lea.vmem %s494, 4 [#allocation4]
        %v570 = vld [vmem:[%s569] sm:$0xf]
        %v571 = vld [vmem:[%s569 + $0x8] sm:$0xf]
        %v572 = vld [vmem:[%s569 + $0x10] sm:$0xf]
        %v573 = vld [vmem:[%s569 + $0x18] sm:$0xf]
        %v574 = vld [vmem:[%s569 + $0x20] sm:$0xf]
        %v575 = vld [vmem:[%s569 + $0x28] sm:$0xf]
        %v576 = vld [vmem:[%s569 + $0x30] sm:$0xf]
        %v577 = vld [vmem:[%s569 + $0x38] sm:$0xf]
        %v578 = vld [vmem:[%s569 + $0x40] sm:$0xf]
        %v579 = vld [vmem:[%s569 + $0x48] sm:$0xf]
        %v580 = vld [vmem:[%s569 + $0x50] sm:$0xf]
        %v581 = vld [vmem:[%s569 + $0x58] sm:$0xf]
        %v582 = vld [vmem:[%s569 + $0x60] sm:$0xf]
        %v583 = vld [vmem:[%s569 + $0x68] sm:$0xf]
        %v584 = vld [vmem:[%s569 + $0x70] sm:$0xf]
        %v585 = vld [vmem:[%s569 + $0x78] sm:$0xf]
        %v586 = vld [vmem:[%s569 + $0x80] sm:$0xf]
        %v587 = vld [vmem:[%s569 + $0x88] sm:$0xf]
        %v588 = vld [vmem:[%s569 + $0x90] sm:$0xf]
        %v589 = vld [vmem:[%s569 + $0x98] sm:$0xf]
        %v590 = vld [vmem:[%s1] sm:$0xff]
        %v591 = vld [vmem:[%s1 + $0x8] sm:$0xf]
        %v592 = vld [vmem:[%s1 + $0xc] sm:$0xff]
        %v593 = vld [vmem:[%s1 + $0x14] sm:$0xf]
        %v594 = vld [vmem:[%s1 + $0x18] sm:$0xff]
        %v595 = vld [vmem:[%s1 + $0x20] sm:$0xf]
        %v596 = vld [vmem:[%s1 + $0x24] sm:$0xff]
        %v597 = vld [vmem:[%s1 + $0x2c] sm:$0xf]
        %v598 = vld [vmem:[%s1 + $0x30] sm:$0xff]
        %v599 = vld [vmem:[%s1 + $0x38] sm:$0xf]
        %v600 = vld [vmem:[%s1 + $0x3c] sm:$0xff]
        %v601 = vld [vmem:[%s1 + $0x44] sm:$0xf]
        %v602 = vld [vmem:[%s1 + $0x48] sm:$0xff]
        %v603 = vld [vmem:[%s1 + $0x50] sm:$0xf]
        %v604 = vld [vmem:[%s1 + $0x54] sm:$0xff]
        %v605 = vld [vmem:[%s1 + $0x5c] sm:$0xf]
        %v606 = vld [vmem:[%s1 + $0x60] sm:$0xff]
        %v607 = vld [vmem:[%s1 + $0x68] sm:$0xf]
        %v608 = vld [vmem:[%s1 + $0x6c] sm:$0xff]
        %v609 = vld [vmem:[%s1 + $0x74] sm:$0xf]
        %v610 = vld [vmem:[%s1 + $0x78] sm:$0xff]
        %v611 = vld [vmem:[%s1 + $0x80] sm:$0xf]
        %v612 = vld [vmem:[%s1 + $0x84] sm:$0xff]
        %v613 = vld [vmem:[%s1 + $0x8c] sm:$0xf]
        %v614 = vld [vmem:[%s1 + $0x90] sm:$0xff]
        %v615 = vld [vmem:[%s1 + $0x98] sm:$0xf]
        %v616 = vld [vmem:[%s1 + $0x9c] sm:$0xff]
        %v617 = vld [vmem:[%s1 + $0xa4] sm:$0xf]
        %v618 = vld [vmem:[%s1 + $0xa8] sm:$0xff]
        %v619 = vld [vmem:[%s1 + $0xb0] sm:$0xf]
        %s620 = scalar_lea.vmem %s1, 180
        %v621 = vld [vmem:[%s620] sm:$0xff]
        %v622 = vld [vmem:[%s620 + $0x8] sm:$0xf]
        %v623 = vld [vmem:[%s620 + $0xc] sm:$0xff]
        %v624 = vld [vmem:[%s620 + $0x14] sm:$0xf]
        %v625 = vld [vmem:[%s620 + $0x18] sm:$0xff]
        %v626 = vld [vmem:[%s620 + $0x20] sm:$0xf]
        %v627 = vld [vmem:[%s620 + $0x24] sm:$0xff]
        %v628 = vld [vmem:[%s620 + $0x2c] sm:$0xf]
        %v629 = vld [vmem:[%s620 + $0x30] sm:$0xff]
        %v630 = vld [vmem:[%s620 + $0x38] sm:$0xf]
        %v631 = vld [vmem:[%s620 + $0x3c] sm:$0xff]
        %v632 = vld [vmem:[%s620 + $0x44] sm:$0xf]
        %v633 = vld [vmem:[%s620 + $0x48] sm:$0xff]
        %v634 = vld [vmem:[%s620 + $0x50] sm:$0xf]
        %v635 = vld [vmem:[%s620 + $0x54] sm:$0xff]
        %v636 = vld [vmem:[%s620 + $0x5c] sm:$0xf]
        %v637 = vld [vmem:[%s620 + $0x60] sm:$0xff]
        %v638 = vld [vmem:[%s620 + $0x68] sm:$0xf]
        %v639 = vld [vmem:[%s620 + $0x6c] sm:$0xff]
        %v640 = vld [vmem:[%s620 + $0x74] sm:$0xf]
        %v641 = vld [vmem:[%s620 + $0x78] sm:$0xff]
        %v642 = vld [vmem:[%s620 + $0x80] sm:$0xf]
        %v643 = vld [vmem:[%s620 + $0x84] sm:$0xff]
        %v644 = vld [vmem:[%s620 + $0x8c] sm:$0xf]
        %v645 = vld [vmem:[%s620 + $0x90] sm:$0xff]
        %v646 = vld [vmem:[%s620 + $0x98] sm:$0xf]
        %v647 = vld [vmem:[%s620 + $0x9c] sm:$0xff]
        %v648 = vld [vmem:[%s620 + $0xa4] sm:$0xf]
        %v649 = vld [vmem:[%s620 + $0xa8] sm:$0xff]
        %v650 = vld [vmem:[%s620 + $0xb0] sm:$0xf]
        %v671 = vunpack.c.l.b16 %v549
        %v672 = vunpack.c.l.b16 %v550
        %v673 = vunpack.c.l.b16 %v551
        %v674 = vunpack.c.l.b16 %v552
        %v675 = vunpack.c.l.b16 %v553
        %v676 = vunpack.c.l.b16 %v554
        %v677 = vunpack.c.l.b16 %v555
        %v678 = vunpack.c.l.b16 %v556
        %v679 = vunpack.c.l.b16 %v557
        %v680 = vunpack.c.l.b16 %v558
        %v681 = vunpack.c.l.b16 %v559
        %v682 = vunpack.c.l.b16 %v560
        %v683 = vunpack.c.l.b16 %v561
        %v684 = vunpack.c.l.b16 %v562
        %v685 = vunpack.c.l.b16 %v563
        %v686 = vunpack.c.l.b16 %v564
        %v687 = vunpack.c.l.b16 %v565
        %v688 = vunpack.c.l.b16 %v566
        %v689 = vunpack.c.l.b16 %v567
        %v690 = vunpack.c.l.b16 %v568
        %v691 = vpack.c.b16 %v672, %v671
        %v692 = vpack.c.b16 %v674, %v673
        %v693 = vpack.c.b16 %v676, %v675
        %v694 = vpack.c.b16 %v678, %v677
        %v695 = vpack.c.b16 %v680, %v679
        %v696 = vpack.c.b16 %v682, %v681
        %v697 = vpack.c.b16 %v684, %v683
        %v698 = vpack.c.b16 %v686, %v685
        %v699 = vpack.c.b16 %v688, %v687
        %v700 = vpack.c.b16 %v690, %v689
        %v731 = vunpack.c.l.b16 %v621
        %v732 = vunpack.c.h.b16 %v621
        %v733 = vunpack.c.l.b16 %v622
        %v734 = vunpack.c.l.b16 %v623
        %v735 = vunpack.c.h.b16 %v623
        %v736 = vunpack.c.l.b16 %v624
        %v737 = vunpack.c.l.b16 %v625
        %v738 = vunpack.c.h.b16 %v625
        %v739 = vunpack.c.l.b16 %v626
        %v740 = vunpack.c.l.b16 %v627
        %v741 = vunpack.c.h.b16 %v627
        %v742 = vunpack.c.l.b16 %v628
        %v743 = vunpack.c.l.b16 %v629
        %v744 = vunpack.c.h.b16 %v629
        %v745 = vunpack.c.l.b16 %v630
        %v746 = vunpack.c.l.b16 %v631
        %v747 = vunpack.c.h.b16 %v631
        %v748 = vunpack.c.l.b16 %v632
        %v749 = vunpack.c.l.b16 %v633
        %v750 = vunpack.c.h.b16 %v633
        %v751 = vunpack.c.l.b16 %v634
        %v752 = vunpack.c.l.b16 %v635
        %v753 = vunpack.c.h.b16 %v635
        %v754 = vunpack.c.l.b16 %v636
        %v755 = vunpack.c.l.b16 %v637
        %v756 = vunpack.c.h.b16 %v637
        %v757 = vunpack.c.l.b16 %v638
        %v758 = vunpack.c.l.b16 %v639
        %v759 = vunpack.c.h.b16 %v639
        %v760 = vunpack.c.l.b16 %v640
        %v761 = vunpack.c.l.b16 %v641
        %v762 = vunpack.c.h.b16 %v641
        %v763 = vunpack.c.l.b16 %v642
        %v764 = vunpack.c.l.b16 %v643
        %v765 = vunpack.c.h.b16 %v643
        %v766 = vunpack.c.l.b16 %v644
        %v767 = vunpack.c.l.b16 %v645
        %v768 = vunpack.c.h.b16 %v645
        %v769 = vunpack.c.l.b16 %v646
        %v770 = vunpack.c.l.b16 %v647
        %v771 = vunpack.c.h.b16 %v647
        %v772 = vunpack.c.l.b16 %v648
        %v773 = vunpack.c.l.b16 %v649
        %v774 = vunpack.c.h.b16 %v649
        %v775 = vunpack.c.l.b16 %v650
        %v776 = vpack.c.b16 %v734, %v731
        %v777 = vpack.c.b16 %v735, %v732
        %v778 = vpack.c.b16 %v736, %v733
        %v779 = vpack.c.b16 %v740, %v737
        %v780 = vpack.c.b16 %v741, %v738
        %v781 = vpack.c.b16 %v742, %v739
        %v782 = vpack.c.b16 %v746, %v743
        %v783 = vpack.c.b16 %v747, %v744
        %v784 = vpack.c.b16 %v748, %v745
        %v785 = vpack.c.b16 %v752, %v749
        %v786 = vpack.c.b16 %v753, %v750
        %v787 = vpack.c.b16 %v754, %v751
        %v788 = vpack.c.b16 %v758, %v755
        %v789 = vpack.c.b16 %v759, %v756
        %v790 = vpack.c.b16 %v760, %v757
        %v791 = vpack.c.b16 %v764, %v761
        %v792 = vpack.c.b16 %v765, %v762
        %v793 = vpack.c.b16 %v766, %v763
        %v794 = vpack.c.b16 %v770, %v767
        %v795 = vpack.c.b16 %v771, %v768
        %v796 = vpack.c.b16 %v772, %v769
        %v797 = vpack.c.b16 %v773, %v773
        %v798 = vpack.c.b16 %v774, %v774
        %v799 = vpack.c.b16 %v775, %v775
        %vm821 = vcmask 982016
        %v823 = vsel %vm821, %v691, 0
        %v826 = vsel %vm821, %v692, 0
        %v829 = vsel %vm821, %v693, 0
        %v832 = vsel %vm821, %v694, 0
        %v835 = vsel %vm821, %v695, 0
        %v838 = vsel %vm821, %v696, 0
        %v841 = vsel %vm821, %v697, 0
        %v844 = vsel %vm821, %v698, 0
        %v847 = vsel %vm821, %v699, 0
        %v850 = vsel %vm821, %v700, 0
        %vm852 = vcmask 1043456
        %v854 = vsel %vm852, %v797, 0
        %v857 = vsel %vm852, %v798, 0
        %v860 = vsel %vm852, %v799, 0
        %862 = vmatprep.subr.bf16.mxu0 %v857
        %863 = vmatpush1.bf16.msra.mxu0 %v854
        %864 = vmatprep.subr.bf16.mxu0 %v795
        %865 = vmatpush1.bf16.msra.mxu0 %v794
        %866 = vmatprep.subr.bf16.mxu0 %v792
        %867 = vmatpush1.bf16.msra.mxu0 %v791
        %868 = vmatprep.subr.bf16.mxu0 %v789
        %869 = vmatpush1.bf16.msra.mxu0 %v788
        %870 = vmatprep.subr.bf16.mxu0 %v786
        %871 = vmatpush1.bf16.msra.mxu0 %v785
        %872 = vmatprep.subr.bf16.mxu0 %v783
        %873 = vmatpush1.bf16.msra.mxu0 %v782
        %874 = vmatprep.subr.bf16.mxu0 %v780
        %875 = vmatpush1.bf16.msra.mxu0 %v779
        %876 = vmatprep.subr.bf16.mxu0 %v777
        %877 = vmatpush1.bf16.msra.mxu0 %v776
        %878 = vmatprep.subr.bf16.mxu0 0
        %879 = vmatpush2.bf16.msra.mxu0 0
        %880 = vmatprep.subr.bf16.mxu0 0
        %881 = vmatpush2.bf16.msra.mxu0 0
        %882 = vmatprep.subr.bf16.mxu0 0
        %883 = vmatpush2.bf16.msra.mxu0 0
        %884 = vmatprep.subr.bf16.mxu0 0
        %885 = vmatpush2.bf16.msra.mxu0 0
        %886 = vmatprep.subr.bf16.mxu0 0
        %887 = vmatpush2.bf16.msra.mxu0 0
        %888 = vmatprep.subr.bf16.mxu0 0
        %889 = vmatpush2.bf16.msra.mxu0 0
        %890 = vmatprep.subr.bf16.mxu0 0
        %891 = vmatpush2.bf16.msra.mxu0 0
        %892 = vmatprep.subr.bf16.mxu0 0
        %893 = vmatpush2.bf16.msra.mxu0 0
        %894 = vmatprep.mubr.bf16.mxu0 0
        %895 = vmatmul.mubr.bf16.gmra.mxu0 %v823
        %v896 = vpop.f32.mrf.mxu0
        %v897 = vadd.f32 0.0, %v896
        %v898 = vpop.f32.mrf.mxu0
        %v899 = vadd.f32 0.0, %v898
        %v900 = vpop.f32.mrf.mxu0
        %v901 = vadd.f32 0.0, %v900
        %v902 = vpop.f32.mrf.mxu0
        %v903 = vadd.f32 0.0, %v902
        %904 = vmatprep.mubr.bf16.mxu0 0
        %905 = vmatmul.mubr.bf16.gmra.mxu0 %v826
        %v906 = vpop.f32.mrf.mxu0
        %v907 = vadd.f32 0.0, %v906
        %v908 = vpop.f32.mrf.mxu0
        %v909 = vadd.f32 0.0, %v908
        %v910 = vpop.f32.mrf.mxu0
        %v911 = vadd.f32 0.0, %v910
        %v912 = vpop.f32.mrf.mxu0
        %v913 = vadd.f32 0.0, %v912
        %914 = vmatprep.mubr.bf16.mxu0 0
        %915 = vmatmul.mubr.bf16.gmra.mxu0 %v829
        %v916 = vpop.f32.mrf.mxu0
        %v917 = vadd.f32 0.0, %v916
        %v918 = vpop.f32.mrf.mxu0
        %v919 = vadd.f32 0.0, %v918
        %v920 = vpop.f32.mrf.mxu0
        %v921 = vadd.f32 0.0, %v920
        %v922 = vpop.f32.mrf.mxu0
        %v923 = vadd.f32 0.0, %v922
        %924 = vmatprep.mubr.bf16.mxu0 0
        %925 = vmatmul.mubr.bf16.gmra.mxu0 %v832
        %v926 = vpop.f32.mrf.mxu0
        %v927 = vadd.f32 0.0, %v926
        %v928 = vpop.f32.mrf.mxu0
        %v929 = vadd.f32 0.0, %v928
        %v930 = vpop.f32.mrf.mxu0
        %v931 = vadd.f32 0.0, %v930
        %v932 = vpop.f32.mrf.mxu0
        %v933 = vadd.f32 0.0, %v932
        %934 = vmatprep.mubr.bf16.mxu0 0
        %935 = vmatmul.mubr.bf16.gmra.mxu0 %v835
        %v936 = vpop.f32.mrf.mxu0
        %v937 = vadd.f32 0.0, %v936
        %v938 = vpop.f32.mrf.mxu0
        %v939 = vadd.f32 0.0, %v938
        %v940 = vpop.f32.mrf.mxu0
        %v941 = vadd.f32 0.0, %v940
        %v942 = vpop.f32.mrf.mxu0
        %v943 = vadd.f32 0.0, %v942
        %944 = vmatprep.mubr.bf16.mxu0 0
        %945 = vmatmul.mubr.bf16.gmra.mxu0 %v838
        %v946 = vpop.f32.mrf.mxu0
        %v947 = vadd.f32 0.0, %v946
        %v948 = vpop.f32.mrf.mxu0
        %v949 = vadd.f32 0.0, %v948
        %v950 = vpop.f32.mrf.mxu0
        %v951 = vadd.f32 0.0, %v950
        %v952 = vpop.f32.mrf.mxu0
        %v953 = vadd.f32 0.0, %v952
        %954 = vmatprep.mubr.bf16.mxu0 0
        %955 = vmatmul.mubr.bf16.gmra.mxu0 %v841
        %v956 = vpop.f32.mrf.mxu0
        %v957 = vadd.f32 0.0, %v956
        %v958 = vpop.f32.mrf.mxu0
        %v959 = vadd.f32 0.0, %v958
        %v960 = vpop.f32.mrf.mxu0
        %v961 = vadd.f32 0.0, %v960
        %v962 = vpop.f32.mrf.mxu0
        %v963 = vadd.f32 0.0, %v962
        %964 = vmatprep.mubr.bf16.mxu0 0
        %965 = vmatmul.mubr.bf16.gmra.mxu0 %v844
        %v966 = vpop.f32.mrf.mxu0
        %v967 = vadd.f32 0.0, %v966
        %v968 = vpop.f32.mrf.mxu0
        %v969 = vadd.f32 0.0, %v968
        %v970 = vpop.f32.mrf.mxu0
        %v971 = vadd.f32 0.0, %v970
        %v972 = vpop.f32.mrf.mxu0
        %v973 = vadd.f32 0.0, %v972
        %974 = vmatprep.mubr.bf16.mxu0 0
        %975 = vmatmul.mubr.bf16.gmra.mxu0 %v847
        %v976 = vpop.f32.mrf.mxu0
        %v977 = vadd.f32 0.0, %v976
        %v978 = vpop.f32.mrf.mxu0
        %v979 = vadd.f32 0.0, %v978
        %v980 = vpop.f32.mrf.mxu0
        %v981 = vadd.f32 0.0, %v980
        %v982 = vpop.f32.mrf.mxu0
        %v983 = vadd.f32 0.0, %v982
        %984 = vmatprep.mubr.bf16.mxu0 0
        %985 = vmatmul.mubr.bf16.gmra.mxu0 %v850
        %v986 = vpop.f32.mrf.mxu0
        %v987 = vadd.f32 0.0, %v986
        %v988 = vpop.f32.mrf.mxu0
        %v989 = vadd.f32 0.0, %v988
        %v990 = vpop.f32.mrf.mxu0
        %v991 = vadd.f32 0.0, %v990
        %v992 = vpop.f32.mrf.mxu0
        %v993 = vadd.f32 0.0, %v992
        %994 = vdwg.mxu0
        %995 = vmatprep.subr.bf16.mxu0 0
        %996 = vmatpush1.bf16.msra.mxu0 %v860
        %997 = vmatprep.subr.bf16.mxu0 0
        %998 = vmatpush1.bf16.msra.mxu0 %v796
        %999 = vmatprep.subr.bf16.mxu0 0
        %1000 = vmatpush1.bf16.msra.mxu0 %v793
        %1001 = vmatprep.subr.bf16.mxu0 0
        %1002 = vmatpush1.bf16.msra.mxu0 %v790
        %1003 = vmatprep.subr.bf16.mxu0 0
        %1004 = vmatpush1.bf16.msra.mxu0 %v787
        %1005 = vmatprep.subr.bf16.mxu0 0
        %1006 = vmatpush1.bf16.msra.mxu0 %v784
        %1007 = vmatprep.subr.bf16.mxu0 0
        %1008 = vmatpush1.bf16.msra.mxu0 %v781
        %1009 = vmatprep.subr.bf16.mxu0 0
        %1010 = vmatpush1.bf16.msra.mxu0 %v778
        %1011 = vmatprep.subr.bf16.mxu0 0
        %1012 = vmatpush2.bf16.msra.mxu0 0
        %1013 = vmatprep.subr.bf16.mxu0 0
        %1014 = vmatpush2.bf16.msra.mxu0 0
        %1015 = vmatprep.subr.bf16.mxu0 0
        %1016 = vmatpush2.bf16.msra.mxu0 0
        %1017 = vmatprep.subr.bf16.mxu0 0
        %1018 = vmatpush2.bf16.msra.mxu0 0
        %1019 = vmatprep.subr.bf16.mxu0 0
        %1020 = vmatpush2.bf16.msra.mxu0 0
        %1021 = vmatprep.subr.bf16.mxu0 0
        %1022 = vmatpush2.bf16.msra.mxu0 0
        %1023 = vmatprep.subr.bf16.mxu0 0
        %1024 = vmatpush2.bf16.msra.mxu0 0
        %1025 = vmatprep.subr.bf16.mxu0 0
        %1026 = vmatpush2.bf16.msra.mxu0 0
        %1027 = vmatprep.mubr.bf16.mxu0 0
        %1028 = vmatmul.mubr.bf16.gmra.mxu0 %v823
        %v1029 = vpop.f32.mrf.mxu0
        %v1030 = vadd.f32 0.0, %v1029
        %v1031 = vpop.f32.mrf.mxu0
        %v1032 = vpop.f32.mrf.mxu0
        %v1033 = vadd.f32 0.0, %v1032
        %v1034 = vpop.f32.mrf.mxu0
        %1035 = vmatprep.mubr.bf16.mxu0 0
        %1036 = vmatmul.mubr.bf16.gmra.mxu0 %v826
        %v1037 = vpop.f32.mrf.mxu0
        %v1038 = vadd.f32 0.0, %v1037
        %v1039 = vpop.f32.mrf.mxu0
        %v1040 = vpop.f32.mrf.mxu0
        %v1041 = vadd.f32 0.0, %v1040
        %v1042 = vpop.f32.mrf.mxu0
        %1043 = vmatprep.mubr.bf16.mxu0 0
        %1044 = vmatmul.mubr.bf16.gmra.mxu0 %v829
        %v1045 = vpop.f32.mrf.mxu0
        %v1046 = vadd.f32 0.0, %v1045
        %v1047 = vpop.f32.mrf.mxu0
        %v1048 = vpop.f32.mrf.mxu0
        %v1049 = vadd.f32 0.0, %v1048
        %v1050 = vpop.f32.mrf.mxu0
        %1051 = vmatprep.mubr.bf16.mxu0 0
        %1052 = vmatmul.mubr.bf16.gmra.mxu0 %v832
        %v1053 = vpop.f32.mrf.mxu0
        %v1054 = vadd.f32 0.0, %v1053
        %v1055 = vpop.f32.mrf.mxu0
        %v1056 = vpop.f32.mrf.mxu0
        %v1057 = vadd.f32 0.0, %v1056
        %v1058 = vpop.f32.mrf.mxu0
        %1059 = vmatprep.mubr.bf16.mxu0 0
        %1060 = vmatmul.mubr.bf16.gmra.mxu0 %v835
        %v1061 = vpop.f32.mrf.mxu0
        %v1062 = vadd.f32 0.0, %v1061
        %v1063 = vpop.f32.mrf.mxu0
        %v1064 = vpop.f32.mrf.mxu0
        %v1065 = vadd.f32 0.0, %v1064
        %v1066 = vpop.f32.mrf.mxu0
        %1067 = vmatprep.mubr.bf16.mxu0 0
        %1068 = vmatmul.mubr.bf16.gmra.mxu0 %v838
        %v1069 = vpop.f32.mrf.mxu0
        %v1070 = vadd.f32 0.0, %v1069
        %v1071 = vpop.f32.mrf.mxu0
        %v1072 = vpop.f32.mrf.mxu0
        %v1073 = vadd.f32 0.0, %v1072
        %v1074 = vpop.f32.mrf.mxu0
        %1075 = vmatprep.mubr.bf16.mxu0 0
        %1076 = vmatmul.mubr.bf16.gmra.mxu0 %v841
        %v1077 = vpop.f32.mrf.mxu0
        %v1078 = vadd.f32 0.0, %v1077
        %v1079 = vpop.f32.mrf.mxu0
        %v1080 = vpop.f32.mrf.mxu0
        %v1081 = vadd.f32 0.0, %v1080
        %v1082 = vpop.f32.mrf.mxu0
        %1083 = vmatprep.mubr.bf16.mxu0 0
        %1084 = vmatmul.mubr.bf16.gmra.mxu0 %v844
        %v1085 = vpop.f32.mrf.mxu0
        %v1086 = vadd.f32 0.0, %v1085
        %v1087 = vpop.f32.mrf.mxu0
        %v1088 = vpop.f32.mrf.mxu0
        %v1089 = vadd.f32 0.0, %v1088
        %v1090 = vpop.f32.mrf.mxu0
        %1091 = vmatprep.mubr.bf16.mxu0 0
        %1092 = vmatmul.mubr.bf16.gmra.mxu0 %v847
        %v1093 = vpop.f32.mrf.mxu0
        %v1094 = vadd.f32 0.0, %v1093
        %v1095 = vpop.f32.mrf.mxu0
        %v1096 = vpop.f32.mrf.mxu0
        %v1097 = vadd.f32 0.0, %v1096
        %v1098 = vpop.f32.mrf.mxu0
        %1099 = vmatprep.mubr.bf16.mxu0 0
        %1100 = vmatmul.mubr.bf16.gmra.mxu0 %v850
        %v1101 = vpop.f32.mrf.mxu0
        %v1102 = vadd.f32 0.0, %v1101
        %v1103 = vpop.f32.mrf.mxu0
        %v1104 = vpop.f32.mrf.mxu0
        %v1105 = vadd.f32 0.0, %v1104
        %v1106 = vpop.f32.mrf.mxu0
        %1107 = vdwg.mxu0
        %v1128 = vunpack.c.l.b16 0
        %v1129 = vunpack.c.l.b16 %v570
        %v1130 = vunpack.c.l.b16 %v571
        %v1131 = vunpack.c.l.b16 %v572
        %v1132 = vunpack.c.l.b16 %v573
        %v1133 = vunpack.c.l.b16 %v574
        %v1134 = vunpack.c.l.b16 %v575
        %v1135 = vunpack.c.l.b16 %v576
        %v1136 = vunpack.c.l.b16 %v577
        %v1137 = vunpack.c.l.b16 %v578
        %v1138 = vunpack.c.l.b16 %v579
        %v1139 = vunpack.c.l.b16 %v580
        %v1140 = vunpack.c.l.b16 %v581
        %v1141 = vunpack.c.l.b16 %v582
        %v1142 = vunpack.c.l.b16 %v583
        %v1143 = vunpack.c.l.b16 %v584
        %v1144 = vunpack.c.l.b16 %v585
        %v1145 = vunpack.c.l.b16 %v586
        %v1146 = vunpack.c.l.b16 %v587
        %v1147 = vunpack.c.l.b16 %v588
        %v1148 = vpack.c.b16 %v1129, %v1128
        %v1149 = vpack.c.b16 %v1131, %v1130
        %v1150 = vpack.c.b16 %v1133, %v1132
        %v1151 = vpack.c.b16 %v1135, %v1134
        %v1152 = vpack.c.b16 %v1137, %v1136
        %v1153 = vpack.c.b16 %v1139, %v1138
        %v1154 = vpack.c.b16 %v1141, %v1140
        %v1155 = vpack.c.b16 %v1143, %v1142
        %v1156 = vpack.c.b16 %v1145, %v1144
        %v1157 = vpack.c.b16 %v1147, %v1146
        %v1188 = vunpack.c.l.b16 %v590
        %v1189 = vunpack.c.h.b16 %v590
        %v1190 = vunpack.c.l.b16 %v591
        %v1191 = vunpack.c.l.b16 %v592
        %v1192 = vunpack.c.h.b16 %v592
        %v1193 = vunpack.c.l.b16 %v593
        %v1194 = vunpack.c.l.b16 %v594
        %v1195 = vunpack.c.h.b16 %v594
        %v1196 = vunpack.c.l.b16 %v595
        %v1197 = vunpack.c.l.b16 %v596
        %v1198 = vunpack.c.h.b16 %v596
        %v1199 = vunpack.c.l.b16 %v597
        %v1200 = vunpack.c.l.b16 %v598
        %v1201 = vunpack.c.h.b16 %v598
        %v1202 = vunpack.c.l.b16 %v599
        %v1203 = vunpack.c.l.b16 %v600
        %v1204 = vunpack.c.h.b16 %v600
        %v1205 = vunpack.c.l.b16 %v601
        %v1206 = vunpack.c.l.b16 %v602
        %v1207 = vunpack.c.h.b16 %v602
        %v1208 = vunpack.c.l.b16 %v603
        %v1209 = vunpack.c.l.b16 %v604
        %v1210 = vunpack.c.h.b16 %v604
        %v1211 = vunpack.c.l.b16 %v605
        %v1212 = vunpack.c.l.b16 %v606
        %v1213 = vunpack.c.h.b16 %v606
        %v1214 = vunpack.c.l.b16 %v607
        %v1215 = vunpack.c.l.b16 %v608
        %v1216 = vunpack.c.h.b16 %v608
        %v1217 = vunpack.c.l.b16 %v609
        %v1218 = vunpack.c.l.b16 %v610
        %v1219 = vunpack.c.h.b16 %v610
        %v1220 = vunpack.c.l.b16 %v611
        %v1221 = vunpack.c.l.b16 %v612
        %v1222 = vunpack.c.h.b16 %v612
        %v1223 = vunpack.c.l.b16 %v613
        %v1224 = vunpack.c.l.b16 %v614
        %v1225 = vunpack.c.h.b16 %v614
        %v1226 = vunpack.c.l.b16 %v615
        %v1227 = vunpack.c.l.b16 %v616
        %v1228 = vunpack.c.h.b16 %v616
        %v1229 = vunpack.c.l.b16 %v617
        %v1230 = vunpack.c.l.b16 %v618
        %v1231 = vunpack.c.h.b16 %v618
        %v1232 = vunpack.c.l.b16 %v619
        %v1233 = vpack.c.b16 %v1191, %v1188
        %v1234 = vpack.c.b16 %v1192, %v1189
        %v1235 = vpack.c.b16 %v1193, %v1190
        %v1236 = vpack.c.b16 %v1197, %v1194
        %v1237 = vpack.c.b16 %v1198, %v1195
        %v1238 = vpack.c.b16 %v1199, %v1196
        %v1239 = vpack.c.b16 %v1203, %v1200
        %v1240 = vpack.c.b16 %v1204, %v1201
        %v1241 = vpack.c.b16 %v1205, %v1202
        %v1242 = vpack.c.b16 %v1209, %v1206
        %v1243 = vpack.c.b16 %v1210, %v1207
        %v1244 = vpack.c.b16 %v1211, %v1208
        %v1245 = vpack.c.b16 %v1215, %v1212
        %v1246 = vpack.c.b16 %v1216, %v1213
        %v1247 = vpack.c.b16 %v1217, %v1214
        %v1248 = vpack.c.b16 %v1221, %v1218
        %v1249 = vpack.c.b16 %v1222, %v1219
        %v1250 = vpack.c.b16 %v1223, %v1220
        %v1251 = vpack.c.b16 %v1227, %v1224
        %v1252 = vpack.c.b16 %v1228, %v1225
        %v1253 = vpack.c.b16 %v1229, %v1226
        %v1254 = vpack.c.b16 %v1230, %v1230
        %v1255 = vpack.c.b16 %v1231, %v1231
        %v1256 = vpack.c.b16 %v1232, %v1232
        %v1279 = vsel %vm821, %v1148, 0
        %v1282 = vsel %vm821, %v1149, 0
        %v1285 = vsel %vm821, %v1150, 0
        %v1288 = vsel %vm821, %v1151, 0
        %v1291 = vsel %vm821, %v1152, 0
        %v1294 = vsel %vm821, %v1153, 0
        %v1297 = vsel %vm821, %v1154, 0
        %v1300 = vsel %vm821, %v1155, 0
        %v1303 = vsel %vm821, %v1156, 0
        %v1306 = vsel %vm821, %v1157, 0
        %v1309 = vsel %vm852, %v1254, 0
        %v1312 = vsel %vm852, %v1255, 0
        %v1315 = vsel %vm852, %v1256, 0
        %1317 = vmatprep.subr.bf16.mxu0 %v1312
        %1318 = vmatpush1.bf16.msra.mxu0 %v1309
        %1319 = vmatprep.subr.bf16.mxu0 %v1252
        %1320 = vmatpush1.bf16.msra.mxu0 %v1251
        %1321 = vmatprep.subr.bf16.mxu0 %v1249
        %1322 = vmatpush1.bf16.msra.mxu0 %v1248
        %1323 = vmatprep.subr.bf16.mxu0 %v1246
        %1324 = vmatpush1.bf16.msra.mxu0 %v1245
        %1325 = vmatprep.subr.bf16.mxu0 %v1243
        %1326 = vmatpush1.bf16.msra.mxu0 %v1242
        %1327 = vmatprep.subr.bf16.mxu0 %v1240
        %1328 = vmatpush1.bf16.msra.mxu0 %v1239
        %1329 = vmatprep.subr.bf16.mxu0 %v1237
        %1330 = vmatpush1.bf16.msra.mxu0 %v1236
        %1331 = vmatprep.subr.bf16.mxu0 %v1234
        %1332 = vmatpush1.bf16.msra.mxu0 %v1233
        %1333 = vmatprep.subr.bf16.mxu0 0
        %1334 = vmatpush2.bf16.msra.mxu0 0
        %1335 = vmatprep.subr.bf16.mxu0 0
        %1336 = vmatpush2.bf16.msra.mxu0 0
        %1337 = vmatprep.subr.bf16.mxu0 0
        %1338 = vmatpush2.bf16.msra.mxu0 0
        %1339 = vmatprep.subr.bf16.mxu0 0
        %1340 = vmatpush2.bf16.msra.mxu0 0
        %1341 = vmatprep.subr.bf16.mxu0 0
        %1342 = vmatpush2.bf16.msra.mxu0 0
        %1343 = vmatprep.subr.bf16.mxu0 0
        %1344 = vmatpush2.bf16.msra.mxu0 0
        %1345 = vmatprep.subr.bf16.mxu0 0
        %1346 = vmatpush2.bf16.msra.mxu0 0
        %1347 = vmatprep.subr.bf16.mxu0 0
        %1348 = vmatpush2.bf16.msra.mxu0 0
        %1349 = vmatprep.mubr.bf16.mxu0 0
        %1350 = vmatmul.mubr.bf16.gmra.mxu0 %v1279
        %v1351 = vpop.f32.mrf.mxu0
        %v1352 = vadd.f32 %v897, %v1351
        %v1353 = vpop.f32.mrf.mxu0
        %v1354 = vadd.f32 %v899, %v1353
        %v1355 = vpop.f32.mrf.mxu0
        %v1356 = vadd.f32 %v901, %v1355
        %v1357 = vpop.f32.mrf.mxu0
        %v1358 = vadd.f32 %v903, %v1357
        %1359 = vmatprep.mubr.bf16.mxu0 0
        %1360 = vmatmul.mubr.bf16.gmra.mxu0 %v1282
        %v1361 = vpop.f32.mrf.mxu0
        %v1362 = vadd.f32 %v907, %v1361
        %v1363 = vpop.f32.mrf.mxu0
        %v1364 = vadd.f32 %v909, %v1363
        %v1365 = vpop.f32.mrf.mxu0
        %v1366 = vadd.f32 %v911, %v1365
        %v1367 = vpop.f32.mrf.mxu0
        %v1368 = vadd.f32 %v913, %v1367
        %1369 = vmatprep.mubr.bf16.mxu0 0
        %1370 = vmatmul.mubr.bf16.gmra.mxu0 %v1285
        %v1371 = vpop.f32.mrf.mxu0
        %v1372 = vadd.f32 %v917, %v1371
        %v1373 = vpop.f32.mrf.mxu0
        %v1374 = vadd.f32 %v919, %v1373
        %v1375 = vpop.f32.mrf.mxu0
        %v1376 = vadd.f32 %v921, %v1375
        %v1377 = vpop.f32.mrf.mxu0
        %v1378 = vadd.f32 %v923, %v1377
        %1379 = vmatprep.mubr.bf16.mxu0 0
        %1380 = vmatmul.mubr.bf16.gmra.mxu0 %v1288
        %v1381 = vpop.f32.mrf.mxu0
        %v1382 = vadd.f32 %v927, %v1381
        %v1383 = vpop.f32.mrf.mxu0
        %v1384 = vadd.f32 %v929, %v1383
        %v1385 = vpop.f32.mrf.mxu0
        %v1386 = vadd.f32 %v931, %v1385
        %v1387 = vpop.f32.mrf.mxu0
        %v1388 = vadd.f32 %v933, %v1387
        %1389 = vmatprep.mubr.bf16.mxu0 0
        %1390 = vmatmul.mubr.bf16.gmra.mxu0 %v1291
        %v1391 = vpop.f32.mrf.mxu0
        %v1392 = vadd.f32 %v937, %v1391
        %v1393 = vpop.f32.mrf.mxu0
        %v1394 = vadd.f32 %v939, %v1393
        %v1395 = vpop.f32.mrf.mxu0
        %v1396 = vadd.f32 %v941, %v1395
        %v1397 = vpop.f32.mrf.mxu0
        %v1398 = vadd.f32 %v943, %v1397
        %1399 = vmatprep.mubr.bf16.mxu0 0
        %1400 = vmatmul.mubr.bf16.gmra.mxu0 %v1294
        %v1401 = vpop.f32.mrf.mxu0
        %v1402 = vadd.f32 %v947, %v1401
        %v1403 = vpop.f32.mrf.mxu0
        %v1404 = vadd.f32 %v949, %v1403
        %v1405 = vpop.f32.mrf.mxu0
        %v1406 = vadd.f32 %v951, %v1405
        %v1407 = vpop.f32.mrf.mxu0
        %v1408 = vadd.f32 %v953, %v1407
        %1409 = vmatprep.mubr.bf16.mxu0 0
        %1410 = vmatmul.mubr.bf16.gmra.mxu0 %v1297
        %v1411 = vpop.f32.mrf.mxu0
        %v1412 = vadd.f32 %v957, %v1411
        %v1413 = vpop.f32.mrf.mxu0
        %v1414 = vadd.f32 %v959, %v1413
        %v1415 = vpop.f32.mrf.mxu0
        %v1416 = vadd.f32 %v961, %v1415
        %v1417 = vpop.f32.mrf.mxu0
        %v1418 = vadd.f32 %v963, %v1417
        %1419 = vmatprep.mubr.bf16.mxu0 0
        %1420 = vmatmul.mubr.bf16.gmra.mxu0 %v1300
        %v1421 = vpop.f32.mrf.mxu0
        %v1422 = vadd.f32 %v967, %v1421
        %v1423 = vpop.f32.mrf.mxu0
        %v1424 = vadd.f32 %v969, %v1423
        %v1425 = vpop.f32.mrf.mxu0
        %v1426 = vadd.f32 %v971, %v1425
        %v1427 = vpop.f32.mrf.mxu0
        %v1428 = vadd.f32 %v973, %v1427
        %1429 = vmatprep.mubr.bf16.mxu0 0
        %1430 = vmatmul.mubr.bf16.gmra.mxu0 %v1303
        %v1431 = vpop.f32.mrf.mxu0
        %v1432 = vadd.f32 %v977, %v1431
        %v1433 = vpop.f32.mrf.mxu0
        %v1434 = vadd.f32 %v979, %v1433
        %v1435 = vpop.f32.mrf.mxu0
        %v1436 = vadd.f32 %v981, %v1435
        %v1437 = vpop.f32.mrf.mxu0
        %v1438 = vadd.f32 %v983, %v1437
        %1439 = vmatprep.mubr.bf16.mxu0 0
        %1440 = vmatmul.mubr.bf16.gmra.mxu0 %v1306
        %v1441 = vpop.f32.mrf.mxu0
        %v1442 = vadd.f32 %v987, %v1441
        %v1443 = vpop.f32.mrf.mxu0
        %v1444 = vadd.f32 %v989, %v1443
        %v1445 = vpop.f32.mrf.mxu0
        %v1446 = vadd.f32 %v991, %v1445
        %v1447 = vpop.f32.mrf.mxu0
        %v1448 = vadd.f32 %v993, %v1447
        %1449 = vdwg.mxu0
        %1450 = vmatprep.subr.bf16.mxu0 0
        %1451 = vmatpush1.bf16.msra.mxu0 %v1315
        %1452 = vmatprep.subr.bf16.mxu0 0
        %1453 = vmatpush1.bf16.msra.mxu0 %v1253
        %1454 = vmatprep.subr.bf16.mxu0 0
        %1455 = vmatpush1.bf16.msra.mxu0 %v1250
        %1456 = vmatprep.subr.bf16.mxu0 0
        %1457 = vmatpush1.bf16.msra.mxu0 %v1247
        %1458 = vmatprep.subr.bf16.mxu0 0
        %1459 = vmatpush1.bf16.msra.mxu0 %v1244
        %1460 = vmatprep.subr.bf16.mxu0 0
        %1461 = vmatpush1.bf16.msra.mxu0 %v1241
        %1462 = vmatprep.subr.bf16.mxu0 0
        %1463 = vmatpush1.bf16.msra.mxu0 %v1238
        %1464 = vmatprep.subr.bf16.mxu0 0
        %1465 = vmatpush1.bf16.msra.mxu0 %v1235
        %1466 = vmatprep.subr.bf16.mxu0 0
        %1467 = vmatpush2.bf16.msra.mxu0 0
        %1468 = vmatprep.subr.bf16.mxu0 0
        %1469 = vmatpush2.bf16.msra.mxu0 0
        %1470 = vmatprep.subr.bf16.mxu0 0
        %1471 = vmatpush2.bf16.msra.mxu0 0
        %1472 = vmatprep.subr.bf16.mxu0 0
        %1473 = vmatpush2.bf16.msra.mxu0 0
        %1474 = vmatprep.subr.bf16.mxu0 0
        %1475 = vmatpush2.bf16.msra.mxu0 0
        %1476 = vmatprep.subr.bf16.mxu0 0
        %1477 = vmatpush2.bf16.msra.mxu0 0
        %1478 = vmatprep.subr.bf16.mxu0 0
        %1479 = vmatpush2.bf16.msra.mxu0 0
        %1480 = vmatprep.subr.bf16.mxu0 0
        %1481 = vmatpush2.bf16.msra.mxu0 0
        %1482 = vmatprep.mubr.bf16.mxu0 0
        %1483 = vmatmul.mubr.bf16.gmra.mxu0 %v1279
        %v1484 = vpop.f32.mrf.mxu0
        %v1485 = vadd.f32 %v1030, %v1484
        %v1486 = vpop.f32.mrf.mxu0
        %v1487 = vpop.f32.mrf.mxu0
        %v1488 = vadd.f32 %v1033, %v1487
        %v1489 = vpop.f32.mrf.mxu0
        %1490 = vmatprep.mubr.bf16.mxu0 0
        %1491 = vmatmul.mubr.bf16.gmra.mxu0 %v1282
        %v1492 = vpop.f32.mrf.mxu0
        %v1493 = vadd.f32 %v1038, %v1492
        %v1494 = vpop.f32.mrf.mxu0
        %v1495 = vpop.f32.mrf.mxu0
        %v1496 = vadd.f32 %v1041, %v1495
        %v1497 = vpop.f32.mrf.mxu0
        %1498 = vmatprep.mubr.bf16.mxu0 0
        %1499 = vmatmul.mubr.bf16.gmra.mxu0 %v1285
        %v1500 = vpop.f32.mrf.mxu0
        %v1501 = vadd.f32 %v1046, %v1500
        %v1502 = vpop.f32.mrf.mxu0
        %v1503 = vpop.f32.mrf.mxu0
        %v1504 = vadd.f32 %v1049, %v1503
        %v1505 = vpop.f32.mrf.mxu0
        %1506 = vmatprep.mubr.bf16.mxu0 0
        %1507 = vmatmul.mubr.bf16.gmra.mxu0 %v1288
        %v1508 = vpop.f32.mrf.mxu0
        %v1509 = vadd.f32 %v1054, %v1508
        %v1510 = vpop.f32.mrf.mxu0
        %v1511 = vpop.f32.mrf.mxu0
        %v1512 = vadd.f32 %v1057, %v1511
        %v1513 = vpop.f32.mrf.mxu0
        %1514 = vmatprep.mubr.bf16.mxu0 0
        %1515 = vmatmul.mubr.bf16.gmra.mxu0 %v1291
        %v1516 = vpop.f32.mrf.mxu0
        %v1517 = vadd.f32 %v1062, %v1516
        %v1518 = vpop.f32.mrf.mxu0
        %v1519 = vpop.f32.mrf.mxu0
        %v1520 = vadd.f32 %v1065, %v1519
        %v1521 = vpop.f32.mrf.mxu0
        %1522 = vmatprep.mubr.bf16.mxu0 0
        %1523 = vmatmul.mubr.bf16.gmra.mxu0 %v1294
        %v1524 = vpop.f32.mrf.mxu0
        %v1525 = vadd.f32 %v1070, %v1524
        %v1526 = vpop.f32.mrf.mxu0
        %v1527 = vpop.f32.mrf.mxu0
        %v1528 = vadd.f32 %v1073, %v1527
        %v1529 = vpop.f32.mrf.mxu0
        %1530 = vmatprep.mubr.bf16.mxu0 0
        %1531 = vmatmul.mubr.bf16.gmra.mxu0 %v1297
        %v1532 = vpop.f32.mrf.mxu0
        %v1533 = vadd.f32 %v1078, %v1532
        %v1534 = vpop.f32.mrf.mxu0
        %v1535 = vpop.f32.mrf.mxu0
        %v1536 = vadd.f32 %v1081, %v1535
        %v1537 = vpop.f32.mrf.mxu0
        %1538 = vmatprep.mubr.bf16.mxu0 0
        %1539 = vmatmul.mubr.bf16.gmra.mxu0 %v1300
        %v1540 = vpop.f32.mrf.mxu0
        %v1541 = vadd.f32 %v1086, %v1540
        %v1542 = vpop.f32.mrf.mxu0
        %v1543 = vpop.f32.mrf.mxu0
        %v1544 = vadd.f32 %v1089, %v1543
        %v1545 = vpop.f32.mrf.mxu0
        %1546 = vmatprep.mubr.bf16.mxu0 0
        %1547 = vmatmul.mubr.bf16.gmra.mxu0 %v1303
        %v1548 = vpop.f32.mrf.mxu0
        %v1549 = vadd.f32 %v1094, %v1548
        %v1550 = vpop.f32.mrf.mxu0
        %v1551 = vpop.f32.mrf.mxu0
        %v1552 = vadd.f32 %v1097, %v1551
        %v1553 = vpop.f32.mrf.mxu0
        %1554 = vmatprep.mubr.bf16.mxu0 0
        %1555 = vmatmul.mubr.bf16.gmra.mxu0 %v1306
        %v1556 = vpop.f32.mrf.mxu0
        %v1557 = vadd.f32 %v1102, %v1556
        %v1558 = vpop.f32.mrf.mxu0
        %v1559 = vpop.f32.mrf.mxu0
        %v1560 = vadd.f32 %v1105, %v1559
        %v1561 = vpop.f32.mrf.mxu0
        %1562 = vdwg.mxu0
        %s1563 = scalar_lea.vmem %s1, 360
        %v1564 = vld [vmem:[%s1563] sm:$0xff]
        %v1565 = vld [vmem:[%s1563 + $0x8] sm:$0xf]
        %v1566 = vld [vmem:[%s1563 + $0xc] sm:$0xff]
        %v1567 = vld [vmem:[%s1563 + $0x14] sm:$0xf]
        %v1568 = vld [vmem:[%s1563 + $0x18] sm:$0xff]
        %v1569 = vld [vmem:[%s1563 + $0x20] sm:$0xf]
        %v1570 = vld [vmem:[%s1563 + $0x24] sm:$0xff]
        %v1571 = vld [vmem:[%s1563 + $0x2c] sm:$0xf]
        %v1572 = vld [vmem:[%s1563 + $0x30] sm:$0xff]
        %v1573 = vld [vmem:[%s1563 + $0x38] sm:$0xf]
        %v1574 = vld [vmem:[%s1563 + $0x3c] sm:$0xff]
        %v1575 = vld [vmem:[%s1563 + $0x44] sm:$0xf]
        %v1576 = vld [vmem:[%s1563 + $0x48] sm:$0xff]
        %v1577 = vld [vmem:[%s1563 + $0x50] sm:$0xf]
        %v1578 = vld [vmem:[%s1563 + $0x54] sm:$0xff]
        %v1579 = vld [vmem:[%s1563 + $0x5c] sm:$0xf]
        %v1580 = vld [vmem:[%s1563 + $0x60] sm:$0xff]
        %v1581 = vld [vmem:[%s1563 + $0x68] sm:$0xf]
        %v1582 = vld [vmem:[%s1563 + $0x6c] sm:$0xff]
        %v1583 = vld [vmem:[%s1563 + $0x74] sm:$0xf]
        %v1584 = vld [vmem:[%s1563 + $0x78] sm:$0xff]
        %v1585 = vld [vmem:[%s1563 + $0x80] sm:$0xf]
        %v1586 = vld [vmem:[%s1563 + $0x84] sm:$0xff]
        %v1587 = vld [vmem:[%s1563 + $0x8c] sm:$0xf]
        %v1588 = vld [vmem:[%s1563 + $0x90] sm:$0xff]
        %v1589 = vld [vmem:[%s1563 + $0x98] sm:$0xf]
        %v1590 = vld [vmem:[%s1563 + $0x9c] sm:$0xff]
        %v1591 = vld [vmem:[%s1563 + $0xa4] sm:$0xf]
        %v1592 = vld [vmem:[%s1563 + $0xa8] sm:$0xff]
        %v1593 = vld [vmem:[%s1563 + $0xb0] sm:$0xf]
        %v1595 = vunpack.c.l.b16 %v589
        %v1596 = vpack.c.b16 %v1130, %v1129
        %v1597 = vpack.c.b16 %v1132, %v1131
        %v1598 = vpack.c.b16 %v1134, %v1133
        %v1599 = vpack.c.b16 %v1136, %v1135
        %v1600 = vpack.c.b16 %v1138, %v1137
        %v1601 = vpack.c.b16 %v1140, %v1139
        %v1602 = vpack.c.b16 %v1142, %v1141
        %v1603 = vpack.c.b16 %v1144, %v1143
        %v1604 = vpack.c.b16 %v1146, %v1145
        %v1605 = vpack.c.b16 %v1595, %v1147
        %v1636 = vunpack.c.l.b16 %v1564
        %v1637 = vunpack.c.h.b16 %v1564
        %v1638 = vunpack.c.l.b16 %v1565
        %v1639 = vunpack.c.l.b16 %v1566
        %v1640 = vunpack.c.h.b16 %v1566
        %v1641 = vunpack.c.l.b16 %v1567
        %v1642 = vunpack.c.l.b16 %v1568
        %v1643 = vunpack.c.h.b16 %v1568
        %v1644 = vunpack.c.l.b16 %v1569
        %v1645 = vunpack.c.l.b16 %v1570
        %v1646 = vunpack.c.h.b16 %v1570
        %v1647 = vunpack.c.l.b16 %v1571
        %v1648 = vunpack.c.l.b16 %v1572
        %v1649 = vunpack.c.h.b16 %v1572
        %v1650 = vunpack.c.l.b16 %v1573
        %v1651 = vunpack.c.l.b16 %v1574
        %v1652 = vunpack.c.h.b16 %v1574
        %v1653 = vunpack.c.l.b16 %v1575
        %v1654 = vunpack.c.l.b16 %v1576
        %v1655 = vunpack.c.h.b16 %v1576
        %v1656 = vunpack.c.l.b16 %v1577
        %v1657 = vunpack.c.l.b16 %v1578
        %v1658 = vunpack.c.h.b16 %v1578
        %v1659 = vunpack.c.l.b16 %v1579
        %v1660 = vunpack.c.l.b16 %v1580
        %v1661 = vunpack.c.h.b16 %v1580
        %v1662 = vunpack.c.l.b16 %v1581
        %v1663 = vunpack.c.l.b16 %v1582
        %v1664 = vunpack.c.h.b16 %v1582
        %v1665 = vunpack.c.l.b16 %v1583
        %v1666 = vunpack.c.l.b16 %v1584
        %v1667 = vunpack.c.h.b16 %v1584
        %v1668 = vunpack.c.l.b16 %v1585
        %v1669 = vunpack.c.l.b16 %v1586
        %v1670 = vunpack.c.h.b16 %v1586
        %v1671 = vunpack.c.l.b16 %v1587
        %v1672 = vunpack.c.l.b16 %v1588
        %v1673 = vunpack.c.h.b16 %v1588
        %v1674 = vunpack.c.l.b16 %v1589
        %v1675 = vunpack.c.l.b16 %v1590
        %v1676 = vunpack.c.h.b16 %v1590
        %v1677 = vunpack.c.l.b16 %v1591
        %v1678 = vunpack.c.l.b16 %v1592
        %v1679 = vunpack.c.h.b16 %v1592
        %v1680 = vunpack.c.l.b16 %v1593
        %v1681 = vpack.c.b16 %v1639, %v1636
        %v1682 = vpack.c.b16 %v1640, %v1637
        %v1683 = vpack.c.b16 %v1641, %v1638
        %v1684 = vpack.c.b16 %v1645, %v1642
        %v1685 = vpack.c.b16 %v1646, %v1643
        %v1686 = vpack.c.b16 %v1647, %v1644
        %v1687 = vpack.c.b16 %v1651, %v1648
        %v1688 = vpack.c.b16 %v1652, %v1649
        %v1689 = vpack.c.b16 %v1653, %v1650
        %v1690 = vpack.c.b16 %v1657, %v1654
        %v1691 = vpack.c.b16 %v1658, %v1655
        %v1692 = vpack.c.b16 %v1659, %v1656
        %v1693 = vpack.c.b16 %v1663, %v1660
        %v1694 = vpack.c.b16 %v1664, %v1661
        %v1695 = vpack.c.b16 %v1665, %v1662
        %v1696 = vpack.c.b16 %v1669, %v1666
        %v1697 = vpack.c.b16 %v1670, %v1667
        %v1698 = vpack.c.b16 %v1671, %v1668
        %v1699 = vpack.c.b16 %v1675, %v1672
        %v1700 = vpack.c.b16 %v1676, %v1673
        %v1701 = vpack.c.b16 %v1677, %v1674
        %v1702 = vpack.c.b16 %v1678, %v1678
        %v1703 = vpack.c.b16 %v1679, %v1679
        %v1704 = vpack.c.b16 %v1680, %v1680
        %v1727 = vsel %vm821, %v1596, 0
        %v1730 = vsel %vm821, %v1597, 0
        %v1733 = vsel %vm821, %v1598, 0
        %v1736 = vsel %vm821, %v1599, 0
        %v1739 = vsel %vm821, %v1600, 0
        %v1742 = vsel %vm821, %v1601, 0
        %v1745 = vsel %vm821, %v1602, 0
        %v1748 = vsel %vm821, %v1603, 0
        %v1751 = vsel %vm821, %v1604, 0
        %v1754 = vsel %vm821, %v1605, 0
        %v1757 = vsel %vm852, %v1702, 0
        %v1760 = vsel %vm852, %v1703, 0
        %v1763 = vsel %vm852, %v1704, 0
        %1765 = vmatprep.subr.bf16.mxu0 %v1760
        %1766 = vmatpush1.bf16.msra.mxu0 %v1757
        %1767 = vmatprep.subr.bf16.mxu0 %v1700
        %1768 = vmatpush1.bf16.msra.mxu0 %v1699
        %1769 = vmatprep.subr.bf16.mxu0 %v1697
        %1770 = vmatpush1.bf16.msra.mxu0 %v1696
        %1771 = vmatprep.subr.bf16.mxu0 %v1694
        %1772 = vmatpush1.bf16.msra.mxu0 %v1693
        %1773 = vmatprep.subr.bf16.mxu0 %v1691
        %1774 = vmatpush1.bf16.msra.mxu0 %v1690
        %1775 = vmatprep.subr.bf16.mxu0 %v1688
        %1776 = vmatpush1.bf16.msra.mxu0 %v1687
        %1777 = vmatprep.subr.bf16.mxu0 %v1685
        %1778 = vmatpush1.bf16.msra.mxu0 %v1684
        %1779 = vmatprep.subr.bf16.mxu0 %v1682
        %1780 = vmatpush1.bf16.msra.mxu0 %v1681
        %1781 = vmatprep.subr.bf16.mxu0 0
        %1782 = vmatpush2.bf16.msra.mxu0 0
        %1783 = vmatprep.subr.bf16.mxu0 0
        %1784 = vmatpush2.bf16.msra.mxu0 0
        %1785 = vmatprep.subr.bf16.mxu0 0
        %1786 = vmatpush2.bf16.msra.mxu0 0
        %1787 = vmatprep.subr.bf16.mxu0 0
        %1788 = vmatpush2.bf16.msra.mxu0 0
        %1789 = vmatprep.subr.bf16.mxu0 0
        %1790 = vmatpush2.bf16.msra.mxu0 0
        %1791 = vmatprep.subr.bf16.mxu0 0
        %1792 = vmatpush2.bf16.msra.mxu0 0
        %1793 = vmatprep.subr.bf16.mxu0 0
        %1794 = vmatpush2.bf16.msra.mxu0 0
        %1795 = vmatprep.subr.bf16.mxu0 0
        %1796 = vmatpush2.bf16.msra.mxu0 0
        %1797 = vmatprep.mubr.bf16.mxu0 0
        %1798 = vmatmul.mubr.bf16.gmra.mxu0 %v1727
        %v1799 = vpop.f32.mrf.mxu0
        %v1800 = vadd.f32 0.0, %v1799
        %v1801 = vpop.f32.mrf.mxu0
        %v1802 = vadd.f32 0.0, %v1801
        %v1803 = vpop.f32.mrf.mxu0
        %v1804 = vadd.f32 0.0, %v1803
        %v1805 = vpop.f32.mrf.mxu0
        %v1806 = vadd.f32 0.0, %v1805
        %1807 = vmatprep.mubr.bf16.mxu0 0
        %1808 = vmatmul.mubr.bf16.gmra.mxu0 %v1730
        %v1809 = vpop.f32.mrf.mxu0
        %v1810 = vadd.f32 0.0, %v1809
        %v1811 = vpop.f32.mrf.mxu0
        %v1812 = vadd.f32 0.0, %v1811
        %v1813 = vpop.f32.mrf.mxu0
        %v1814 = vadd.f32 0.0, %v1813
        %v1815 = vpop.f32.mrf.mxu0
        %v1816 = vadd.f32 0.0, %v1815
        %1817 = vmatprep.mubr.bf16.mxu0 0
        %1818 = vmatmul.mubr.bf16.gmra.mxu0 %v1733
        %v1819 = vpop.f32.mrf.mxu0
        %v1820 = vadd.f32 0.0, %v1819
        %v1821 = vpop.f32.mrf.mxu0
        %v1822 = vadd.f32 0.0, %v1821
        %v1823 = vpop.f32.mrf.mxu0
        %v1824 = vadd.f32 0.0, %v1823
        %v1825 = vpop.f32.mrf.mxu0
        %v1826 = vadd.f32 0.0, %v1825
        %1827 = vmatprep.mubr.bf16.mxu0 0
        %1828 = vmatmul.mubr.bf16.gmra.mxu0 %v1736
        %v1829 = vpop.f32.mrf.mxu0
        %v1830 = vadd.f32 0.0, %v1829
        %v1831 = vpop.f32.mrf.mxu0
        %v1832 = vadd.f32 0.0, %v1831
        %v1833 = vpop.f32.mrf.mxu0
        %v1834 = vadd.f32 0.0, %v1833
        %v1835 = vpop.f32.mrf.mxu0
        %v1836 = vadd.f32 0.0, %v1835
        %1837 = vmatprep.mubr.bf16.mxu0 0
        %1838 = vmatmul.mubr.bf16.gmra.mxu0 %v1739
        %v1839 = vpop.f32.mrf.mxu0
        %v1840 = vadd.f32 0.0, %v1839
        %v1841 = vpop.f32.mrf.mxu0
        %v1842 = vadd.f32 0.0, %v1841
        %v1843 = vpop.f32.mrf.mxu0
        %v1844 = vadd.f32 0.0, %v1843
        %v1845 = vpop.f32.mrf.mxu0
        %v1846 = vadd.f32 0.0, %v1845
        %1847 = vmatprep.mubr.bf16.mxu0 0
        %1848 = vmatmul.mubr.bf16.gmra.mxu0 %v1742
        %v1849 = vpop.f32.mrf.mxu0
        %v1850 = vadd.f32 0.0, %v1849
        %v1851 = vpop.f32.mrf.mxu0
        %v1852 = vadd.f32 0.0, %v1851
        %v1853 = vpop.f32.mrf.mxu0
        %v1854 = vadd.f32 0.0, %v1853
        %v1855 = vpop.f32.mrf.mxu0
        %v1856 = vadd.f32 0.0, %v1855
        %1857 = vmatprep.mubr.bf16.mxu0 0
        %1858 = vmatmul.mubr.bf16.gmra.mxu0 %v1745
        %v1859 = vpop.f32.mrf.mxu0
        %v1860 = vadd.f32 0.0, %v1859
        %v1861 = vpop.f32.mrf.mxu0
        %v1862 = vadd.f32 0.0, %v1861
        %v1863 = vpop.f32.mrf.mxu0
        %v1864 = vadd.f32 0.0, %v1863
        %v1865 = vpop.f32.mrf.mxu0
        %v1866 = vadd.f32 0.0, %v1865
        %1867 = vmatprep.mubr.bf16.mxu0 0
        %1868 = vmatmul.mubr.bf16.gmra.mxu0 %v1748
        %v1869 = vpop.f32.mrf.mxu0
        %v1870 = vadd.f32 0.0, %v1869
        %v1871 = vpop.f32.mrf.mxu0
        %v1872 = vadd.f32 0.0, %v1871
        %v1873 = vpop.f32.mrf.mxu0
        %v1874 = vadd.f32 0.0, %v1873
        %v1875 = vpop.f32.mrf.mxu0
        %v1876 = vadd.f32 0.0, %v1875
        %1877 = vmatprep.mubr.bf16.mxu0 0
        %1878 = vmatmul.mubr.bf16.gmra.mxu0 %v1751
        %v1879 = vpop.f32.mrf.mxu0
        %v1880 = vadd.f32 0.0, %v1879
        %v1881 = vpop.f32.mrf.mxu0
        %v1882 = vadd.f32 0.0, %v1881
        %v1883 = vpop.f32.mrf.mxu0
        %v1884 = vadd.f32 0.0, %v1883
        %v1885 = vpop.f32.mrf.mxu0
        %v1886 = vadd.f32 0.0, %v1885
        %1887 = vmatprep.mubr.bf16.mxu0 0
        %1888 = vmatmul.mubr.bf16.gmra.mxu0 %v1754
        %v1889 = vpop.f32.mrf.mxu0
        %v1890 = vadd.f32 0.0, %v1889
        %v1891 = vpop.f32.mrf.mxu0
        %v1892 = vadd.f32 0.0, %v1891
        %v1893 = vpop.f32.mrf.mxu0
        %v1894 = vadd.f32 0.0, %v1893
        %v1895 = vpop.f32.mrf.mxu0
        %v1896 = vadd.f32 0.0, %v1895
        %1897 = vdwg.mxu0
        %1898 = vmatprep.subr.bf16.mxu0 0
        %1899 = vmatpush1.bf16.msra.mxu0 %v1763
        %1900 = vmatprep.subr.bf16.mxu0 0
        %1901 = vmatpush1.bf16.msra.mxu0 %v1701
        %1902 = vmatprep.subr.bf16.mxu0 0
        %1903 = vmatpush1.bf16.msra.mxu0 %v1698
        %1904 = vmatprep.subr.bf16.mxu0 0
        %1905 = vmatpush1.bf16.msra.mxu0 %v1695
        %1906 = vmatprep.subr.bf16.mxu0 0
        %1907 = vmatpush1.bf16.msra.mxu0 %v1692
        %1908 = vmatprep.subr.bf16.mxu0 0
        %1909 = vmatpush1.bf16.msra.mxu0 %v1689
        %1910 = vmatprep.subr.bf16.mxu0 0
        %1911 = vmatpush1.bf16.msra.mxu0 %v1686
        %1912 = vmatprep.subr.bf16.mxu0 0
        %1913 = vmatpush1.bf16.msra.mxu0 %v1683
        %1914 = vmatprep.subr.bf16.mxu0 0
        %1915 = vmatpush2.bf16.msra.mxu0 0
        %1916 = vmatprep.subr.bf16.mxu0 0
        %1917 = vmatpush2.bf16.msra.mxu0 0
        %1918 = vmatprep.subr.bf16.mxu0 0
        %1919 = vmatpush2.bf16.msra.mxu0 0
        %1920 = vmatprep.subr.bf16.mxu0 0
        %1921 = vmatpush2.bf16.msra.mxu0 0
        %1922 = vmatprep.subr.bf16.mxu0 0
        %1923 = vmatpush2.bf16.msra.mxu0 0
        %1924 = vmatprep.subr.bf16.mxu0 0
        %1925 = vmatpush2.bf16.msra.mxu0 0
        %1926 = vmatprep.subr.bf16.mxu0 0
        %1927 = vmatpush2.bf16.msra.mxu0 0
        %1928 = vmatprep.subr.bf16.mxu0 0
        %1929 = vmatpush2.bf16.msra.mxu0 0
        %1930 = vmatprep.mubr.bf16.mxu0 0
        %1931 = vmatmul.mubr.bf16.gmra.mxu0 %v1727
        %v1932 = vpop.f32.mrf.mxu0
        %v1933 = vadd.f32 0.0, %v1932
        %v1934 = vpop.f32.mrf.mxu0
        %v1935 = vpop.f32.mrf.mxu0
        %v1936 = vadd.f32 0.0, %v1935
        %v1937 = vpop.f32.mrf.mxu0
        %1938 = vmatprep.mubr.bf16.mxu0 0
        %1939 = vmatmul.mubr.bf16.gmra.mxu0 %v1730
        %v1940 = vpop.f32.mrf.mxu0
        %v1941 = vadd.f32 0.0, %v1940
        %v1942 = vpop.f32.mrf.mxu0
        %v1943 = vpop.f32.mrf.mxu0
        %v1944 = vadd.f32 0.0, %v1943
        %v1945 = vpop.f32.mrf.mxu0
        %1946 = vmatprep.mubr.bf16.mxu0 0
        %1947 = vmatmul.mubr.bf16.gmra.mxu0 %v1733
        %v1948 = vpop.f32.mrf.mxu0
        %v1949 = vadd.f32 0.0, %v1948
        %v1950 = vpop.f32.mrf.mxu0
        %v1951 = vpop.f32.mrf.mxu0
        %v1952 = vadd.f32 0.0, %v1951
        %v1953 = vpop.f32.mrf.mxu0
        %1954 = vmatprep.mubr.bf16.mxu0 0
        %1955 = vmatmul.mubr.bf16.gmra.mxu0 %v1736
        %v1956 = vpop.f32.mrf.mxu0
        %v1957 = vadd.f32 0.0, %v1956
        %v1958 = vpop.f32.mrf.mxu0
        %v1959 = vpop.f32.mrf.mxu0
        %v1960 = vadd.f32 0.0, %v1959
        %v1961 = vpop.f32.mrf.mxu0
        %1962 = vmatprep.mubr.bf16.mxu0 0
        %1963 = vmatmul.mubr.bf16.gmra.mxu0 %v1739
        %v1964 = vpop.f32.mrf.mxu0
        %v1965 = vadd.f32 0.0, %v1964
        %v1966 = vpop.f32.mrf.mxu0
        %v1967 = vpop.f32.mrf.mxu0
        %v1968 = vadd.f32 0.0, %v1967
        %v1969 = vpop.f32.mrf.mxu0
        %1970 = vmatprep.mubr.bf16.mxu0 0
        %1971 = vmatmul.mubr.bf16.gmra.mxu0 %v1742
        %v1972 = vpop.f32.mrf.mxu0
        %v1973 = vadd.f32 0.0, %v1972
        %v1974 = vpop.f32.mrf.mxu0
        %v1975 = vpop.f32.mrf.mxu0
        %v1976 = vadd.f32 0.0, %v1975
        %v1977 = vpop.f32.mrf.mxu0
        %1978 = vmatprep.mubr.bf16.mxu0 0
        %1979 = vmatmul.mubr.bf16.gmra.mxu0 %v1745
        %v1980 = vpop.f32.mrf.mxu0
        %v1981 = vadd.f32 0.0, %v1980
        %v1982 = vpop.f32.mrf.mxu0
        %v1983 = vpop.f32.mrf.mxu0
        %v1984 = vadd.f32 0.0, %v1983
        %v1985 = vpop.f32.mrf.mxu0
        %1986 = vmatprep.mubr.bf16.mxu0 0
        %1987 = vmatmul.mubr.bf16.gmra.mxu0 %v1748
        %v1988 = vpop.f32.mrf.mxu0
        %v1989 = vadd.f32 0.0, %v1988
        %v1990 = vpop.f32.mrf.mxu0
        %v1991 = vpop.f32.mrf.mxu0
        %v1992 = vadd.f32 0.0, %v1991
        %v1993 = vpop.f32.mrf.mxu0
        %1994 = vmatprep.mubr.bf16.mxu0 0
        %1995 = vmatmul.mubr.bf16.gmra.mxu0 %v1751
        %v1996 = vpop.f32.mrf.mxu0
        %v1997 = vadd.f32 0.0, %v1996
        %v1998 = vpop.f32.mrf.mxu0
        %v1999 = vpop.f32.mrf.mxu0
        %v2000 = vadd.f32 0.0, %v1999
        %v2001 = vpop.f32.mrf.mxu0
        %2002 = vmatprep.mubr.bf16.mxu0 0
        %2003 = vmatmul.mubr.bf16.gmra.mxu0 %v1754
        %v2004 = vpop.f32.mrf.mxu0
        %v2005 = vadd.f32 0.0, %v2004
        %v2006 = vpop.f32.mrf.mxu0
        %v2007 = vpop.f32.mrf.mxu0
        %v2008 = vadd.f32 0.0, %v2007
        %v2009 = vpop.f32.mrf.mxu0
        %2010 = vdwg.mxu0
        %v2011 = vadd.f32 %v1352, %v1800
        %v2012 = vadd.f32 %v1354, %v1802
        %v2013 = vadd.f32 %v1485, %v1933
        %v2014 = vadd.f32 %v1356, %v1804
        %v2015 = vadd.f32 %v1358, %v1806
        %v2016 = vadd.f32 %v1488, %v1936
        %v2017 = vadd.f32 %v1362, %v1810
        %v2018 = vadd.f32 %v1364, %v1812
        %v2019 = vadd.f32 %v1493, %v1941
        %v2020 = vadd.f32 %v1366, %v1814
        %v2021 = vadd.f32 %v1368, %v1816
        %v2022 = vadd.f32 %v1496, %v1944
        %v2023 = vadd.f32 %v1372, %v1820
        %v2024 = vadd.f32 %v1374, %v1822
        %v2025 = vadd.f32 %v1501, %v1949
        %v2026 = vadd.f32 %v1376, %v1824
        %v2027 = vadd.f32 %v1378, %v1826
        %v2028 = vadd.f32 %v1504, %v1952
        %v2029 = vadd.f32 %v1382, %v1830
        %v2030 = vadd.f32 %v1384, %v1832
        %v2031 = vadd.f32 %v1509, %v1957
        %v2032 = vadd.f32 %v1386, %v1834
        %v2033 = vadd.f32 %v1388, %v1836
        %v2034 = vadd.f32 %v1512, %v1960
        %v2035 = vadd.f32 %v1392, %v1840
        %v2036 = vadd.f32 %v1394, %v1842
        %v2037 = vadd.f32 %v1517, %v1965
        %v2038 = vadd.f32 %v1396, %v1844
        %v2039 = vadd.f32 %v1398, %v1846
        %v2040 = vadd.f32 %v1520, %v1968
        %v2041 = vadd.f32 %v1402, %v1850
        %v2042 = vadd.f32 %v1404, %v1852
        %v2043 = vadd.f32 %v1525, %v1973
        %v2044 = vadd.f32 %v1406, %v1854
        %v2045 = vadd.f32 %v1408, %v1856
        %v2046 = vadd.f32 %v1528, %v1976
        %v2047 = vadd.f32 %v1412, %v1860
        %v2048 = vadd.f32 %v1414, %v1862
        %v2049 = vadd.f32 %v1533, %v1981
        %v2050 = vadd.f32 %v1416, %v1864
        %v2051 = vadd.f32 %v1418, %v1866
        %v2052 = vadd.f32 %v1536, %v1984
        %v2053 = vadd.f32 %v1422, %v1870
        %v2054 = vadd.f32 %v1424, %v1872
        %v2055 = vadd.f32 %v1541, %v1989
        %v2056 = vadd.f32 %v1426, %v1874
        %v2057 = vadd.f32 %v1428, %v1876
        %v2058 = vadd.f32 %v1544, %v1992
        %v2059 = vadd.f32 %v1432, %v1880
        %v2060 = vadd.f32 %v1434, %v1882
        %v2061 = vadd.f32 %v1549, %v1997
        %v2062 = vadd.f32 %v1436, %v1884
        %v2063 = vadd.f32 %v1438, %v1886
        %v2064 = vadd.f32 %v1552, %v2000
        %v2065 = vadd.f32 %v1442, %v1890
        %v2066 = vadd.f32 %v1444, %v1892
        %v2067 = vadd.f32 %v1557, %v2005
        %v2068 = vadd.f32 %v1446, %v1894
        %v2069 = vadd.f32 %v1448, %v1896
        %v2070 = vadd.f32 %v1560, %v2008
        %v2071 = vld [vmem:[%s5] sm:$0x7]
        %v2073 = vlaneseq
        %v2074 = vshrl.u32 %v2073, 7
        %v2075 = vsub.s32 0, %v2074
        %v2076 = vrot.slane %v2071, %v2075
        %v2077 = vlaneseq
        %v2078 = vshrl.u32 %v2077, 7
        %v2079 = vsub.s32 1, %v2078
        %v2080 = vrot.slane %v2071, %v2079
        %v2081 = vlaneseq
        %v2082 = vshrl.u32 %v2081, 7
        %v2083 = vsub.s32 2, %v2082
        %v2084 = vrot.slane %v2071, %v2083
        %v2088 = vadd.f32 %v2011, %v2076
        %v2089 = vadd.f32 %v2012, %v2080
        %v2090 = vadd.f32 %v2013, %v2084
        %v2091 = vadd.f32 %v2014, %v2076
        %v2092 = vadd.f32 %v2015, %v2080
        %v2093 = vadd.f32 %v2016, %v2084
        %v2094 = vadd.f32 %v2017, %v2076
        %v2095 = vadd.f32 %v2018, %v2080
        %v2096 = vadd.f32 %v2019, %v2084
        %v2097 = vadd.f32 %v2020, %v2076
        %v2098 = vadd.f32 %v2021, %v2080
        %v2099 = vadd.f32 %v2022, %v2084
        %v2100 = vadd.f32 %v2023, %v2076
        %v2101 = vadd.f32 %v2024, %v2080
        %v2102 = vadd.f32 %v2025, %v2084
        %v2103 = vadd.f32 %v2026, %v2076
        %v2104 = vadd.f32 %v2027, %v2080
        %v2105 = vadd.f32 %v2028, %v2084
        %v2106 = vadd.f32 %v2029, %v2076
        %v2107 = vadd.f32 %v2030, %v2080
        %v2108 = vadd.f32 %v2031, %v2084
        %v2109 = vadd.f32 %v2032, %v2076
        %v2110 = vadd.f32 %v2033, %v2080
        %v2111 = vadd.f32 %v2034, %v2084
        %v2112 = vadd.f32 %v2035, %v2076
        %v2113 = vadd.f32 %v2036, %v2080
        %v2114 = vadd.f32 %v2037, %v2084
        %v2115 = vadd.f32 %v2038, %v2076
        %v2116 = vadd.f32 %v2039, %v2080
        %v2117 = vadd.f32 %v2040, %v2084
        %v2118 = vadd.f32 %v2041, %v2076
        %v2119 = vadd.f32 %v2042, %v2080
        %v2120 = vadd.f32 %v2043, %v2084
        %v2121 = vadd.f32 %v2044, %v2076
        %v2122 = vadd.f32 %v2045, %v2080
        %v2123 = vadd.f32 %v2046, %v2084
        %v2124 = vadd.f32 %v2047, %v2076
        %v2125 = vadd.f32 %v2048, %v2080
        %v2126 = vadd.f32 %v2049, %v2084
        %v2127 = vadd.f32 %v2050, %v2076
        %v2128 = vadd.f32 %v2051, %v2080
        %v2129 = vadd.f32 %v2052, %v2084
        %v2130 = vadd.f32 %v2053, %v2076
        %v2131 = vadd.f32 %v2054, %v2080
        %v2132 = vadd.f32 %v2055, %v2084
        %v2133 = vadd.f32 %v2056, %v2076
        %v2134 = vadd.f32 %v2057, %v2080
        %v2135 = vadd.f32 %v2058, %v2084
        %v2136 = vadd.f32 %v2059, %v2076
        %v2137 = vadd.f32 %v2060, %v2080
        %v2138 = vadd.f32 %v2061, %v2084
        %v2139 = vadd.f32 %v2062, %v2076
        %v2140 = vadd.f32 %v2063, %v2080
        %v2141 = vadd.f32 %v2064, %v2084
        %v2142 = vadd.f32 %v2065, %v2076
        %v2143 = vadd.f32 %v2066, %v2080
        %v2144 = vadd.f32 %v2067, %v2084
        %v2145 = vadd.f32 %v2068, %v2076
        %v2146 = vadd.f32 %v2069, %v2080
        %v2147 = vadd.f32 %v2070, %v2084
        %v2148 = vmax.f32 %v2088, 0.0
        %v2149 = vmax.f32 %v2089, 0.0
        %v2150 = vmax.f32 %v2090, 0.0
        %v2151 = vmax.f32 %v2091, 0.0
        %v2152 = vmax.f32 %v2092, 0.0
        %v2153 = vmax.f32 %v2093, 0.0
        %v2154 = vmax.f32 %v2094, 0.0
        %v2155 = vmax.f32 %v2095, 0.0
        %v2156 = vmax.f32 %v2096, 0.0
        %v2157 = vmax.f32 %v2097, 0.0
        %v2158 = vmax.f32 %v2098, 0.0
        %v2159 = vmax.f32 %v2099, 0.0
        %v2160 = vmax.f32 %v2100, 0.0
        %v2161 = vmax.f32 %v2101, 0.0
        %v2162 = vmax.f32 %v2102, 0.0
        %v2163 = vmax.f32 %v2103, 0.0
        %v2164 = vmax.f32 %v2104, 0.0
        %v2165 = vmax.f32 %v2105, 0.0
        %v2166 = vmax.f32 %v2106, 0.0
        %v2167 = vmax.f32 %v2107, 0.0
        %v2168 = vmax.f32 %v2108, 0.0
        %v2169 = vmax.f32 %v2109, 0.0
        %v2170 = vmax.f32 %v2110, 0.0
        %v2171 = vmax.f32 %v2111, 0.0
        %v2172 = vmax.f32 %v2112, 0.0
        %v2173 = vmax.f32 %v2113, 0.0
        %v2174 = vmax.f32 %v2114, 0.0
        %v2175 = vmax.f32 %v2115, 0.0
        %v2176 = vmax.f32 %v2116, 0.0
        %v2177 = vmax.f32 %v2117, 0.0
        %v2178 = vmax.f32 %v2118, 0.0
        %v2179 = vmax.f32 %v2119, 0.0
        %v2180 = vmax.f32 %v2120, 0.0
        %v2181 = vmax.f32 %v2121, 0.0
        %v2182 = vmax.f32 %v2122, 0.0
        %v2183 = vmax.f32 %v2123, 0.0
        %v2184 = vmax.f32 %v2124, 0.0
        %v2185 = vmax.f32 %v2125, 0.0
        %v2186 = vmax.f32 %v2126, 0.0
        %v2187 = vmax.f32 %v2127, 0.0
        %v2188 = vmax.f32 %v2128, 0.0
        %v2189 = vmax.f32 %v2129, 0.0
        %v2190 = vmax.f32 %v2130, 0.0
        %v2191 = vmax.f32 %v2131, 0.0
        %v2192 = vmax.f32 %v2132, 0.0
        %v2193 = vmax.f32 %v2133, 0.0
        %v2194 = vmax.f32 %v2134, 0.0
        %v2195 = vmax.f32 %v2135, 0.0
        %v2196 = vmax.f32 %v2136, 0.0
        %v2197 = vmax.f32 %v2137, 0.0
        %v2198 = vmax.f32 %v2138, 0.0
        %v2199 = vmax.f32 %v2139, 0.0
        %v2200 = vmax.f32 %v2140, 0.0
        %v2201 = vmax.f32 %v2141, 0.0
        %v2202 = vmax.f32 %v2142, 0.0
        %v2203 = vmax.f32 %v2143, 0.0
        %v2204 = vmax.f32 %v2144, 0.0
        %v2205 = vmax.f32 %v2145, 0.0
        %v2206 = vmax.f32 %v2146, 0.0
        %v2207 = vmax.f32 %v2147, 0.0
        %v2208 = vpack.c.bf16 %v2151, %v2148
        %v2209 = vpack.c.bf16 %v2152, %v2149
        %v2210 = vpack.c.bf16 %v2153, %v2150
        %v2211 = vpack.c.bf16 %v2157, %v2154
        %v2212 = vpack.c.bf16 %v2158, %v2155
        %v2213 = vpack.c.bf16 %v2159, %v2156
        %v2214 = vpack.c.bf16 %v2163, %v2160
        %v2215 = vpack.c.bf16 %v2164, %v2161
        %v2216 = vpack.c.bf16 %v2165, %v2162
        %v2217 = vpack.c.bf16 %v2169, %v2166
        %v2218 = vpack.c.bf16 %v2170, %v2167
        %v2219 = vpack.c.bf16 %v2171, %v2168
        %v2220 = vpack.c.bf16 %v2175, %v2172
        %v2221 = vpack.c.bf16 %v2176, %v2173
        %v2222 = vpack.c.bf16 %v2177, %v2174
        %v2223 = vpack.c.bf16 %v2181, %v2178
        %v2224 = vpack.c.bf16 %v2182, %v2179
        %v2225 = vpack.c.bf16 %v2183, %v2180
        %v2226 = vpack.c.bf16 %v2187, %v2184
        %v2227 = vpack.c.bf16 %v2188, %v2185
        %v2228 = vpack.c.bf16 %v2189, %v2186
        %v2229 = vpack.c.bf16 %v2193, %v2190
        %v2230 = vpack.c.bf16 %v2194, %v2191
        %v2231 = vpack.c.bf16 %v2195, %v2192
        %v2232 = vpack.c.bf16 %v2199, %v2196
        %v2233 = vpack.c.bf16 %v2200, %v2197
        %v2234 = vpack.c.bf16 %v2201, %v2198
        %v2235 = vpack.c.bf16 %v2205, %v2202
        %v2236 = vpack.c.bf16 %v2206, %v2203
        %v2237 = vpack.c.bf16 %v2207, %v2204
        %v2268 = vunpack.c.l.b16 %v2208
        %v2269 = vunpack.c.l.b16 %v2209
        %v2270 = vunpack.c.l.b16 %v2210
        %v2271 = vunpack.c.h.b16 %v2208
        %v2272 = vunpack.c.h.b16 %v2209
        %v2273 = vunpack.c.h.b16 %v2210
        %v2274 = vunpack.c.l.b16 %v2211
        %v2275 = vunpack.c.l.b16 %v2212
        %v2276 = vunpack.c.l.b16 %v2213
        %v2277 = vunpack.c.h.b16 %v2211
        %v2278 = vunpack.c.h.b16 %v2212
        %v2279 = vunpack.c.h.b16 %v2213
        %v2280 = vunpack.c.l.b16 %v2214
        %v2281 = vunpack.c.l.b16 %v2215
        %v2282 = vunpack.c.l.b16 %v2216
        %v2283 = vunpack.c.h.b16 %v2214
        %v2284 = vunpack.c.h.b16 %v2215
        %v2285 = vunpack.c.h.b16 %v2216
        %v2286 = vunpack.c.l.b16 %v2217
        %v2287 = vunpack.c.l.b16 %v2218
        %v2288 = vunpack.c.l.b16 %v2219
        %v2289 = vunpack.c.h.b16 %v2217
        %v2290 = vunpack.c.h.b16 %v2218
        %v2291 = vunpack.c.h.b16 %v2219
        %v2292 = vunpack.c.l.b16 %v2220
        %v2293 = vunpack.c.l.b16 %v2221
        %v2294 = vunpack.c.l.b16 %v2222
        %v2295 = vunpack.c.h.b16 %v2220
        %v2296 = vunpack.c.h.b16 %v2221
        %v2297 = vunpack.c.h.b16 %v2222
        %v2298 = vunpack.c.l.b16 %v2223
        %v2299 = vunpack.c.l.b16 %v2224
        %v2300 = vunpack.c.l.b16 %v2225
        %v2301 = vunpack.c.h.b16 %v2223
        %v2302 = vunpack.c.h.b16 %v2224
        %v2303 = vunpack.c.h.b16 %v2225
        %v2304 = vunpack.c.l.b16 %v2226
        %v2305 = vunpack.c.l.b16 %v2227
        %v2306 = vunpack.c.l.b16 %v2228
        %v2307 = vunpack.c.h.b16 %v2226
        %v2308 = vunpack.c.h.b16 %v2227
        %v2309 = vunpack.c.h.b16 %v2228
        %v2310 = vunpack.c.l.b16 %v2229
        %v2311 = vunpack.c.l.b16 %v2230
        %v2312 = vunpack.c.l.b16 %v2231
        %v2313 = vunpack.c.h.b16 %v2229
        %v2314 = vunpack.c.h.b16 %v2230
        %v2315 = vunpack.c.h.b16 %v2231
        %v2316 = vunpack.c.l.b16 %v2232
        %v2317 = vunpack.c.l.b16 %v2233
        %v2318 = vunpack.c.l.b16 %v2234
        %v2319 = vunpack.c.h.b16 %v2232
        %v2320 = vunpack.c.h.b16 %v2233
        %v2321 = vunpack.c.h.b16 %v2234
        %v2322 = vunpack.c.l.b16 %v2235
        %v2323 = vunpack.c.l.b16 %v2236
        %v2324 = vunpack.c.l.b16 %v2237
        %v2325 = vunpack.c.h.b16 %v2235
        %v2326 = vunpack.c.h.b16 %v2236
        %v2327 = vunpack.c.h.b16 %v2237
        %v2328 = vpack.c.b16 %v2269, %v2268
        %v2329 = vpack.c.b16 %v2270, %v2270
        %v2330 = vpack.c.b16 %v2272, %v2271
        %v2331 = vpack.c.b16 %v2273, %v2273
        %v2332 = vpack.c.b16 %v2275, %v2274
        %v2333 = vpack.c.b16 %v2276, %v2276
        %v2334 = vpack.c.b16 %v2278, %v2277
        %v2335 = vpack.c.b16 %v2279, %v2279
        %v2336 = vpack.c.b16 %v2281, %v2280
        %v2337 = vpack.c.b16 %v2282, %v2282
        %v2338 = vpack.c.b16 %v2284, %v2283
        %v2339 = vpack.c.b16 %v2285, %v2285
        %v2340 = vpack.c.b16 %v2287, %v2286
        %v2341 = vpack.c.b16 %v2288, %v2288
        %v2342 = vpack.c.b16 %v2290, %v2289
        %v2343 = vpack.c.b16 %v2291, %v2291
        %v2344 = vpack.c.b16 %v2293, %v2292
        %v2345 = vpack.c.b16 %v2294, %v2294
        %v2346 = vpack.c.b16 %v2296, %v2295
        %v2347 = vpack.c.b16 %v2297, %v2297
        %v2348 = vpack.c.b16 %v2299, %v2298
        %v2349 = vpack.c.b16 %v2300, %v2300
        %v2350 = vpack.c.b16 %v2302, %v2301
        %v2351 = vpack.c.b16 %v2303, %v2303
        %v2352 = vpack.c.b16 %v2305, %v2304
        %v2353 = vpack.c.b16 %v2306, %v2306
        %v2354 = vpack.c.b16 %v2308, %v2307
        %v2355 = vpack.c.b16 %v2309, %v2309
        %v2356 = vpack.c.b16 %v2311, %v2310
        %v2357 = vpack.c.b16 %v2312, %v2312
        %v2358 = vpack.c.b16 %v2314, %v2313
        %v2359 = vpack.c.b16 %v2315, %v2315
        %v2360 = vpack.c.b16 %v2317, %v2316
        %v2361 = vpack.c.b16 %v2318, %v2318
        %v2362 = vpack.c.b16 %v2320, %v2319
        %v2363 = vpack.c.b16 %v2321, %v2321
        %v2364 = vpack.c.b16 %v2323, %v2322
        %v2365 = vpack.c.b16 %v2324, %v2324
        %v2366 = vpack.c.b16 %v2326, %v2325
        %v2367 = vpack.c.b16 %v2327, %v2327
        %s2408 = scalar_lea.vmem [#allocation2], 24
        %2409 = vst [vmem:[%s2408] sm:$0xff] %v2328
        %2410 = vst [vmem:[%s2408 + $0x8] sm:$0xf] %v2329
        %2411 = vst [vmem:[%s2408 + $0xc] sm:$0xff] %v2330
        %2412 = vst [vmem:[%s2408 + $0x14] sm:$0xf] %v2331
        %2413 = vst [vmem:[%s2408 + $0x18] sm:$0xff] %v2332
        %2414 = vst [vmem:[%s2408 + $0x20] sm:$0xf] %v2333
        %2415 = vst [vmem:[%s2408 + $0x24] sm:$0xff] %v2334
        %2416 = vst [vmem:[%s2408 + $0x2c] sm:$0xf] %v2335
        %2417 = vst [vmem:[%s2408 + $0x30] sm:$0xff] %v2336
        %2418 = vst [vmem:[%s2408 + $0x38] sm:$0xf] %v2337
        %2419 = vst [vmem:[%s2408 + $0x3c] sm:$0xff] %v2338
        %2420 = vst [vmem:[%s2408 + $0x44] sm:$0xf] %v2339
        %2421 = vst [vmem:[%s2408 + $0x48] sm:$0xff] %v2340
        %2422 = vst [vmem:[%s2408 + $0x50] sm:$0xf] %v2341
        %2423 = vst [vmem:[%s2408 + $0x54] sm:$0xff] %v2342
        %2424 = vst [vmem:[%s2408 + $0x5c] sm:$0xf] %v2343
        %2425 = vst [vmem:[%s2408 + $0x60] sm:$0xff] %v2344
        %2426 = vst [vmem:[%s2408 + $0x68] sm:$0xf] %v2345
        %2427 = vst [vmem:[%s2408 + $0x6c] sm:$0xff] %v2346
        %2428 = vst [vmem:[%s2408 + $0x74] sm:$0xf] %v2347
        %2429 = vst [vmem:[%s2408 + $0x78] sm:$0xff] %v2348
        %2430 = vst [vmem:[%s2408 + $0x80] sm:$0xf] %v2349
        %2431 = vst [vmem:[%s2408 + $0x84] sm:$0xff] %v2350
        %2432 = vst [vmem:[%s2408 + $0x8c] sm:$0xf] %v2351
        %2433 = vst [vmem:[%s2408 + $0x90] sm:$0xff] %v2352
        %2434 = vst [vmem:[%s2408 + $0x98] sm:$0xf] %v2353
        %2435 = vst [vmem:[%s2408 + $0x9c] sm:$0xff] %v2354
        %2436 = vst [vmem:[%s2408 + $0xa4] sm:$0xf] %v2355
        %2437 = vst [vmem:[%s2408 + $0xa8] sm:$0xff] %v2356
        %2438 = vst [vmem:[%s2408 + $0xb0] sm:$0xf] %v2357
        %2439 = vst [vmem:[%s2408 + $0xb4] sm:$0xff] %v2358
        %2440 = vst [vmem:[%s2408 + $0xbc] sm:$0xf] %v2359
        %2441 = vst [vmem:[%s2408 + $0xc0] sm:$0xff] %v2360
        %2442 = vst [vmem:[%s2408 + $0xc8] sm:$0xf] %v2361
        %2443 = vst [vmem:[%s2408 + $0xcc] sm:$0xff] %v2362
        %2444 = vst [vmem:[%s2408 + $0xd4] sm:$0xf] %v2363
        %2445 = vst [vmem:[%s2408 + $0xd8] sm:$0xff] %v2364
        %2446 = vst [vmem:[%s2408 + $0xe0] sm:$0xf] %v2365
        %2447 = vst [vmem:[%s2408 + $0xe4] sm:$0xff] %v2366
        %2448 = vst [vmem:[%s2408 + $0xec] sm:$0xf] %v2367
        %s2449 = scalar_lea.vmem [#allocation2], 12
        %v2450 = vld [vmem:[%s2449] sm:$0xff]
        %v2451 = vld [vmem:[%s2449 + $0x8] sm:$0xf]
        %v2452 = vld [vmem:[%s2449 + $0x18] sm:$0xff]
        %v2453 = vld [vmem:[%s2449 + $0x20] sm:$0xf]
        %v2454 = vld [vmem:[%s2449 + $0x30] sm:$0xff]
        %v2455 = vld [vmem:[%s2449 + $0x38] sm:$0xf]
        %v2456 = vld [vmem:[%s2449 + $0x48] sm:$0xff]
        %v2457 = vld [vmem:[%s2449 + $0x50] sm:$0xf]
        %v2458 = vld [vmem:[%s2449 + $0x60] sm:$0xff]
        %v2459 = vld [vmem:[%s2449 + $0x68] sm:$0xf]
        %v2460 = vld [vmem:[%s2449 + $0x78] sm:$0xff]
        %v2461 = vld [vmem:[%s2449 + $0x80] sm:$0xf]
        %v2462 = vld [vmem:[%s2449 + $0x90] sm:$0xff]
        %v2463 = vld [vmem:[%s2449 + $0x98] sm:$0xf]
        %v2464 = vld [vmem:[%s2449 + $0xa8] sm:$0xff]
        %v2465 = vld [vmem:[%s2449 + $0xb0] sm:$0xf]
        %v2466 = vld [vmem:[%s2449 + $0xc0] sm:$0xff]
        %v2467 = vld [vmem:[%s2449 + $0xc8] sm:$0xf]
        %v2468 = vld [vmem:[%s2449 + $0xd8] sm:$0xff]
        %v2469 = vld [vmem:[%s2449 + $0xe0] sm:$0xf]
        %v2470 = vld [vmem:[%s2] sm:$0xff]
        %v2471 = vld [vmem:[%s2 + $0x8] sm:$0xff]
        %v2472 = vld [vmem:[%s2 + $0x10] sm:$0xff]
        %v2473 = vld [vmem:[%s2 + $0x18] sm:$0xff]
        %v2474 = vld [vmem:[%s2 + $0x20] sm:$0xff]
        %v2475 = vld [vmem:[%s2 + $0x28] sm:$0xff]
        %v2476 = vld [vmem:[%s2 + $0x30] sm:$0xff]
        %v2477 = vld [vmem:[%s2 + $0x38] sm:$0xff]
        %v2478 = vld [vmem:[%s2 + $0x40] sm:$0xff]
        %v2479 = vld [vmem:[%s2 + $0x48] sm:$0xff]
        %v2480 = vld [vmem:[%s2 + $0x50] sm:$0xff]
        %v2481 = vld [vmem:[%s2 + $0x58] sm:$0xff]
        %v2482 = vld [vmem:[%s2 + $0x60] sm:$0xff]
        %v2483 = vld [vmem:[%s2 + $0x68] sm:$0xff]
        %v2484 = vld [vmem:[%s2 + $0x70] sm:$0xff]
        %v2485 = vld [vmem:[%s2 + $0x78] sm:$0xff]
        %v2486 = vld [vmem:[%s2 + $0x80] sm:$0xff]
        %v2487 = vld [vmem:[%s2 + $0x88] sm:$0xff]
        %v2488 = vld [vmem:[%s2 + $0x90] sm:$0xff]
        %v2489 = vld [vmem:[%s2 + $0x98] sm:$0xff]
        %v2490 = vld [vmem:[%s2 + $0xa0] sm:$0xff]
        %v2491 = vld [vmem:[%s2 + $0xa8] sm:$0xff]
        %v2492 = vld [vmem:[%s2 + $0xb0] sm:$0xff]
        %v2493 = vld [vmem:[%s2 + $0xb8] sm:$0xff]
        %v2494 = vld [vmem:[%s2 + $0xc0] sm:$0xff]
        %v2495 = vld [vmem:[%s2 + $0xc8] sm:$0xff]
        %v2496 = vld [vmem:[%s2 + $0xd0] sm:$0xff]
        %v2497 = vld [vmem:[%s2 + $0xd8] sm:$0xff]
        %v2498 = vld [vmem:[%s2 + $0xe0] sm:$0xff]
        %v2499 = vld [vmem:[%s2 + $0xe8] sm:$0xff]
        %v2500 = vld [vmem:[%s2 + $0xf0] sm:$0xff]
        %v2501 = vld [vmem:[%s2 + $0xf8] sm:$0xff]
        %v2502 = vld [vmem:[%s2 + $0x100] sm:$0xff]
        %v2503 = vld [vmem:[%s2 + $0x108] sm:$0xff]
        %v2504 = vld [vmem:[%s2 + $0x110] sm:$0xff]
        %v2505 = vld [vmem:[%s2 + $0x118] sm:$0xff]
        %v2506 = vld [vmem:[%s2 + $0x120] sm:$0xff]
        %v2507 = vld [vmem:[%s2 + $0x128] sm:$0xff]
        %v2508 = vld [vmem:[%s2 + $0x130] sm:$0xff]
        %v2509 = vld [vmem:[%s2 + $0x138] sm:$0xff]
        %v2510 = vld [vmem:[%s2 + $0x140] sm:$0xff]
        %v2511 = vld [vmem:[%s2 + $0x148] sm:$0xff]
        %v2512 = vld [vmem:[%s2 + $0x150] sm:$0xff]
        %v2513 = vld [vmem:[%s2 + $0x158] sm:$0xff]
        %v2514 = vld [vmem:[%s2 + $0x160] sm:$0xff]
        %v2515 = vld [vmem:[%s2 + $0x168] sm:$0xff]
        %v2516 = vld [vmem:[%s2 + $0x170] sm:$0xff]
        %v2517 = vld [vmem:[%s2 + $0x178] sm:$0xff]
        %v2518 = vld [vmem:[%s2 + $0x180] sm:$0xff]
        %v2519 = vld [vmem:[%s2 + $0x188] sm:$0xff]
        %v2520 = vld [vmem:[%s2 + $0x190] sm:$0xff]
        %v2521 = vld [vmem:[%s2 + $0x198] sm:$0xff]
        %v2522 = vld [vmem:[%s2 + $0x1a0] sm:$0xff]
        %v2523 = vld [vmem:[%s2 + $0x1a8] sm:$0xff]
        %v2524 = vld [vmem:[%s2 + $0x1b0] sm:$0xff]
        %v2525 = vld [vmem:[%s2 + $0x1b8] sm:$0xff]
        %v2526 = vld [vmem:[%s2 + $0x1c0] sm:$0xff]
        %v2527 = vld [vmem:[%s2 + $0x1c8] sm:$0xff]
        %v2528 = vld [vmem:[%s2 + $0x1d0] sm:$0xff]
        %v2529 = vld [vmem:[%s2 + $0x1d8] sm:$0xff]
        %v2530 = vld [vmem:[%s2 + $0x1e0] sm:$0xff]
        %v2531 = vld [vmem:[%s2 + $0x1e8] sm:$0xff]
        %v2532 = vld [vmem:[%s2 + $0x1f0] sm:$0xff]
        %v2533 = vld [vmem:[%s2 + $0x1f8] sm:$0xff]
        %v2534 = vld [vmem:[%s2 + $0x200] sm:$0xff]
        %v2535 = vld [vmem:[%s2 + $0x208] sm:$0xff]
        %v2536 = vld [vmem:[%s2 + $0x210] sm:$0xff]
        %v2537 = vld [vmem:[%s2 + $0x218] sm:$0xff]
        %v2538 = vld [vmem:[%s2 + $0x220] sm:$0xff]
        %v2539 = vld [vmem:[%s2 + $0x228] sm:$0xff]
        %v2540 = vld [vmem:[%s2 + $0x230] sm:$0xff]
        %v2541 = vld [vmem:[%s2 + $0x238] sm:$0xff]
        %v2542 = vld [vmem:[%s2 + $0x240] sm:$0xff]
        %v2543 = vld [vmem:[%s2 + $0x248] sm:$0xff]
        %v2544 = vld [vmem:[%s2 + $0x250] sm:$0xff]
        %v2545 = vld [vmem:[%s2 + $0x258] sm:$0xff]
        %v2546 = vld [vmem:[%s2 + $0x260] sm:$0xff]
        %v2547 = vld [vmem:[%s2 + $0x268] sm:$0xff]
        %v2548 = vld [vmem:[%s2 + $0x270] sm:$0xff]
        %v2549 = vld [vmem:[%s2 + $0x278] sm:$0xff]
        %v2550 = vld [vmem:[%s2 + $0x280] sm:$0xff]
        %v2551 = vld [vmem:[%s2 + $0x288] sm:$0xff]
        %v2552 = vld [vmem:[%s2 + $0x290] sm:$0xff]
        %v2553 = vld [vmem:[%s2 + $0x298] sm:$0xff]
        %v2554 = vld [vmem:[%s2 + $0x2a0] sm:$0xff]
        %v2555 = vld [vmem:[%s2 + $0x2a8] sm:$0xff]
        %v2556 = vld [vmem:[%s2 + $0x2b0] sm:$0xff]
        %v2557 = vld [vmem:[%s2 + $0x2b8] sm:$0xff]
        %v2558 = vld [vmem:[%s2 + $0x2c0] sm:$0xff]
        %v2559 = vld [vmem:[%s2 + $0x2c8] sm:$0xff]
        %v2560 = vld [vmem:[%s2 + $0x2d0] sm:$0xff]
        %v2561 = vld [vmem:[%s2 + $0x2d8] sm:$0xff]
        %v2562 = vld [vmem:[%s2 + $0x2e0] sm:$0xff]
        %v2563 = vld [vmem:[%s2 + $0x2e8] sm:$0xff]
        %v2564 = vld [vmem:[%s2 + $0x2f0] sm:$0xff]
        %v2565 = vld [vmem:[%s2 + $0x2f8] sm:$0xff]
        %v2566 = vld [vmem:[%s2408] sm:$0xff]
        %v2567 = vld [vmem:[%s2408 + $0x8] sm:$0xf]
        %v2568 = vld [vmem:[%s2408 + $0x18] sm:$0xff]
        %v2569 = vld [vmem:[%s2408 + $0x20] sm:$0xf]
        %v2570 = vld [vmem:[%s2408 + $0x30] sm:$0xff]
        %v2571 = vld [vmem:[%s2408 + $0x38] sm:$0xf]
        %v2572 = vld [vmem:[%s2408 + $0x48] sm:$0xff]
        %v2573 = vld [vmem:[%s2408 + $0x50] sm:$0xf]
        %v2574 = vld [vmem:[%s2408 + $0x60] sm:$0xff]
        %v2575 = vld [vmem:[%s2408 + $0x68] sm:$0xf]
        %v2576 = vld [vmem:[%s2408 + $0x78] sm:$0xff]
        %v2577 = vld [vmem:[%s2408 + $0x80] sm:$0xf]
        %v2578 = vld [vmem:[%s2408 + $0x90] sm:$0xff]
        %v2579 = vld [vmem:[%s2408 + $0x98] sm:$0xf]
        %v2580 = vld [vmem:[%s2408 + $0xa8] sm:$0xff]
        %v2581 = vld [vmem:[%s2408 + $0xb0] sm:$0xf]
        %v2582 = vld [vmem:[%s2408 + $0xc0] sm:$0xff]
        %v2583 = vld [vmem:[%s2408 + $0xc8] sm:$0xf]
        %v2584 = vld [vmem:[%s2408 + $0xd8] sm:$0xff]
        %v2585 = vld [vmem:[%s2408 + $0xe0] sm:$0xf]
        %s2586 = scalar_lea.vmem %s2, 768
        %v2587 = vld [vmem:[%s2586] sm:$0xff]
        %v2588 = vld [vmem:[%s2586 + $0x8] sm:$0xff]
        %v2589 = vld [vmem:[%s2586 + $0x10] sm:$0xff]
        %v2590 = vld [vmem:[%s2586 + $0x18] sm:$0xff]
        %v2591 = vld [vmem:[%s2586 + $0x20] sm:$0xff]
        %v2592 = vld [vmem:[%s2586 + $0x28] sm:$0xff]
        %v2593 = vld [vmem:[%s2586 + $0x30] sm:$0xff]
        %v2594 = vld [vmem:[%s2586 + $0x38] sm:$0xff]
        %v2595 = vld [vmem:[%s2586 + $0x40] sm:$0xff]
        %v2596 = vld [vmem:[%s2586 + $0x48] sm:$0xff]
        %v2597 = vld [vmem:[%s2586 + $0x50] sm:$0xff]
        %v2598 = vld [vmem:[%s2586 + $0x58] sm:$0xff]
        %v2599 = vld [vmem:[%s2586 + $0x60] sm:$0xff]
        %v2600 = vld [vmem:[%s2586 + $0x68] sm:$0xff]
        %v2601 = vld [vmem:[%s2586 + $0x70] sm:$0xff]
        %v2602 = vld [vmem:[%s2586 + $0x78] sm:$0xff]
        %v2603 = vld [vmem:[%s2586 + $0x80] sm:$0xff]
        %v2604 = vld [vmem:[%s2586 + $0x88] sm:$0xff]
        %v2605 = vld [vmem:[%s2586 + $0x90] sm:$0xff]
        %v2606 = vld [vmem:[%s2586 + $0x98] sm:$0xff]
        %v2607 = vld [vmem:[%s2586 + $0xa0] sm:$0xff]
        %v2608 = vld [vmem:[%s2586 + $0xa8] sm:$0xff]
        %v2609 = vld [vmem:[%s2586 + $0xb0] sm:$0xff]
        %v2610 = vld [vmem:[%s2586 + $0xb8] sm:$0xff]
        %v2611 = vld [vmem:[%s2586 + $0xc0] sm:$0xff]
        %v2612 = vld [vmem:[%s2586 + $0xc8] sm:$0xff]
        %v2613 = vld [vmem:[%s2586 + $0xd0] sm:$0xff]
        %v2614 = vld [vmem:[%s2586 + $0xd8] sm:$0xff]
        %v2615 = vld [vmem:[%s2586 + $0xe0] sm:$0xff]
        %v2616 = vld [vmem:[%s2586 + $0xe8] sm:$0xff]
        %v2617 = vld [vmem:[%s2586 + $0xf0] sm:$0xff]
        %v2618 = vld [vmem:[%s2586 + $0xf8] sm:$0xff]
        %v2619 = vld [vmem:[%s2586 + $0x100] sm:$0xff]
        %v2620 = vld [vmem:[%s2586 + $0x108] sm:$0xff]
        %v2621 = vld [vmem:[%s2586 + $0x110] sm:$0xff]
        %v2622 = vld [vmem:[%s2586 + $0x118] sm:$0xff]
        %v2623 = vld [vmem:[%s2586 + $0x120] sm:$0xff]
        %v2624 = vld [vmem:[%s2586 + $0x128] sm:$0xff]
        %v2625 = vld [vmem:[%s2586 + $0x130] sm:$0xff]
        %v2626 = vld [vmem:[%s2586 + $0x138] sm:$0xff]
        %v2627 = vld [vmem:[%s2586 + $0x140] sm:$0xff]
        %v2628 = vld [vmem:[%s2586 + $0x148] sm:$0xff]
        %v2629 = vld [vmem:[%s2586 + $0x150] sm:$0xff]
        %v2630 = vld [vmem:[%s2586 + $0x158] sm:$0xff]
        %v2631 = vld [vmem:[%s2586 + $0x160] sm:$0xff]
        %v2632 = vld [vmem:[%s2586 + $0x168] sm:$0xff]
        %v2633 = vld [vmem:[%s2586 + $0x170] sm:$0xff]
        %v2634 = vld [vmem:[%s2586 + $0x178] sm:$0xff]
        %v2635 = vld [vmem:[%s2586 + $0x180] sm:$0xff]
        %v2636 = vld [vmem:[%s2586 + $0x188] sm:$0xff]
        %v2637 = vld [vmem:[%s2586 + $0x190] sm:$0xff]
        %v2638 = vld [vmem:[%s2586 + $0x198] sm:$0xff]
        %v2639 = vld [vmem:[%s2586 + $0x1a0] sm:$0xff]
        %v2640 = vld [vmem:[%s2586 + $0x1a8] sm:$0xff]
        %v2641 = vld [vmem:[%s2586 + $0x1b0] sm:$0xff]
        %v2642 = vld [vmem:[%s2586 + $0x1b8] sm:$0xff]
        %v2643 = vld [vmem:[%s2586 + $0x1c0] sm:$0xff]
        %v2644 = vld [vmem:[%s2586 + $0x1c8] sm:$0xff]
        %v2645 = vld [vmem:[%s2586 + $0x1d0] sm:$0xff]
        %v2646 = vld [vmem:[%s2586 + $0x1d8] sm:$0xff]
        %v2647 = vld [vmem:[%s2586 + $0x1e0] sm:$0xff]
        %v2648 = vld [vmem:[%s2586 + $0x1e8] sm:$0xff]
        %v2649 = vld [vmem:[%s2586 + $0x1f0] sm:$0xff]
        %v2650 = vld [vmem:[%s2586 + $0x1f8] sm:$0xff]
        %v2651 = vld [vmem:[%s2586 + $0x200] sm:$0xff]
        %v2652 = vld [vmem:[%s2586 + $0x208] sm:$0xff]
        %v2653 = vld [vmem:[%s2586 + $0x210] sm:$0xff]
        %v2654 = vld [vmem:[%s2586 + $0x218] sm:$0xff]
        %v2655 = vld [vmem:[%s2586 + $0x220] sm:$0xff]
        %v2656 = vld [vmem:[%s2586 + $0x228] sm:$0xff]
        %v2657 = vld [vmem:[%s2586 + $0x230] sm:$0xff]
        %v2658 = vld [vmem:[%s2586 + $0x238] sm:$0xff]
        %v2659 = vld [vmem:[%s2586 + $0x240] sm:$0xff]
        %v2660 = vld [vmem:[%s2586 + $0x248] sm:$0xff]
        %v2661 = vld [vmem:[%s2586 + $0x250] sm:$0xff]
        %v2662 = vld [vmem:[%s2586 + $0x258] sm:$0xff]
        %v2663 = vld [vmem:[%s2586 + $0x260] sm:$0xff]
        %v2664 = vld [vmem:[%s2586 + $0x268] sm:$0xff]
        %v2665 = vld [vmem:[%s2586 + $0x270] sm:$0xff]
        %v2666 = vld [vmem:[%s2586 + $0x278] sm:$0xff]
        %v2667 = vld [vmem:[%s2586 + $0x280] sm:$0xff]
        %v2668 = vld [vmem:[%s2586 + $0x288] sm:$0xff]
        %v2669 = vld [vmem:[%s2586 + $0x290] sm:$0xff]
        %v2670 = vld [vmem:[%s2586 + $0x298] sm:$0xff]
        %v2671 = vld [vmem:[%s2586 + $0x2a0] sm:$0xff]
        %v2672 = vld [vmem:[%s2586 + $0x2a8] sm:$0xff]
        %v2673 = vld [vmem:[%s2586 + $0x2b0] sm:$0xff]
        %v2674 = vld [vmem:[%s2586 + $0x2b8] sm:$0xff]
        %v2675 = vld [vmem:[%s2586 + $0x2c0] sm:$0xff]
        %v2676 = vld [vmem:[%s2586 + $0x2c8] sm:$0xff]
        %v2677 = vld [vmem:[%s2586 + $0x2d0] sm:$0xff]
        %v2678 = vld [vmem:[%s2586 + $0x2d8] sm:$0xff]
        %v2679 = vld [vmem:[%s2586 + $0x2e0] sm:$0xff]
        %v2680 = vld [vmem:[%s2586 + $0x2e8] sm:$0xff]
        %v2681 = vld [vmem:[%s2586 + $0x2f0] sm:$0xff]
        %v2682 = vld [vmem:[%s2586 + $0x2f8] sm:$0xff]
        %v2703 = vunpack.c.l.b16 %v2566
        %v2704 = vunpack.c.h.b16 %v2566
        %v2705 = vunpack.c.l.b16 %v2567
        %v2706 = vunpack.c.l.b16 %v2568
        %v2707 = vunpack.c.h.b16 %v2568
        %v2708 = vunpack.c.l.b16 %v2569
        %v2709 = vunpack.c.l.b16 %v2570
        %v2710 = vunpack.c.h.b16 %v2570
        %v2711 = vunpack.c.l.b16 %v2571
        %v2712 = vunpack.c.l.b16 %v2572
        %v2713 = vunpack.c.h.b16 %v2572
        %v2714 = vunpack.c.l.b16 %v2573
        %v2715 = vunpack.c.l.b16 %v2574
        %v2716 = vunpack.c.h.b16 %v2574
        %v2717 = vunpack.c.l.b16 %v2575
        %v2718 = vunpack.c.l.b16 %v2576
        %v2719 = vunpack.c.h.b16 %v2576
        %v2720 = vunpack.c.l.b16 %v2577
        %v2721 = vunpack.c.l.b16 %v2578
        %v2722 = vunpack.c.h.b16 %v2578
        %v2723 = vunpack.c.l.b16 %v2579
        %v2724 = vunpack.c.l.b16 %v2580
        %v2725 = vunpack.c.h.b16 %v2580
        %v2726 = vunpack.c.l.b16 %v2581
        %v2727 = vunpack.c.l.b16 %v2582
        %v2728 = vunpack.c.h.b16 %v2582
        %v2729 = vunpack.c.l.b16 %v2583
        %v2730 = vunpack.c.l.b16 %v2584
        %v2731 = vunpack.c.h.b16 %v2584
        %v2732 = vunpack.c.l.b16 %v2585
        %v2733 = vpack.c.b16 %v2706, %v2703
        %v2734 = vpack.c.b16 %v2707, %v2704
        %v2735 = vpack.c.b16 %v2708, %v2705
        %v2736 = vpack.c.b16 %v2712, %v2709
        %v2737 = vpack.c.b16 %v2713, %v2710
        %v2738 = vpack.c.b16 %v2714, %v2711
        %v2739 = vpack.c.b16 %v2718, %v2715
        %v2740 = vpack.c.b16 %v2719, %v2716
        %v2741 = vpack.c.b16 %v2720, %v2717
        %v2742 = vpack.c.b16 %v2724, %v2721
        %v2743 = vpack.c.b16 %v2725, %v2722
        %v2744 = vpack.c.b16 %v2726, %v2723
        %v2745 = vpack.c.b16 %v2730, %v2727
        %v2746 = vpack.c.b16 %v2731, %v2728
        %v2747 = vpack.c.b16 %v2732, %v2729
        %v2859 = vunpack.c.l.b16 %v2587
        %v2860 = vunpack.c.h.b16 %v2587
        %v2861 = vunpack.c.l.b16 %v2588
        %v2862 = vunpack.c.h.b16 %v2588
        %v2863 = vunpack.c.l.b16 %v2589
        %v2864 = vunpack.c.h.b16 %v2589
        %v2865 = vunpack.c.l.b16 %v2590
        %v2866 = vunpack.c.h.b16 %v2590
        %v2867 = vunpack.c.l.b16 %v2591
        %v2868 = vunpack.c.h.b16 %v2591
        %v2869 = vunpack.c.l.b16 %v2592
        %v2870 = vunpack.c.h.b16 %v2592
        %v2871 = vunpack.c.l.b16 %v2593
        %v2872 = vunpack.c.h.b16 %v2593
        %v2873 = vunpack.c.l.b16 %v2594
        %v2874 = vunpack.c.h.b16 %v2594
        %v2875 = vunpack.c.l.b16 %v2595
        %v2876 = vunpack.c.h.b16 %v2595
        %v2877 = vunpack.c.l.b16 %v2596
        %v2878 = vunpack.c.h.b16 %v2596
        %v2879 = vunpack.c.l.b16 %v2597
        %v2880 = vunpack.c.h.b16 %v2597
        %v2881 = vunpack.c.l.b16 %v2598
        %v2882 = vunpack.c.h.b16 %v2598
        %v2883 = vunpack.c.l.b16 %v2599
        %v2884 = vunpack.c.h.b16 %v2599
        %v2885 = vunpack.c.l.b16 %v2600
        %v2886 = vunpack.c.h.b16 %v2600
        %v2887 = vunpack.c.l.b16 %v2601
        %v2888 = vunpack.c.h.b16 %v2601
        %v2889 = vunpack.c.l.b16 %v2602
        %v2890 = vunpack.c.h.b16 %v2602
        %v2891 = vunpack.c.l.b16 %v2603
        %v2892 = vunpack.c.h.b16 %v2603
        %v2893 = vunpack.c.l.b16 %v2604
        %v2894 = vunpack.c.h.b16 %v2604
        %v2895 = vunpack.c.l.b16 %v2605
        %v2896 = vunpack.c.h.b16 %v2605
        %v2897 = vunpack.c.l.b16 %v2606
        %v2898 = vunpack.c.h.b16 %v2606
        %v2899 = vunpack.c.l.b16 %v2607
        %v2900 = vunpack.c.h.b16 %v2607
        %v2901 = vunpack.c.l.b16 %v2608
        %v2902 = vunpack.c.h.b16 %v2608
        %v2903 = vunpack.c.l.b16 %v2609
        %v2904 = vunpack.c.h.b16 %v2609
        %v2905 = vunpack.c.l.b16 %v2610
        %v2906 = vunpack.c.h.b16 %v2610
        %v2907 = vunpack.c.l.b16 %v2611
        %v2908 = vunpack.c.h.b16 %v2611
        %v2909 = vunpack.c.l.b16 %v2612
        %v2910 = vunpack.c.h.b16 %v2612
        %v2911 = vunpack.c.l.b16 %v2613
        %v2912 = vunpack.c.h.b16 %v2613
        %v2913 = vunpack.c.l.b16 %v2614
        %v2914 = vunpack.c.h.b16 %v2614
        %v2915 = vunpack.c.l.b16 %v2615
        %v2916 = vunpack.c.h.b16 %v2615
        %v2917 = vunpack.c.l.b16 %v2616
        %v2918 = vunpack.c.h.b16 %v2616
        %v2919 = vunpack.c.l.b16 %v2617
        %v2920 = vunpack.c.h.b16 %v2617
        %v2921 = vunpack.c.l.b16 %v2618
        %v2922 = vunpack.c.h.b16 %v2618
        %v2923 = vunpack.c.l.b16 %v2619
        %v2924 = vunpack.c.h.b16 %v2619
        %v2925 = vunpack.c.l.b16 %v2620
        %v2926 = vunpack.c.h.b16 %v2620
        %v2927 = vunpack.c.l.b16 %v2621
        %v2928 = vunpack.c.h.b16 %v2621
        %v2929 = vunpack.c.l.b16 %v2622
        %v2930 = vunpack.c.h.b16 %v2622
        %v2931 = vunpack.c.l.b16 %v2623
        %v2932 = vunpack.c.h.b16 %v2623
        %v2933 = vunpack.c.l.b16 %v2624
        %v2934 = vunpack.c.h.b16 %v2624
        %v2935 = vunpack.c.l.b16 %v2625
        %v2936 = vunpack.c.h.b16 %v2625
        %v2937 = vunpack.c.l.b16 %v2626
        %v2938 = vunpack.c.h.b16 %v2626
        %v2939 = vunpack.c.l.b16 %v2627
        %v2940 = vunpack.c.h.b16 %v2627
        %v2941 = vunpack.c.l.b16 %v2628
        %v2942 = vunpack.c.h.b16 %v2628
        %v2943 = vunpack.c.l.b16 %v2629
        %v2944 = vunpack.c.h.b16 %v2629
        %v2945 = vunpack.c.l.b16 %v2630
        %v2946 = vunpack.c.h.b16 %v2630
        %v2947 = vunpack.c.l.b16 %v2631
        %v2948 = vunpack.c.h.b16 %v2631
        %v2949 = vunpack.c.l.b16 %v2632
        %v2950 = vunpack.c.h.b16 %v2632
        %v2951 = vunpack.c.l.b16 %v2633
        %v2952 = vunpack.c.h.b16 %v2633
        %v2953 = vunpack.c.l.b16 %v2634
        %v2954 = vunpack.c.h.b16 %v2634
        %v2955 = vunpack.c.l.b16 %v2635
        %v2956 = vunpack.c.h.b16 %v2635
        %v2957 = vunpack.c.l.b16 %v2636
        %v2958 = vunpack.c.h.b16 %v2636
        %v2959 = vunpack.c.l.b16 %v2637
        %v2960 = vunpack.c.h.b16 %v2637
        %v2961 = vunpack.c.l.b16 %v2638
        %v2962 = vunpack.c.h.b16 %v2638
        %v2963 = vunpack.c.l.b16 %v2639
        %v2964 = vunpack.c.h.b16 %v2639
        %v2965 = vunpack.c.l.b16 %v2640
        %v2966 = vunpack.c.h.b16 %v2640
        %v2967 = vunpack.c.l.b16 %v2641
        %v2968 = vunpack.c.h.b16 %v2641
        %v2969 = vunpack.c.l.b16 %v2642
        %v2970 = vunpack.c.h.b16 %v2642
        %v2971 = vunpack.c.l.b16 %v2643
        %v2972 = vunpack.c.h.b16 %v2643
        %v2973 = vunpack.c.l.b16 %v2644
        %v2974 = vunpack.c.h.b16 %v2644
        %v2975 = vunpack.c.l.b16 %v2645
        %v2976 = vunpack.c.h.b16 %v2645
        %v2977 = vunpack.c.l.b16 %v2646
        %v2978 = vunpack.c.h.b16 %v2646
        %v2979 = vunpack.c.l.b16 %v2647
        %v2980 = vunpack.c.h.b16 %v2647
        %v2981 = vunpack.c.l.b16 %v2648
        %v2982 = vunpack.c.h.b16 %v2648
        %v2983 = vunpack.c.l.b16 %v2649
        %v2984 = vunpack.c.h.b16 %v2649
        %v2985 = vunpack.c.l.b16 %v2650
        %v2986 = vunpack.c.h.b16 %v2650
        %v2987 = vunpack.c.l.b16 %v2651
        %v2988 = vunpack.c.h.b16 %v2651
        %v2989 = vunpack.c.l.b16 %v2652
        %v2990 = vunpack.c.h.b16 %v2652
        %v2991 = vunpack.c.l.b16 %v2653
        %v2992 = vunpack.c.h.b16 %v2653
        %v2993 = vunpack.c.l.b16 %v2654
        %v2994 = vunpack.c.h.b16 %v2654
        %v2995 = vunpack.c.l.b16 %v2655
        %v2996 = vunpack.c.h.b16 %v2655
        %v2997 = vunpack.c.l.b16 %v2656
        %v2998 = vunpack.c.h.b16 %v2656
        %v2999 = vunpack.c.l.b16 %v2657
        %v3000 = vunpack.c.h.b16 %v2657
        %v3001 = vunpack.c.l.b16 %v2658
        %v3002 = vunpack.c.h.b16 %v2658
        %v3003 = vunpack.c.l.b16 %v2659
        %v3004 = vunpack.c.h.b16 %v2659
        %v3005 = vunpack.c.l.b16 %v2660
        %v3006 = vunpack.c.h.b16 %v2660
        %v3007 = vunpack.c.l.b16 %v2661
        %v3008 = vunpack.c.h.b16 %v2661
        %v3009 = vunpack.c.l.b16 %v2662
        %v3010 = vunpack.c.h.b16 %v2662
        %v3011 = vunpack.c.l.b16 %v2663
        %v3012 = vunpack.c.h.b16 %v2663
        %v3013 = vunpack.c.l.b16 %v2664
        %v3014 = vunpack.c.h.b16 %v2664
        %v3015 = vunpack.c.l.b16 %v2665
        %v3016 = vunpack.c.h.b16 %v2665
        %v3017 = vunpack.c.l.b16 %v2666
        %v3018 = vunpack.c.h.b16 %v2666
        %v3019 = vunpack.c.l.b16 %v2667
        %v3020 = vunpack.c.h.b16 %v2667
        %v3021 = vunpack.c.l.b16 %v2668
        %v3022 = vunpack.c.h.b16 %v2668
        %v3023 = vunpack.c.l.b16 %v2669
        %v3024 = vunpack.c.h.b16 %v2669
        %v3025 = vunpack.c.l.b16 %v2670
        %v3026 = vunpack.c.h.b16 %v2670
        %v3027 = vunpack.c.l.b16 %v2671
        %v3028 = vunpack.c.h.b16 %v2671
        %v3029 = vunpack.c.l.b16 %v2672
        %v3030 = vunpack.c.h.b16 %v2672
        %v3031 = vunpack.c.l.b16 %v2673
        %v3032 = vunpack.c.h.b16 %v2673
        %v3033 = vunpack.c.l.b16 %v2674
        %v3034 = vunpack.c.h.b16 %v2674
        %v3035 = vunpack.c.l.b16 %v2675
        %v3036 = vunpack.c.h.b16 %v2675
        %v3037 = vunpack.c.l.b16 %v2676
        %v3038 = vunpack.c.h.b16 %v2676
        %v3039 = vunpack.c.l.b16 %v2677
        %v3040 = vunpack.c.h.b16 %v2677
        %v3041 = vunpack.c.l.b16 %v2678
        %v3042 = vunpack.c.h.b16 %v2678
        %v3043 = vunpack.c.l.b16 %v2679
        %v3044 = vunpack.c.h.b16 %v2679
        %v3045 = vunpack.c.l.b16 %v2680
        %v3046 = vunpack.c.h.b16 %v2680
        %v3047 = vunpack.c.l.b16 %v2681
        %v3048 = vunpack.c.h.b16 %v2681
        %v3049 = vunpack.c.l.b16 %v2682
        %v3050 = vunpack.c.h.b16 %v2682
        %v3051 = vpack.c.b16 %v2863, %v2859
        %v3052 = vpack.c.b16 %v2864, %v2860
        %v3053 = vpack.c.b16 %v2865, %v2861
        %v3054 = vpack.c.b16 %v2866, %v2862
        %v3055 = vpack.c.b16 %v2871, %v2867
        %v3056 = vpack.c.b16 %v2872, %v2868
        %v3057 = vpack.c.b16 %v2873, %v2869
        %v3058 = vpack.c.b16 %v2874, %v2870
        %v3059 = vpack.c.b16 %v2879, %v2875
        %v3060 = vpack.c.b16 %v2880, %v2876
        %v3061 = vpack.c.b16 %v2881, %v2877
        %v3062 = vpack.c.b16 %v2882, %v2878
        %v3063 = vpack.c.b16 %v2887, %v2883
        %v3064 = vpack.c.b16 %v2888, %v2884
        %v3065 = vpack.c.b16 %v2889, %v2885
        %v3066 = vpack.c.b16 %v2890, %v2886
        %v3067 = vpack.c.b16 %v2895, %v2891
        %v3068 = vpack.c.b16 %v2896, %v2892
        %v3069 = vpack.c.b16 %v2897, %v2893
        %v3070 = vpack.c.b16 %v2898, %v2894
        %v3071 = vpack.c.b16 %v2903, %v2899
        %v3072 = vpack.c.b16 %v2904, %v2900
        %v3073 = vpack.c.b16 %v2905, %v2901
        %v3074 = vpack.c.b16 %v2906, %v2902
        %v3075 = vpack.c.b16 %v2911, %v2907
        %v3076 = vpack.c.b16 %v2912, %v2908
        %v3077 = vpack.c.b16 %v2913, %v2909
        %v3078 = vpack.c.b16 %v2914, %v2910
        %v3079 = vpack.c.b16 %v2919, %v2915
        %v3080 = vpack.c.b16 %v2920, %v2916
        %v3081 = vpack.c.b16 %v2921, %v2917
        %v3082 = vpack.c.b16 %v2922, %v2918
        %v3083 = vpack.c.b16 %v2927, %v2923
        %v3084 = vpack.c.b16 %v2928, %v2924
        %v3085 = vpack.c.b16 %v2929, %v2925
        %v3086 = vpack.c.b16 %v2930, %v2926
        %v3087 = vpack.c.b16 %v2935, %v2931
        %v3088 = vpack.c.b16 %v2936, %v2932
        %v3089 = vpack.c.b16 %v2937, %v2933
        %v3090 = vpack.c.b16 %v2938, %v2934
        %v3091 = vpack.c.b16 %v2943, %v2939
        %v3092 = vpack.c.b16 %v2944, %v2940
        %v3093 = vpack.c.b16 %v2945, %v2941
        %v3094 = vpack.c.b16 %v2946, %v2942
        %v3095 = vpack.c.b16 %v2951, %v2947
        %v3096 = vpack.c.b16 %v2952, %v2948
        %v3097 = vpack.c.b16 %v2953, %v2949
        %v3098 = vpack.c.b16 %v2954, %v2950
        %v3099 = vpack.c.b16 %v2959, %v2955
        %v3100 = vpack.c.b16 %v2960, %v2956
        %v3101 = vpack.c.b16 %v2961, %v2957
        %v3102 = vpack.c.b16 %v2962, %v2958
        %v3103 = vpack.c.b16 %v2967, %v2963
        %v3104 = vpack.c.b16 %v2968, %v2964
        %v3105 = vpack.c.b16 %v2969, %v2965
        %v3106 = vpack.c.b16 %v2970, %v2966
        %v3107 = vpack.c.b16 %v2975, %v2971
        %v3108 = vpack.c.b16 %v2976, %v2972
        %v3109 = vpack.c.b16 %v2977, %v2973
        %v3110 = vpack.c.b16 %v2978, %v2974
        %v3111 = vpack.c.b16 %v2983, %v2979
        %v3112 = vpack.c.b16 %v2984, %v2980
        %v3113 = vpack.c.b16 %v2985, %v2981
        %v3114 = vpack.c.b16 %v2986, %v2982
        %v3115 = vpack.c.b16 %v2991, %v2987
        %v3116 = vpack.c.b16 %v2992, %v2988
        %v3117 = vpack.c.b16 %v2993, %v2989
        %v3118 = vpack.c.b16 %v2994, %v2990
        %v3119 = vpack.c.b16 %v2999, %v2995
        %v3120 = vpack.c.b16 %v3000, %v2996
        %v3121 = vpack.c.b16 %v3001, %v2997
        %v3122 = vpack.c.b16 %v3002, %v2998
        %v3123 = vpack.c.b16 %v3007, %v3003
        %v3124 = vpack.c.b16 %v3008, %v3004
        %v3125 = vpack.c.b16 %v3009, %v3005
        %v3126 = vpack.c.b16 %v3010, %v3006
        %v3127 = vpack.c.b16 %v3015, %v3011
        %v3128 = vpack.c.b16 %v3016, %v3012
        %v3129 = vpack.c.b16 %v3017, %v3013
        %v3130 = vpack.c.b16 %v3018, %v3014
        %v3131 = vpack.c.b16 %v3023, %v3019
        %v3132 = vpack.c.b16 %v3024, %v3020
        %v3133 = vpack.c.b16 %v3025, %v3021
        %v3134 = vpack.c.b16 %v3026, %v3022
        %v3135 = vpack.c.b16 %v3031, %v3027
        %v3136 = vpack.c.b16 %v3032, %v3028
        %v3137 = vpack.c.b16 %v3033, %v3029
        %v3138 = vpack.c.b16 %v3034, %v3030
        %v3139 = vpack.c.b16 %v3039, %v3035
        %v3140 = vpack.c.b16 %v3040, %v3036
        %v3141 = vpack.c.b16 %v3041, %v3037
        %v3142 = vpack.c.b16 %v3042, %v3038
        %v3143 = vpack.c.b16 %v3047, %v3043
        %v3144 = vpack.c.b16 %v3048, %v3044
        %v3145 = vpack.c.b16 %v3049, %v3045
        %v3146 = vpack.c.b16 %v3050, %v3046
        %3243 = vmatprep.subr.bf16.mxu0 %v3080
        %3244 = vmatpush1.bf16.msra.mxu0 %v3079
        %3245 = vmatprep.subr.bf16.mxu0 %v3076
        %3246 = vmatpush1.bf16.msra.mxu0 %v3075
        %3247 = vmatprep.subr.bf16.mxu0 %v3072
        %3248 = vmatpush1.bf16.msra.mxu0 %v3071
        %3249 = vmatprep.subr.bf16.mxu0 %v3068
        %3250 = vmatpush1.bf16.msra.mxu0 %v3067
        %3251 = vmatprep.subr.bf16.mxu0 %v3064
        %3252 = vmatpush1.bf16.msra.mxu0 %v3063
        %3253 = vmatprep.subr.bf16.mxu0 %v3060
        %3254 = vmatpush1.bf16.msra.mxu0 %v3059
        %3255 = vmatprep.subr.bf16.mxu0 %v3056
        %3256 = vmatpush1.bf16.msra.mxu0 %v3055
        %3257 = vmatprep.subr.bf16.mxu0 %v3052
        %3258 = vmatpush1.bf16.msra.mxu0 %v3051
        %3259 = vmatprep.subr.bf16.mxu0 %v3112
        %3260 = vmatpush2.bf16.msra.mxu0 %v3111
        %3261 = vmatprep.subr.bf16.mxu0 %v3108
        %3262 = vmatpush2.bf16.msra.mxu0 %v3107
        %3263 = vmatprep.subr.bf16.mxu0 %v3104
        %3264 = vmatpush2.bf16.msra.mxu0 %v3103
        %3265 = vmatprep.subr.bf16.mxu0 %v3100
        %3266 = vmatpush2.bf16.msra.mxu0 %v3099
        %3267 = vmatprep.subr.bf16.mxu0 %v3096
        %3268 = vmatpush2.bf16.msra.mxu0 %v3095
        %3269 = vmatprep.subr.bf16.mxu0 %v3092
        %3270 = vmatpush2.bf16.msra.mxu0 %v3091
        %3271 = vmatprep.subr.bf16.mxu0 %v3088
        %3272 = vmatpush2.bf16.msra.mxu0 %v3087
        %3273 = vmatprep.subr.bf16.mxu0 %v3084
        %3274 = vmatpush2.bf16.msra.mxu0 %v3083
        %3275 = vmatprep.mubr.bf16.mxu0 %v2734
        %3276 = vmatmul.mubr.bf16.gmra.mxu0 %v2733
        %v3277 = vpop.f32.mrf.mxu0
        %v3278 = vadd.f32 0.0, %v3277
        %v3279 = vpop.f32.mrf.mxu0
        %v3280 = vadd.f32 0.0, %v3279
        %v3281 = vpop.f32.mrf.mxu0
        %v3282 = vadd.f32 0.0, %v3281
        %v3283 = vpop.f32.mrf.mxu0
        %v3284 = vadd.f32 0.0, %v3283
        %3285 = vmatprep.mubr.bf16.mxu0 %v2737
        %3286 = vmatmul.mubr.bf16.gmra.mxu0 %v2736
        %v3287 = vpop.f32.mrf.mxu0
        %v3288 = vadd.f32 0.0, %v3287
        %v3289 = vpop.f32.mrf.mxu0
        %v3290 = vadd.f32 0.0, %v3289
        %v3291 = vpop.f32.mrf.mxu0
        %v3292 = vadd.f32 0.0, %v3291
        %v3293 = vpop.f32.mrf.mxu0
        %v3294 = vadd.f32 0.0, %v3293
        %3295 = vmatprep.mubr.bf16.mxu0 %v2740
        %3296 = vmatmul.mubr.bf16.gmra.mxu0 %v2739
        %v3297 = vpop.f32.mrf.mxu0
        %v3298 = vadd.f32 0.0, %v3297
        %v3299 = vpop.f32.mrf.mxu0
        %v3300 = vadd.f32 0.0, %v3299
        %v3301 = vpop.f32.mrf.mxu0
        %v3302 = vadd.f32 0.0, %v3301
        %v3303 = vpop.f32.mrf.mxu0
        %v3304 = vadd.f32 0.0, %v3303
        %3305 = vmatprep.mubr.bf16.mxu0 %v2743
        %3306 = vmatmul.mubr.bf16.gmra.mxu0 %v2742
        %v3307 = vpop.f32.mrf.mxu0
        %v3308 = vadd.f32 0.0, %v3307
        %v3309 = vpop.f32.mrf.mxu0
        %v3310 = vadd.f32 0.0, %v3309
        %v3311 = vpop.f32.mrf.mxu0
        %v3312 = vadd.f32 0.0, %v3311
        %v3313 = vpop.f32.mrf.mxu0
        %v3314 = vadd.f32 0.0, %v3313
        %3315 = vmatprep.mubr.bf16.mxu0 %v2746
        %3316 = vmatmul.mubr.bf16.gmra.mxu0 %v2745
        %v3317 = vpop.f32.mrf.mxu0
        %v3318 = vadd.f32 0.0, %v3317
        %v3319 = vpop.f32.mrf.mxu0
        %v3320 = vadd.f32 0.0, %v3319
        %v3321 = vpop.f32.mrf.mxu0
        %v3322 = vadd.f32 0.0, %v3321
        %v3323 = vpop.f32.mrf.mxu0
        %v3324 = vadd.f32 0.0, %v3323
        %3325 = vdwg.mxu0
        %3326 = vmatprep.subr.bf16.mxu0 %v3144
        %3327 = vmatpush1.bf16.msra.mxu0 %v3143
        %3328 = vmatprep.subr.bf16.mxu0 %v3140
        %3329 = vmatpush1.bf16.msra.mxu0 %v3139
        %3330 = vmatprep.subr.bf16.mxu0 %v3136
        %3331 = vmatpush1.bf16.msra.mxu0 %v3135
        %3332 = vmatprep.subr.bf16.mxu0 %v3132
        %3333 = vmatpush1.bf16.msra.mxu0 %v3131
        %3334 = vmatprep.subr.bf16.mxu0 %v3128
        %3335 = vmatpush1.bf16.msra.mxu0 %v3127
        %3336 = vmatprep.subr.bf16.mxu0 %v3124
        %3337 = vmatpush1.bf16.msra.mxu0 %v3123
        %3338 = vmatprep.subr.bf16.mxu0 %v3120
        %3339 = vmatpush1.bf16.msra.mxu0 %v3119
        %3340 = vmatprep.subr.bf16.mxu0 %v3116
        %3341 = vmatpush1.bf16.msra.mxu0 %v3115
        %3342 = vmatprep.subr.bf16.mxu0 0
        %3343 = vmatpush2.bf16.msra.mxu0 0
        %3344 = vmatprep.subr.bf16.mxu0 0
        %3345 = vmatpush2.bf16.msra.mxu0 0
        %3346 = vmatprep.subr.bf16.mxu0 0
        %3347 = vmatpush2.bf16.msra.mxu0 0
        %3348 = vmatprep.subr.bf16.mxu0 0
        %3349 = vmatpush2.bf16.msra.mxu0 0
        %3350 = vmatprep.subr.bf16.mxu0 0
        %3351 = vmatpush2.bf16.msra.mxu0 0
        %3352 = vmatprep.subr.bf16.mxu0 0
        %3353 = vmatpush2.bf16.msra.mxu0 0
        %3354 = vmatprep.subr.bf16.mxu0 0
        %3355 = vmatpush2.bf16.msra.mxu0 0
        %3356 = vmatprep.subr.bf16.mxu0 0
        %3357 = vmatpush2.bf16.msra.mxu0 0
        %3358 = vmatprep.mubr.bf16.mxu0 0
        %3359 = vmatmul.mubr.bf16.gmra.mxu0 %v2735
        %v3360 = vpop.f32.mrf.mxu0
        %v3361 = vadd.f32 %v3278, %v3360
        %v3362 = vpop.f32.mrf.mxu0
        %v3363 = vadd.f32 %v3280, %v3362
        %v3364 = vpop.f32.mrf.mxu0
        %v3365 = vadd.f32 %v3282, %v3364
        %v3366 = vpop.f32.mrf.mxu0
        %v3367 = vadd.f32 %v3284, %v3366
        %3368 = vmatprep.mubr.bf16.mxu0 0
        %3369 = vmatmul.mubr.bf16.gmra.mxu0 %v2738
        %v3370 = vpop.f32.mrf.mxu0
        %v3371 = vadd.f32 %v3288, %v3370
        %v3372 = vpop.f32.mrf.mxu0
        %v3373 = vadd.f32 %v3290, %v3372
        %v3374 = vpop.f32.mrf.mxu0
        %v3375 = vadd.f32 %v3292, %v3374
        %v3376 = vpop.f32.mrf.mxu0
        %v3377 = vadd.f32 %v3294, %v3376
        %3378 = vmatprep.mubr.bf16.mxu0 0
        %3379 = vmatmul.mubr.bf16.gmra.mxu0 %v2741
        %v3380 = vpop.f32.mrf.mxu0
        %v3381 = vadd.f32 %v3298, %v3380
        %v3382 = vpop.f32.mrf.mxu0
        %v3383 = vadd.f32 %v3300, %v3382
        %v3384 = vpop.f32.mrf.mxu0
        %v3385 = vadd.f32 %v3302, %v3384
        %v3386 = vpop.f32.mrf.mxu0
        %v3387 = vadd.f32 %v3304, %v3386
        %3388 = vmatprep.mubr.bf16.mxu0 0
        %3389 = vmatmul.mubr.bf16.gmra.mxu0 %v2744
        %v3390 = vpop.f32.mrf.mxu0
        %v3391 = vadd.f32 %v3308, %v3390
        %v3392 = vpop.f32.mrf.mxu0
        %v3393 = vadd.f32 %v3310, %v3392
        %v3394 = vpop.f32.mrf.mxu0
        %v3395 = vadd.f32 %v3312, %v3394
        %v3396 = vpop.f32.mrf.mxu0
        %v3397 = vadd.f32 %v3314, %v3396
        %3398 = vmatprep.mubr.bf16.mxu0 0
        %3399 = vmatmul.mubr.bf16.gmra.mxu0 %v2747
        %v3400 = vpop.f32.mrf.mxu0
        %v3401 = vadd.f32 %v3318, %v3400
        %v3402 = vpop.f32.mrf.mxu0
        %v3403 = vadd.f32 %v3320, %v3402
        %v3404 = vpop.f32.mrf.mxu0
        %v3405 = vadd.f32 %v3322, %v3404
        %v3406 = vpop.f32.mrf.mxu0
        %v3407 = vadd.f32 %v3324, %v3406
        %3408 = vdwg.mxu0
        %3409 = vmatprep.subr.bf16.mxu0 %v3082
        %3410 = vmatpush1.bf16.msra.mxu0 %v3081
        %3411 = vmatprep.subr.bf16.mxu0 %v3078
        %3412 = vmatpush1.bf16.msra.mxu0 %v3077
        %3413 = vmatprep.subr.bf16.mxu0 %v3074
        %3414 = vmatpush1.bf16.msra.mxu0 %v3073
        %3415 = vmatprep.subr.bf16.mxu0 %v3070
        %3416 = vmatpush1.bf16.msra.mxu0 %v3069
        %3417 = vmatprep.subr.bf16.mxu0 %v3066
        %3418 = vmatpush1.bf16.msra.mxu0 %v3065
        %3419 = vmatprep.subr.bf16.mxu0 %v3062
        %3420 = vmatpush1.bf16.msra.mxu0 %v3061
        %3421 = vmatprep.subr.bf16.mxu0 %v3058
        %3422 = vmatpush1.bf16.msra.mxu0 %v3057
        %3423 = vmatprep.subr.bf16.mxu0 %v3054
        %3424 = vmatpush1.bf16.msra.mxu0 %v3053
        %3425 = vmatprep.subr.bf16.mxu0 %v3114
        %3426 = vmatpush2.bf16.msra.mxu0 %v3113
        %3427 = vmatprep.subr.bf16.mxu0 %v3110
        %3428 = vmatpush2.bf16.msra.mxu0 %v3109
        %3429 = vmatprep.subr.bf16.mxu0 %v3106
        %3430 = vmatpush2.bf16.msra.mxu0 %v3105
        %3431 = vmatprep.subr.bf16.mxu0 %v3102
        %3432 = vmatpush2.bf16.msra.mxu0 %v3101
        %3433 = vmatprep.subr.bf16.mxu0 %v3098
        %3434 = vmatpush2.bf16.msra.mxu0 %v3097
        %3435 = vmatprep.subr.bf16.mxu0 %v3094
        %3436 = vmatpush2.bf16.msra.mxu0 %v3093
        %3437 = vmatprep.subr.bf16.mxu0 %v3090
        %3438 = vmatpush2.bf16.msra.mxu0 %v3089
        %3439 = vmatprep.subr.bf16.mxu0 %v3086
        %3440 = vmatpush2.bf16.msra.mxu0 %v3085
        %3441 = vmatprep.mubr.bf16.mxu0 %v2734
        %3442 = vmatmul.mubr.bf16.gmra.mxu0 %v2733
        %v3443 = vpop.f32.mrf.mxu0
        %v3444 = vadd.f32 0.0, %v3443
        %v3445 = vpop.f32.mrf.mxu0
        %v3446 = vadd.f32 0.0, %v3445
        %v3447 = vpop.f32.mrf.mxu0
        %v3448 = vadd.f32 0.0, %v3447
        %v3449 = vpop.f32.mrf.mxu0
        %v3450 = vadd.f32 0.0, %v3449
        %3451 = vmatprep.mubr.bf16.mxu0 %v2737
        %3452 = vmatmul.mubr.bf16.gmra.mxu0 %v2736
        %v3453 = vpop.f32.mrf.mxu0
        %v3454 = vadd.f32 0.0, %v3453
        %v3455 = vpop.f32.mrf.mxu0
        %v3456 = vadd.f32 0.0, %v3455
        %v3457 = vpop.f32.mrf.mxu0
        %v3458 = vadd.f32 0.0, %v3457
        %v3459 = vpop.f32.mrf.mxu0
        %v3460 = vadd.f32 0.0, %v3459
        %3461 = vmatprep.mubr.bf16.mxu0 %v2740
        %3462 = vmatmul.mubr.bf16.gmra.mxu0 %v2739
        %v3463 = vpop.f32.mrf.mxu0
        %v3464 = vadd.f32 0.0, %v3463
        %v3465 = vpop.f32.mrf.mxu0
        %v3466 = vadd.f32 0.0, %v3465
        %v3467 = vpop.f32.mrf.mxu0
        %v3468 = vadd.f32 0.0, %v3467
        %v3469 = vpop.f32.mrf.mxu0
        %v3470 = vadd.f32 0.0, %v3469
        %3471 = vmatprep.mubr.bf16.mxu0 %v2743
        %3472 = vmatmul.mubr.bf16.gmra.mxu0 %v2742
        %v3473 = vpop.f32.mrf.mxu0
        %v3474 = vadd.f32 0.0, %v3473
        %v3475 = vpop.f32.mrf.mxu0
        %v3476 = vadd.f32 0.0, %v3475
        %v3477 = vpop.f32.mrf.mxu0
        %v3478 = vadd.f32 0.0, %v3477
        %v3479 = vpop.f32.mrf.mxu0
        %v3480 = vadd.f32 0.0, %v3479
        %3481 = vmatprep.mubr.bf16.mxu0 %v2746
        %3482 = vmatmul.mubr.bf16.gmra.mxu0 %v2745
        %v3483 = vpop.f32.mrf.mxu0
        %v3484 = vadd.f32 0.0, %v3483
        %v3485 = vpop.f32.mrf.mxu0
        %v3486 = vadd.f32 0.0, %v3485
        %v3487 = vpop.f32.mrf.mxu0
        %v3488 = vadd.f32 0.0, %v3487
        %v3489 = vpop.f32.mrf.mxu0
        %v3490 = vadd.f32 0.0, %v3489
        %3491 = vdwg.mxu0
        %3492 = vmatprep.subr.bf16.mxu0 %v3146
        %3493 = vmatpush1.bf16.msra.mxu0 %v3145
        %3494 = vmatprep.subr.bf16.mxu0 %v3142
        %3495 = vmatpush1.bf16.msra.mxu0 %v3141
        %3496 = vmatprep.subr.bf16.mxu0 %v3138
        %3497 = vmatpush1.bf16.msra.mxu0 %v3137
        %3498 = vmatprep.subr.bf16.mxu0 %v3134
        %3499 = vmatpush1.bf16.msra.mxu0 %v3133
        %3500 = vmatprep.subr.bf16.mxu0 %v3130
        %3501 = vmatpush1.bf16.msra.mxu0 %v3129
        %3502 = vmatprep.subr.bf16.mxu0 %v3126
        %3503 = vmatpush1.bf16.msra.mxu0 %v3125
        %3504 = vmatprep.subr.bf16.mxu0 %v3122
        %3505 = vmatpush1.bf16.msra.mxu0 %v3121
        %3506 = vmatprep.subr.bf16.mxu0 %v3118
        %3507 = vmatpush1.bf16.msra.mxu0 %v3117
        %3508 = vmatprep.subr.bf16.mxu0 0
        %3509 = vmatpush2.bf16.msra.mxu0 0
        %3510 = vmatprep.subr.bf16.mxu0 0
        %3511 = vmatpush2.bf16.msra.mxu0 0
        %3512 = vmatprep.subr.bf16.mxu0 0
        %3513 = vmatpush2.bf16.msra.mxu0 0
        %3514 = vmatprep.subr.bf16.mxu0 0
        %3515 = vmatpush2.bf16.msra.mxu0 0
        %3516 = vmatprep.subr.bf16.mxu0 0
        %3517 = vmatpush2.bf16.msra.mxu0 0
        %3518 = vmatprep.subr.bf16.mxu0 0
        %3519 = vmatpush2.bf16.msra.mxu0 0
        %3520 = vmatprep.subr.bf16.mxu0 0
        %3521 = vmatpush2.bf16.msra.mxu0 0
        %3522 = vmatprep.subr.bf16.mxu0 0
        %3523 = vmatpush2.bf16.msra.mxu0 0
        %3524 = vmatprep.mubr.bf16.mxu0 0
        %3525 = vmatmul.mubr.bf16.gmra.mxu0 %v2735
        %v3526 = vpop.f32.mrf.mxu0
        %v3527 = vadd.f32 %v3444, %v3526
        %v3528 = vpop.f32.mrf.mxu0
        %v3529 = vadd.f32 %v3446, %v3528
        %v3530 = vpop.f32.mrf.mxu0
        %v3531 = vadd.f32 %v3448, %v3530
        %v3532 = vpop.f32.mrf.mxu0
        %v3533 = vadd.f32 %v3450, %v3532
        %3534 = vmatprep.mubr.bf16.mxu0 0
        %3535 = vmatmul.mubr.bf16.gmra.mxu0 %v2738
        %v3536 = vpop.f32.mrf.mxu0
        %v3537 = vadd.f32 %v3454, %v3536
        %v3538 = vpop.f32.mrf.mxu0
        %v3539 = vadd.f32 %v3456, %v3538
        %v3540 = vpop.f32.mrf.mxu0
        %v3541 = vadd.f32 %v3458, %v3540
        %v3542 = vpop.f32.mrf.mxu0
        %v3543 = vadd.f32 %v3460, %v3542
        %3544 = vmatprep.mubr.bf16.mxu0 0
        %3545 = vmatmul.mubr.bf16.gmra.mxu0 %v2741
        %v3546 = vpop.f32.mrf.mxu0
        %v3547 = vadd.f32 %v3464, %v3546
        %v3548 = vpop.f32.mrf.mxu0
        %v3549 = vadd.f32 %v3466, %v3548
        %v3550 = vpop.f32.mrf.mxu0
        %v3551 = vadd.f32 %v3468, %v3550
        %v3552 = vpop.f32.mrf.mxu0
        %v3553 = vadd.f32 %v3470, %v3552
        %3554 = vmatprep.mubr.bf16.mxu0 0
        %3555 = vmatmul.mubr.bf16.gmra.mxu0 %v2744
        %v3556 = vpop.f32.mrf.mxu0
        %v3557 = vadd.f32 %v3474, %v3556
        %v3558 = vpop.f32.mrf.mxu0
        %v3559 = vadd.f32 %v3476, %v3558
        %v3560 = vpop.f32.mrf.mxu0
        %v3561 = vadd.f32 %v3478, %v3560
        %v3562 = vpop.f32.mrf.mxu0
        %v3563 = vadd.f32 %v3480, %v3562
        %3564 = vmatprep.mubr.bf16.mxu0 0
        %3565 = vmatmul.mubr.bf16.gmra.mxu0 %v2747
        %v3566 = vpop.f32.mrf.mxu0
        %v3567 = vadd.f32 %v3484, %v3566
        %v3568 = vpop.f32.mrf.mxu0
        %v3569 = vadd.f32 %v3486, %v3568
        %v3570 = vpop.f32.mrf.mxu0
        %v3571 = vadd.f32 %v3488, %v3570
        %v3572 = vpop.f32.mrf.mxu0
        %v3573 = vadd.f32 %v3490, %v3572
        %3574 = vdwg.mxu0
        %v3595 = vunpack.c.l.b16 %v2450
        %v3596 = vunpack.c.h.b16 %v2450
        %v3597 = vunpack.c.l.b16 %v2451
        %v3598 = vunpack.c.l.b16 %v2452
        %v3599 = vunpack.c.h.b16 %v2452
        %v3600 = vunpack.c.l.b16 %v2453
        %v3601 = vunpack.c.l.b16 %v2454
        %v3602 = vunpack.c.h.b16 %v2454
        %v3603 = vunpack.c.l.b16 %v2455
        %v3604 = vunpack.c.l.b16 %v2456
        %v3605 = vunpack.c.h.b16 %v2456
        %v3606 = vunpack.c.l.b16 %v2457
        %v3607 = vunpack.c.l.b16 %v2458
        %v3608 = vunpack.c.h.b16 %v2458
        %v3609 = vunpack.c.l.b16 %v2459
        %v3610 = vunpack.c.l.b16 %v2460
        %v3611 = vunpack.c.h.b16 %v2460
        %v3612 = vunpack.c.l.b16 %v2461
        %v3613 = vunpack.c.l.b16 %v2462
        %v3614 = vunpack.c.h.b16 %v2462
        %v3615 = vunpack.c.l.b16 %v2463
        %v3616 = vunpack.c.l.b16 %v2464
        %v3617 = vunpack.c.h.b16 %v2464
        %v3618 = vunpack.c.l.b16 %v2465
        %v3619 = vunpack.c.l.b16 %v2466
        %v3620 = vunpack.c.h.b16 %v2466
        %v3621 = vunpack.c.l.b16 %v2467
        %v3622 = vunpack.c.l.b16 %v2468
        %v3623 = vunpack.c.h.b16 %v2468
        %v3624 = vunpack.c.l.b16 %v2469
        %v3625 = vpack.c.b16 %v3598, %v3595
        %v3626 = vpack.c.b16 %v3599, %v3596
        %v3627 = vpack.c.b16 %v3600, %v3597
        %v3628 = vpack.c.b16 %v3604, %v3601
        %v3629 = vpack.c.b16 %v3605, %v3602
        %v3630 = vpack.c.b16 %v3606, %v3603
        %v3631 = vpack.c.b16 %v3610, %v3607
        %v3632 = vpack.c.b16 %v3611, %v3608
        %v3633 = vpack.c.b16 %v3612, %v3609
        %v3634 = vpack.c.b16 %v3616, %v3613
        %v3635 = vpack.c.b16 %v3617, %v3614
        %v3636 = vpack.c.b16 %v3618, %v3615
        %v3637 = vpack.c.b16 %v3622, %v3619
        %v3638 = vpack.c.b16 %v3623, %v3620
        %v3639 = vpack.c.b16 %v3624, %v3621
        %v3751 = vunpack.c.l.b16 %v2470
        %v3752 = vunpack.c.h.b16 %v2470
        %v3753 = vunpack.c.l.b16 %v2471
        %v3754 = vunpack.c.h.b16 %v2471
        %v3755 = vunpack.c.l.b16 %v2472
        %v3756 = vunpack.c.h.b16 %v2472
        %v3757 = vunpack.c.l.b16 %v2473
        %v3758 = vunpack.c.h.b16 %v2473
        %v3759 = vunpack.c.l.b16 %v2474
        %v3760 = vunpack.c.h.b16 %v2474
        %v3761 = vunpack.c.l.b16 %v2475
        %v3762 = vunpack.c.h.b16 %v2475
        %v3763 = vunpack.c.l.b16 %v2476
        %v3764 = vunpack.c.h.b16 %v2476
        %v3765 = vunpack.c.l.b16 %v2477
        %v3766 = vunpack.c.h.b16 %v2477
        %v3767 = vunpack.c.l.b16 %v2478
        %v3768 = vunpack.c.h.b16 %v2478
        %v3769 = vunpack.c.l.b16 %v2479
        %v3770 = vunpack.c.h.b16 %v2479
        %v3771 = vunpack.c.l.b16 %v2480
        %v3772 = vunpack.c.h.b16 %v2480
        %v3773 = vunpack.c.l.b16 %v2481
        %v3774 = vunpack.c.h.b16 %v2481
        %v3775 = vunpack.c.l.b16 %v2482
        %v3776 = vunpack.c.h.b16 %v2482
        %v3777 = vunpack.c.l.b16 %v2483
        %v3778 = vunpack.c.h.b16 %v2483
        %v3779 = vunpack.c.l.b16 %v2484
        %v3780 = vunpack.c.h.b16 %v2484
        %v3781 = vunpack.c.l.b16 %v2485
        %v3782 = vunpack.c.h.b16 %v2485
        %v3783 = vunpack.c.l.b16 %v2486
        %v3784 = vunpack.c.h.b16 %v2486
        %v3785 = vunpack.c.l.b16 %v2487
        %v3786 = vunpack.c.h.b16 %v2487
        %v3787 = vunpack.c.l.b16 %v2488
        %v3788 = vunpack.c.h.b16 %v2488
        %v3789 = vunpack.c.l.b16 %v2489
        %v3790 = vunpack.c.h.b16 %v2489
        %v3791 = vunpack.c.l.b16 %v2490
        %v3792 = vunpack.c.h.b16 %v2490
        %v3793 = vunpack.c.l.b16 %v2491
        %v3794 = vunpack.c.h.b16 %v2491
        %v3795 = vunpack.c.l.b16 %v2492
        %v3796 = vunpack.c.h.b16 %v2492
        %v3797 = vunpack.c.l.b16 %v2493
        %v3798 = vunpack.c.h.b16 %v2493
        %v3799 = vunpack.c.l.b16 %v2494
        %v3800 = vunpack.c.h.b16 %v2494
        %v3801 = vunpack.c.l.b16 %v2495
        %v3802 = vunpack.c.h.b16 %v2495
        %v3803 = vunpack.c.l.b16 %v2496
        %v3804 = vunpack.c.h.b16 %v2496
        %v3805 = vunpack.c.l.b16 %v2497
        %v3806 = vunpack.c.h.b16 %v2497
        %v3807 = vunpack.c.l.b16 %v2498
        %v3808 = vunpack.c.h.b16 %v2498
        %v3809 = vunpack.c.l.b16 %v2499
        %v3810 = vunpack.c.h.b16 %v2499
        %v3811 = vunpack.c.l.b16 %v2500
        %v3812 = vunpack.c.h.b16 %v2500
        %v3813 = vunpack.c.l.b16 %v2501
        %v3814 = vunpack.c.h.b16 %v2501
        %v3815 = vunpack.c.l.b16 %v2502
        %v3816 = vunpack.c.h.b16 %v2502
        %v3817 = vunpack.c.l.b16 %v2503
        %v3818 = vunpack.c.h.b16 %v2503
        %v3819 = vunpack.c.l.b16 %v2504
        %v3820 = vunpack.c.h.b16 %v2504
        %v3821 = vunpack.c.l.b16 %v2505
        %v3822 = vunpack.c.h.b16 %v2505
        %v3823 = vunpack.c.l.b16 %v2506
        %v3824 = vunpack.c.h.b16 %v2506
        %v3825 = vunpack.c.l.b16 %v2507
        %v3826 = vunpack.c.h.b16 %v2507
        %v3827 = vunpack.c.l.b16 %v2508
        %v3828 = vunpack.c.h.b16 %v2508
        %v3829 = vunpack.c.l.b16 %v2509
        %v3830 = vunpack.c.h.b16 %v2509
        %v3831 = vunpack.c.l.b16 %v2510
        %v3832 = vunpack.c.h.b16 %v2510
        %v3833 = vunpack.c.l.b16 %v2511
        %v3834 = vunpack.c.h.b16 %v2511
        %v3835 = vunpack.c.l.b16 %v2512
        %v3836 = vunpack.c.h.b16 %v2512
        %v3837 = vunpack.c.l.b16 %v2513
        %v3838 = vunpack.c.h.b16 %v2513
        %v3839 = vunpack.c.l.b16 %v2514
        %v3840 = vunpack.c.h.b16 %v2514
        %v3841 = vunpack.c.l.b16 %v2515
        %v3842 = vunpack.c.h.b16 %v2515
        %v3843 = vunpack.c.l.b16 %v2516
        %v3844 = vunpack.c.h.b16 %v2516
        %v3845 = vunpack.c.l.b16 %v2517
        %v3846 = vunpack.c.h.b16 %v2517
        %v3847 = vunpack.c.l.b16 %v2518
        %v3848 = vunpack.c.h.b16 %v2518
        %v3849 = vunpack.c.l.b16 %v2519
        %v3850 = vunpack.c.h.b16 %v2519
        %v3851 = vunpack.c.l.b16 %v2520
        %v3852 = vunpack.c.h.b16 %v2520
        %v3853 = vunpack.c.l.b16 %v2521
        %v3854 = vunpack.c.h.b16 %v2521
        %v3855 = vunpack.c.l.b16 %v2522
        %v3856 = vunpack.c.h.b16 %v2522
        %v3857 = vunpack.c.l.b16 %v2523
        %v3858 = vunpack.c.h.b16 %v2523
        %v3859 = vunpack.c.l.b16 %v2524
        %v3860 = vunpack.c.h.b16 %v2524
        %v3861 = vunpack.c.l.b16 %v2525
        %v3862 = vunpack.c.h.b16 %v2525
        %v3863 = vunpack.c.l.b16 %v2526
        %v3864 = vunpack.c.h.b16 %v2526
        %v3865 = vunpack.c.l.b16 %v2527
        %v3866 = vunpack.c.h.b16 %v2527
        %v3867 = vunpack.c.l.b16 %v2528
        %v3868 = vunpack.c.h.b16 %v2528
        %v3869 = vunpack.c.l.b16 %v2529
        %v3870 = vunpack.c.h.b16 %v2529
        %v3871 = vunpack.c.l.b16 %v2530
        %v3872 = vunpack.c.h.b16 %v2530
        %v3873 = vunpack.c.l.b16 %v2531
        %v3874 = vunpack.c.h.b16 %v2531
        %v3875 = vunpack.c.l.b16 %v2532
        %v3876 = vunpack.c.h.b16 %v2532
        %v3877 = vunpack.c.l.b16 %v2533
        %v3878 = vunpack.c.h.b16 %v2533
        %v3879 = vunpack.c.l.b16 %v2534
        %v3880 = vunpack.c.h.b16 %v2534
        %v3881 = vunpack.c.l.b16 %v2535
        %v3882 = vunpack.c.h.b16 %v2535
        %v3883 = vunpack.c.l.b16 %v2536
        %v3884 = vunpack.c.h.b16 %v2536
        %v3885 = vunpack.c.l.b16 %v2537
        %v3886 = vunpack.c.h.b16 %v2537
        %v3887 = vunpack.c.l.b16 %v2538
        %v3888 = vunpack.c.h.b16 %v2538
        %v3889 = vunpack.c.l.b16 %v2539
        %v3890 = vunpack.c.h.b16 %v2539
        %v3891 = vunpack.c.l.b16 %v2540
        %v3892 = vunpack.c.h.b16 %v2540
        %v3893 = vunpack.c.l.b16 %v2541
        %v3894 = vunpack.c.h.b16 %v2541
        %v3895 = vunpack.c.l.b16 %v2542
        %v3896 = vunpack.c.h.b16 %v2542
        %v3897 = vunpack.c.l.b16 %v2543
        %v3898 = vunpack.c.h.b16 %v2543
        %v3899 = vunpack.c.l.b16 %v2544
        %v3900 = vunpack.c.h.b16 %v2544
        %v3901 = vunpack.c.l.b16 %v2545
        %v3902 = vunpack.c.h.b16 %v2545
        %v3903 = vunpack.c.l.b16 %v2546
        %v3904 = vunpack.c.h.b16 %v2546
        %v3905 = vunpack.c.l.b16 %v2547
        %v3906 = vunpack.c.h.b16 %v2547
        %v3907 = vunpack.c.l.b16 %v2548
        %v3908 = vunpack.c.h.b16 %v2548
        %v3909 = vunpack.c.l.b16 %v2549
        %v3910 = vunpack.c.h.b16 %v2549
        %v3911 = vunpack.c.l.b16 %v2550
        %v3912 = vunpack.c.h.b16 %v2550
        %v3913 = vunpack.c.l.b16 %v2551
        %v3914 = vunpack.c.h.b16 %v2551
        %v3915 = vunpack.c.l.b16 %v2552
        %v3916 = vunpack.c.h.b16 %v2552
        %v3917 = vunpack.c.l.b16 %v2553
        %v3918 = vunpack.c.h.b16 %v2553
        %v3919 = vunpack.c.l.b16 %v2554
        %v3920 = vunpack.c.h.b16 %v2554
        %v3921 = vunpack.c.l.b16 %v2555
        %v3922 = vunpack.c.h.b16 %v2555
        %v3923 = vunpack.c.l.b16 %v2556
        %v3924 = vunpack.c.h.b16 %v2556
        %v3925 = vunpack.c.l.b16 %v2557
        %v3926 = vunpack.c.h.b16 %v2557
        %v3927 = vunpack.c.l.b16 %v2558
        %v3928 = vunpack.c.h.b16 %v2558
        %v3929 = vunpack.c.l.b16 %v2559
        %v3930 = vunpack.c.h.b16 %v2559
        %v3931 = vunpack.c.l.b16 %v2560
        %v3932 = vunpack.c.h.b16 %v2560
        %v3933 = vunpack.c.l.b16 %v2561
        %v3934 = vunpack.c.h.b16 %v2561
        %v3935 = vunpack.c.l.b16 %v2562
        %v3936 = vunpack.c.h.b16 %v2562
        %v3937 = vunpack.c.l.b16 %v2563
        %v3938 = vunpack.c.h.b16 %v2563
        %v3939 = vunpack.c.l.b16 %v2564
        %v3940 = vunpack.c.h.b16 %v2564
        %v3941 = vunpack.c.l.b16 %v2565
        %v3942 = vunpack.c.h.b16 %v2565
        %v3943 = vpack.c.b16 %v3755, %v3751
        %v3944 = vpack.c.b16 %v3756, %v3752
        %v3945 = vpack.c.b16 %v3757, %v3753
        %v3946 = vpack.c.b16 %v3758, %v3754
        %v3947 = vpack.c.b16 %v3763, %v3759
        %v3948 = vpack.c.b16 %v3764, %v3760
        %v3949 = vpack.c.b16 %v3765, %v3761
        %v3950 = vpack.c.b16 %v3766, %v3762
        %v3951 = vpack.c.b16 %v3771, %v3767
        %v3952 = vpack.c.b16 %v3772, %v3768
        %v3953 = vpack.c.b16 %v3773, %v3769
        %v3954 = vpack.c.b16 %v3774, %v3770
        %v3955 = vpack.c.b16 %v3779, %v3775
        %v3956 = vpack.c.b16 %v3780, %v3776
        %v3957 = vpack.c.b16 %v3781, %v3777
        %v3958 = vpack.c.b16 %v3782, %v3778
        %v3959 = vpack.c.b16 %v3787, %v3783
        %v3960 = vpack.c.b16 %v3788, %v3784
        %v3961 = vpack.c.b16 %v3789, %v3785
        %v3962 = vpack.c.b16 %v3790, %v3786
        %v3963 = vpack.c.b16 %v3795, %v3791
        %v3964 = vpack.c.b16 %v3796, %v3792
        %v3965 = vpack.c.b16 %v3797, %v3793
        %v3966 = vpack.c.b16 %v3798, %v3794
        %v3967 = vpack.c.b16 %v3803, %v3799
        %v3968 = vpack.c.b16 %v3804, %v3800
        %v3969 = vpack.c.b16 %v3805, %v3801
        %v3970 = vpack.c.b16 %v3806, %v3802
        %v3971 = vpack.c.b16 %v3811, %v3807
        %v3972 = vpack.c.b16 %v3812, %v3808
        %v3973 = vpack.c.b16 %v3813, %v3809
        %v3974 = vpack.c.b16 %v3814, %v3810
        %v3975 = vpack.c.b16 %v3819, %v3815
        %v3976 = vpack.c.b16 %v3820, %v3816
        %v3977 = vpack.c.b16 %v3821, %v3817
        %v3978 = vpack.c.b16 %v3822, %v3818
        %v3979 = vpack.c.b16 %v3827, %v3823
        %v3980 = vpack.c.b16 %v3828, %v3824
        %v3981 = vpack.c.b16 %v3829, %v3825
        %v3982 = vpack.c.b16 %v3830, %v3826
        %v3983 = vpack.c.b16 %v3835, %v3831
        %v3984 = vpack.c.b16 %v3836, %v3832
        %v3985 = vpack.c.b16 %v3837, %v3833
        %v3986 = vpack.c.b16 %v3838, %v3834
        %v3987 = vpack.c.b16 %v3843, %v3839
        %v3988 = vpack.c.b16 %v3844, %v3840
        %v3989 = vpack.c.b16 %v3845, %v3841
        %v3990 = vpack.c.b16 %v3846, %v3842
        %v3991 = vpack.c.b16 %v3851, %v3847
        %v3992 = vpack.c.b16 %v3852, %v3848
        %v3993 = vpack.c.b16 %v3853, %v3849
        %v3994 = vpack.c.b16 %v3854, %v3850
        %v3995 = vpack.c.b16 %v3859, %v3855
        %v3996 = vpack.c.b16 %v3860, %v3856
        %v3997 = vpack.c.b16 %v3861, %v3857
        %v3998 = vpack.c.b16 %v3862, %v3858
        %v3999 = vpack.c.b16 %v3867, %v3863
        %v4000 = vpack.c.b16 %v3868, %v3864
        %v4001 = vpack.c.b16 %v3869, %v3865
        %v4002 = vpack.c.b16 %v3870, %v3866
        %v4003 = vpack.c.b16 %v3875, %v3871
        %v4004 = vpack.c.b16 %v3876, %v3872
        %v4005 = vpack.c.b16 %v3877, %v3873
        %v4006 = vpack.c.b16 %v3878, %v3874
        %v4007 = vpack.c.b16 %v3883, %v3879
        %v4008 = vpack.c.b16 %v3884, %v3880
        %v4009 = vpack.c.b16 %v3885, %v3881
        %v4010 = vpack.c.b16 %v3886, %v3882
        %v4011 = vpack.c.b16 %v3891, %v3887
        %v4012 = vpack.c.b16 %v3892, %v3888
        %v4013 = vpack.c.b16 %v3893, %v3889
        %v4014 = vpack.c.b16 %v3894, %v3890
        %v4015 = vpack.c.b16 %v3899, %v3895
        %v4016 = vpack.c.b16 %v3900, %v3896
        %v4017 = vpack.c.b16 %v3901, %v3897
        %v4018 = vpack.c.b16 %v3902, %v3898
        %v4019 = vpack.c.b16 %v3907, %v3903
        %v4020 = vpack.c.b16 %v3908, %v3904
        %v4021 = vpack.c.b16 %v3909, %v3905
        %v4022 = vpack.c.b16 %v3910, %v3906
        %v4023 = vpack.c.b16 %v3915, %v3911
        %v4024 = vpack.c.b16 %v3916, %v3912
        %v4025 = vpack.c.b16 %v3917, %v3913
        %v4026 = vpack.c.b16 %v3918, %v3914
        %v4027 = vpack.c.b16 %v3923, %v3919
        %v4028 = vpack.c.b16 %v3924, %v3920
        %v4029 = vpack.c.b16 %v3925, %v3921
        %v4030 = vpack.c.b16 %v3926, %v3922
        %v4031 = vpack.c.b16 %v3931, %v3927
        %v4032 = vpack.c.b16 %v3932, %v3928
        %v4033 = vpack.c.b16 %v3933, %v3929
        %v4034 = vpack.c.b16 %v3934, %v3930
        %v4035 = vpack.c.b16 %v3939, %v3935
        %v4036 = vpack.c.b16 %v3940, %v3936
        %v4037 = vpack.c.b16 %v3941, %v3937
        %v4038 = vpack.c.b16 %v3942, %v3938
        %4135 = vmatprep.subr.bf16.mxu0 %v3972
        %4136 = vmatpush1.bf16.msra.mxu0 %v3971
        %4137 = vmatprep.subr.bf16.mxu0 %v3968
        %4138 = vmatpush1.bf16.msra.mxu0 %v3967
        %4139 = vmatprep.subr.bf16.mxu0 %v3964
        %4140 = vmatpush1.bf16.msra.mxu0 %v3963
        %4141 = vmatprep.subr.bf16.mxu0 %v3960
        %4142 = vmatpush1.bf16.msra.mxu0 %v3959
        %4143 = vmatprep.subr.bf16.mxu0 %v3956
        %4144 = vmatpush1.bf16.msra.mxu0 %v3955
        %4145 = vmatprep.subr.bf16.mxu0 %v3952
        %4146 = vmatpush1.bf16.msra.mxu0 %v3951
        %4147 = vmatprep.subr.bf16.mxu0 %v3948
        %4148 = vmatpush1.bf16.msra.mxu0 %v3947
        %4149 = vmatprep.subr.bf16.mxu0 %v3944
        %4150 = vmatpush1.bf16.msra.mxu0 %v3943
        %4151 = vmatprep.subr.bf16.mxu0 %v4004
        %4152 = vmatpush2.bf16.msra.mxu0 %v4003
        %4153 = vmatprep.subr.bf16.mxu0 %v4000
        %4154 = vmatpush2.bf16.msra.mxu0 %v3999
        %4155 = vmatprep.subr.bf16.mxu0 %v3996
        %4156 = vmatpush2.bf16.msra.mxu0 %v3995
        %4157 = vmatprep.subr.bf16.mxu0 %v3992
        %4158 = vmatpush2.bf16.msra.mxu0 %v3991
        %4159 = vmatprep.subr.bf16.mxu0 %v3988
        %4160 = vmatpush2.bf16.msra.mxu0 %v3987
        %4161 = vmatprep.subr.bf16.mxu0 %v3984
        %4162 = vmatpush2.bf16.msra.mxu0 %v3983
        %4163 = vmatprep.subr.bf16.mxu0 %v3980
        %4164 = vmatpush2.bf16.msra.mxu0 %v3979
        %4165 = vmatprep.subr.bf16.mxu0 %v3976
        %4166 = vmatpush2.bf16.msra.mxu0 %v3975
        %4167 = vmatprep.mubr.bf16.mxu0 %v3626
        %4168 = vmatmul.mubr.bf16.gmra.mxu0 %v3625
        %v4169 = vpop.f32.mrf.mxu0
        %v4170 = vadd.f32 %v3361, %v4169
        %v4171 = vpop.f32.mrf.mxu0
        %v4172 = vadd.f32 %v3363, %v4171
        %v4173 = vpop.f32.mrf.mxu0
        %v4174 = vadd.f32 %v3365, %v4173
        %v4175 = vpop.f32.mrf.mxu0
        %v4176 = vadd.f32 %v3367, %v4175
        %4177 = vmatprep.mubr.bf16.mxu0 %v3629
        %4178 = vmatmul.mubr.bf16.gmra.mxu0 %v3628
        %v4179 = vpop.f32.mrf.mxu0
        %v4180 = vadd.f32 %v3371, %v4179
        %v4181 = vpop.f32.mrf.mxu0
        %v4182 = vadd.f32 %v3373, %v4181
        %v4183 = vpop.f32.mrf.mxu0
        %v4184 = vadd.f32 %v3375, %v4183
        %v4185 = vpop.f32.mrf.mxu0
        %v4186 = vadd.f32 %v3377, %v4185
        %4187 = vmatprep.mubr.bf16.mxu0 %v3632
        %4188 = vmatmul.mubr.bf16.gmra.mxu0 %v3631
        %v4189 = vpop.f32.mrf.mxu0
        %v4190 = vadd.f32 %v3381, %v4189
        %v4191 = vpop.f32.mrf.mxu0
        %v4192 = vadd.f32 %v3383, %v4191
        %v4193 = vpop.f32.mrf.mxu0
        %v4194 = vadd.f32 %v3385, %v4193
        %v4195 = vpop.f32.mrf.mxu0
        %v4196 = vadd.f32 %v3387, %v4195
        %4197 = vmatprep.mubr.bf16.mxu0 %v3635
        %4198 = vmatmul.mubr.bf16.gmra.mxu0 %v3634
        %v4199 = vpop.f32.mrf.mxu0
        %v4200 = vadd.f32 %v3391, %v4199
        %v4201 = vpop.f32.mrf.mxu0
        %v4202 = vadd.f32 %v3393, %v4201
        %v4203 = vpop.f32.mrf.mxu0
        %v4204 = vadd.f32 %v3395, %v4203
        %v4205 = vpop.f32.mrf.mxu0
        %v4206 = vadd.f32 %v3397, %v4205
        %4207 = vmatprep.mubr.bf16.mxu0 %v3638
        %4208 = vmatmul.mubr.bf16.gmra.mxu0 %v3637
        %v4209 = vpop.f32.mrf.mxu0
        %v4210 = vadd.f32 %v3401, %v4209
        %v4211 = vpop.f32.mrf.mxu0
        %v4212 = vadd.f32 %v3403, %v4211
        %v4213 = vpop.f32.mrf.mxu0
        %v4214 = vadd.f32 %v3405, %v4213
        %v4215 = vpop.f32.mrf.mxu0
        %v4216 = vadd.f32 %v3407, %v4215
        %4217 = vdwg.mxu0
        %4218 = vmatprep.subr.bf16.mxu0 %v4036
        %4219 = vmatpush1.bf16.msra.mxu0 %v4035
        %4220 = vmatprep.subr.bf16.mxu0 %v4032
        %4221 = vmatpush1.bf16.msra.mxu0 %v4031
        %4222 = vmatprep.subr.bf16.mxu0 %v4028
        %4223 = vmatpush1.bf16.msra.mxu0 %v4027
        %4224 = vmatprep.subr.bf16.mxu0 %v4024
        %4225 = vmatpush1.bf16.msra.mxu0 %v4023
        %4226 = vmatprep.subr.bf16.mxu0 %v4020
        %4227 = vmatpush1.bf16.msra.mxu0 %v4019
        %4228 = vmatprep.subr.bf16.mxu0 %v4016
        %4229 = vmatpush1.bf16.msra.mxu0 %v4015
        %4230 = vmatprep.subr.bf16.mxu0 %v4012
        %4231 = vmatpush1.bf16.msra.mxu0 %v4011
        %4232 = vmatprep.subr.bf16.mxu0 %v4008
        %4233 = vmatpush1.bf16.msra.mxu0 %v4007
        %4234 = vmatprep.subr.bf16.mxu0 0
        %4235 = vmatpush2.bf16.msra.mxu0 0
        %4236 = vmatprep.subr.bf16.mxu0 0
        %4237 = vmatpush2.bf16.msra.mxu0 0
        %4238 = vmatprep.subr.bf16.mxu0 0
        %4239 = vmatpush2.bf16.msra.mxu0 0
        %4240 = vmatprep.subr.bf16.mxu0 0
        %4241 = vmatpush2.bf16.msra.mxu0 0
        %4242 = vmatprep.subr.bf16.mxu0 0
        %4243 = vmatpush2.bf16.msra.mxu0 0
        %4244 = vmatprep.subr.bf16.mxu0 0
        %4245 = vmatpush2.bf16.msra.mxu0 0
        %4246 = vmatprep.subr.bf16.mxu0 0
        %4247 = vmatpush2.bf16.msra.mxu0 0
        %4248 = vmatprep.subr.bf16.mxu0 0
        %4249 = vmatpush2.bf16.msra.mxu0 0
        %4250 = vmatprep.mubr.bf16.mxu0 0
        %4251 = vmatmul.mubr.bf16.gmra.mxu0 %v3627
        %v4252 = vpop.f32.mrf.mxu0
        %v4253 = vadd.f32 %v4170, %v4252
        %v4254 = vpop.f32.mrf.mxu0
        %v4255 = vadd.f32 %v4172, %v4254
        %v4256 = vpop.f32.mrf.mxu0
        %v4257 = vadd.f32 %v4174, %v4256
        %v4258 = vpop.f32.mrf.mxu0
        %v4259 = vadd.f32 %v4176, %v4258
        %4260 = vmatprep.mubr.bf16.mxu0 0
        %4261 = vmatmul.mubr.bf16.gmra.mxu0 %v3630
        %v4262 = vpop.f32.mrf.mxu0
        %v4263 = vadd.f32 %v4180, %v4262
        %v4264 = vpop.f32.mrf.mxu0
        %v4265 = vadd.f32 %v4182, %v4264
        %v4266 = vpop.f32.mrf.mxu0
        %v4267 = vadd.f32 %v4184, %v4266
        %v4268 = vpop.f32.mrf.mxu0
        %v4269 = vadd.f32 %v4186, %v4268
        %4270 = vmatprep.mubr.bf16.mxu0 0
        %4271 = vmatmul.mubr.bf16.gmra.mxu0 %v3633
        %v4272 = vpop.f32.mrf.mxu0
        %v4273 = vadd.f32 %v4190, %v4272
        %v4274 = vpop.f32.mrf.mxu0
        %v4275 = vadd.f32 %v4192, %v4274
        %v4276 = vpop.f32.mrf.mxu0
        %v4277 = vadd.f32 %v4194, %v4276
        %v4278 = vpop.f32.mrf.mxu0
        %v4279 = vadd.f32 %v4196, %v4278
        %4280 = vmatprep.mubr.bf16.mxu0 0
        %4281 = vmatmul.mubr.bf16.gmra.mxu0 %v3636
        %v4282 = vpop.f32.mrf.mxu0
        %v4283 = vadd.f32 %v4200, %v4282
        %v4284 = vpop.f32.mrf.mxu0
        %v4285 = vadd.f32 %v4202, %v4284
        %v4286 = vpop.f32.mrf.mxu0
        %v4287 = vadd.f32 %v4204, %v4286
        %v4288 = vpop.f32.mrf.mxu0
        %v4289 = vadd.f32 %v4206, %v4288
        %4290 = vmatprep.mubr.bf16.mxu0 0
        %4291 = vmatmul.mubr.bf16.gmra.mxu0 %v3639
        %v4292 = vpop.f32.mrf.mxu0
        %v4293 = vadd.f32 %v4210, %v4292
        %v4294 = vpop.f32.mrf.mxu0
        %v4295 = vadd.f32 %v4212, %v4294
        %v4296 = vpop.f32.mrf.mxu0
        %v4297 = vadd.f32 %v4214, %v4296
        %v4298 = vpop.f32.mrf.mxu0
        %v4299 = vadd.f32 %v4216, %v4298
        %4300 = vdwg.mxu0
        %4301 = vmatprep.subr.bf16.mxu0 %v3974
        %4302 = vmatpush1.bf16.msra.mxu0 %v3973
        %4303 = vmatprep.subr.bf16.mxu0 %v3970
        %4304 = vmatpush1.bf16.msra.mxu0 %v3969
        %4305 = vmatprep.subr.bf16.mxu0 %v3966
        %4306 = vmatpush1.bf16.msra.mxu0 %v3965
        %4307 = vmatprep.subr.bf16.mxu0 %v3962
        %4308 = vmatpush1.bf16.msra.mxu0 %v3961
        %4309 = vmatprep.subr.bf16.mxu0 %v3958
        %4310 = vmatpush1.bf16.msra.mxu0 %v3957
        %4311 = vmatprep.subr.bf16.mxu0 %v3954
        %4312 = vmatpush1.bf16.msra.mxu0 %v3953
        %4313 = vmatprep.subr.bf16.mxu0 %v3950
        %4314 = vmatpush1.bf16.msra.mxu0 %v3949
        %4315 = vmatprep.subr.bf16.mxu0 %v3946
        %4316 = vmatpush1.bf16.msra.mxu0 %v3945
        %4317 = vmatprep.subr.bf16.mxu0 %v4006
        %4318 = vmatpush2.bf16.msra.mxu0 %v4005
        %4319 = vmatprep.subr.bf16.mxu0 %v4002
        %4320 = vmatpush2.bf16.msra.mxu0 %v4001
        %4321 = vmatprep.subr.bf16.mxu0 %v3998
        %4322 = vmatpush2.bf16.msra.mxu0 %v3997
        %4323 = vmatprep.subr.bf16.mxu0 %v3994
        %4324 = vmatpush2.bf16.msra.mxu0 %v3993
        %4325 = vmatprep.subr.bf16.mxu0 %v3990
        %4326 = vmatpush2.bf16.msra.mxu0 %v3989
        %4327 = vmatprep.subr.bf16.mxu0 %v3986
        %4328 = vmatpush2.bf16.msra.mxu0 %v3985
        %4329 = vmatprep.subr.bf16.mxu0 %v3982
        %4330 = vmatpush2.bf16.msra.mxu0 %v3981
        %4331 = vmatprep.subr.bf16.mxu0 %v3978
        %4332 = vmatpush2.bf16.msra.mxu0 %v3977
        %4333 = vmatprep.mubr.bf16.mxu0 %v3626
        %4334 = vmatmul.mubr.bf16.gmra.mxu0 %v3625
        %v4335 = vpop.f32.mrf.mxu0
        %v4336 = vadd.f32 %v3527, %v4335
        %v4337 = vpop.f32.mrf.mxu0
        %v4338 = vadd.f32 %v3529, %v4337
        %v4339 = vpop.f32.mrf.mxu0
        %v4340 = vadd.f32 %v3531, %v4339
        %v4341 = vpop.f32.mrf.mxu0
        %v4342 = vadd.f32 %v3533, %v4341
        %4343 = vmatprep.mubr.bf16.mxu0 %v3629
        %4344 = vmatmul.mubr.bf16.gmra.mxu0 %v3628
        %v4345 = vpop.f32.mrf.mxu0
        %v4346 = vadd.f32 %v3537, %v4345
        %v4347 = vpop.f32.mrf.mxu0
        %v4348 = vadd.f32 %v3539, %v4347
        %v4349 = vpop.f32.mrf.mxu0
        %v4350 = vadd.f32 %v3541, %v4349
        %v4351 = vpop.f32.mrf.mxu0
        %v4352 = vadd.f32 %v3543, %v4351
        %4353 = vmatprep.mubr.bf16.mxu0 %v3632
        %4354 = vmatmul.mubr.bf16.gmra.mxu0 %v3631
        %v4355 = vpop.f32.mrf.mxu0
        %v4356 = vadd.f32 %v3547, %v4355
        %v4357 = vpop.f32.mrf.mxu0
        %v4358 = vadd.f32 %v3549, %v4357
        %v4359 = vpop.f32.mrf.mxu0
        %v4360 = vadd.f32 %v3551, %v4359
        %v4361 = vpop.f32.mrf.mxu0
        %v4362 = vadd.f32 %v3553, %v4361
        %4363 = vmatprep.mubr.bf16.mxu0 %v3635
        %4364 = vmatmul.mubr.bf16.gmra.mxu0 %v3634
        %v4365 = vpop.f32.mrf.mxu0
        %v4366 = vadd.f32 %v3557, %v4365
        %v4367 = vpop.f32.mrf.mxu0
        %v4368 = vadd.f32 %v3559, %v4367
        %v4369 = vpop.f32.mrf.mxu0
        %v4370 = vadd.f32 %v3561, %v4369
        %v4371 = vpop.f32.mrf.mxu0
        %v4372 = vadd.f32 %v3563, %v4371
        %4373 = vmatprep.mubr.bf16.mxu0 %v3638
        %4374 = vmatmul.mubr.bf16.gmra.mxu0 %v3637
        %v4375 = vpop.f32.mrf.mxu0
        %v4376 = vadd.f32 %v3567, %v4375
        %v4377 = vpop.f32.mrf.mxu0
        %v4378 = vadd.f32 %v3569, %v4377
        %v4379 = vpop.f32.mrf.mxu0
        %v4380 = vadd.f32 %v3571, %v4379
        %v4381 = vpop.f32.mrf.mxu0
        %v4382 = vadd.f32 %v3573, %v4381
        %4383 = vdwg.mxu0
        %4384 = vmatprep.subr.bf16.mxu0 %v4038
        %4385 = vmatpush1.bf16.msra.mxu0 %v4037
        %4386 = vmatprep.subr.bf16.mxu0 %v4034
        %4387 = vmatpush1.bf16.msra.mxu0 %v4033
        %4388 = vmatprep.subr.bf16.mxu0 %v4030
        %4389 = vmatpush1.bf16.msra.mxu0 %v4029
        %4390 = vmatprep.subr.bf16.mxu0 %v4026
        %4391 = vmatpush1.bf16.msra.mxu0 %v4025
        %4392 = vmatprep.subr.bf16.mxu0 %v4022
        %4393 = vmatpush1.bf16.msra.mxu0 %v4021
        %4394 = vmatprep.subr.bf16.mxu0 %v4018
        %4395 = vmatpush1.bf16.msra.mxu0 %v4017
        %4396 = vmatprep.subr.bf16.mxu0 %v4014
        %4397 = vmatpush1.bf16.msra.mxu0 %v4013
        %4398 = vmatprep.subr.bf16.mxu0 %v4010
        %4399 = vmatpush1.bf16.msra.mxu0 %v4009
        %4400 = vmatprep.subr.bf16.mxu0 0
        %4401 = vmatpush2.bf16.msra.mxu0 0
        %4402 = vmatprep.subr.bf16.mxu0 0
        %4403 = vmatpush2.bf16.msra.mxu0 0
        %4404 = vmatprep.subr.bf16.mxu0 0
        %4405 = vmatpush2.bf16.msra.mxu0 0
        %4406 = vmatprep.subr.bf16.mxu0 0
        %4407 = vmatpush2.bf16.msra.mxu0 0
        %4408 = vmatprep.subr.bf16.mxu0 0
        %4409 = vmatpush2.bf16.msra.mxu0 0
        %4410 = vmatprep.subr.bf16.mxu0 0
        %4411 = vmatpush2.bf16.msra.mxu0 0
        %4412 = vmatprep.subr.bf16.mxu0 0
        %4413 = vmatpush2.bf16.msra.mxu0 0
        %4414 = vmatprep.subr.bf16.mxu0 0
        %4415 = vmatpush2.bf16.msra.mxu0 0
        %4416 = vmatprep.mubr.bf16.mxu0 0
        %4417 = vmatmul.mubr.bf16.gmra.mxu0 %v3627
        %v4418 = vpop.f32.mrf.mxu0
        %v4419 = vadd.f32 %v4336, %v4418
        %v4420 = vpop.f32.mrf.mxu0
        %v4421 = vadd.f32 %v4338, %v4420
        %v4422 = vpop.f32.mrf.mxu0
        %v4423 = vadd.f32 %v4340, %v4422
        %v4424 = vpop.f32.mrf.mxu0
        %v4425 = vadd.f32 %v4342, %v4424
        %4426 = vmatprep.mubr.bf16.mxu0 0
        %4427 = vmatmul.mubr.bf16.gmra.mxu0 %v3630
        %v4428 = vpop.f32.mrf.mxu0
        %v4429 = vadd.f32 %v4346, %v4428
        %v4430 = vpop.f32.mrf.mxu0
        %v4431 = vadd.f32 %v4348, %v4430
        %v4432 = vpop.f32.mrf.mxu0
        %v4433 = vadd.f32 %v4350, %v4432
        %v4434 = vpop.f32.mrf.mxu0
        %v4435 = vadd.f32 %v4352, %v4434
        %4436 = vmatprep.mubr.bf16.mxu0 0
        %4437 = vmatmul.mubr.bf16.gmra.mxu0 %v3633
        %v4438 = vpop.f32.mrf.mxu0
        %v4439 = vadd.f32 %v4356, %v4438
        %v4440 = vpop.f32.mrf.mxu0
        %v4441 = vadd.f32 %v4358, %v4440
        %v4442 = vpop.f32.mrf.mxu0
        %v4443 = vadd.f32 %v4360, %v4442
        %v4444 = vpop.f32.mrf.mxu0
        %v4445 = vadd.f32 %v4362, %v4444
        %4446 = vmatprep.mubr.bf16.mxu0 0
        %4447 = vmatmul.mubr.bf16.gmra.mxu0 %v3636
        %v4448 = vpop.f32.mrf.mxu0
        %v4449 = vadd.f32 %v4366, %v4448
        %v4450 = vpop.f32.mrf.mxu0
        %v4451 = vadd.f32 %v4368, %v4450
        %v4452 = vpop.f32.mrf.mxu0
        %v4453 = vadd.f32 %v4370, %v4452
        %v4454 = vpop.f32.mrf.mxu0
        %v4455 = vadd.f32 %v4372, %v4454
        %4456 = vmatprep.mubr.bf16.mxu0 0
        %4457 = vmatmul.mubr.bf16.gmra.mxu0 %v3639
        %v4458 = vpop.f32.mrf.mxu0
        %v4459 = vadd.f32 %v4376, %v4458
        %v4460 = vpop.f32.mrf.mxu0
        %v4461 = vadd.f32 %v4378, %v4460
        %v4462 = vpop.f32.mrf.mxu0
        %v4463 = vadd.f32 %v4380, %v4462
        %v4464 = vpop.f32.mrf.mxu0
        %v4465 = vadd.f32 %v4382, %v4464
        %4466 = vdwg.mxu0
        %s4467 = scalar_lea.vmem [#allocation2], 36
        %v4468 = vld [vmem:[%s4467] sm:$0xff]
        %v4469 = vld [vmem:[%s4467 + $0x8] sm:$0xf]
        %v4470 = vld [vmem:[%s4467 + $0x18] sm:$0xff]
        %v4471 = vld [vmem:[%s4467 + $0x20] sm:$0xf]
        %v4472 = vld [vmem:[%s4467 + $0x30] sm:$0xff]
        %v4473 = vld [vmem:[%s4467 + $0x38] sm:$0xf]
        %v4474 = vld [vmem:[%s4467 + $0x48] sm:$0xff]
        %v4475 = vld [vmem:[%s4467 + $0x50] sm:$0xf]
        %v4476 = vld [vmem:[%s4467 + $0x60] sm:$0xff]
        %v4477 = vld [vmem:[%s4467 + $0x68] sm:$0xf]
        %v4478 = vld [vmem:[%s4467 + $0x78] sm:$0xff]
        %v4479 = vld [vmem:[%s4467 + $0x80] sm:$0xf]
        %v4480 = vld [vmem:[%s4467 + $0x90] sm:$0xff]
        %v4481 = vld [vmem:[%s4467 + $0x98] sm:$0xf]
        %v4482 = vld [vmem:[%s4467 + $0xa8] sm:$0xff]
        %v4483 = vld [vmem:[%s4467 + $0xb0] sm:$0xf]
        %v4484 = vld [vmem:[%s4467 + $0xc0] sm:$0xff]
        %v4485 = vld [vmem:[%s4467 + $0xc8] sm:$0xf]
        %v4486 = vld [vmem:[%s4467 + $0xd8] sm:$0xff]
        %v4487 = vld [vmem:[%s4467 + $0xe0] sm:$0xf]
        %s4488 = scalar_lea.vmem %s2, 1536
        %v4489 = vld [vmem:[%s4488] sm:$0xff]
        %v4490 = vld [vmem:[%s4488 + $0x8] sm:$0xff]
        %v4491 = vld [vmem:[%s4488 + $0x10] sm:$0xff]
        %v4492 = vld [vmem:[%s4488 + $0x18] sm:$0xff]
        %v4493 = vld [vmem:[%s4488 + $0x20] sm:$0xff]
        %v4494 = vld [vmem:[%s4488 + $0x28] sm:$0xff]
        %v4495 = vld [vmem:[%s4488 + $0x30] sm:$0xff]
        %v4496 = vld [vmem:[%s4488 + $0x38] sm:$0xff]
        %v4497 = vld [vmem:[%s4488 + $0x40] sm:$0xff]
        %v4498 = vld [vmem:[%s4488 + $0x48] sm:$0xff]
        %v4499 = vld [vmem:[%s4488 + $0x50] sm:$0xff]
        %v4500 = vld [vmem:[%s4488 + $0x58] sm:$0xff]
        %v4501 = vld [vmem:[%s4488 + $0x60] sm:$0xff]
        %v4502 = vld [vmem:[%s4488 + $0x68] sm:$0xff]
        %v4503 = vld [vmem:[%s4488 + $0x70] sm:$0xff]
        %v4504 = vld [vmem:[%s4488 + $0x78] sm:$0xff]
        %v4505 = vld [vmem:[%s4488 + $0x80] sm:$0xff]
        %v4506 = vld [vmem:[%s4488 + $0x88] sm:$0xff]
        %v4507 = vld [vmem:[%s4488 + $0x90] sm:$0xff]
        %v4508 = vld [vmem:[%s4488 + $0x98] sm:$0xff]
        %v4509 = vld [vmem:[%s4488 + $0xa0] sm:$0xff]
        %v4510 = vld [vmem:[%s4488 + $0xa8] sm:$0xff]
        %v4511 = vld [vmem:[%s4488 + $0xb0] sm:$0xff]
        %v4512 = vld [vmem:[%s4488 + $0xb8] sm:$0xff]
        %v4513 = vld [vmem:[%s4488 + $0xc0] sm:$0xff]
        %v4514 = vld [vmem:[%s4488 + $0xc8] sm:$0xff]
        %v4515 = vld [vmem:[%s4488 + $0xd0] sm:$0xff]
        %v4516 = vld [vmem:[%s4488 + $0xd8] sm:$0xff]
        %v4517 = vld [vmem:[%s4488 + $0xe0] sm:$0xff]
        %v4518 = vld [vmem:[%s4488 + $0xe8] sm:$0xff]
        %v4519 = vld [vmem:[%s4488 + $0xf0] sm:$0xff]
        %v4520 = vld [vmem:[%s4488 + $0xf8] sm:$0xff]
        %v4521 = vld [vmem:[%s4488 + $0x100] sm:$0xff]
        %v4522 = vld [vmem:[%s4488 + $0x108] sm:$0xff]
        %v4523 = vld [vmem:[%s4488 + $0x110] sm:$0xff]
        %v4524 = vld [vmem:[%s4488 + $0x118] sm:$0xff]
        %v4525 = vld [vmem:[%s4488 + $0x120] sm:$0xff]
        %v4526 = vld [vmem:[%s4488 + $0x128] sm:$0xff]
        %v4527 = vld [vmem:[%s4488 + $0x130] sm:$0xff]
        %v4528 = vld [vmem:[%s4488 + $0x138] sm:$0xff]
        %v4529 = vld [vmem:[%s4488 + $0x140] sm:$0xff]
        %v4530 = vld [vmem:[%s4488 + $0x148] sm:$0xff]
        %v4531 = vld [vmem:[%s4488 + $0x150] sm:$0xff]
        %v4532 = vld [vmem:[%s4488 + $0x158] sm:$0xff]
        %v4533 = vld [vmem:[%s4488 + $0x160] sm:$0xff]
        %v4534 = vld [vmem:[%s4488 + $0x168] sm:$0xff]
        %v4535 = vld [vmem:[%s4488 + $0x170] sm:$0xff]
        %v4536 = vld [vmem:[%s4488 + $0x178] sm:$0xff]
        %v4537 = vld [vmem:[%s4488 + $0x180] sm:$0xff]
        %v4538 = vld [vmem:[%s4488 + $0x188] sm:$0xff]
        %v4539 = vld [vmem:[%s4488 + $0x190] sm:$0xff]
        %v4540 = vld [vmem:[%s4488 + $0x198] sm:$0xff]
        %v4541 = vld [vmem:[%s4488 + $0x1a0] sm:$0xff]
        %v4542 = vld [vmem:[%s4488 + $0x1a8] sm:$0xff]
        %v4543 = vld [vmem:[%s4488 + $0x1b0] sm:$0xff]
        %v4544 = vld [vmem:[%s4488 + $0x1b8] sm:$0xff]
        %v4545 = vld [vmem:[%s4488 + $0x1c0] sm:$0xff]
        %v4546 = vld [vmem:[%s4488 + $0x1c8] sm:$0xff]
        %v4547 = vld [vmem:[%s4488 + $0x1d0] sm:$0xff]
        %v4548 = vld [vmem:[%s4488 + $0x1d8] sm:$0xff]
        %v4549 = vld [vmem:[%s4488 + $0x1e0] sm:$0xff]
        %v4550 = vld [vmem:[%s4488 + $0x1e8] sm:$0xff]
        %v4551 = vld [vmem:[%s4488 + $0x1f0] sm:$0xff]
        %v4552 = vld [vmem:[%s4488 + $0x1f8] sm:$0xff]
        %v4553 = vld [vmem:[%s4488 + $0x200] sm:$0xff]
        %v4554 = vld [vmem:[%s4488 + $0x208] sm:$0xff]
        %v4555 = vld [vmem:[%s4488 + $0x210] sm:$0xff]
        %v4556 = vld [vmem:[%s4488 + $0x218] sm:$0xff]
        %v4557 = vld [vmem:[%s4488 + $0x220] sm:$0xff]
        %v4558 = vld [vmem:[%s4488 + $0x228] sm:$0xff]
        %v4559 = vld [vmem:[%s4488 + $0x230] sm:$0xff]
        %v4560 = vld [vmem:[%s4488 + $0x238] sm:$0xff]
        %v4561 = vld [vmem:[%s4488 + $0x240] sm:$0xff]
        %v4562 = vld [vmem:[%s4488 + $0x248] sm:$0xff]
        %v4563 = vld [vmem:[%s4488 + $0x250] sm:$0xff]
        %v4564 = vld [vmem:[%s4488 + $0x258] sm:$0xff]
        %v4565 = vld [vmem:[%s4488 + $0x260] sm:$0xff]
        %v4566 = vld [vmem:[%s4488 + $0x268] sm:$0xff]
        %v4567 = vld [vmem:[%s4488 + $0x270] sm:$0xff]
        %v4568 = vld [vmem:[%s4488 + $0x278] sm:$0xff]
        %v4569 = vld [vmem:[%s4488 + $0x280] sm:$0xff]
        %v4570 = vld [vmem:[%s4488 + $0x288] sm:$0xff]
        %v4571 = vld [vmem:[%s4488 + $0x290] sm:$0xff]
        %v4572 = vld [vmem:[%s4488 + $0x298] sm:$0xff]
        %v4573 = vld [vmem:[%s4488 + $0x2a0] sm:$0xff]
        %v4574 = vld [vmem:[%s4488 + $0x2a8] sm:$0xff]
        %v4575 = vld [vmem:[%s4488 + $0x2b0] sm:$0xff]
        %v4576 = vld [vmem:[%s4488 + $0x2b8] sm:$0xff]
        %v4577 = vld [vmem:[%s4488 + $0x2c0] sm:$0xff]
        %v4578 = vld [vmem:[%s4488 + $0x2c8] sm:$0xff]
        %v4579 = vld [vmem:[%s4488 + $0x2d0] sm:$0xff]
        %v4580 = vld [vmem:[%s4488 + $0x2d8] sm:$0xff]
        %v4581 = vld [vmem:[%s4488 + $0x2e0] sm:$0xff]
        %v4582 = vld [vmem:[%s4488 + $0x2e8] sm:$0xff]
        %v4583 = vld [vmem:[%s4488 + $0x2f0] sm:$0xff]
        %v4584 = vld [vmem:[%s4488 + $0x2f8] sm:$0xff]
        %v4605 = vunpack.c.l.b16 %v4468
        %v4606 = vunpack.c.h.b16 %v4468
        %v4607 = vunpack.c.l.b16 %v4469
        %v4608 = vunpack.c.l.b16 %v4470
        %v4609 = vunpack.c.h.b16 %v4470
        %v4610 = vunpack.c.l.b16 %v4471
        %v4611 = vunpack.c.l.b16 %v4472
        %v4612 = vunpack.c.h.b16 %v4472
        %v4613 = vunpack.c.l.b16 %v4473
        %v4614 = vunpack.c.l.b16 %v4474
        %v4615 = vunpack.c.h.b16 %v4474
        %v4616 = vunpack.c.l.b16 %v4475
        %v4617 = vunpack.c.l.b16 %v4476
        %v4618 = vunpack.c.h.b16 %v4476
        %v4619 = vunpack.c.l.b16 %v4477
        %v4620 = vunpack.c.l.b16 %v4478
        %v4621 = vunpack.c.h.b16 %v4478
        %v4622 = vunpack.c.l.b16 %v4479
        %v4623 = vunpack.c.l.b16 %v4480
        %v4624 = vunpack.c.h.b16 %v4480
        %v4625 = vunpack.c.l.b16 %v4481
        %v4626 = vunpack.c.l.b16 %v4482
        %v4627 = vunpack.c.h.b16 %v4482
        %v4628 = vunpack.c.l.b16 %v4483
        %v4629 = vunpack.c.l.b16 %v4484
        %v4630 = vunpack.c.h.b16 %v4484
        %v4631 = vunpack.c.l.b16 %v4485
        %v4632 = vunpack.c.l.b16 %v4486
        %v4633 = vunpack.c.h.b16 %v4486
        %v4634 = vunpack.c.l.b16 %v4487
        %v4635 = vpack.c.b16 %v4608, %v4605
        %v4636 = vpack.c.b16 %v4609, %v4606
        %v4637 = vpack.c.b16 %v4610, %v4607
        %v4638 = vpack.c.b16 %v4614, %v4611
        %v4639 = vpack.c.b16 %v4615, %v4612
        %v4640 = vpack.c.b16 %v4616, %v4613
        %v4641 = vpack.c.b16 %v4620, %v4617
        %v4642 = vpack.c.b16 %v4621, %v4618
        %v4643 = vpack.c.b16 %v4622, %v4619
        %v4644 = vpack.c.b16 %v4626, %v4623
        %v4645 = vpack.c.b16 %v4627, %v4624
        %v4646 = vpack.c.b16 %v4628, %v4625
        %v4647 = vpack.c.b16 %v4632, %v4629
        %v4648 = vpack.c.b16 %v4633, %v4630
        %v4649 = vpack.c.b16 %v4634, %v4631
        %v4761 = vunpack.c.l.b16 %v4489
        %v4762 = vunpack.c.h.b16 %v4489
        %v4763 = vunpack.c.l.b16 %v4490
        %v4764 = vunpack.c.h.b16 %v4490
        %v4765 = vunpack.c.l.b16 %v4491
        %v4766 = vunpack.c.h.b16 %v4491
        %v4767 = vunpack.c.l.b16 %v4492
        %v4768 = vunpack.c.h.b16 %v4492
        %v4769 = vunpack.c.l.b16 %v4493
        %v4770 = vunpack.c.h.b16 %v4493
        %v4771 = vunpack.c.l.b16 %v4494
        %v4772 = vunpack.c.h.b16 %v4494
        %v4773 = vunpack.c.l.b16 %v4495
        %v4774 = vunpack.c.h.b16 %v4495
        %v4775 = vunpack.c.l.b16 %v4496
        %v4776 = vunpack.c.h.b16 %v4496
        %v4777 = vunpack.c.l.b16 %v4497
        %v4778 = vunpack.c.h.b16 %v4497
        %v4779 = vunpack.c.l.b16 %v4498
        %v4780 = vunpack.c.h.b16 %v4498
        %v4781 = vunpack.c.l.b16 %v4499
        %v4782 = vunpack.c.h.b16 %v4499
        %v4783 = vunpack.c.l.b16 %v4500
        %v4784 = vunpack.c.h.b16 %v4500
        %v4785 = vunpack.c.l.b16 %v4501
        %v4786 = vunpack.c.h.b16 %v4501
        %v4787 = vunpack.c.l.b16 %v4502
        %v4788 = vunpack.c.h.b16 %v4502
        %v4789 = vunpack.c.l.b16 %v4503
        %v4790 = vunpack.c.h.b16 %v4503
        %v4791 = vunpack.c.l.b16 %v4504
        %v4792 = vunpack.c.h.b16 %v4504
        %v4793 = vunpack.c.l.b16 %v4505
        %v4794 = vunpack.c.h.b16 %v4505
        %v4795 = vunpack.c.l.b16 %v4506
        %v4796 = vunpack.c.h.b16 %v4506
        %v4797 = vunpack.c.l.b16 %v4507
        %v4798 = vunpack.c.h.b16 %v4507
        %v4799 = vunpack.c.l.b16 %v4508
        %v4800 = vunpack.c.h.b16 %v4508
        %v4801 = vunpack.c.l.b16 %v4509
        %v4802 = vunpack.c.h.b16 %v4509
        %v4803 = vunpack.c.l.b16 %v4510
        %v4804 = vunpack.c.h.b16 %v4510
        %v4805 = vunpack.c.l.b16 %v4511
        %v4806 = vunpack.c.h.b16 %v4511
        %v4807 = vunpack.c.l.b16 %v4512
        %v4808 = vunpack.c.h.b16 %v4512
        %v4809 = vunpack.c.l.b16 %v4513
        %v4810 = vunpack.c.h.b16 %v4513
        %v4811 = vunpack.c.l.b16 %v4514
        %v4812 = vunpack.c.h.b16 %v4514
        %v4813 = vunpack.c.l.b16 %v4515
        %v4814 = vunpack.c.h.b16 %v4515
        %v4815 = vunpack.c.l.b16 %v4516
        %v4816 = vunpack.c.h.b16 %v4516
        %v4817 = vunpack.c.l.b16 %v4517
        %v4818 = vunpack.c.h.b16 %v4517
        %v4819 = vunpack.c.l.b16 %v4518
        %v4820 = vunpack.c.h.b16 %v4518
        %v4821 = vunpack.c.l.b16 %v4519
        %v4822 = vunpack.c.h.b16 %v4519
        %v4823 = vunpack.c.l.b16 %v4520
        %v4824 = vunpack.c.h.b16 %v4520
        %v4825 = vunpack.c.l.b16 %v4521
        %v4826 = vunpack.c.h.b16 %v4521
        %v4827 = vunpack.c.l.b16 %v4522
        %v4828 = vunpack.c.h.b16 %v4522
        %v4829 = vunpack.c.l.b16 %v4523
        %v4830 = vunpack.c.h.b16 %v4523
        %v4831 = vunpack.c.l.b16 %v4524
        %v4832 = vunpack.c.h.b16 %v4524
        %v4833 = vunpack.c.l.b16 %v4525
        %v4834 = vunpack.c.h.b16 %v4525
        %v4835 = vunpack.c.l.b16 %v4526
        %v4836 = vunpack.c.h.b16 %v4526
        %v4837 = vunpack.c.l.b16 %v4527
        %v4838 = vunpack.c.h.b16 %v4527
        %v4839 = vunpack.c.l.b16 %v4528
        %v4840 = vunpack.c.h.b16 %v4528
        %v4841 = vunpack.c.l.b16 %v4529
        %v4842 = vunpack.c.h.b16 %v4529
        %v4843 = vunpack.c.l.b16 %v4530
        %v4844 = vunpack.c.h.b16 %v4530
        %v4845 = vunpack.c.l.b16 %v4531
        %v4846 = vunpack.c.h.b16 %v4531
        %v4847 = vunpack.c.l.b16 %v4532
        %v4848 = vunpack.c.h.b16 %v4532
        %v4849 = vunpack.c.l.b16 %v4533
        %v4850 = vunpack.c.h.b16 %v4533
        %v4851 = vunpack.c.l.b16 %v4534
        %v4852 = vunpack.c.h.b16 %v4534
        %v4853 = vunpack.c.l.b16 %v4535
        %v4854 = vunpack.c.h.b16 %v4535
        %v4855 = vunpack.c.l.b16 %v4536
        %v4856 = vunpack.c.h.b16 %v4536
        %v4857 = vunpack.c.l.b16 %v4537
        %v4858 = vunpack.c.h.b16 %v4537
        %v4859 = vunpack.c.l.b16 %v4538
        %v4860 = vunpack.c.h.b16 %v4538
        %v4861 = vunpack.c.l.b16 %v4539
        %v4862 = vunpack.c.h.b16 %v4539
        %v4863 = vunpack.c.l.b16 %v4540
        %v4864 = vunpack.c.h.b16 %v4540
        %v4865 = vunpack.c.l.b16 %v4541
        %v4866 = vunpack.c.h.b16 %v4541
        %v4867 = vunpack.c.l.b16 %v4542
        %v4868 = vunpack.c.h.b16 %v4542
        %v4869 = vunpack.c.l.b16 %v4543
        %v4870 = vunpack.c.h.b16 %v4543
        %v4871 = vunpack.c.l.b16 %v4544
        %v4872 = vunpack.c.h.b16 %v4544
        %v4873 = vunpack.c.l.b16 %v4545
        %v4874 = vunpack.c.h.b16 %v4545
        %v4875 = vunpack.c.l.b16 %v4546
        %v4876 = vunpack.c.h.b16 %v4546
        %v4877 = vunpack.c.l.b16 %v4547
        %v4878 = vunpack.c.h.b16 %v4547
        %v4879 = vunpack.c.l.b16 %v4548
        %v4880 = vunpack.c.h.b16 %v4548
        %v4881 = vunpack.c.l.b16 %v4549
        %v4882 = vunpack.c.h.b16 %v4549
        %v4883 = vunpack.c.l.b16 %v4550
        %v4884 = vunpack.c.h.b16 %v4550
        %v4885 = vunpack.c.l.b16 %v4551
        %v4886 = vunpack.c.h.b16 %v4551
        %v4887 = vunpack.c.l.b16 %v4552
        %v4888 = vunpack.c.h.b16 %v4552
        %v4889 = vunpack.c.l.b16 %v4553
        %v4890 = vunpack.c.h.b16 %v4553
        %v4891 = vunpack.c.l.b16 %v4554
        %v4892 = vunpack.c.h.b16 %v4554
        %v4893 = vunpack.c.l.b16 %v4555
        %v4894 = vunpack.c.h.b16 %v4555
        %v4895 = vunpack.c.l.b16 %v4556
        %v4896 = vunpack.c.h.b16 %v4556
        %v4897 = vunpack.c.l.b16 %v4557
        %v4898 = vunpack.c.h.b16 %v4557
        %v4899 = vunpack.c.l.b16 %v4558
        %v4900 = vunpack.c.h.b16 %v4558
        %v4901 = vunpack.c.l.b16 %v4559
        %v4902 = vunpack.c.h.b16 %v4559
        %v4903 = vunpack.c.l.b16 %v4560
        %v4904 = vunpack.c.h.b16 %v4560
        %v4905 = vunpack.c.l.b16 %v4561
        %v4906 = vunpack.c.h.b16 %v4561
        %v4907 = vunpack.c.l.b16 %v4562
        %v4908 = vunpack.c.h.b16 %v4562
        %v4909 = vunpack.c.l.b16 %v4563
        %v4910 = vunpack.c.h.b16 %v4563
        %v4911 = vunpack.c.l.b16 %v4564
        %v4912 = vunpack.c.h.b16 %v4564
        %v4913 = vunpack.c.l.b16 %v4565
        %v4914 = vunpack.c.h.b16 %v4565
        %v4915 = vunpack.c.l.b16 %v4566
        %v4916 = vunpack.c.h.b16 %v4566
        %v4917 = vunpack.c.l.b16 %v4567
        %v4918 = vunpack.c.h.b16 %v4567
        %v4919 = vunpack.c.l.b16 %v4568
        %v4920 = vunpack.c.h.b16 %v4568
        %v4921 = vunpack.c.l.b16 %v4569
        %v4922 = vunpack.c.h.b16 %v4569
        %v4923 = vunpack.c.l.b16 %v4570
        %v4924 = vunpack.c.h.b16 %v4570
        %v4925 = vunpack.c.l.b16 %v4571
        %v4926 = vunpack.c.h.b16 %v4571
        %v4927 = vunpack.c.l.b16 %v4572
        %v4928 = vunpack.c.h.b16 %v4572
        %v4929 = vunpack.c.l.b16 %v4573
        %v4930 = vunpack.c.h.b16 %v4573
        %v4931 = vunpack.c.l.b16 %v4574
        %v4932 = vunpack.c.h.b16 %v4574
        %v4933 = vunpack.c.l.b16 %v4575
        %v4934 = vunpack.c.h.b16 %v4575
        %v4935 = vunpack.c.l.b16 %v4576
        %v4936 = vunpack.c.h.b16 %v4576
        %v4937 = vunpack.c.l.b16 %v4577
        %v4938 = vunpack.c.h.b16 %v4577
        %v4939 = vunpack.c.l.b16 %v4578
        %v4940 = vunpack.c.h.b16 %v4578
        %v4941 = vunpack.c.l.b16 %v4579
        %v4942 = vunpack.c.h.b16 %v4579
        %v4943 = vunpack.c.l.b16 %v4580
        %v4944 = vunpack.c.h.b16 %v4580
        %v4945 = vunpack.c.l.b16 %v4581
        %v4946 = vunpack.c.h.b16 %v4581
        %v4947 = vunpack.c.l.b16 %v4582
        %v4948 = vunpack.c.h.b16 %v4582
        %v4949 = vunpack.c.l.b16 %v4583
        %v4950 = vunpack.c.h.b16 %v4583
        %v4951 = vunpack.c.l.b16 %v4584
        %v4952 = vunpack.c.h.b16 %v4584
        %v4953 = vpack.c.b16 %v4765, %v4761
        %v4954 = vpack.c.b16 %v4766, %v4762
        %v4955 = vpack.c.b16 %v4767, %v4763
        %v4956 = vpack.c.b16 %v4768, %v4764
        %v4957 = vpack.c.b16 %v4773, %v4769
        %v4958 = vpack.c.b16 %v4774, %v4770
        %v4959 = vpack.c.b16 %v4775, %v4771
        %v4960 = vpack.c.b16 %v4776, %v4772
        %v4961 = vpack.c.b16 %v4781, %v4777
        %v4962 = vpack.c.b16 %v4782, %v4778
        %v4963 = vpack.c.b16 %v4783, %v4779
        %v4964 = vpack.c.b16 %v4784, %v4780
        %v4965 = vpack.c.b16 %v4789, %v4785
        %v4966 = vpack.c.b16 %v4790, %v4786
        %v4967 = vpack.c.b16 %v4791, %v4787
        %v4968 = vpack.c.b16 %v4792, %v4788
        %v4969 = vpack.c.b16 %v4797, %v4793
        %v4970 = vpack.c.b16 %v4798, %v4794
        %v4971 = vpack.c.b16 %v4799, %v4795
        %v4972 = vpack.c.b16 %v4800, %v4796
        %v4973 = vpack.c.b16 %v4805, %v4801
        %v4974 = vpack.c.b16 %v4806, %v4802
        %v4975 = vpack.c.b16 %v4807, %v4803
        %v4976 = vpack.c.b16 %v4808, %v4804
        %v4977 = vpack.c.b16 %v4813, %v4809
        %v4978 = vpack.c.b16 %v4814, %v4810
        %v4979 = vpack.c.b16 %v4815, %v4811
        %v4980 = vpack.c.b16 %v4816, %v4812
        %v4981 = vpack.c.b16 %v4821, %v4817
        %v4982 = vpack.c.b16 %v4822, %v4818
        %v4983 = vpack.c.b16 %v4823, %v4819
        %v4984 = vpack.c.b16 %v4824, %v4820
        %v4985 = vpack.c.b16 %v4829, %v4825
        %v4986 = vpack.c.b16 %v4830, %v4826
        %v4987 = vpack.c.b16 %v4831, %v4827
        %v4988 = vpack.c.b16 %v4832, %v4828
        %v4989 = vpack.c.b16 %v4837, %v4833
        %v4990 = vpack.c.b16 %v4838, %v4834
        %v4991 = vpack.c.b16 %v4839, %v4835
        %v4992 = vpack.c.b16 %v4840, %v4836
        %v4993 = vpack.c.b16 %v4845, %v4841
        %v4994 = vpack.c.b16 %v4846, %v4842
        %v4995 = vpack.c.b16 %v4847, %v4843
        %v4996 = vpack.c.b16 %v4848, %v4844
        %v4997 = vpack.c.b16 %v4853, %v4849
        %v4998 = vpack.c.b16 %v4854, %v4850
        %v4999 = vpack.c.b16 %v4855, %v4851
        %v5000 = vpack.c.b16 %v4856, %v4852
        %v5001 = vpack.c.b16 %v4861, %v4857
        %v5002 = vpack.c.b16 %v4862, %v4858
        %v5003 = vpack.c.b16 %v4863, %v4859
        %v5004 = vpack.c.b16 %v4864, %v4860
        %v5005 = vpack.c.b16 %v4869, %v4865
        %v5006 = vpack.c.b16 %v4870, %v4866
        %v5007 = vpack.c.b16 %v4871, %v4867
        %v5008 = vpack.c.b16 %v4872, %v4868
        %v5009 = vpack.c.b16 %v4877, %v4873
        %v5010 = vpack.c.b16 %v4878, %v4874
        %v5011 = vpack.c.b16 %v4879, %v4875
        %v5012 = vpack.c.b16 %v4880, %v4876
        %v5013 = vpack.c.b16 %v4885, %v4881
        %v5014 = vpack.c.b16 %v4886, %v4882
        %v5015 = vpack.c.b16 %v4887, %v4883
        %v5016 = vpack.c.b16 %v4888, %v4884
        %v5017 = vpack.c.b16 %v4893, %v4889
        %v5018 = vpack.c.b16 %v4894, %v4890
        %v5019 = vpack.c.b16 %v4895, %v4891
        %v5020 = vpack.c.b16 %v4896, %v4892
        %v5021 = vpack.c.b16 %v4901, %v4897
        %v5022 = vpack.c.b16 %v4902, %v4898
        %v5023 = vpack.c.b16 %v4903, %v4899
        %v5024 = vpack.c.b16 %v4904, %v4900
        %v5025 = vpack.c.b16 %v4909, %v4905
        %v5026 = vpack.c.b16 %v4910, %v4906
        %v5027 = vpack.c.b16 %v4911, %v4907
        %v5028 = vpack.c.b16 %v4912, %v4908
        %v5029 = vpack.c.b16 %v4917, %v4913
        %v5030 = vpack.c.b16 %v4918, %v4914
        %v5031 = vpack.c.b16 %v4919, %v4915
        %v5032 = vpack.c.b16 %v4920, %v4916
        %v5033 = vpack.c.b16 %v4925, %v4921
        %v5034 = vpack.c.b16 %v4926, %v4922
        %v5035 = vpack.c.b16 %v4927, %v4923
        %v5036 = vpack.c.b16 %v4928, %v4924
        %v5037 = vpack.c.b16 %v4933, %v4929
        %v5038 = vpack.c.b16 %v4934, %v4930
        %v5039 = vpack.c.b16 %v4935, %v4931
        %v5040 = vpack.c.b16 %v4936, %v4932
        %v5041 = vpack.c.b16 %v4941, %v4937
        %v5042 = vpack.c.b16 %v4942, %v4938
        %v5043 = vpack.c.b16 %v4943, %v4939
        %v5044 = vpack.c.b16 %v4944, %v4940
        %v5045 = vpack.c.b16 %v4949, %v4945
        %v5046 = vpack.c.b16 %v4950, %v4946
        %v5047 = vpack.c.b16 %v4951, %v4947
        %v5048 = vpack.c.b16 %v4952, %v4948
        %5145 = vmatprep.subr.bf16.mxu0 %v4982
        %5146 = vmatpush1.bf16.msra.mxu0 %v4981
        %5147 = vmatprep.subr.bf16.mxu0 %v4978
        %5148 = vmatpush1.bf16.msra.mxu0 %v4977
        %5149 = vmatprep.subr.bf16.mxu0 %v4974
        %5150 = vmatpush1.bf16.msra.mxu0 %v4973
        %5151 = vmatprep.subr.bf16.mxu0 %v4970
        %5152 = vmatpush1.bf16.msra.mxu0 %v4969
        %5153 = vmatprep.subr.bf16.mxu0 %v4966
        %5154 = vmatpush1.bf16.msra.mxu0 %v4965
        %5155 = vmatprep.subr.bf16.mxu0 %v4962
        %5156 = vmatpush1.bf16.msra.mxu0 %v4961
        %5157 = vmatprep.subr.bf16.mxu0 %v4958
        %5158 = vmatpush1.bf16.msra.mxu0 %v4957
        %5159 = vmatprep.subr.bf16.mxu0 %v4954
        %5160 = vmatpush1.bf16.msra.mxu0 %v4953
        %5161 = vmatprep.subr.bf16.mxu0 %v5014
        %5162 = vmatpush2.bf16.msra.mxu0 %v5013
        %5163 = vmatprep.subr.bf16.mxu0 %v5010
        %5164 = vmatpush2.bf16.msra.mxu0 %v5009
        %5165 = vmatprep.subr.bf16.mxu0 %v5006
        %5166 = vmatpush2.bf16.msra.mxu0 %v5005
        %5167 = vmatprep.subr.bf16.mxu0 %v5002
        %5168 = vmatpush2.bf16.msra.mxu0 %v5001
        %5169 = vmatprep.subr.bf16.mxu0 %v4998
        %5170 = vmatpush2.bf16.msra.mxu0 %v4997
        %5171 = vmatprep.subr.bf16.mxu0 %v4994
        %5172 = vmatpush2.bf16.msra.mxu0 %v4993
        %5173 = vmatprep.subr.bf16.mxu0 %v4990
        %5174 = vmatpush2.bf16.msra.mxu0 %v4989
        %5175 = vmatprep.subr.bf16.mxu0 %v4986
        %5176 = vmatpush2.bf16.msra.mxu0 %v4985
        %5177 = vmatprep.mubr.bf16.mxu0 %v4636
        %5178 = vmatmul.mubr.bf16.gmra.mxu0 %v4635
        %v5179 = vpop.f32.mrf.mxu0
        %v5180 = vadd.f32 0.0, %v5179
        %v5181 = vpop.f32.mrf.mxu0
        %v5182 = vadd.f32 0.0, %v5181
        %v5183 = vpop.f32.mrf.mxu0
        %v5184 = vadd.f32 0.0, %v5183
        %v5185 = vpop.f32.mrf.mxu0
        %v5186 = vadd.f32 0.0, %v5185
        %5187 = vmatprep.mubr.bf16.mxu0 %v4639
        %5188 = vmatmul.mubr.bf16.gmra.mxu0 %v4638
        %v5189 = vpop.f32.mrf.mxu0
        %v5190 = vadd.f32 0.0, %v5189
        %v5191 = vpop.f32.mrf.mxu0
        %v5192 = vadd.f32 0.0, %v5191
        %v5193 = vpop.f32.mrf.mxu0
        %v5194 = vadd.f32 0.0, %v5193
        %v5195 = vpop.f32.mrf.mxu0
        %v5196 = vadd.f32 0.0, %v5195
        %5197 = vmatprep.mubr.bf16.mxu0 %v4642
        %5198 = vmatmul.mubr.bf16.gmra.mxu0 %v4641
        %v5199 = vpop.f32.mrf.mxu0
        %v5200 = vadd.f32 0.0, %v5199
        %v5201 = vpop.f32.mrf.mxu0
        %v5202 = vadd.f32 0.0, %v5201
        %v5203 = vpop.f32.mrf.mxu0
        %v5204 = vadd.f32 0.0, %v5203
        %v5205 = vpop.f32.mrf.mxu0
        %v5206 = vadd.f32 0.0, %v5205
        %5207 = vmatprep.mubr.bf16.mxu0 %v4645
        %5208 = vmatmul.mubr.bf16.gmra.mxu0 %v4644
        %v5209 = vpop.f32.mrf.mxu0
        %v5210 = vadd.f32 0.0, %v5209
        %v5211 = vpop.f32.mrf.mxu0
        %v5212 = vadd.f32 0.0, %v5211
        %v5213 = vpop.f32.mrf.mxu0
        %v5214 = vadd.f32 0.0, %v5213
        %v5215 = vpop.f32.mrf.mxu0
        %v5216 = vadd.f32 0.0, %v5215
        %5217 = vmatprep.mubr.bf16.mxu0 %v4648
        %5218 = vmatmul.mubr.bf16.gmra.mxu0 %v4647
        %v5219 = vpop.f32.mrf.mxu0
        %v5220 = vadd.f32 0.0, %v5219
        %v5221 = vpop.f32.mrf.mxu0
        %v5222 = vadd.f32 0.0, %v5221
        %v5223 = vpop.f32.mrf.mxu0
        %v5224 = vadd.f32 0.0, %v5223
        %v5225 = vpop.f32.mrf.mxu0
        %v5226 = vadd.f32 0.0, %v5225
        %5227 = vdwg.mxu0
        %5228 = vmatprep.subr.bf16.mxu0 %v5046
        %5229 = vmatpush1.bf16.msra.mxu0 %v5045
        %5230 = vmatprep.subr.bf16.mxu0 %v5042
        %5231 = vmatpush1.bf16.msra.mxu0 %v5041
        %5232 = vmatprep.subr.bf16.mxu0 %v5038
        %5233 = vmatpush1.bf16.msra.mxu0 %v5037
        %5234 = vmatprep.subr.bf16.mxu0 %v5034
        %5235 = vmatpush1.bf16.msra.mxu0 %v5033
        %5236 = vmatprep.subr.bf16.mxu0 %v5030
        %5237 = vmatpush1.bf16.msra.mxu0 %v5029
        %5238 = vmatprep.subr.bf16.mxu0 %v5026
        %5239 = vmatpush1.bf16.msra.mxu0 %v5025
        %5240 = vmatprep.subr.bf16.mxu0 %v5022
        %5241 = vmatpush1.bf16.msra.mxu0 %v5021
        %5242 = vmatprep.subr.bf16.mxu0 %v5018
        %5243 = vmatpush1.bf16.msra.mxu0 %v5017
        %5244 = vmatprep.subr.bf16.mxu0 0
        %5245 = vmatpush2.bf16.msra.mxu0 0
        %5246 = vmatprep.subr.bf16.mxu0 0
        %5247 = vmatpush2.bf16.msra.mxu0 0
        %5248 = vmatprep.subr.bf16.mxu0 0
        %5249 = vmatpush2.bf16.msra.mxu0 0
        %5250 = vmatprep.subr.bf16.mxu0 0
        %5251 = vmatpush2.bf16.msra.mxu0 0
        %5252 = vmatprep.subr.bf16.mxu0 0
        %5253 = vmatpush2.bf16.msra.mxu0 0
        %5254 = vmatprep.subr.bf16.mxu0 0
        %5255 = vmatpush2.bf16.msra.mxu0 0
        %5256 = vmatprep.subr.bf16.mxu0 0
        %5257 = vmatpush2.bf16.msra.mxu0 0
        %5258 = vmatprep.subr.bf16.mxu0 0
        %5259 = vmatpush2.bf16.msra.mxu0 0
        %5260 = vmatprep.mubr.bf16.mxu0 0
        %5261 = vmatmul.mubr.bf16.gmra.mxu0 %v4637
        %v5262 = vpop.f32.mrf.mxu0
        %v5263 = vadd.f32 %v5180, %v5262
        %v5264 = vpop.f32.mrf.mxu0
        %v5265 = vadd.f32 %v5182, %v5264
        %v5266 = vpop.f32.mrf.mxu0
        %v5267 = vadd.f32 %v5184, %v5266
        %v5268 = vpop.f32.mrf.mxu0
        %v5269 = vadd.f32 %v5186, %v5268
        %5270 = vmatprep.mubr.bf16.mxu0 0
        %5271 = vmatmul.mubr.bf16.gmra.mxu0 %v4640
        %v5272 = vpop.f32.mrf.mxu0
        %v5273 = vadd.f32 %v5190, %v5272
        %v5274 = vpop.f32.mrf.mxu0
        %v5275 = vadd.f32 %v5192, %v5274
        %v5276 = vpop.f32.mrf.mxu0
        %v5277 = vadd.f32 %v5194, %v5276
        %v5278 = vpop.f32.mrf.mxu0
        %v5279 = vadd.f32 %v5196, %v5278
        %5280 = vmatprep.mubr.bf16.mxu0 0
        %5281 = vmatmul.mubr.bf16.gmra.mxu0 %v4643
        %v5282 = vpop.f32.mrf.mxu0
        %v5283 = vadd.f32 %v5200, %v5282
        %v5284 = vpop.f32.mrf.mxu0
        %v5285 = vadd.f32 %v5202, %v5284
        %v5286 = vpop.f32.mrf.mxu0
        %v5287 = vadd.f32 %v5204, %v5286
        %v5288 = vpop.f32.mrf.mxu0
        %v5289 = vadd.f32 %v5206, %v5288
        %5290 = vmatprep.mubr.bf16.mxu0 0
        %5291 = vmatmul.mubr.bf16.gmra.mxu0 %v4646
        %v5292 = vpop.f32.mrf.mxu0
        %v5293 = vadd.f32 %v5210, %v5292
        %v5294 = vpop.f32.mrf.mxu0
        %v5295 = vadd.f32 %v5212, %v5294
        %v5296 = vpop.f32.mrf.mxu0
        %v5297 = vadd.f32 %v5214, %v5296
        %v5298 = vpop.f32.mrf.mxu0
        %v5299 = vadd.f32 %v5216, %v5298
        %5300 = vmatprep.mubr.bf16.mxu0 0
        %5301 = vmatmul.mubr.bf16.gmra.mxu0 %v4649
        %v5302 = vpop.f32.mrf.mxu0
        %v5303 = vadd.f32 %v5220, %v5302
        %v5304 = vpop.f32.mrf.mxu0
        %v5305 = vadd.f32 %v5222, %v5304
        %v5306 = vpop.f32.mrf.mxu0
        %v5307 = vadd.f32 %v5224, %v5306
        %v5308 = vpop.f32.mrf.mxu0
        %v5309 = vadd.f32 %v5226, %v5308
        %5310 = vdwg.mxu0
        %5311 = vmatprep.subr.bf16.mxu0 %v4984
        %5312 = vmatpush1.bf16.msra.mxu0 %v4983
        %5313 = vmatprep.subr.bf16.mxu0 %v4980
        %5314 = vmatpush1.bf16.msra.mxu0 %v4979
        %5315 = vmatprep.subr.bf16.mxu0 %v4976
        %5316 = vmatpush1.bf16.msra.mxu0 %v4975
        %5317 = vmatprep.subr.bf16.mxu0 %v4972
        %5318 = vmatpush1.bf16.msra.mxu0 %v4971
        %5319 = vmatprep.subr.bf16.mxu0 %v4968
        %5320 = vmatpush1.bf16.msra.mxu0 %v4967
        %5321 = vmatprep.subr.bf16.mxu0 %v4964
        %5322 = vmatpush1.bf16.msra.mxu0 %v4963
        %5323 = vmatprep.subr.bf16.mxu0 %v4960
        %5324 = vmatpush1.bf16.msra.mxu0 %v4959
        %5325 = vmatprep.subr.bf16.mxu0 %v4956
        %5326 = vmatpush1.bf16.msra.mxu0 %v4955
        %5327 = vmatprep.subr.bf16.mxu0 %v5016
        %5328 = vmatpush2.bf16.msra.mxu0 %v5015
        %5329 = vmatprep.subr.bf16.mxu0 %v5012
        %5330 = vmatpush2.bf16.msra.mxu0 %v5011
        %5331 = vmatprep.subr.bf16.mxu0 %v5008
        %5332 = vmatpush2.bf16.msra.mxu0 %v5007
        %5333 = vmatprep.subr.bf16.mxu0 %v5004
        %5334 = vmatpush2.bf16.msra.mxu0 %v5003
        %5335 = vmatprep.subr.bf16.mxu0 %v5000
        %5336 = vmatpush2.bf16.msra.mxu0 %v4999
        %5337 = vmatprep.subr.bf16.mxu0 %v4996
        %5338 = vmatpush2.bf16.msra.mxu0 %v4995
        %5339 = vmatprep.subr.bf16.mxu0 %v4992
        %5340 = vmatpush2.bf16.msra.mxu0 %v4991
        %5341 = vmatprep.subr.bf16.mxu0 %v4988
        %5342 = vmatpush2.bf16.msra.mxu0 %v4987
        %5343 = vmatprep.mubr.bf16.mxu0 %v4636
        %5344 = vmatmul.mubr.bf16.gmra.mxu0 %v4635
        %v5345 = vpop.f32.mrf.mxu0
        %v5346 = vadd.f32 0.0, %v5345
        %v5347 = vpop.f32.mrf.mxu0
        %v5348 = vadd.f32 0.0, %v5347
        %v5349 = vpop.f32.mrf.mxu0
        %v5350 = vadd.f32 0.0, %v5349
        %v5351 = vpop.f32.mrf.mxu0
        %v5352 = vadd.f32 0.0, %v5351
        %5353 = vmatprep.mubr.bf16.mxu0 %v4639
        %5354 = vmatmul.mubr.bf16.gmra.mxu0 %v4638
        %v5355 = vpop.f32.mrf.mxu0
        %v5356 = vadd.f32 0.0, %v5355
        %v5357 = vpop.f32.mrf.mxu0
        %v5358 = vadd.f32 0.0, %v5357
        %v5359 = vpop.f32.mrf.mxu0
        %v5360 = vadd.f32 0.0, %v5359
        %v5361 = vpop.f32.mrf.mxu0
        %v5362 = vadd.f32 0.0, %v5361
        %5363 = vmatprep.mubr.bf16.mxu0 %v4642
        %5364 = vmatmul.mubr.bf16.gmra.mxu0 %v4641
        %v5365 = vpop.f32.mrf.mxu0
        %v5366 = vadd.f32 0.0, %v5365
        %v5367 = vpop.f32.mrf.mxu0
        %v5368 = vadd.f32 0.0, %v5367
        %v5369 = vpop.f32.mrf.mxu0
        %v5370 = vadd.f32 0.0, %v5369
        %v5371 = vpop.f32.mrf.mxu0
        %v5372 = vadd.f32 0.0, %v5371
        %5373 = vmatprep.mubr.bf16.mxu0 %v4645
        %5374 = vmatmul.mubr.bf16.gmra.mxu0 %v4644
        %v5375 = vpop.f32.mrf.mxu0
        %v5376 = vadd.f32 0.0, %v5375
        %v5377 = vpop.f32.mrf.mxu0
        %v5378 = vadd.f32 0.0, %v5377
        %v5379 = vpop.f32.mrf.mxu0
        %v5380 = vadd.f32 0.0, %v5379
        %v5381 = vpop.f32.mrf.mxu0
        %v5382 = vadd.f32 0.0, %v5381
        %5383 = vmatprep.mubr.bf16.mxu0 %v4648
        %5384 = vmatmul.mubr.bf16.gmra.mxu0 %v4647
        %v5385 = vpop.f32.mrf.mxu0
        %v5386 = vadd.f32 0.0, %v5385
        %v5387 = vpop.f32.mrf.mxu0
        %v5388 = vadd.f32 0.0, %v5387
        %v5389 = vpop.f32.mrf.mxu0
        %v5390 = vadd.f32 0.0, %v5389
        %v5391 = vpop.f32.mrf.mxu0
        %v5392 = vadd.f32 0.0, %v5391
        %5393 = vdwg.mxu0
        %5394 = vmatprep.subr.bf16.mxu0 %v5048
        %5395 = vmatpush1.bf16.msra.mxu0 %v5047
        %5396 = vmatprep.subr.bf16.mxu0 %v5044
        %5397 = vmatpush1.bf16.msra.mxu0 %v5043
        %5398 = vmatprep.subr.bf16.mxu0 %v5040
        %5399 = vmatpush1.bf16.msra.mxu0 %v5039
        %5400 = vmatprep.subr.bf16.mxu0 %v5036
        %5401 = vmatpush1.bf16.msra.mxu0 %v5035
        %5402 = vmatprep.subr.bf16.mxu0 %v5032
        %5403 = vmatpush1.bf16.msra.mxu0 %v5031
        %5404 = vmatprep.subr.bf16.mxu0 %v5028
        %5405 = vmatpush1.bf16.msra.mxu0 %v5027
        %5406 = vmatprep.subr.bf16.mxu0 %v5024
        %5407 = vmatpush1.bf16.msra.mxu0 %v5023
        %5408 = vmatprep.subr.bf16.mxu0 %v5020
        %5409 = vmatpush1.bf16.msra.mxu0 %v5019
        %5410 = vmatprep.subr.bf16.mxu0 0
        %5411 = vmatpush2.bf16.msra.mxu0 0
        %5412 = vmatprep.subr.bf16.mxu0 0
        %5413 = vmatpush2.bf16.msra.mxu0 0
        %5414 = vmatprep.subr.bf16.mxu0 0
        %5415 = vmatpush2.bf16.msra.mxu0 0
        %5416 = vmatprep.subr.bf16.mxu0 0
        %5417 = vmatpush2.bf16.msra.mxu0 0
        %5418 = vmatprep.subr.bf16.mxu0 0
        %5419 = vmatpush2.bf16.msra.mxu0 0
        %5420 = vmatprep.subr.bf16.mxu0 0
        %5421 = vmatpush2.bf16.msra.mxu0 0
        %5422 = vmatprep.subr.bf16.mxu0 0
        %5423 = vmatpush2.bf16.msra.mxu0 0
        %5424 = vmatprep.subr.bf16.mxu0 0
        %5425 = vmatpush2.bf16.msra.mxu0 0
        %5426 = vmatprep.mubr.bf16.mxu0 0
        %5427 = vmatmul.mubr.bf16.gmra.mxu0 %v4637
        %v5428 = vpop.f32.mrf.mxu0
        %v5429 = vadd.f32 %v5346, %v5428
        %v5430 = vpop.f32.mrf.mxu0
        %v5431 = vadd.f32 %v5348, %v5430
        %v5432 = vpop.f32.mrf.mxu0
        %v5433 = vadd.f32 %v5350, %v5432
        %v5434 = vpop.f32.mrf.mxu0
        %v5435 = vadd.f32 %v5352, %v5434
        %5436 = vmatprep.mubr.bf16.mxu0 0
        %5437 = vmatmul.mubr.bf16.gmra.mxu0 %v4640
        %v5438 = vpop.f32.mrf.mxu0
        %v5439 = vadd.f32 %v5356, %v5438
        %v5440 = vpop.f32.mrf.mxu0
        %v5441 = vadd.f32 %v5358, %v5440
        %v5442 = vpop.f32.mrf.mxu0
        %v5443 = vadd.f32 %v5360, %v5442
        %v5444 = vpop.f32.mrf.mxu0
        %v5445 = vadd.f32 %v5362, %v5444
        %5446 = vmatprep.mubr.bf16.mxu0 0
        %5447 = vmatmul.mubr.bf16.gmra.mxu0 %v4643
        %v5448 = vpop.f32.mrf.mxu0
        %v5449 = vadd.f32 %v5366, %v5448
        %v5450 = vpop.f32.mrf.mxu0
        %v5451 = vadd.f32 %v5368, %v5450
        %v5452 = vpop.f32.mrf.mxu0
        %v5453 = vadd.f32 %v5370, %v5452
        %v5454 = vpop.f32.mrf.mxu0
        %v5455 = vadd.f32 %v5372, %v5454
        %5456 = vmatprep.mubr.bf16.mxu0 0
        %5457 = vmatmul.mubr.bf16.gmra.mxu0 %v4646
        %v5458 = vpop.f32.mrf.mxu0
        %v5459 = vadd.f32 %v5376, %v5458
        %v5460 = vpop.f32.mrf.mxu0
        %v5461 = vadd.f32 %v5378, %v5460
        %v5462 = vpop.f32.mrf.mxu0
        %v5463 = vadd.f32 %v5380, %v5462
        %v5464 = vpop.f32.mrf.mxu0
        %v5465 = vadd.f32 %v5382, %v5464
        %5466 = vmatprep.mubr.bf16.mxu0 0
        %5467 = vmatmul.mubr.bf16.gmra.mxu0 %v4649
        %v5468 = vpop.f32.mrf.mxu0
        %v5469 = vadd.f32 %v5386, %v5468
        %v5470 = vpop.f32.mrf.mxu0
        %v5471 = vadd.f32 %v5388, %v5470
        %v5472 = vpop.f32.mrf.mxu0
        %v5473 = vadd.f32 %v5390, %v5472
        %v5474 = vpop.f32.mrf.mxu0
        %v5475 = vadd.f32 %v5392, %v5474
        %5476 = vdwg.mxu0
        %v5477 = vadd.f32 %v4253, %v5263
        %v5478 = vadd.f32 %v4255, %v5265
        %v5479 = vadd.f32 %v4419, %v5429
        %v5480 = vadd.f32 %v4421, %v5431
        %v5481 = vadd.f32 %v4257, %v5267
        %v5482 = vadd.f32 %v4259, %v5269
        %v5483 = vadd.f32 %v4423, %v5433
        %v5484 = vadd.f32 %v4425, %v5435
        %v5485 = vadd.f32 %v4263, %v5273
        %v5486 = vadd.f32 %v4265, %v5275
        %v5487 = vadd.f32 %v4429, %v5439
        %v5488 = vadd.f32 %v4431, %v5441
        %v5489 = vadd.f32 %v4267, %v5277
        %v5490 = vadd.f32 %v4269, %v5279
        %v5491 = vadd.f32 %v4433, %v5443
        %v5492 = vadd.f32 %v4435, %v5445
        %v5493 = vadd.f32 %v4273, %v5283
        %v5494 = vadd.f32 %v4275, %v5285
        %v5495 = vadd.f32 %v4439, %v5449
        %v5496 = vadd.f32 %v4441, %v5451
        %v5497 = vadd.f32 %v4277, %v5287
        %v5498 = vadd.f32 %v4279, %v5289
        %v5499 = vadd.f32 %v4443, %v5453
        %v5500 = vadd.f32 %v4445, %v5455
        %v5501 = vadd.f32 %v4283, %v5293
        %v5502 = vadd.f32 %v4285, %v5295
        %v5503 = vadd.f32 %v4449, %v5459
        %v5504 = vadd.f32 %v4451, %v5461
        %v5505 = vadd.f32 %v4287, %v5297
        %v5506 = vadd.f32 %v4289, %v5299
        %v5507 = vadd.f32 %v4453, %v5463
        %v5508 = vadd.f32 %v4455, %v5465
        %v5509 = vadd.f32 %v4293, %v5303
        %v5510 = vadd.f32 %v4295, %v5305
        %v5511 = vadd.f32 %v4459, %v5469
        %v5512 = vadd.f32 %v4461, %v5471
        %v5513 = vadd.f32 %v4297, %v5307
        %v5514 = vadd.f32 %v4299, %v5309
        %v5515 = vadd.f32 %v4463, %v5473
        %v5516 = vadd.f32 %v4465, %v5475
        %v5517 = vld [vmem:[%s6] sm:$0xf]
        %v5519 = vlaneseq
        %v5520 = vshrl.u32 %v5519, 7
        %v5521 = vsub.s32 0, %v5520
        %v5522 = vrot.slane %v5517, %v5521
        %v5523 = vlaneseq
        %v5524 = vshrl.u32 %v5523, 7
        %v5525 = vsub.s32 1, %v5524
        %v5526 = vrot.slane %v5517, %v5525
        %v5527 = vlaneseq
        %v5528 = vshrl.u32 %v5527, 7
        %v5529 = vsub.s32 2, %v5528
        %v5530 = vrot.slane %v5517, %v5529
        %v5531 = vlaneseq
        %v5532 = vshrl.u32 %v5531, 7
        %v5533 = vsub.s32 3, %v5532
        %v5534 = vrot.slane %v5517, %v5533
        %v5539 = vadd.f32 %v5477, %v5522
        %v5540 = vadd.f32 %v5478, %v5526
        %v5541 = vadd.f32 %v5479, %v5530
        %v5542 = vadd.f32 %v5480, %v5534
        %v5543 = vadd.f32 %v5481, %v5522
        %v5544 = vadd.f32 %v5482, %v5526
        %v5545 = vadd.f32 %v5483, %v5530
        %v5546 = vadd.f32 %v5484, %v5534
        %v5547 = vadd.f32 %v5485, %v5522
        %v5548 = vadd.f32 %v5486, %v5526
        %v5549 = vadd.f32 %v5487, %v5530
        %v5550 = vadd.f32 %v5488, %v5534
        %v5551 = vadd.f32 %v5489, %v5522
        %v5552 = vadd.f32 %v5490, %v5526
        %v5553 = vadd.f32 %v5491, %v5530
        %v5554 = vadd.f32 %v5492, %v5534
        %v5555 = vadd.f32 %v5493, %v5522
        %v5556 = vadd.f32 %v5494, %v5526
        %v5557 = vadd.f32 %v5495, %v5530
        %v5558 = vadd.f32 %v5496, %v5534
        %v5559 = vadd.f32 %v5497, %v5522
        %v5560 = vadd.f32 %v5498, %v5526
        %v5561 = vadd.f32 %v5499, %v5530
        %v5562 = vadd.f32 %v5500, %v5534
        %v5563 = vadd.f32 %v5501, %v5522
        %v5564 = vadd.f32 %v5502, %v5526
        %v5565 = vadd.f32 %v5503, %v5530
        %v5566 = vadd.f32 %v5504, %v5534
        %v5567 = vadd.f32 %v5505, %v5522
        %v5568 = vadd.f32 %v5506, %v5526
        %v5569 = vadd.f32 %v5507, %v5530
        %v5570 = vadd.f32 %v5508, %v5534
        %v5571 = vadd.f32 %v5509, %v5522
        %v5572 = vadd.f32 %v5510, %v5526
        %v5573 = vadd.f32 %v5511, %v5530
        %v5574 = vadd.f32 %v5512, %v5534
        %v5575 = vadd.f32 %v5513, %v5522
        %v5576 = vadd.f32 %v5514, %v5526
        %v5577 = vadd.f32 %v5515, %v5530
        %v5578 = vadd.f32 %v5516, %v5534
        %v5579 = vmax.f32 %v5539, 0.0
        %v5580 = vmax.f32 %v5540, 0.0
        %v5581 = vmax.f32 %v5541, 0.0
        %v5582 = vmax.f32 %v5542, 0.0
        %v5583 = vmax.f32 %v5543, 0.0
        %v5584 = vmax.f32 %v5544, 0.0
        %v5585 = vmax.f32 %v5545, 0.0
        %v5586 = vmax.f32 %v5546, 0.0
        %v5587 = vmax.f32 %v5547, 0.0
        %v5588 = vmax.f32 %v5548, 0.0
        %v5589 = vmax.f32 %v5549, 0.0
        %v5590 = vmax.f32 %v5550, 0.0
        %v5591 = vmax.f32 %v5551, 0.0
        %v5592 = vmax.f32 %v5552, 0.0
        %v5593 = vmax.f32 %v5553, 0.0
        %v5594 = vmax.f32 %v5554, 0.0
        %v5595 = vmax.f32 %v5555, 0.0
        %v5596 = vmax.f32 %v5556, 0.0
        %v5597 = vmax.f32 %v5557, 0.0
        %v5598 = vmax.f32 %v5558, 0.0
        %v5599 = vmax.f32 %v5559, 0.0
        %v5600 = vmax.f32 %v5560, 0.0
        %v5601 = vmax.f32 %v5561, 0.0
        %v5602 = vmax.f32 %v5562, 0.0
        %v5603 = vmax.f32 %v5563, 0.0
        %v5604 = vmax.f32 %v5564, 0.0
        %v5605 = vmax.f32 %v5565, 0.0
        %v5606 = vmax.f32 %v5566, 0.0
        %v5607 = vmax.f32 %v5567, 0.0
        %v5608 = vmax.f32 %v5568, 0.0
        %v5609 = vmax.f32 %v5569, 0.0
        %v5610 = vmax.f32 %v5570, 0.0
        %v5611 = vmax.f32 %v5571, 0.0
        %v5612 = vmax.f32 %v5572, 0.0
        %v5613 = vmax.f32 %v5573, 0.0
        %v5614 = vmax.f32 %v5574, 0.0
        %v5615 = vmax.f32 %v5575, 0.0
        %v5616 = vmax.f32 %v5576, 0.0
        %v5617 = vmax.f32 %v5577, 0.0
        %v5618 = vmax.f32 %v5578, 0.0
        %v5619 = vpack.c.bf16 %v5583, %v5579
        %v5620 = vpack.c.bf16 %v5584, %v5580
        %v5621 = vpack.c.bf16 %v5585, %v5581
        %v5622 = vpack.c.bf16 %v5586, %v5582
        %v5623 = vpack.c.bf16 %v5591, %v5587
        %v5624 = vpack.c.bf16 %v5592, %v5588
        %v5625 = vpack.c.bf16 %v5593, %v5589
        %v5626 = vpack.c.bf16 %v5594, %v5590
        %v5627 = vpack.c.bf16 %v5599, %v5595
        %v5628 = vpack.c.bf16 %v5600, %v5596
        %v5629 = vpack.c.bf16 %v5601, %v5597
        %v5630 = vpack.c.bf16 %v5602, %v5598
        %v5631 = vpack.c.bf16 %v5607, %v5603
        %v5632 = vpack.c.bf16 %v5608, %v5604
        %v5633 = vpack.c.bf16 %v5609, %v5605
        %v5634 = vpack.c.bf16 %v5610, %v5606
        %v5635 = vpack.c.bf16 %v5615, %v5611
        %v5636 = vpack.c.bf16 %v5616, %v5612
        %v5637 = vpack.c.bf16 %v5617, %v5613
        %v5638 = vpack.c.bf16 %v5618, %v5614
        %v5659 = vunpack.c.l.b16 %v5619
        %v5660 = vunpack.c.l.b16 %v5620
        %v5661 = vunpack.c.l.b16 %v5621
        %v5662 = vunpack.c.l.b16 %v5622
        %v5663 = vunpack.c.h.b16 %v5619
        %v5664 = vunpack.c.h.b16 %v5620
        %v5665 = vunpack.c.h.b16 %v5621
        %v5666 = vunpack.c.h.b16 %v5622
        %v5667 = vunpack.c.l.b16 %v5623
        %v5668 = vunpack.c.l.b16 %v5624
        %v5669 = vunpack.c.l.b16 %v5625
        %v5670 = vunpack.c.l.b16 %v5626
        %v5671 = vunpack.c.h.b16 %v5623
        %v5672 = vunpack.c.h.b16 %v5624
        %v5673 = vunpack.c.h.b16 %v5625
        %v5674 = vunpack.c.h.b16 %v5626
        %v5675 = vunpack.c.l.b16 %v5627
        %v5676 = vunpack.c.l.b16 %v5628
        %v5677 = vunpack.c.l.b16 %v5629
        %v5678 = vunpack.c.l.b16 %v5630
        %v5679 = vunpack.c.h.b16 %v5627
        %v5680 = vunpack.c.h.b16 %v5628
        %v5681 = vunpack.c.h.b16 %v5629
        %v5682 = vunpack.c.h.b16 %v5630
        %v5683 = vunpack.c.l.b16 %v5631
        %v5684 = vunpack.c.l.b16 %v5632
        %v5685 = vunpack.c.l.b16 %v5633
        %v5686 = vunpack.c.l.b16 %v5634
        %v5687 = vunpack.c.h.b16 %v5631
        %v5688 = vunpack.c.h.b16 %v5632
        %v5689 = vunpack.c.h.b16 %v5633
        %v5690 = vunpack.c.h.b16 %v5634
        %v5691 = vunpack.c.l.b16 %v5635
        %v5692 = vunpack.c.l.b16 %v5636
        %v5693 = vunpack.c.l.b16 %v5637
        %v5694 = vunpack.c.l.b16 %v5638
        %v5695 = vunpack.c.h.b16 %v5635
        %v5696 = vunpack.c.h.b16 %v5636
        %v5697 = vunpack.c.h.b16 %v5637
        %v5698 = vunpack.c.h.b16 %v5638
        %v5699 = vpack.c.b16 %v5660, %v5659
        %v5700 = vpack.c.b16 %v5662, %v5661
        %v5701 = vpack.c.b16 %v5664, %v5663
        %v5702 = vpack.c.b16 %v5666, %v5665
        %v5703 = vpack.c.b16 %v5668, %v5667
        %v5704 = vpack.c.b16 %v5670, %v5669
        %v5705 = vpack.c.b16 %v5672, %v5671
        %v5706 = vpack.c.b16 %v5674, %v5673
        %v5707 = vpack.c.b16 %v5676, %v5675
        %v5708 = vpack.c.b16 %v5678, %v5677
        %v5709 = vpack.c.b16 %v5680, %v5679
        %v5710 = vpack.c.b16 %v5682, %v5681
        %v5711 = vpack.c.b16 %v5684, %v5683
        %v5712 = vpack.c.b16 %v5686, %v5685
        %v5713 = vpack.c.b16 %v5688, %v5687
        %v5714 = vpack.c.b16 %v5690, %v5689
        %v5715 = vpack.c.b16 %v5692, %v5691
        %v5716 = vpack.c.b16 %v5694, %v5693
        %v5717 = vpack.c.b16 %v5696, %v5695
        %v5718 = vpack.c.b16 %v5698, %v5697
        %s5739 = scalar_lea.vmem [#allocation3], 32
        %5740 = vst [vmem:[%s5739] sm:$0xff] %v5699
        %5741 = vst [vmem:[%s5739 + $0x8] sm:$0xff] %v5700
        %5742 = vst [vmem:[%s5739 + $0x10] sm:$0xff] %v5701
        %5743 = vst [vmem:[%s5739 + $0x18] sm:$0xff] %v5702
        %5744 = vst [vmem:[%s5739 + $0x20] sm:$0xff] %v5703
        %5745 = vst [vmem:[%s5739 + $0x28] sm:$0xff] %v5704
        %5746 = vst [vmem:[%s5739 + $0x30] sm:$0xff] %v5705
        %5747 = vst [vmem:[%s5739 + $0x38] sm:$0xff] %v5706
        %5748 = vst [vmem:[%s5739 + $0x40] sm:$0xff] %v5707
        %5749 = vst [vmem:[%s5739 + $0x48] sm:$0xff] %v5708
        %5750 = vst [vmem:[%s5739 + $0x50] sm:$0xff] %v5709
        %5751 = vst [vmem:[%s5739 + $0x58] sm:$0xff] %v5710
        %5752 = vst [vmem:[%s5739 + $0x60] sm:$0xff] %v5711
        %5753 = vst [vmem:[%s5739 + $0x68] sm:$0xff] %v5712
        %5754 = vst [vmem:[%s5739 + $0x70] sm:$0xff] %v5713
        %5755 = vst [vmem:[%s5739 + $0x78] sm:$0xff] %v5714
        %5756 = vst [vmem:[%s5739 + $0x80] sm:$0xff] %v5715
        %5757 = vst [vmem:[%s5739 + $0x88] sm:$0xff] %v5716
        %5758 = vst [vmem:[%s5739 + $0x90] sm:$0xff] %v5717
        %5759 = vst [vmem:[%s5739 + $0x98] sm:$0xff] %v5718
        %s5760 = scalar_lea.vmem [#allocation3], 16
        %v5761 = vld [vmem:[%s5760] sm:$0xff]
        %v5762 = vld [vmem:[%s5760 + $0x8] sm:$0xff]
        %v5763 = vld [vmem:[%s5760 + $0x20] sm:$0xff]
        %v5764 = vld [vmem:[%s5760 + $0x28] sm:$0xff]
        %v5765 = vld [vmem:[%s5760 + $0x40] sm:$0xff]
        %v5766 = vld [vmem:[%s5760 + $0x48] sm:$0xff]
        %v5767 = vld [vmem:[%s5760 + $0x60] sm:$0xff]
        %v5768 = vld [vmem:[%s5760 + $0x68] sm:$0xff]
        %v5769 = vld [vmem:[%s5760 + $0x80] sm:$0xff]
        %v5770 = vld [vmem:[%s5760 + $0x88] sm:$0xff]
        %v5771 = vld [vmem:[%s3] sm:$0xff]
        %v5772 = vld [vmem:[%s3 + $0x8] sm:$0xff]
        %v5773 = vld [vmem:[%s3 + $0x10] sm:$0xff]
        %v5774 = vld [vmem:[%s3 + $0x18] sm:$0xff]
        %v5775 = vld [vmem:[%s3 + $0x20] sm:$0xff]
        %v5776 = vld [vmem:[%s3 + $0x28] sm:$0xff]
        %v5777 = vld [vmem:[%s3 + $0x30] sm:$0xff]
        %v5778 = vld [vmem:[%s3 + $0x38] sm:$0xff]
        %v5779 = vld [vmem:[%s3 + $0x40] sm:$0xff]
        %v5780 = vld [vmem:[%s3 + $0x48] sm:$0xff]
        %v5781 = vld [vmem:[%s3 + $0x50] sm:$0xff]
        %v5782 = vld [vmem:[%s3 + $0x58] sm:$0xff]
        %v5783 = vld [vmem:[%s3 + $0x60] sm:$0xff]
        %v5784 = vld [vmem:[%s3 + $0x68] sm:$0xff]
        %v5785 = vld [vmem:[%s3 + $0x70] sm:$0xff]
        %v5786 = vld [vmem:[%s3 + $0x78] sm:$0xff]
        %v5787 = vld [vmem:[%s3 + $0x80] sm:$0xff]
        %v5788 = vld [vmem:[%s3 + $0x88] sm:$0xff]
        %v5789 = vld [vmem:[%s3 + $0x90] sm:$0xff]
        %v5790 = vld [vmem:[%s3 + $0x98] sm:$0xff]
        %v5791 = vld [vmem:[%s3 + $0xa0] sm:$0xff]
        %v5792 = vld [vmem:[%s3 + $0xa8] sm:$0xff]
        %v5793 = vld [vmem:[%s3 + $0xb0] sm:$0xff]
        %v5794 = vld [vmem:[%s3 + $0xb8] sm:$0xff]
        %v5795 = vld [vmem:[%s3 + $0xc0] sm:$0xff]
        %v5796 = vld [vmem:[%s3 + $0xc8] sm:$0xff]
        %v5797 = vld [vmem:[%s3 + $0xd0] sm:$0xff]
        %v5798 = vld [vmem:[%s3 + $0xd8] sm:$0xff]
        %v5799 = vld [vmem:[%s3 + $0xe0] sm:$0xff]
        %v5800 = vld [vmem:[%s3 + $0xe8] sm:$0xff]
        %v5801 = vld [vmem:[%s3 + $0xf0] sm:$0xff]
        %v5802 = vld [vmem:[%s3 + $0xf8] sm:$0xff]
        %v5803 = vld [vmem:[%s3 + $0x100] sm:$0xff]
        %v5804 = vld [vmem:[%s3 + $0x108] sm:$0xff]
        %v5805 = vld [vmem:[%s3 + $0x110] sm:$0xff]
        %v5806 = vld [vmem:[%s3 + $0x118] sm:$0xff]
        %v5807 = vld [vmem:[%s3 + $0x120] sm:$0xff]
        %v5808 = vld [vmem:[%s3 + $0x128] sm:$0xff]
        %v5809 = vld [vmem:[%s3 + $0x130] sm:$0xff]
        %v5810 = vld [vmem:[%s3 + $0x138] sm:$0xff]
        %v5811 = vld [vmem:[%s3 + $0x140] sm:$0xff]
        %v5812 = vld [vmem:[%s3 + $0x148] sm:$0xff]
        %v5813 = vld [vmem:[%s3 + $0x150] sm:$0xff]
        %v5814 = vld [vmem:[%s3 + $0x158] sm:$0xff]
        %v5815 = vld [vmem:[%s3 + $0x160] sm:$0xff]
        %v5816 = vld [vmem:[%s3 + $0x168] sm:$0xff]
        %v5817 = vld [vmem:[%s3 + $0x170] sm:$0xff]
        %v5818 = vld [vmem:[%s3 + $0x178] sm:$0xff]
        %v5819 = vld [vmem:[%s3 + $0x180] sm:$0xff]
        %v5820 = vld [vmem:[%s3 + $0x188] sm:$0xff]
        %v5821 = vld [vmem:[%s3 + $0x190] sm:$0xff]
        %v5822 = vld [vmem:[%s3 + $0x198] sm:$0xff]
        %v5823 = vld [vmem:[%s3 + $0x1a0] sm:$0xff]
        %v5824 = vld [vmem:[%s3 + $0x1a8] sm:$0xff]
        %v5825 = vld [vmem:[%s3 + $0x1b0] sm:$0xff]
        %v5826 = vld [vmem:[%s3 + $0x1b8] sm:$0xff]
        %v5827 = vld [vmem:[%s3 + $0x1c0] sm:$0xff]
        %v5828 = vld [vmem:[%s3 + $0x1c8] sm:$0xff]
        %v5829 = vld [vmem:[%s3 + $0x1d0] sm:$0xff]
        %v5830 = vld [vmem:[%s3 + $0x1d8] sm:$0xff]
        %v5831 = vld [vmem:[%s3 + $0x1e0] sm:$0xff]
        %v5832 = vld [vmem:[%s3 + $0x1e8] sm:$0xff]
        %v5833 = vld [vmem:[%s3 + $0x1f0] sm:$0xff]
        %v5834 = vld [vmem:[%s3 + $0x1f8] sm:$0xff]
        %v5835 = vld [vmem:[%s5739] sm:$0xff]
        %v5836 = vld [vmem:[%s5739 + $0x8] sm:$0xff]
        %v5837 = vld [vmem:[%s5739 + $0x20] sm:$0xff]
        %v5838 = vld [vmem:[%s5739 + $0x28] sm:$0xff]
        %v5839 = vld [vmem:[%s5739 + $0x40] sm:$0xff]
        %v5840 = vld [vmem:[%s5739 + $0x48] sm:$0xff]
        %v5841 = vld [vmem:[%s5739 + $0x60] sm:$0xff]
        %v5842 = vld [vmem:[%s5739 + $0x68] sm:$0xff]
        %v5843 = vld [vmem:[%s5739 + $0x80] sm:$0xff]
        %v5844 = vld [vmem:[%s5739 + $0x88] sm:$0xff]
        %s5845 = scalar_lea.vmem %s3, 512
        %v5846 = vld [vmem:[%s5845] sm:$0xff]
        %v5847 = vld [vmem:[%s5845 + $0x8] sm:$0xff]
        %v5848 = vld [vmem:[%s5845 + $0x10] sm:$0xff]
        %v5849 = vld [vmem:[%s5845 + $0x18] sm:$0xff]
        %v5850 = vld [vmem:[%s5845 + $0x20] sm:$0xff]
        %v5851 = vld [vmem:[%s5845 + $0x28] sm:$0xff]
        %v5852 = vld [vmem:[%s5845 + $0x30] sm:$0xff]
        %v5853 = vld [vmem:[%s5845 + $0x38] sm:$0xff]
        %v5854 = vld [vmem:[%s5845 + $0x40] sm:$0xff]
        %v5855 = vld [vmem:[%s5845 + $0x48] sm:$0xff]
        %v5856 = vld [vmem:[%s5845 + $0x50] sm:$0xff]
        %v5857 = vld [vmem:[%s5845 + $0x58] sm:$0xff]
        %v5858 = vld [vmem:[%s5845 + $0x60] sm:$0xff]
        %v5859 = vld [vmem:[%s5845 + $0x68] sm:$0xff]
        %v5860 = vld [vmem:[%s5845 + $0x70] sm:$0xff]
        %v5861 = vld [vmem:[%s5845 + $0x78] sm:$0xff]
        %v5862 = vld [vmem:[%s5845 + $0x80] sm:$0xff]
        %v5863 = vld [vmem:[%s5845 + $0x88] sm:$0xff]
        %v5864 = vld [vmem:[%s5845 + $0x90] sm:$0xff]
        %v5865 = vld [vmem:[%s5845 + $0x98] sm:$0xff]
        %v5866 = vld [vmem:[%s5845 + $0xa0] sm:$0xff]
        %v5867 = vld [vmem:[%s5845 + $0xa8] sm:$0xff]
        %v5868 = vld [vmem:[%s5845 + $0xb0] sm:$0xff]
        %v5869 = vld [vmem:[%s5845 + $0xb8] sm:$0xff]
        %v5870 = vld [vmem:[%s5845 + $0xc0] sm:$0xff]
        %v5871 = vld [vmem:[%s5845 + $0xc8] sm:$0xff]
        %v5872 = vld [vmem:[%s5845 + $0xd0] sm:$0xff]
        %v5873 = vld [vmem:[%s5845 + $0xd8] sm:$0xff]
        %v5874 = vld [vmem:[%s5845 + $0xe0] sm:$0xff]
        %v5875 = vld [vmem:[%s5845 + $0xe8] sm:$0xff]
        %v5876 = vld [vmem:[%s5845 + $0xf0] sm:$0xff]
        %v5877 = vld [vmem:[%s5845 + $0xf8] sm:$0xff]
        %v5878 = vld [vmem:[%s5845 + $0x100] sm:$0xff]
        %v5879 = vld [vmem:[%s5845 + $0x108] sm:$0xff]
        %v5880 = vld [vmem:[%s5845 + $0x110] sm:$0xff]
        %v5881 = vld [vmem:[%s5845 + $0x118] sm:$0xff]
        %v5882 = vld [vmem:[%s5845 + $0x120] sm:$0xff]
        %v5883 = vld [vmem:[%s5845 + $0x128] sm:$0xff]
        %v5884 = vld [vmem:[%s5845 + $0x130] sm:$0xff]
        %v5885 = vld [vmem:[%s5845 + $0x138] sm:$0xff]
        %v5886 = vld [vmem:[%s5845 + $0x140] sm:$0xff]
        %v5887 = vld [vmem:[%s5845 + $0x148] sm:$0xff]
        %v5888 = vld [vmem:[%s5845 + $0x150] sm:$0xff]
        %v5889 = vld [vmem:[%s5845 + $0x158] sm:$0xff]
        %v5890 = vld [vmem:[%s5845 + $0x160] sm:$0xff]
        %v5891 = vld [vmem:[%s5845 + $0x168] sm:$0xff]
        %v5892 = vld [vmem:[%s5845 + $0x170] sm:$0xff]
        %v5893 = vld [vmem:[%s5845 + $0x178] sm:$0xff]
        %v5894 = vld [vmem:[%s5845 + $0x180] sm:$0xff]
        %v5895 = vld [vmem:[%s5845 + $0x188] sm:$0xff]
        %v5896 = vld [vmem:[%s5845 + $0x190] sm:$0xff]
        %v5897 = vld [vmem:[%s5845 + $0x198] sm:$0xff]
        %v5898 = vld [vmem:[%s5845 + $0x1a0] sm:$0xff]
        %v5899 = vld [vmem:[%s5845 + $0x1a8] sm:$0xff]
        %v5900 = vld [vmem:[%s5845 + $0x1b0] sm:$0xff]
        %v5901 = vld [vmem:[%s5845 + $0x1b8] sm:$0xff]
        %v5902 = vld [vmem:[%s5845 + $0x1c0] sm:$0xff]
        %v5903 = vld [vmem:[%s5845 + $0x1c8] sm:$0xff]
        %v5904 = vld [vmem:[%s5845 + $0x1d0] sm:$0xff]
        %v5905 = vld [vmem:[%s5845 + $0x1d8] sm:$0xff]
        %v5906 = vld [vmem:[%s5845 + $0x1e0] sm:$0xff]
        %v5907 = vld [vmem:[%s5845 + $0x1e8] sm:$0xff]
        %v5908 = vld [vmem:[%s5845 + $0x1f0] sm:$0xff]
        %v5909 = vld [vmem:[%s5845 + $0x1f8] sm:$0xff]
        %v5920 = vunpack.c.l.b16 %v5835
        %v5921 = vunpack.c.h.b16 %v5835
        %v5922 = vunpack.c.l.b16 %v5836
        %v5923 = vunpack.c.h.b16 %v5836
        %v5924 = vunpack.c.l.b16 %v5837
        %v5925 = vunpack.c.h.b16 %v5837
        %v5926 = vunpack.c.l.b16 %v5838
        %v5927 = vunpack.c.h.b16 %v5838
        %v5928 = vunpack.c.l.b16 %v5839
        %v5929 = vunpack.c.h.b16 %v5839
        %v5930 = vunpack.c.l.b16 %v5840
        %v5931 = vunpack.c.h.b16 %v5840
        %v5932 = vunpack.c.l.b16 %v5841
        %v5933 = vunpack.c.h.b16 %v5841
        %v5934 = vunpack.c.l.b16 %v5842
        %v5935 = vunpack.c.h.b16 %v5842
        %v5936 = vunpack.c.l.b16 %v5843
        %v5937 = vunpack.c.h.b16 %v5843
        %v5938 = vunpack.c.l.b16 %v5844
        %v5939 = vunpack.c.h.b16 %v5844
        %v5940 = vpack.c.b16 %v5924, %v5920
        %v5941 = vpack.c.b16 %v5925, %v5921
        %v5942 = vpack.c.b16 %v5926, %v5922
        %v5943 = vpack.c.b16 %v5927, %v5923
        %v5944 = vpack.c.b16 %v5932, %v5928
        %v5945 = vpack.c.b16 %v5933, %v5929
        %v5946 = vpack.c.b16 %v5934, %v5930
        %v5947 = vpack.c.b16 %v5935, %v5931
        %v5948 = vpack.c.b16 %v5936, %v5936
        %v5949 = vpack.c.b16 %v5937, %v5937
        %v5950 = vpack.c.b16 %v5938, %v5938
        %v5951 = vpack.c.b16 %v5939, %v5939
        %v6028 = vunpack.c.l.b16 %v5846
        %v6029 = vunpack.c.h.b16 %v5846
        %v6030 = vunpack.c.l.b16 %v5847
        %v6031 = vunpack.c.h.b16 %v5847
        %v6032 = vunpack.c.l.b16 %v5848
        %v6033 = vunpack.c.h.b16 %v5848
        %v6034 = vunpack.c.l.b16 %v5849
        %v6035 = vunpack.c.h.b16 %v5849
        %v6036 = vunpack.c.l.b16 %v5850
        %v6037 = vunpack.c.h.b16 %v5850
        %v6038 = vunpack.c.l.b16 %v5851
        %v6039 = vunpack.c.h.b16 %v5851
        %v6040 = vunpack.c.l.b16 %v5852
        %v6041 = vunpack.c.h.b16 %v5852
        %v6042 = vunpack.c.l.b16 %v5853
        %v6043 = vunpack.c.h.b16 %v5853
        %v6044 = vunpack.c.l.b16 %v5854
        %v6045 = vunpack.c.h.b16 %v5854
        %v6046 = vunpack.c.l.b16 %v5855
        %v6047 = vunpack.c.h.b16 %v5855
        %v6048 = vunpack.c.l.b16 %v5856
        %v6049 = vunpack.c.h.b16 %v5856
        %v6050 = vunpack.c.l.b16 %v5857
        %v6051 = vunpack.c.h.b16 %v5857
        %v6052 = vunpack.c.l.b16 %v5858
        %v6053 = vunpack.c.h.b16 %v5858
        %v6054 = vunpack.c.l.b16 %v5859
        %v6055 = vunpack.c.h.b16 %v5859
        %v6056 = vunpack.c.l.b16 %v5860
        %v6057 = vunpack.c.h.b16 %v5860
        %v6058 = vunpack.c.l.b16 %v5861
        %v6059 = vunpack.c.h.b16 %v5861
        %v6060 = vunpack.c.l.b16 %v5862
        %v6061 = vunpack.c.h.b16 %v5862
        %v6062 = vunpack.c.l.b16 %v5863
        %v6063 = vunpack.c.h.b16 %v5863
        %v6064 = vunpack.c.l.b16 %v5864
        %v6065 = vunpack.c.h.b16 %v5864
        %v6066 = vunpack.c.l.b16 %v5865
        %v6067 = vunpack.c.h.b16 %v5865
        %v6068 = vunpack.c.l.b16 %v5866
        %v6069 = vunpack.c.h.b16 %v5866
        %v6070 = vunpack.c.l.b16 %v5867
        %v6071 = vunpack.c.h.b16 %v5867
        %v6072 = vunpack.c.l.b16 %v5868
        %v6073 = vunpack.c.h.b16 %v5868
        %v6074 = vunpack.c.l.b16 %v5869
        %v6075 = vunpack.c.h.b16 %v5869
        %v6076 = vunpack.c.l.b16 %v5870
        %v6077 = vunpack.c.h.b16 %v5870
        %v6078 = vunpack.c.l.b16 %v5871
        %v6079 = vunpack.c.h.b16 %v5871
        %v6080 = vunpack.c.l.b16 %v5872
        %v6081 = vunpack.c.h.b16 %v5872
        %v6082 = vunpack.c.l.b16 %v5873
        %v6083 = vunpack.c.h.b16 %v5873
        %v6084 = vunpack.c.l.b16 %v5874
        %v6085 = vunpack.c.h.b16 %v5874
        %v6086 = vunpack.c.l.b16 %v5875
        %v6087 = vunpack.c.h.b16 %v5875
        %v6088 = vunpack.c.l.b16 %v5876
        %v6089 = vunpack.c.h.b16 %v5876
        %v6090 = vunpack.c.l.b16 %v5877
        %v6091 = vunpack.c.h.b16 %v5877
        %v6092 = vunpack.c.l.b16 %v5878
        %v6093 = vunpack.c.h.b16 %v5878
        %v6094 = vunpack.c.l.b16 %v5879
        %v6095 = vunpack.c.h.b16 %v5879
        %v6096 = vunpack.c.l.b16 %v5880
        %v6097 = vunpack.c.h.b16 %v5880
        %v6098 = vunpack.c.l.b16 %v5881
        %v6099 = vunpack.c.h.b16 %v5881
        %v6100 = vunpack.c.l.b16 %v5882
        %v6101 = vunpack.c.h.b16 %v5882
        %v6102 = vunpack.c.l.b16 %v5883
        %v6103 = vunpack.c.h.b16 %v5883
        %v6104 = vunpack.c.l.b16 %v5884
        %v6105 = vunpack.c.h.b16 %v5884
        %v6106 = vunpack.c.l.b16 %v5885
        %v6107 = vunpack.c.h.b16 %v5885
        %v6108 = vunpack.c.l.b16 %v5886
        %v6109 = vunpack.c.h.b16 %v5886
        %v6110 = vunpack.c.l.b16 %v5887
        %v6111 = vunpack.c.h.b16 %v5887
        %v6112 = vunpack.c.l.b16 %v5888
        %v6113 = vunpack.c.h.b16 %v5888
        %v6114 = vunpack.c.l.b16 %v5889
        %v6115 = vunpack.c.h.b16 %v5889
        %v6116 = vunpack.c.l.b16 %v5890
        %v6117 = vunpack.c.h.b16 %v5890
        %v6118 = vunpack.c.l.b16 %v5891
        %v6119 = vunpack.c.h.b16 %v5891
        %v6120 = vunpack.c.l.b16 %v5892
        %v6121 = vunpack.c.h.b16 %v5892
        %v6122 = vunpack.c.l.b16 %v5893
        %v6123 = vunpack.c.h.b16 %v5893
        %v6124 = vunpack.c.l.b16 %v5894
        %v6125 = vunpack.c.h.b16 %v5894
        %v6126 = vunpack.c.l.b16 %v5895
        %v6127 = vunpack.c.h.b16 %v5895
        %v6128 = vunpack.c.l.b16 %v5896
        %v6129 = vunpack.c.h.b16 %v5896
        %v6130 = vunpack.c.l.b16 %v5897
        %v6131 = vunpack.c.h.b16 %v5897
        %v6132 = vunpack.c.l.b16 %v5898
        %v6133 = vunpack.c.h.b16 %v5898
        %v6134 = vunpack.c.l.b16 %v5899
        %v6135 = vunpack.c.h.b16 %v5899
        %v6136 = vunpack.c.l.b16 %v5900
        %v6137 = vunpack.c.h.b16 %v5900
        %v6138 = vunpack.c.l.b16 %v5901
        %v6139 = vunpack.c.h.b16 %v5901
        %v6140 = vunpack.c.l.b16 %v5902
        %v6141 = vunpack.c.h.b16 %v5902
        %v6142 = vunpack.c.l.b16 %v5903
        %v6143 = vunpack.c.h.b16 %v5903
        %v6144 = vunpack.c.l.b16 %v5904
        %v6145 = vunpack.c.h.b16 %v5904
        %v6146 = vunpack.c.l.b16 %v5905
        %v6147 = vunpack.c.h.b16 %v5905
        %v6148 = vunpack.c.l.b16 %v5906
        %v6149 = vunpack.c.h.b16 %v5906
        %v6150 = vunpack.c.l.b16 %v5907
        %v6151 = vunpack.c.h.b16 %v5907
        %v6152 = vunpack.c.l.b16 %v5908
        %v6153 = vunpack.c.h.b16 %v5908
        %v6154 = vunpack.c.l.b16 %v5909
        %v6155 = vunpack.c.h.b16 %v5909
        %v6156 = vpack.c.b16 %v6030, %v6028
        %v6157 = vpack.c.b16 %v6031, %v6029
        %v6158 = vpack.c.b16 %v6034, %v6032
        %v6159 = vpack.c.b16 %v6035, %v6033
        %v6160 = vpack.c.b16 %v6038, %v6036
        %v6161 = vpack.c.b16 %v6039, %v6037
        %v6162 = vpack.c.b16 %v6042, %v6040
        %v6163 = vpack.c.b16 %v6043, %v6041
        %v6164 = vpack.c.b16 %v6046, %v6044
        %v6165 = vpack.c.b16 %v6047, %v6045
        %v6166 = vpack.c.b16 %v6050, %v6048
        %v6167 = vpack.c.b16 %v6051, %v6049
        %v6168 = vpack.c.b16 %v6054, %v6052
        %v6169 = vpack.c.b16 %v6055, %v6053
        %v6170 = vpack.c.b16 %v6058, %v6056
        %v6171 = vpack.c.b16 %v6059, %v6057
        %v6172 = vpack.c.b16 %v6062, %v6060
        %v6173 = vpack.c.b16 %v6063, %v6061
        %v6174 = vpack.c.b16 %v6066, %v6064
        %v6175 = vpack.c.b16 %v6067, %v6065
        %v6176 = vpack.c.b16 %v6070, %v6068
        %v6177 = vpack.c.b16 %v6071, %v6069
        %v6178 = vpack.c.b16 %v6074, %v6072
        %v6179 = vpack.c.b16 %v6075, %v6073
        %v6180 = vpack.c.b16 %v6078, %v6076
        %v6181 = vpack.c.b16 %v6079, %v6077
        %v6182 = vpack.c.b16 %v6082, %v6080
        %v6183 = vpack.c.b16 %v6083, %v6081
        %v6184 = vpack.c.b16 %v6086, %v6084
        %v6185 = vpack.c.b16 %v6087, %v6085
        %v6186 = vpack.c.b16 %v6090, %v6088
        %v6187 = vpack.c.b16 %v6091, %v6089
        %v6188 = vpack.c.b16 %v6094, %v6092
        %v6189 = vpack.c.b16 %v6095, %v6093
        %v6190 = vpack.c.b16 %v6098, %v6096
        %v6191 = vpack.c.b16 %v6099, %v6097
        %v6192 = vpack.c.b16 %v6102, %v6100
        %v6193 = vpack.c.b16 %v6103, %v6101
        %v6194 = vpack.c.b16 %v6106, %v6104
        %v6195 = vpack.c.b16 %v6107, %v6105
        %v6196 = vpack.c.b16 %v6110, %v6108
        %v6197 = vpack.c.b16 %v6111, %v6109
        %v6198 = vpack.c.b16 %v6114, %v6112
        %v6199 = vpack.c.b16 %v6115, %v6113
        %v6200 = vpack.c.b16 %v6118, %v6116
        %v6201 = vpack.c.b16 %v6119, %v6117
        %v6202 = vpack.c.b16 %v6122, %v6120
        %v6203 = vpack.c.b16 %v6123, %v6121
        %v6204 = vpack.c.b16 %v6126, %v6124
        %v6205 = vpack.c.b16 %v6127, %v6125
        %v6206 = vpack.c.b16 %v6130, %v6128
        %v6207 = vpack.c.b16 %v6131, %v6129
        %v6208 = vpack.c.b16 %v6134, %v6132
        %v6209 = vpack.c.b16 %v6135, %v6133
        %v6210 = vpack.c.b16 %v6138, %v6136
        %v6211 = vpack.c.b16 %v6139, %v6137
        %v6212 = vpack.c.b16 %v6142, %v6140
        %v6213 = vpack.c.b16 %v6143, %v6141
        %v6214 = vpack.c.b16 %v6146, %v6144
        %v6215 = vpack.c.b16 %v6147, %v6145
        %v6216 = vpack.c.b16 %v6150, %v6148
        %v6217 = vpack.c.b16 %v6151, %v6149
        %v6218 = vpack.c.b16 %v6154, %v6152
        %v6219 = vpack.c.b16 %v6155, %v6153
        %6284 = vmatprep.subr.bf16.mxu0 %v6171
        %6285 = vmatpush1.bf16.msra.mxu0 %v6170
        %6286 = vmatprep.subr.bf16.mxu0 %v6169
        %6287 = vmatpush1.bf16.msra.mxu0 %v6168
        %6288 = vmatprep.subr.bf16.mxu0 %v6167
        %6289 = vmatpush1.bf16.msra.mxu0 %v6166
        %6290 = vmatprep.subr.bf16.mxu0 %v6165
        %6291 = vmatpush1.bf16.msra.mxu0 %v6164
        %6292 = vmatprep.subr.bf16.mxu0 %v6163
        %6293 = vmatpush1.bf16.msra.mxu0 %v6162
        %6294 = vmatprep.subr.bf16.mxu0 %v6161
        %6295 = vmatpush1.bf16.msra.mxu0 %v6160
        %6296 = vmatprep.subr.bf16.mxu0 %v6159
        %6297 = vmatpush1.bf16.msra.mxu0 %v6158
        %6298 = vmatprep.subr.bf16.mxu0 %v6157
        %6299 = vmatpush1.bf16.msra.mxu0 %v6156
        %6300 = vmatprep.subr.bf16.mxu0 %v6187
        %6301 = vmatpush2.bf16.msra.mxu0 %v6186
        %6302 = vmatprep.subr.bf16.mxu0 %v6185
        %6303 = vmatpush2.bf16.msra.mxu0 %v6184
        %6304 = vmatprep.subr.bf16.mxu0 %v6183
        %6305 = vmatpush2.bf16.msra.mxu0 %v6182
        %6306 = vmatprep.subr.bf16.mxu0 %v6181
        %6307 = vmatpush2.bf16.msra.mxu0 %v6180
        %6308 = vmatprep.subr.bf16.mxu0 %v6179
        %6309 = vmatpush2.bf16.msra.mxu0 %v6178
        %6310 = vmatprep.subr.bf16.mxu0 %v6177
        %6311 = vmatpush2.bf16.msra.mxu0 %v6176
        %6312 = vmatprep.subr.bf16.mxu0 %v6175
        %6313 = vmatpush2.bf16.msra.mxu0 %v6174
        %6314 = vmatprep.subr.bf16.mxu0 %v6173
        %6315 = vmatpush2.bf16.msra.mxu0 %v6172
        %6316 = vmatprep.mubr.bf16.mxu0 %v5941
        %6317 = vmatmul.mubr.bf16.gmra.mxu0 %v5940
        %v6318 = vpop.f32.mrf.mxu0
        %v6319 = vadd.f32 0.0, %v6318
        %v6320 = vpop.f32.mrf.mxu0
        %v6321 = vadd.f32 0.0, %v6320
        %v6322 = vpop.f32.mrf.mxu0
        %v6323 = vadd.f32 0.0, %v6322
        %v6324 = vpop.f32.mrf.mxu0
        %v6325 = vadd.f32 0.0, %v6324
        %6326 = vmatprep.mubr.bf16.mxu0 %v5945
        %6327 = vmatmul.mubr.bf16.gmra.mxu0 %v5944
        %v6328 = vpop.f32.mrf.mxu0
        %v6329 = vadd.f32 0.0, %v6328
        %v6330 = vpop.f32.mrf.mxu0
        %v6331 = vadd.f32 0.0, %v6330
        %v6332 = vpop.f32.mrf.mxu0
        %v6333 = vadd.f32 0.0, %v6332
        %v6334 = vpop.f32.mrf.mxu0
        %v6335 = vadd.f32 0.0, %v6334
        %6336 = vmatprep.mubr.bf16.mxu0 %v5949
        %6337 = vmatmul.mubr.bf16.gmra.mxu0 %v5948
        %v6338 = vpop.f32.mrf.mxu0
        %v6339 = vadd.f32 0.0, %v6338
        %v6340 = vpop.f32.mrf.mxu0
        %v6341 = vadd.f32 0.0, %v6340
        %v6342 = vpop.f32.mrf.mxu0
        %v6343 = vpop.f32.mrf.mxu0
        %6344 = vdwg.mxu0
        %6345 = vmatprep.subr.bf16.mxu0 %v6203
        %6346 = vmatpush1.bf16.msra.mxu0 %v6202
        %6347 = vmatprep.subr.bf16.mxu0 %v6201
        %6348 = vmatpush1.bf16.msra.mxu0 %v6200
        %6349 = vmatprep.subr.bf16.mxu0 %v6199
        %6350 = vmatpush1.bf16.msra.mxu0 %v6198
        %6351 = vmatprep.subr.bf16.mxu0 %v6197
        %6352 = vmatpush1.bf16.msra.mxu0 %v6196
        %6353 = vmatprep.subr.bf16.mxu0 %v6195
        %6354 = vmatpush1.bf16.msra.mxu0 %v6194
        %6355 = vmatprep.subr.bf16.mxu0 %v6193
        %6356 = vmatpush1.bf16.msra.mxu0 %v6192
        %6357 = vmatprep.subr.bf16.mxu0 %v6191
        %6358 = vmatpush1.bf16.msra.mxu0 %v6190
        %6359 = vmatprep.subr.bf16.mxu0 %v6189
        %6360 = vmatpush1.bf16.msra.mxu0 %v6188
        %6361 = vmatprep.subr.bf16.mxu0 %v6219
        %6362 = vmatpush2.bf16.msra.mxu0 %v6218
        %6363 = vmatprep.subr.bf16.mxu0 %v6217
        %6364 = vmatpush2.bf16.msra.mxu0 %v6216
        %6365 = vmatprep.subr.bf16.mxu0 %v6215
        %6366 = vmatpush2.bf16.msra.mxu0 %v6214
        %6367 = vmatprep.subr.bf16.mxu0 %v6213
        %6368 = vmatpush2.bf16.msra.mxu0 %v6212
        %6369 = vmatprep.subr.bf16.mxu0 %v6211
        %6370 = vmatpush2.bf16.msra.mxu0 %v6210
        %6371 = vmatprep.subr.bf16.mxu0 %v6209
        %6372 = vmatpush2.bf16.msra.mxu0 %v6208
        %6373 = vmatprep.subr.bf16.mxu0 %v6207
        %6374 = vmatpush2.bf16.msra.mxu0 %v6206
        %6375 = vmatprep.subr.bf16.mxu0 %v6205
        %6376 = vmatpush2.bf16.msra.mxu0 %v6204
        %6377 = vmatprep.mubr.bf16.mxu0 %v5943
        %6378 = vmatmul.mubr.bf16.gmra.mxu0 %v5942
        %v6379 = vpop.f32.mrf.mxu0
        %v6380 = vadd.f32 %v6319, %v6379
        %v6381 = vpop.f32.mrf.mxu0
        %v6382 = vadd.f32 %v6321, %v6381
        %v6383 = vpop.f32.mrf.mxu0
        %v6384 = vadd.f32 %v6323, %v6383
        %v6385 = vpop.f32.mrf.mxu0
        %v6386 = vadd.f32 %v6325, %v6385
        %6387 = vmatprep.mubr.bf16.mxu0 %v5947
        %6388 = vmatmul.mubr.bf16.gmra.mxu0 %v5946
        %v6389 = vpop.f32.mrf.mxu0
        %v6390 = vadd.f32 %v6329, %v6389
        %v6391 = vpop.f32.mrf.mxu0
        %v6392 = vadd.f32 %v6331, %v6391
        %v6393 = vpop.f32.mrf.mxu0
        %v6394 = vadd.f32 %v6333, %v6393
        %v6395 = vpop.f32.mrf.mxu0
        %v6396 = vadd.f32 %v6335, %v6395
        %6397 = vmatprep.mubr.bf16.mxu0 %v5951
        %6398 = vmatmul.mubr.bf16.gmra.mxu0 %v5950
        %v6399 = vpop.f32.mrf.mxu0
        %v6400 = vadd.f32 %v6339, %v6399
        %v6401 = vpop.f32.mrf.mxu0
        %v6402 = vadd.f32 %v6341, %v6401
        %v6403 = vpop.f32.mrf.mxu0
        %v6404 = vpop.f32.mrf.mxu0
        %6405 = vdwg.mxu0
        %v6416 = vunpack.c.l.b16 %v5761
        %v6417 = vunpack.c.h.b16 %v5761
        %v6418 = vunpack.c.l.b16 %v5762
        %v6419 = vunpack.c.h.b16 %v5762
        %v6420 = vunpack.c.l.b16 %v5763
        %v6421 = vunpack.c.h.b16 %v5763
        %v6422 = vunpack.c.l.b16 %v5764
        %v6423 = vunpack.c.h.b16 %v5764
        %v6424 = vunpack.c.l.b16 %v5765
        %v6425 = vunpack.c.h.b16 %v5765
        %v6426 = vunpack.c.l.b16 %v5766
        %v6427 = vunpack.c.h.b16 %v5766
        %v6428 = vunpack.c.l.b16 %v5767
        %v6429 = vunpack.c.h.b16 %v5767
        %v6430 = vunpack.c.l.b16 %v5768
        %v6431 = vunpack.c.h.b16 %v5768
        %v6432 = vunpack.c.l.b16 %v5769
        %v6433 = vunpack.c.h.b16 %v5769
        %v6434 = vunpack.c.l.b16 %v5770
        %v6435 = vunpack.c.h.b16 %v5770
        %v6436 = vpack.c.b16 %v6420, %v6416
        %v6437 = vpack.c.b16 %v6421, %v6417
        %v6438 = vpack.c.b16 %v6422, %v6418
        %v6439 = vpack.c.b16 %v6423, %v6419
        %v6440 = vpack.c.b16 %v6428, %v6424
        %v6441 = vpack.c.b16 %v6429, %v6425
        %v6442 = vpack.c.b16 %v6430, %v6426
        %v6443 = vpack.c.b16 %v6431, %v6427
        %v6444 = vpack.c.b16 %v6432, %v6432
        %v6445 = vpack.c.b16 %v6433, %v6433
        %v6446 = vpack.c.b16 %v6434, %v6434
        %v6447 = vpack.c.b16 %v6435, %v6435
        %v6524 = vunpack.c.l.b16 %v5771
        %v6525 = vunpack.c.h.b16 %v5771
        %v6526 = vunpack.c.l.b16 %v5772
        %v6527 = vunpack.c.h.b16 %v5772
        %v6528 = vunpack.c.l.b16 %v5773
        %v6529 = vunpack.c.h.b16 %v5773
        %v6530 = vunpack.c.l.b16 %v5774
        %v6531 = vunpack.c.h.b16 %v5774
        %v6532 = vunpack.c.l.b16 %v5775
        %v6533 = vunpack.c.h.b16 %v5775
        %v6534 = vunpack.c.l.b16 %v5776
        %v6535 = vunpack.c.h.b16 %v5776
        %v6536 = vunpack.c.l.b16 %v5777
        %v6537 = vunpack.c.h.b16 %v5777
        %v6538 = vunpack.c.l.b16 %v5778
        %v6539 = vunpack.c.h.b16 %v5778
        %v6540 = vunpack.c.l.b16 %v5779
        %v6541 = vunpack.c.h.b16 %v5779
        %v6542 = vunpack.c.l.b16 %v5780
        %v6543 = vunpack.c.h.b16 %v5780
        %v6544 = vunpack.c.l.b16 %v5781
        %v6545 = vunpack.c.h.b16 %v5781
        %v6546 = vunpack.c.l.b16 %v5782
        %v6547 = vunpack.c.h.b16 %v5782
        %v6548 = vunpack.c.l.b16 %v5783
        %v6549 = vunpack.c.h.b16 %v5783
        %v6550 = vunpack.c.l.b16 %v5784
        %v6551 = vunpack.c.h.b16 %v5784
        %v6552 = vunpack.c.l.b16 %v5785
        %v6553 = vunpack.c.h.b16 %v5785
        %v6554 = vunpack.c.l.b16 %v5786
        %v6555 = vunpack.c.h.b16 %v5786
        %v6556 = vunpack.c.l.b16 %v5787
        %v6557 = vunpack.c.h.b16 %v5787
        %v6558 = vunpack.c.l.b16 %v5788
        %v6559 = vunpack.c.h.b16 %v5788
        %v6560 = vunpack.c.l.b16 %v5789
        %v6561 = vunpack.c.h.b16 %v5789
        %v6562 = vunpack.c.l.b16 %v5790
        %v6563 = vunpack.c.h.b16 %v5790
        %v6564 = vunpack.c.l.b16 %v5791
        %v6565 = vunpack.c.h.b16 %v5791
        %v6566 = vunpack.c.l.b16 %v5792
        %v6567 = vunpack.c.h.b16 %v5792
        %v6568 = vunpack.c.l.b16 %v5793
        %v6569 = vunpack.c.h.b16 %v5793
        %v6570 = vunpack.c.l.b16 %v5794
        %v6571 = vunpack.c.h.b16 %v5794
        %v6572 = vunpack.c.l.b16 %v5795
        %v6573 = vunpack.c.h.b16 %v5795
        %v6574 = vunpack.c.l.b16 %v5796
        %v6575 = vunpack.c.h.b16 %v5796
        %v6576 = vunpack.c.l.b16 %v5797
        %v6577 = vunpack.c.h.b16 %v5797
        %v6578 = vunpack.c.l.b16 %v5798
        %v6579 = vunpack.c.h.b16 %v5798
        %v6580 = vunpack.c.l.b16 %v5799
        %v6581 = vunpack.c.h.b16 %v5799
        %v6582 = vunpack.c.l.b16 %v5800
        %v6583 = vunpack.c.h.b16 %v5800
        %v6584 = vunpack.c.l.b16 %v5801
        %v6585 = vunpack.c.h.b16 %v5801
        %v6586 = vunpack.c.l.b16 %v5802
        %v6587 = vunpack.c.h.b16 %v5802
        %v6588 = vunpack.c.l.b16 %v5803
        %v6589 = vunpack.c.h.b16 %v5803
        %v6590 = vunpack.c.l.b16 %v5804
        %v6591 = vunpack.c.h.b16 %v5804
        %v6592 = vunpack.c.l.b16 %v5805
        %v6593 = vunpack.c.h.b16 %v5805
        %v6594 = vunpack.c.l.b16 %v5806
        %v6595 = vunpack.c.h.b16 %v5806
        %v6596 = vunpack.c.l.b16 %v5807
        %v6597 = vunpack.c.h.b16 %v5807
        %v6598 = vunpack.c.l.b16 %v5808
        %v6599 = vunpack.c.h.b16 %v5808
        %v6600 = vunpack.c.l.b16 %v5809
        %v6601 = vunpack.c.h.b16 %v5809
        %v6602 = vunpack.c.l.b16 %v5810
        %v6603 = vunpack.c.h.b16 %v5810
        %v6604 = vunpack.c.l.b16 %v5811
        %v6605 = vunpack.c.h.b16 %v5811
        %v6606 = vunpack.c.l.b16 %v5812
        %v6607 = vunpack.c.h.b16 %v5812
        %v6608 = vunpack.c.l.b16 %v5813
        %v6609 = vunpack.c.h.b16 %v5813
        %v6610 = vunpack.c.l.b16 %v5814
        %v6611 = vunpack.c.h.b16 %v5814
        %v6612 = vunpack.c.l.b16 %v5815
        %v6613 = vunpack.c.h.b16 %v5815
        %v6614 = vunpack.c.l.b16 %v5816
        %v6615 = vunpack.c.h.b16 %v5816
        %v6616 = vunpack.c.l.b16 %v5817
        %v6617 = vunpack.c.h.b16 %v5817
        %v6618 = vunpack.c.l.b16 %v5818
        %v6619 = vunpack.c.h.b16 %v5818
        %v6620 = vunpack.c.l.b16 %v5819
        %v6621 = vunpack.c.h.b16 %v5819
        %v6622 = vunpack.c.l.b16 %v5820
        %v6623 = vunpack.c.h.b16 %v5820
        %v6624 = vunpack.c.l.b16 %v5821
        %v6625 = vunpack.c.h.b16 %v5821
        %v6626 = vunpack.c.l.b16 %v5822
        %v6627 = vunpack.c.h.b16 %v5822
        %v6628 = vunpack.c.l.b16 %v5823
        %v6629 = vunpack.c.h.b16 %v5823
        %v6630 = vunpack.c.l.b16 %v5824
        %v6631 = vunpack.c.h.b16 %v5824
        %v6632 = vunpack.c.l.b16 %v5825
        %v6633 = vunpack.c.h.b16 %v5825
        %v6634 = vunpack.c.l.b16 %v5826
        %v6635 = vunpack.c.h.b16 %v5826
        %v6636 = vunpack.c.l.b16 %v5827
        %v6637 = vunpack.c.h.b16 %v5827
        %v6638 = vunpack.c.l.b16 %v5828
        %v6639 = vunpack.c.h.b16 %v5828
        %v6640 = vunpack.c.l.b16 %v5829
        %v6641 = vunpack.c.h.b16 %v5829
        %v6642 = vunpack.c.l.b16 %v5830
        %v6643 = vunpack.c.h.b16 %v5830
        %v6644 = vunpack.c.l.b16 %v5831
        %v6645 = vunpack.c.h.b16 %v5831
        %v6646 = vunpack.c.l.b16 %v5832
        %v6647 = vunpack.c.h.b16 %v5832
        %v6648 = vunpack.c.l.b16 %v5833
        %v6649 = vunpack.c.h.b16 %v5833
        %v6650 = vunpack.c.l.b16 %v5834
        %v6651 = vunpack.c.h.b16 %v5834
        %v6652 = vpack.c.b16 %v6526, %v6524
        %v6653 = vpack.c.b16 %v6527, %v6525
        %v6654 = vpack.c.b16 %v6530, %v6528
        %v6655 = vpack.c.b16 %v6531, %v6529
        %v6656 = vpack.c.b16 %v6534, %v6532
        %v6657 = vpack.c.b16 %v6535, %v6533
        %v6658 = vpack.c.b16 %v6538, %v6536
        %v6659 = vpack.c.b16 %v6539, %v6537
        %v6660 = vpack.c.b16 %v6542, %v6540
        %v6661 = vpack.c.b16 %v6543, %v6541
        %v6662 = vpack.c.b16 %v6546, %v6544
        %v6663 = vpack.c.b16 %v6547, %v6545
        %v6664 = vpack.c.b16 %v6550, %v6548
        %v6665 = vpack.c.b16 %v6551, %v6549
        %v6666 = vpack.c.b16 %v6554, %v6552
        %v6667 = vpack.c.b16 %v6555, %v6553
        %v6668 = vpack.c.b16 %v6558, %v6556
        %v6669 = vpack.c.b16 %v6559, %v6557
        %v6670 = vpack.c.b16 %v6562, %v6560
        %v6671 = vpack.c.b16 %v6563, %v6561
        %v6672 = vpack.c.b16 %v6566, %v6564
        %v6673 = vpack.c.b16 %v6567, %v6565
        %v6674 = vpack.c.b16 %v6570, %v6568
        %v6675 = vpack.c.b16 %v6571, %v6569
        %v6676 = vpack.c.b16 %v6574, %v6572
        %v6677 = vpack.c.b16 %v6575, %v6573
        %v6678 = vpack.c.b16 %v6578, %v6576
        %v6679 = vpack.c.b16 %v6579, %v6577
        %v6680 = vpack.c.b16 %v6582, %v6580
        %v6681 = vpack.c.b16 %v6583, %v6581
        %v6682 = vpack.c.b16 %v6586, %v6584
        %v6683 = vpack.c.b16 %v6587, %v6585
        %v6684 = vpack.c.b16 %v6590, %v6588
        %v6685 = vpack.c.b16 %v6591, %v6589
        %v6686 = vpack.c.b16 %v6594, %v6592
        %v6687 = vpack.c.b16 %v6595, %v6593
        %v6688 = vpack.c.b16 %v6598, %v6596
        %v6689 = vpack.c.b16 %v6599, %v6597
        %v6690 = vpack.c.b16 %v6602, %v6600
        %v6691 = vpack.c.b16 %v6603, %v6601
        %v6692 = vpack.c.b16 %v6606, %v6604
        %v6693 = vpack.c.b16 %v6607, %v6605
        %v6694 = vpack.c.b16 %v6610, %v6608
        %v6695 = vpack.c.b16 %v6611, %v6609
        %v6696 = vpack.c.b16 %v6614, %v6612
        %v6697 = vpack.c.b16 %v6615, %v6613
        %v6698 = vpack.c.b16 %v6618, %v6616
        %v6699 = vpack.c.b16 %v6619, %v6617
        %v6700 = vpack.c.b16 %v6622, %v6620
        %v6701 = vpack.c.b16 %v6623, %v6621
        %v6702 = vpack.c.b16 %v6626, %v6624
        %v6703 = vpack.c.b16 %v6627, %v6625
        %v6704 = vpack.c.b16 %v6630, %v6628
        %v6705 = vpack.c.b16 %v6631, %v6629
        %v6706 = vpack.c.b16 %v6634, %v6632
        %v6707 = vpack.c.b16 %v6635, %v6633
        %v6708 = vpack.c.b16 %v6638, %v6636
        %v6709 = vpack.c.b16 %v6639, %v6637
        %v6710 = vpack.c.b16 %v6642, %v6640
        %v6711 = vpack.c.b16 %v6643, %v6641
        %v6712 = vpack.c.b16 %v6646, %v6644
        %v6713 = vpack.c.b16 %v6647, %v6645
        %v6714 = vpack.c.b16 %v6650, %v6648
        %v6715 = vpack.c.b16 %v6651, %v6649
        %6780 = vmatprep.subr.bf16.mxu0 %v6667
        %6781 = vmatpush1.bf16.msra.mxu0 %v6666
        %6782 = vmatprep.subr.bf16.mxu0 %v6665
        %6783 = vmatpush1.bf16.msra.mxu0 %v6664
        %6784 = vmatprep.subr.bf16.mxu0 %v6663
        %6785 = vmatpush1.bf16.msra.mxu0 %v6662
        %6786 = vmatprep.subr.bf16.mxu0 %v6661
        %6787 = vmatpush1.bf16.msra.mxu0 %v6660
        %6788 = vmatprep.subr.bf16.mxu0 %v6659
        %6789 = vmatpush1.bf16.msra.mxu0 %v6658
        %6790 = vmatprep.subr.bf16.mxu0 %v6657
        %6791 = vmatpush1.bf16.msra.mxu0 %v6656
        %6792 = vmatprep.subr.bf16.mxu0 %v6655
        %6793 = vmatpush1.bf16.msra.mxu0 %v6654
        %6794 = vmatprep.subr.bf16.mxu0 %v6653
        %6795 = vmatpush1.bf16.msra.mxu0 %v6652
        %6796 = vmatprep.subr.bf16.mxu0 %v6683
        %6797 = vmatpush2.bf16.msra.mxu0 %v6682
        %6798 = vmatprep.subr.bf16.mxu0 %v6681
        %6799 = vmatpush2.bf16.msra.mxu0 %v6680
        %6800 = vmatprep.subr.bf16.mxu0 %v6679
        %6801 = vmatpush2.bf16.msra.mxu0 %v6678
        %6802 = vmatprep.subr.bf16.mxu0 %v6677
        %6803 = vmatpush2.bf16.msra.mxu0 %v6676
        %6804 = vmatprep.subr.bf16.mxu0 %v6675
        %6805 = vmatpush2.bf16.msra.mxu0 %v6674
        %6806 = vmatprep.subr.bf16.mxu0 %v6673
        %6807 = vmatpush2.bf16.msra.mxu0 %v6672
        %6808 = vmatprep.subr.bf16.mxu0 %v6671
        %6809 = vmatpush2.bf16.msra.mxu0 %v6670
        %6810 = vmatprep.subr.bf16.mxu0 %v6669
        %6811 = vmatpush2.bf16.msra.mxu0 %v6668
        %6812 = vmatprep.mubr.bf16.mxu0 %v6437
        %6813 = vmatmul.mubr.bf16.gmra.mxu0 %v6436
        %v6814 = vpop.f32.mrf.mxu0
        %v6815 = vadd.f32 %v6380, %v6814
        %v6816 = vpop.f32.mrf.mxu0
        %v6817 = vadd.f32 %v6382, %v6816
        %v6818 = vpop.f32.mrf.mxu0
        %v6819 = vadd.f32 %v6384, %v6818
        %v6820 = vpop.f32.mrf.mxu0
        %v6821 = vadd.f32 %v6386, %v6820
        %6822 = vmatprep.mubr.bf16.mxu0 %v6441
        %6823 = vmatmul.mubr.bf16.gmra.mxu0 %v6440
        %v6824 = vpop.f32.mrf.mxu0
        %v6825 = vadd.f32 %v6390, %v6824
        %v6826 = vpop.f32.mrf.mxu0
        %v6827 = vadd.f32 %v6392, %v6826
        %v6828 = vpop.f32.mrf.mxu0
        %v6829 = vadd.f32 %v6394, %v6828
        %v6830 = vpop.f32.mrf.mxu0
        %v6831 = vadd.f32 %v6396, %v6830
        %6832 = vmatprep.mubr.bf16.mxu0 %v6445
        %6833 = vmatmul.mubr.bf16.gmra.mxu0 %v6444
        %v6834 = vpop.f32.mrf.mxu0
        %v6835 = vadd.f32 %v6400, %v6834
        %v6836 = vpop.f32.mrf.mxu0
        %v6837 = vadd.f32 %v6402, %v6836
        %v6838 = vpop.f32.mrf.mxu0
        %v6839 = vpop.f32.mrf.mxu0
        %6840 = vdwg.mxu0
        %6841 = vmatprep.subr.bf16.mxu0 %v6699
        %6842 = vmatpush1.bf16.msra.mxu0 %v6698
        %6843 = vmatprep.subr.bf16.mxu0 %v6697
        %6844 = vmatpush1.bf16.msra.mxu0 %v6696
        %6845 = vmatprep.subr.bf16.mxu0 %v6695
        %6846 = vmatpush1.bf16.msra.mxu0 %v6694
        %6847 = vmatprep.subr.bf16.mxu0 %v6693
        %6848 = vmatpush1.bf16.msra.mxu0 %v6692
        %6849 = vmatprep.subr.bf16.mxu0 %v6691
        %6850 = vmatpush1.bf16.msra.mxu0 %v6690
        %6851 = vmatprep.subr.bf16.mxu0 %v6689
        %6852 = vmatpush1.bf16.msra.mxu0 %v6688
        %6853 = vmatprep.subr.bf16.mxu0 %v6687
        %6854 = vmatpush1.bf16.msra.mxu0 %v6686
        %6855 = vmatprep.subr.bf16.mxu0 %v6685
        %6856 = vmatpush1.bf16.msra.mxu0 %v6684
        %6857 = vmatprep.subr.bf16.mxu0 %v6715
        %6858 = vmatpush2.bf16.msra.mxu0 %v6714
        %6859 = vmatprep.subr.bf16.mxu0 %v6713
        %6860 = vmatpush2.bf16.msra.mxu0 %v6712
        %6861 = vmatprep.subr.bf16.mxu0 %v6711
        %6862 = vmatpush2.bf16.msra.mxu0 %v6710
        %6863 = vmatprep.subr.bf16.mxu0 %v6709
        %6864 = vmatpush2.bf16.msra.mxu0 %v6708
        %6865 = vmatprep.subr.bf16.mxu0 %v6707
        %6866 = vmatpush2.bf16.msra.mxu0 %v6706
        %6867 = vmatprep.subr.bf16.mxu0 %v6705
        %6868 = vmatpush2.bf16.msra.mxu0 %v6704
        %6869 = vmatprep.subr.bf16.mxu0 %v6703
        %6870 = vmatpush2.bf16.msra.mxu0 %v6702
        %6871 = vmatprep.subr.bf16.mxu0 %v6701
        %6872 = vmatpush2.bf16.msra.mxu0 %v6700
        %6873 = vmatprep.mubr.bf16.mxu0 %v6439
        %6874 = vmatmul.mubr.bf16.gmra.mxu0 %v6438
        %v6875 = vpop.f32.mrf.mxu0
        %v6876 = vadd.f32 %v6815, %v6875
        %v6877 = vpop.f32.mrf.mxu0
        %v6878 = vadd.f32 %v6817, %v6877
        %v6879 = vpop.f32.mrf.mxu0
        %v6880 = vadd.f32 %v6819, %v6879
        %v6881 = vpop.f32.mrf.mxu0
        %v6882 = vadd.f32 %v6821, %v6881
        %6883 = vmatprep.mubr.bf16.mxu0 %v6443
        %6884 = vmatmul.mubr.bf16.gmra.mxu0 %v6442
        %v6885 = vpop.f32.mrf.mxu0
        %v6886 = vadd.f32 %v6825, %v6885
        %v6887 = vpop.f32.mrf.mxu0
        %v6888 = vadd.f32 %v6827, %v6887
        %v6889 = vpop.f32.mrf.mxu0
        %v6890 = vadd.f32 %v6829, %v6889
        %v6891 = vpop.f32.mrf.mxu0
        %v6892 = vadd.f32 %v6831, %v6891
        %6893 = vmatprep.mubr.bf16.mxu0 %v6447
        %6894 = vmatmul.mubr.bf16.gmra.mxu0 %v6446
        %v6895 = vpop.f32.mrf.mxu0
        %v6896 = vadd.f32 %v6835, %v6895
        %v6897 = vpop.f32.mrf.mxu0
        %v6898 = vadd.f32 %v6837, %v6897
        %v6899 = vpop.f32.mrf.mxu0
        %v6900 = vpop.f32.mrf.mxu0
        %6901 = vdwg.mxu0
        %s6902 = scalar_lea.vmem [#allocation3], 48
        %v6903 = vld [vmem:[%s6902] sm:$0xff]
        %v6904 = vld [vmem:[%s6902 + $0x8] sm:$0xff]
        %v6905 = vld [vmem:[%s6902 + $0x20] sm:$0xff]
        %v6906 = vld [vmem:[%s6902 + $0x28] sm:$0xff]
        %v6907 = vld [vmem:[%s6902 + $0x40] sm:$0xff]
        %v6908 = vld [vmem:[%s6902 + $0x48] sm:$0xff]
        %v6909 = vld [vmem:[%s6902 + $0x60] sm:$0xff]
        %v6910 = vld [vmem:[%s6902 + $0x68] sm:$0xff]
        %v6911 = vld [vmem:[%s6902 + $0x80] sm:$0xff]
        %v6912 = vld [vmem:[%s6902 + $0x88] sm:$0xff]
        %s6913 = scalar_lea.vmem %s3, 1024
        %v6914 = vld [vmem:[%s6913] sm:$0xff]
        %v6915 = vld [vmem:[%s6913 + $0x8] sm:$0xff]
        %v6916 = vld [vmem:[%s6913 + $0x10] sm:$0xff]
        %v6917 = vld [vmem:[%s6913 + $0x18] sm:$0xff]
        %v6918 = vld [vmem:[%s6913 + $0x20] sm:$0xff]
        %v6919 = vld [vmem:[%s6913 + $0x28] sm:$0xff]
        %v6920 = vld [vmem:[%s6913 + $0x30] sm:$0xff]
        %v6921 = vld [vmem:[%s6913 + $0x38] sm:$0xff]
        %v6922 = vld [vmem:[%s6913 + $0x40] sm:$0xff]
        %v6923 = vld [vmem:[%s6913 + $0x48] sm:$0xff]
        %v6924 = vld [vmem:[%s6913 + $0x50] sm:$0xff]
        %v6925 = vld [vmem:[%s6913 + $0x58] sm:$0xff]
        %v6926 = vld [vmem:[%s6913 + $0x60] sm:$0xff]
        %v6927 = vld [vmem:[%s6913 + $0x68] sm:$0xff]
        %v6928 = vld [vmem:[%s6913 + $0x70] sm:$0xff]
        %v6929 = vld [vmem:[%s6913 + $0x78] sm:$0xff]
        %v6930 = vld [vmem:[%s6913 + $0x80] sm:$0xff]
        %v6931 = vld [vmem:[%s6913 + $0x88] sm:$0xff]
        %v6932 = vld [vmem:[%s6913 + $0x90] sm:$0xff]
        %v6933 = vld [vmem:[%s6913 + $0x98] sm:$0xff]
        %v6934 = vld [vmem:[%s6913 + $0xa0] sm:$0xff]
        %v6935 = vld [vmem:[%s6913 + $0xa8] sm:$0xff]
        %v6936 = vld [vmem:[%s6913 + $0xb0] sm:$0xff]
        %v6937 = vld [vmem:[%s6913 + $0xb8] sm:$0xff]
        %v6938 = vld [vmem:[%s6913 + $0xc0] sm:$0xff]
        %v6939 = vld [vmem:[%s6913 + $0xc8] sm:$0xff]
        %v6940 = vld [vmem:[%s6913 + $0xd0] sm:$0xff]
        %v6941 = vld [vmem:[%s6913 + $0xd8] sm:$0xff]
        %v6942 = vld [vmem:[%s6913 + $0xe0] sm:$0xff]
        %v6943 = vld [vmem:[%s6913 + $0xe8] sm:$0xff]
        %v6944 = vld [vmem:[%s6913 + $0xf0] sm:$0xff]
        %v6945 = vld [vmem:[%s6913 + $0xf8] sm:$0xff]
        %v6946 = vld [vmem:[%s6913 + $0x100] sm:$0xff]
        %v6947 = vld [vmem:[%s6913 + $0x108] sm:$0xff]
        %v6948 = vld [vmem:[%s6913 + $0x110] sm:$0xff]
        %v6949 = vld [vmem:[%s6913 + $0x118] sm:$0xff]
        %v6950 = vld [vmem:[%s6913 + $0x120] sm:$0xff]
        %v6951 = vld [vmem:[%s6913 + $0x128] sm:$0xff]
        %v6952 = vld [vmem:[%s6913 + $0x130] sm:$0xff]
        %v6953 = vld [vmem:[%s6913 + $0x138] sm:$0xff]
        %v6954 = vld [vmem:[%s6913 + $0x140] sm:$0xff]
        %v6955 = vld [vmem:[%s6913 + $0x148] sm:$0xff]
        %v6956 = vld [vmem:[%s6913 + $0x150] sm:$0xff]
        %v6957 = vld [vmem:[%s6913 + $0x158] sm:$0xff]
        %v6958 = vld [vmem:[%s6913 + $0x160] sm:$0xff]
        %v6959 = vld [vmem:[%s6913 + $0x168] sm:$0xff]
        %v6960 = vld [vmem:[%s6913 + $0x170] sm:$0xff]
        %v6961 = vld [vmem:[%s6913 + $0x178] sm:$0xff]
        %v6962 = vld [vmem:[%s6913 + $0x180] sm:$0xff]
        %v6963 = vld [vmem:[%s6913 + $0x188] sm:$0xff]
        %v6964 = vld [vmem:[%s6913 + $0x190] sm:$0xff]
        %v6965 = vld [vmem:[%s6913 + $0x198] sm:$0xff]
        %v6966 = vld [vmem:[%s6913 + $0x1a0] sm:$0xff]
        %v6967 = vld [vmem:[%s6913 + $0x1a8] sm:$0xff]
        %v6968 = vld [vmem:[%s6913 + $0x1b0] sm:$0xff]
        %v6969 = vld [vmem:[%s6913 + $0x1b8] sm:$0xff]
        %v6970 = vld [vmem:[%s6913 + $0x1c0] sm:$0xff]
        %v6971 = vld [vmem:[%s6913 + $0x1c8] sm:$0xff]
        %v6972 = vld [vmem:[%s6913 + $0x1d0] sm:$0xff]
        %v6973 = vld [vmem:[%s6913 + $0x1d8] sm:$0xff]
        %v6974 = vld [vmem:[%s6913 + $0x1e0] sm:$0xff]
        %v6975 = vld [vmem:[%s6913 + $0x1e8] sm:$0xff]
        %v6976 = vld [vmem:[%s6913 + $0x1f0] sm:$0xff]
        %v6977 = vld [vmem:[%s6913 + $0x1f8] sm:$0xff]
        %v6988 = vunpack.c.l.b16 %v6903
        %v6989 = vunpack.c.h.b16 %v6903
        %v6990 = vunpack.c.l.b16 %v6904
        %v6991 = vunpack.c.h.b16 %v6904
        %v6992 = vunpack.c.l.b16 %v6905
        %v6993 = vunpack.c.h.b16 %v6905
        %v6994 = vunpack.c.l.b16 %v6906
        %v6995 = vunpack.c.h.b16 %v6906
        %v6996 = vunpack.c.l.b16 %v6907
        %v6997 = vunpack.c.h.b16 %v6907
        %v6998 = vunpack.c.l.b16 %v6908
        %v6999 = vunpack.c.h.b16 %v6908
        %v7000 = vunpack.c.l.b16 %v6909
        %v7001 = vunpack.c.h.b16 %v6909
        %v7002 = vunpack.c.l.b16 %v6910
        %v7003 = vunpack.c.h.b16 %v6910
        %v7004 = vunpack.c.l.b16 %v6911
        %v7005 = vunpack.c.h.b16 %v6911
        %v7006 = vunpack.c.l.b16 %v6912
        %v7007 = vunpack.c.h.b16 %v6912
        %v7008 = vpack.c.b16 %v6992, %v6988
        %v7009 = vpack.c.b16 %v6993, %v6989
        %v7010 = vpack.c.b16 %v6994, %v6990
        %v7011 = vpack.c.b16 %v6995, %v6991
        %v7012 = vpack.c.b16 %v7000, %v6996
        %v7013 = vpack.c.b16 %v7001, %v6997
        %v7014 = vpack.c.b16 %v7002, %v6998
        %v7015 = vpack.c.b16 %v7003, %v6999
        %v7016 = vpack.c.b16 %v7004, %v7004
        %v7017 = vpack.c.b16 %v7005, %v7005
        %v7018 = vpack.c.b16 %v7006, %v7006
        %v7019 = vpack.c.b16 %v7007, %v7007
        %v7096 = vunpack.c.l.b16 %v6914
        %v7097 = vunpack.c.h.b16 %v6914
        %v7098 = vunpack.c.l.b16 %v6915
        %v7099 = vunpack.c.h.b16 %v6915
        %v7100 = vunpack.c.l.b16 %v6916
        %v7101 = vunpack.c.h.b16 %v6916
        %v7102 = vunpack.c.l.b16 %v6917
        %v7103 = vunpack.c.h.b16 %v6917
        %v7104 = vunpack.c.l.b16 %v6918
        %v7105 = vunpack.c.h.b16 %v6918
        %v7106 = vunpack.c.l.b16 %v6919
        %v7107 = vunpack.c.h.b16 %v6919
        %v7108 = vunpack.c.l.b16 %v6920
        %v7109 = vunpack.c.h.b16 %v6920
        %v7110 = vunpack.c.l.b16 %v6921
        %v7111 = vunpack.c.h.b16 %v6921
        %v7112 = vunpack.c.l.b16 %v6922
        %v7113 = vunpack.c.h.b16 %v6922
        %v7114 = vunpack.c.l.b16 %v6923
        %v7115 = vunpack.c.h.b16 %v6923
        %v7116 = vunpack.c.l.b16 %v6924
        %v7117 = vunpack.c.h.b16 %v6924
        %v7118 = vunpack.c.l.b16 %v6925
        %v7119 = vunpack.c.h.b16 %v6925
        %v7120 = vunpack.c.l.b16 %v6926
        %v7121 = vunpack.c.h.b16 %v6926
        %v7122 = vunpack.c.l.b16 %v6927
        %v7123 = vunpack.c.h.b16 %v6927
        %v7124 = vunpack.c.l.b16 %v6928
        %v7125 = vunpack.c.h.b16 %v6928
        %v7126 = vunpack.c.l.b16 %v6929
        %v7127 = vunpack.c.h.b16 %v6929
        %v7128 = vunpack.c.l.b16 %v6930
        %v7129 = vunpack.c.h.b16 %v6930
        %v7130 = vunpack.c.l.b16 %v6931
        %v7131 = vunpack.c.h.b16 %v6931
        %v7132 = vunpack.c.l.b16 %v6932
        %v7133 = vunpack.c.h.b16 %v6932
        %v7134 = vunpack.c.l.b16 %v6933
        %v7135 = vunpack.c.h.b16 %v6933
        %v7136 = vunpack.c.l.b16 %v6934
        %v7137 = vunpack.c.h.b16 %v6934
        %v7138 = vunpack.c.l.b16 %v6935
        %v7139 = vunpack.c.h.b16 %v6935
        %v7140 = vunpack.c.l.b16 %v6936
        %v7141 = vunpack.c.h.b16 %v6936
        %v7142 = vunpack.c.l.b16 %v6937
        %v7143 = vunpack.c.h.b16 %v6937
        %v7144 = vunpack.c.l.b16 %v6938
        %v7145 = vunpack.c.h.b16 %v6938
        %v7146 = vunpack.c.l.b16 %v6939
        %v7147 = vunpack.c.h.b16 %v6939
        %v7148 = vunpack.c.l.b16 %v6940
        %v7149 = vunpack.c.h.b16 %v6940
        %v7150 = vunpack.c.l.b16 %v6941
        %v7151 = vunpack.c.h.b16 %v6941
        %v7152 = vunpack.c.l.b16 %v6942
        %v7153 = vunpack.c.h.b16 %v6942
        %v7154 = vunpack.c.l.b16 %v6943
        %v7155 = vunpack.c.h.b16 %v6943
        %v7156 = vunpack.c.l.b16 %v6944
        %v7157 = vunpack.c.h.b16 %v6944
        %v7158 = vunpack.c.l.b16 %v6945
        %v7159 = vunpack.c.h.b16 %v6945
        %v7160 = vunpack.c.l.b16 %v6946
        %v7161 = vunpack.c.h.b16 %v6946
        %v7162 = vunpack.c.l.b16 %v6947
        %v7163 = vunpack.c.h.b16 %v6947
        %v7164 = vunpack.c.l.b16 %v6948
        %v7165 = vunpack.c.h.b16 %v6948
        %v7166 = vunpack.c.l.b16 %v6949
        %v7167 = vunpack.c.h.b16 %v6949
        %v7168 = vunpack.c.l.b16 %v6950
        %v7169 = vunpack.c.h.b16 %v6950
        %v7170 = vunpack.c.l.b16 %v6951
        %v7171 = vunpack.c.h.b16 %v6951
        %v7172 = vunpack.c.l.b16 %v6952
        %v7173 = vunpack.c.h.b16 %v6952
        %v7174 = vunpack.c.l.b16 %v6953
        %v7175 = vunpack.c.h.b16 %v6953
        %v7176 = vunpack.c.l.b16 %v6954
        %v7177 = vunpack.c.h.b16 %v6954
        %v7178 = vunpack.c.l.b16 %v6955
        %v7179 = vunpack.c.h.b16 %v6955
        %v7180 = vunpack.c.l.b16 %v6956
        %v7181 = vunpack.c.h.b16 %v6956
        %v7182 = vunpack.c.l.b16 %v6957
        %v7183 = vunpack.c.h.b16 %v6957
        %v7184 = vunpack.c.l.b16 %v6958
        %v7185 = vunpack.c.h.b16 %v6958
        %v7186 = vunpack.c.l.b16 %v6959
        %v7187 = vunpack.c.h.b16 %v6959
        %v7188 = vunpack.c.l.b16 %v6960
        %v7189 = vunpack.c.h.b16 %v6960
        %v7190 = vunpack.c.l.b16 %v6961
        %v7191 = vunpack.c.h.b16 %v6961
        %v7192 = vunpack.c.l.b16 %v6962
        %v7193 = vunpack.c.h.b16 %v6962
        %v7194 = vunpack.c.l.b16 %v6963
        %v7195 = vunpack.c.h.b16 %v6963
        %v7196 = vunpack.c.l.b16 %v6964
        %v7197 = vunpack.c.h.b16 %v6964
        %v7198 = vunpack.c.l.b16 %v6965
        %v7199 = vunpack.c.h.b16 %v6965
        %v7200 = vunpack.c.l.b16 %v6966
        %v7201 = vunpack.c.h.b16 %v6966
        %v7202 = vunpack.c.l.b16 %v6967
        %v7203 = vunpack.c.h.b16 %v6967
        %v7204 = vunpack.c.l.b16 %v6968
        %v7205 = vunpack.c.h.b16 %v6968
        %v7206 = vunpack.c.l.b16 %v6969
        %v7207 = vunpack.c.h.b16 %v6969
        %v7208 = vunpack.c.l.b16 %v6970
        %v7209 = vunpack.c.h.b16 %v6970
        %v7210 = vunpack.c.l.b16 %v6971
        %v7211 = vunpack.c.h.b16 %v6971
        %v7212 = vunpack.c.l.b16 %v6972
        %v7213 = vunpack.c.h.b16 %v6972
        %v7214 = vunpack.c.l.b16 %v6973
        %v7215 = vunpack.c.h.b16 %v6973
        %v7216 = vunpack.c.l.b16 %v6974
        %v7217 = vunpack.c.h.b16 %v6974
        %v7218 = vunpack.c.l.b16 %v6975
        %v7219 = vunpack.c.h.b16 %v6975
        %v7220 = vunpack.c.l.b16 %v6976
        %v7221 = vunpack.c.h.b16 %v6976
        %v7222 = vunpack.c.l.b16 %v6977
        %v7223 = vunpack.c.h.b16 %v6977
        %v7224 = vpack.c.b16 %v7098, %v7096
        %v7225 = vpack.c.b16 %v7099, %v7097
        %v7226 = vpack.c.b16 %v7102, %v7100
        %v7227 = vpack.c.b16 %v7103, %v7101
        %v7228 = vpack.c.b16 %v7106, %v7104
        %v7229 = vpack.c.b16 %v7107, %v7105
        %v7230 = vpack.c.b16 %v7110, %v7108
        %v7231 = vpack.c.b16 %v7111, %v7109
        %v7232 = vpack.c.b16 %v7114, %v7112
        %v7233 = vpack.c.b16 %v7115, %v7113
        %v7234 = vpack.c.b16 %v7118, %v7116
        %v7235 = vpack.c.b16 %v7119, %v7117
        %v7236 = vpack.c.b16 %v7122, %v7120
        %v7237 = vpack.c.b16 %v7123, %v7121
        %v7238 = vpack.c.b16 %v7126, %v7124
        %v7239 = vpack.c.b16 %v7127, %v7125
        %v7240 = vpack.c.b16 %v7130, %v7128
        %v7241 = vpack.c.b16 %v7131, %v7129
        %v7242 = vpack.c.b16 %v7134, %v7132
        %v7243 = vpack.c.b16 %v7135, %v7133
        %v7244 = vpack.c.b16 %v7138, %v7136
        %v7245 = vpack.c.b16 %v7139, %v7137
        %v7246 = vpack.c.b16 %v7142, %v7140
        %v7247 = vpack.c.b16 %v7143, %v7141
        %v7248 = vpack.c.b16 %v7146, %v7144
        %v7249 = vpack.c.b16 %v7147, %v7145
        %v7250 = vpack.c.b16 %v7150, %v7148
        %v7251 = vpack.c.b16 %v7151, %v7149
        %v7252 = vpack.c.b16 %v7154, %v7152
        %v7253 = vpack.c.b16 %v7155, %v7153
        %v7254 = vpack.c.b16 %v7158, %v7156
        %v7255 = vpack.c.b16 %v7159, %v7157
        %v7256 = vpack.c.b16 %v7162, %v7160
        %v7257 = vpack.c.b16 %v7163, %v7161
        %v7258 = vpack.c.b16 %v7166, %v7164
        %v7259 = vpack.c.b16 %v7167, %v7165
        %v7260 = vpack.c.b16 %v7170, %v7168
        %v7261 = vpack.c.b16 %v7171, %v7169
        %v7262 = vpack.c.b16 %v7174, %v7172
        %v7263 = vpack.c.b16 %v7175, %v7173
        %v7264 = vpack.c.b16 %v7178, %v7176
        %v7265 = vpack.c.b16 %v7179, %v7177
        %v7266 = vpack.c.b16 %v7182, %v7180
        %v7267 = vpack.c.b16 %v7183, %v7181
        %v7268 = vpack.c.b16 %v7186, %v7184
        %v7269 = vpack.c.b16 %v7187, %v7185
        %v7270 = vpack.c.b16 %v7190, %v7188
        %v7271 = vpack.c.b16 %v7191, %v7189
        %v7272 = vpack.c.b16 %v7194, %v7192
        %v7273 = vpack.c.b16 %v7195, %v7193
        %v7274 = vpack.c.b16 %v7198, %v7196
        %v7275 = vpack.c.b16 %v7199, %v7197
        %v7276 = vpack.c.b16 %v7202, %v7200
        %v7277 = vpack.c.b16 %v7203, %v7201
        %v7278 = vpack.c.b16 %v7206, %v7204
        %v7279 = vpack.c.b16 %v7207, %v7205
        %v7280 = vpack.c.b16 %v7210, %v7208
        %v7281 = vpack.c.b16 %v7211, %v7209
        %v7282 = vpack.c.b16 %v7214, %v7212
        %v7283 = vpack.c.b16 %v7215, %v7213
        %v7284 = vpack.c.b16 %v7218, %v7216
        %v7285 = vpack.c.b16 %v7219, %v7217
        %v7286 = vpack.c.b16 %v7222, %v7220
        %v7287 = vpack.c.b16 %v7223, %v7221
        %7352 = vmatprep.subr.bf16.mxu0 %v7239
        %7353 = vmatpush1.bf16.msra.mxu0 %v7238
        %7354 = vmatprep.subr.bf16.mxu0 %v7237
        %7355 = vmatpush1.bf16.msra.mxu0 %v7236
        %7356 = vmatprep.subr.bf16.mxu0 %v7235
        %7357 = vmatpush1.bf16.msra.mxu0 %v7234
        %7358 = vmatprep.subr.bf16.mxu0 %v7233
        %7359 = vmatpush1.bf16.msra.mxu0 %v7232
        %7360 = vmatprep.subr.bf16.mxu0 %v7231
        %7361 = vmatpush1.bf16.msra.mxu0 %v7230
        %7362 = vmatprep.subr.bf16.mxu0 %v7229
        %7363 = vmatpush1.bf16.msra.mxu0 %v7228
        %7364 = vmatprep.subr.bf16.mxu0 %v7227
        %7365 = vmatpush1.bf16.msra.mxu0 %v7226
        %7366 = vmatprep.subr.bf16.mxu0 %v7225
        %7367 = vmatpush1.bf16.msra.mxu0 %v7224
        %7368 = vmatprep.subr.bf16.mxu0 %v7255
        %7369 = vmatpush2.bf16.msra.mxu0 %v7254
        %7370 = vmatprep.subr.bf16.mxu0 %v7253
        %7371 = vmatpush2.bf16.msra.mxu0 %v7252
        %7372 = vmatprep.subr.bf16.mxu0 %v7251
        %7373 = vmatpush2.bf16.msra.mxu0 %v7250
        %7374 = vmatprep.subr.bf16.mxu0 %v7249
        %7375 = vmatpush2.bf16.msra.mxu0 %v7248
        %7376 = vmatprep.subr.bf16.mxu0 %v7247
        %7377 = vmatpush2.bf16.msra.mxu0 %v7246
        %7378 = vmatprep.subr.bf16.mxu0 %v7245
        %7379 = vmatpush2.bf16.msra.mxu0 %v7244
        %7380 = vmatprep.subr.bf16.mxu0 %v7243
        %7381 = vmatpush2.bf16.msra.mxu0 %v7242
        %7382 = vmatprep.subr.bf16.mxu0 %v7241
        %7383 = vmatpush2.bf16.msra.mxu0 %v7240
        %7384 = vmatprep.mubr.bf16.mxu0 %v7009
        %7385 = vmatmul.mubr.bf16.gmra.mxu0 %v7008
        %v7386 = vpop.f32.mrf.mxu0
        %v7387 = vadd.f32 0.0, %v7386
        %v7388 = vpop.f32.mrf.mxu0
        %v7389 = vadd.f32 0.0, %v7388
        %v7390 = vpop.f32.mrf.mxu0
        %v7391 = vadd.f32 0.0, %v7390
        %v7392 = vpop.f32.mrf.mxu0
        %v7393 = vadd.f32 0.0, %v7392
        %7394 = vmatprep.mubr.bf16.mxu0 %v7013
        %7395 = vmatmul.mubr.bf16.gmra.mxu0 %v7012
        %v7396 = vpop.f32.mrf.mxu0
        %v7397 = vadd.f32 0.0, %v7396
        %v7398 = vpop.f32.mrf.mxu0
        %v7399 = vadd.f32 0.0, %v7398
        %v7400 = vpop.f32.mrf.mxu0
        %v7401 = vadd.f32 0.0, %v7400
        %v7402 = vpop.f32.mrf.mxu0
        %v7403 = vadd.f32 0.0, %v7402
        %7404 = vmatprep.mubr.bf16.mxu0 %v7017
        %7405 = vmatmul.mubr.bf16.gmra.mxu0 %v7016
        %v7406 = vpop.f32.mrf.mxu0
        %v7407 = vadd.f32 0.0, %v7406
        %v7408 = vpop.f32.mrf.mxu0
        %v7409 = vadd.f32 0.0, %v7408
        %v7410 = vpop.f32.mrf.mxu0
        %v7411 = vpop.f32.mrf.mxu0
        %7412 = vdwg.mxu0
        %7413 = vmatprep.subr.bf16.mxu0 %v7271
        %7414 = vmatpush1.bf16.msra.mxu0 %v7270
        %7415 = vmatprep.subr.bf16.mxu0 %v7269
        %7416 = vmatpush1.bf16.msra.mxu0 %v7268
        %7417 = vmatprep.subr.bf16.mxu0 %v7267
        %7418 = vmatpush1.bf16.msra.mxu0 %v7266
        %7419 = vmatprep.subr.bf16.mxu0 %v7265
        %7420 = vmatpush1.bf16.msra.mxu0 %v7264
        %7421 = vmatprep.subr.bf16.mxu0 %v7263
        %7422 = vmatpush1.bf16.msra.mxu0 %v7262
        %7423 = vmatprep.subr.bf16.mxu0 %v7261
        %7424 = vmatpush1.bf16.msra.mxu0 %v7260
        %7425 = vmatprep.subr.bf16.mxu0 %v7259
        %7426 = vmatpush1.bf16.msra.mxu0 %v7258
        %7427 = vmatprep.subr.bf16.mxu0 %v7257
        %7428 = vmatpush1.bf16.msra.mxu0 %v7256
        %7429 = vmatprep.subr.bf16.mxu0 %v7287
        %7430 = vmatpush2.bf16.msra.mxu0 %v7286
        %7431 = vmatprep.subr.bf16.mxu0 %v7285
        %7432 = vmatpush2.bf16.msra.mxu0 %v7284
        %7433 = vmatprep.subr.bf16.mxu0 %v7283
        %7434 = vmatpush2.bf16.msra.mxu0 %v7282
        %7435 = vmatprep.subr.bf16.mxu0 %v7281
        %7436 = vmatpush2.bf16.msra.mxu0 %v7280
        %7437 = vmatprep.subr.bf16.mxu0 %v7279
        %7438 = vmatpush2.bf16.msra.mxu0 %v7278
        %7439 = vmatprep.subr.bf16.mxu0 %v7277
        %7440 = vmatpush2.bf16.msra.mxu0 %v7276
        %7441 = vmatprep.subr.bf16.mxu0 %v7275
        %7442 = vmatpush2.bf16.msra.mxu0 %v7274
        %7443 = vmatprep.subr.bf16.mxu0 %v7273
        %7444 = vmatpush2.bf16.msra.mxu0 %v7272
        %7445 = vmatprep.mubr.bf16.mxu0 %v7011
        %7446 = vmatmul.mubr.bf16.gmra.mxu0 %v7010
        %v7447 = vpop.f32.mrf.mxu0
        %v7448 = vadd.f32 %v7387, %v7447
        %v7449 = vpop.f32.mrf.mxu0
        %v7450 = vadd.f32 %v7389, %v7449
        %v7451 = vpop.f32.mrf.mxu0
        %v7452 = vadd.f32 %v7391, %v7451
        %v7453 = vpop.f32.mrf.mxu0
        %v7454 = vadd.f32 %v7393, %v7453
        %7455 = vmatprep.mubr.bf16.mxu0 %v7015
        %7456 = vmatmul.mubr.bf16.gmra.mxu0 %v7014
        %v7457 = vpop.f32.mrf.mxu0
        %v7458 = vadd.f32 %v7397, %v7457
        %v7459 = vpop.f32.mrf.mxu0
        %v7460 = vadd.f32 %v7399, %v7459
        %v7461 = vpop.f32.mrf.mxu0
        %v7462 = vadd.f32 %v7401, %v7461
        %v7463 = vpop.f32.mrf.mxu0
        %v7464 = vadd.f32 %v7403, %v7463
        %7465 = vmatprep.mubr.bf16.mxu0 %v7019
        %7466 = vmatmul.mubr.bf16.gmra.mxu0 %v7018
        %v7467 = vpop.f32.mrf.mxu0
        %v7468 = vadd.f32 %v7407, %v7467
        %v7469 = vpop.f32.mrf.mxu0
        %v7470 = vadd.f32 %v7409, %v7469
        %v7471 = vpop.f32.mrf.mxu0
        %v7472 = vpop.f32.mrf.mxu0
        %7473 = vdwg.mxu0
        %v7474 = vadd.f32 %v6876, %v7448
        %v7475 = vadd.f32 %v6878, %v7450
        %v7476 = vadd.f32 %v6880, %v7452
        %v7477 = vadd.f32 %v6882, %v7454
        %v7478 = vadd.f32 %v6886, %v7458
        %v7479 = vadd.f32 %v6888, %v7460
        %v7480 = vadd.f32 %v6890, %v7462
        %v7481 = vadd.f32 %v6892, %v7464
        %v7482 = vadd.f32 %v6896, %v7468
        %v7483 = vadd.f32 %v6898, %v7470
        %v7484 = vld [vmem:[%s7] sm:$0x3]
        %v7486 = vlaneseq
        %v7487 = vshrl.u32 %v7486, 7
        %v7488 = vsub.s32 0, %v7487
        %v7489 = vrot.slane %v7484, %v7488
        %v7490 = vlaneseq
        %v7491 = vshrl.u32 %v7490, 7
        %v7492 = vsub.s32 1, %v7491
        %v7493 = vrot.slane %v7484, %v7492
        %v7496 = vadd.f32 %v7474, %v7489
        %v7497 = vadd.f32 %v7475, %v7493
        %v7498 = vadd.f32 %v7476, %v7489
        %v7499 = vadd.f32 %v7477, %v7493
        %v7500 = vadd.f32 %v7478, %v7489
        %v7501 = vadd.f32 %v7479, %v7493
        %v7502 = vadd.f32 %v7480, %v7489
        %v7503 = vadd.f32 %v7481, %v7493
        %v7504 = vadd.f32 %v7482, %v7489
        %v7505 = vadd.f32 %v7483, %v7493
        %v7506 = vmax.f32 %v7496, 0.0
        %v7507 = vmax.f32 %v7497, 0.0
        %v7508 = vmax.f32 %v7498, 0.0
        %v7509 = vmax.f32 %v7499, 0.0
        %v7510 = vmax.f32 %v7500, 0.0
        %v7511 = vmax.f32 %v7501, 0.0
        %v7512 = vmax.f32 %v7502, 0.0
        %v7513 = vmax.f32 %v7503, 0.0
        %v7514 = vmax.f32 %v7504, 0.0
        %v7515 = vmax.f32 %v7505, 0.0
        %v7516 = vpack.c.bf16 %v7508, %v7506
        %v7517 = vpack.c.bf16 %v7509, %v7507
        %v7518 = vpack.c.bf16 %v7512, %v7510
        %v7519 = vpack.c.bf16 %v7513, %v7511
        %v7520 = vpack.c.bf16 %v7514, %v7514
        %v7521 = vpack.c.bf16 %v7515, %v7515
        %v7528 = vunpack.c.l.b16 %v7516
        %v7529 = vunpack.c.l.b16 %v7517
        %v7530 = vunpack.c.h.b16 %v7516
        %v7531 = vunpack.c.h.b16 %v7517
        %v7532 = vunpack.c.l.b16 %v7518
        %v7533 = vunpack.c.l.b16 %v7519
        %v7534 = vunpack.c.h.b16 %v7518
        %v7535 = vunpack.c.h.b16 %v7519
        %v7536 = vunpack.c.l.b16 %v7520
        %v7537 = vunpack.c.l.b16 %v7521
        %v7538 = vld [vmem:[%s4] sm:$0xf]
        %v7539 = vld [vmem:[%s4 + $0x4] sm:$0xf]
        %v7540 = vld [vmem:[%s4 + $0x8] sm:$0xf]
        %v7541 = vld [vmem:[%s4 + $0xc] sm:$0xf]
        %v7542 = vld [vmem:[%s4 + $0x10] sm:$0xf]
        %v7543 = vld [vmem:[%s4 + $0x14] sm:$0xf]
        %v7544 = vld [vmem:[%s4 + $0x18] sm:$0xf]
        %v7545 = vld [vmem:[%s4 + $0x1c] sm:$0xf]
        %v7546 = vld [vmem:[%s4 + $0x20] sm:$0xf]
        %v7547 = vld [vmem:[%s4 + $0x24] sm:$0xf]
        %v7548 = vld [vmem:[%s4 + $0x28] sm:$0xf]
        %v7549 = vld [vmem:[%s4 + $0x2c] sm:$0xf]
        %v7550 = vld [vmem:[%s4 + $0x30] sm:$0xf]
        %v7551 = vld [vmem:[%s4 + $0x34] sm:$0xf]
        %v7552 = vld [vmem:[%s4 + $0x38] sm:$0xf]
        %v7553 = vld [vmem:[%s4 + $0x3c] sm:$0xf]
        %v7554 = vld [vmem:[%s4 + $0x40] sm:$0xf]
        %v7555 = vld [vmem:[%s4 + $0x44] sm:$0xf]
        %v7556 = vld [vmem:[%s4 + $0x48] sm:$0xf]
        %v7557 = vld [vmem:[%s4 + $0x4c] sm:$0xf]
        %v7558 = vld [vmem:[%s4 + $0x50] sm:$0xf]
        %v7559 = vld [vmem:[%s4 + $0x54] sm:$0xf]
        %v7560 = vld [vmem:[%s4 + $0x58] sm:$0xf]
        %v7561 = vld [vmem:[%s4 + $0x5c] sm:$0xf]
        %v7562 = vld [vmem:[%s4 + $0x60] sm:$0xf]
        %v7563 = vld [vmem:[%s4 + $0x64] sm:$0xf]
        %v7564 = vld [vmem:[%s4 + $0x68] sm:$0xf]
        %v7565 = vld [vmem:[%s4 + $0x6c] sm:$0xf]
        %v7566 = vld [vmem:[%s4 + $0x70] sm:$0xf]
        %v7567 = vld [vmem:[%s4 + $0x74] sm:$0xf]
        %v7568 = vld [vmem:[%s4 + $0x78] sm:$0xf]
        %v7569 = vld [vmem:[%s4 + $0x7c] sm:$0xf]
        %s7570 = scalar_lea.vmem %s4, 128
        %v7571 = vld [vmem:[%s7570] sm:$0xf]
        %v7572 = vld [vmem:[%s7570 + $0x4] sm:$0xf]
        %v7573 = vld [vmem:[%s7570 + $0x8] sm:$0xf]
        %v7574 = vld [vmem:[%s7570 + $0xc] sm:$0xf]
        %v7575 = vld [vmem:[%s7570 + $0x10] sm:$0xf]
        %v7576 = vld [vmem:[%s7570 + $0x14] sm:$0xf]
        %v7577 = vld [vmem:[%s7570 + $0x18] sm:$0xf]
        %v7578 = vld [vmem:[%s7570 + $0x1c] sm:$0xf]
        %v7579 = vld [vmem:[%s7570 + $0x20] sm:$0xf]
        %v7580 = vld [vmem:[%s7570 + $0x24] sm:$0xf]
        %v7581 = vld [vmem:[%s7570 + $0x28] sm:$0xf]
        %v7582 = vld [vmem:[%s7570 + $0x2c] sm:$0xf]
        %v7583 = vld [vmem:[%s7570 + $0x30] sm:$0xf]
        %v7584 = vld [vmem:[%s7570 + $0x34] sm:$0xf]
        %v7585 = vld [vmem:[%s7570 + $0x38] sm:$0xf]
        %v7586 = vld [vmem:[%s7570 + $0x3c] sm:$0xf]
        %v7587 = vld [vmem:[%s7570 + $0x40] sm:$0xf]
        %v7588 = vld [vmem:[%s7570 + $0x44] sm:$0xf]
        %v7589 = vld [vmem:[%s7570 + $0x48] sm:$0xf]
        %v7590 = vld [vmem:[%s7570 + $0x4c] sm:$0xf]
        %v7591 = vld [vmem:[%s7570 + $0x50] sm:$0xf]
        %v7592 = vld [vmem:[%s7570 + $0x54] sm:$0xf]
        %v7593 = vld [vmem:[%s7570 + $0x58] sm:$0xf]
        %v7594 = vld [vmem:[%s7570 + $0x5c] sm:$0xf]
        %v7595 = vld [vmem:[%s7570 + $0x60] sm:$0xf]
        %v7596 = vld [vmem:[%s7570 + $0x64] sm:$0xf]
        %v7597 = vld [vmem:[%s7570 + $0x68] sm:$0xf]
        %v7598 = vld [vmem:[%s7570 + $0x6c] sm:$0xf]
        %v7599 = vld [vmem:[%s7570 + $0x70] sm:$0xf]
        %v7600 = vld [vmem:[%s7570 + $0x74] sm:$0xf]
        %v7601 = vld [vmem:[%s7570 + $0x78] sm:$0xf]
        %v7602 = vld [vmem:[%s7570 + $0x7c] sm:$0xf]
        %v7603 = vpack.c.b16 %v7530, %v7530
        %v7604 = vpack.c.b16 %v7531, %v7531
        %v7639 = vunpack.c.l.b16 %v7571
        %v7640 = vunpack.c.l.b16 %v7572
        %v7641 = vunpack.c.l.b16 %v7573
        %v7642 = vunpack.c.l.b16 %v7574
        %v7643 = vunpack.c.l.b16 %v7575
        %v7644 = vunpack.c.l.b16 %v7576
        %v7645 = vunpack.c.l.b16 %v7577
        %v7646 = vunpack.c.l.b16 %v7578
        %v7647 = vunpack.c.l.b16 %v7579
        %v7648 = vunpack.c.l.b16 %v7580
        %v7649 = vunpack.c.l.b16 %v7581
        %v7650 = vunpack.c.l.b16 %v7582
        %v7651 = vunpack.c.l.b16 %v7583
        %v7652 = vunpack.c.l.b16 %v7584
        %v7653 = vunpack.c.l.b16 %v7585
        %v7654 = vunpack.c.l.b16 %v7586
        %v7655 = vunpack.c.l.b16 %v7587
        %v7656 = vunpack.c.l.b16 %v7588
        %v7657 = vunpack.c.l.b16 %v7589
        %v7658 = vunpack.c.l.b16 %v7590
        %v7659 = vunpack.c.l.b16 %v7591
        %v7660 = vunpack.c.l.b16 %v7592
        %v7661 = vunpack.c.l.b16 %v7593
        %v7662 = vunpack.c.l.b16 %v7594
        %v7663 = vunpack.c.l.b16 %v7595
        %v7664 = vunpack.c.l.b16 %v7596
        %v7665 = vunpack.c.l.b16 %v7597
        %v7666 = vunpack.c.l.b16 %v7598
        %v7667 = vunpack.c.l.b16 %v7599
        %v7668 = vunpack.c.l.b16 %v7600
        %v7669 = vunpack.c.l.b16 %v7601
        %v7670 = vunpack.c.l.b16 %v7602
        %v7671 = vpack.c.b16 %v7640, %v7639
        %v7672 = vpack.c.b16 %v7642, %v7641
        %v7673 = vpack.c.b16 %v7644, %v7643
        %v7674 = vpack.c.b16 %v7646, %v7645
        %v7675 = vpack.c.b16 %v7648, %v7647
        %v7676 = vpack.c.b16 %v7650, %v7649
        %v7677 = vpack.c.b16 %v7652, %v7651
        %v7678 = vpack.c.b16 %v7654, %v7653
        %v7679 = vpack.c.b16 %v7656, %v7655
        %v7680 = vpack.c.b16 %v7658, %v7657
        %v7681 = vpack.c.b16 %v7660, %v7659
        %v7682 = vpack.c.b16 %v7662, %v7661
        %v7683 = vpack.c.b16 %v7664, %v7663
        %v7684 = vpack.c.b16 %v7666, %v7665
        %v7685 = vpack.c.b16 %v7668, %v7667
        %v7686 = vpack.c.b16 %v7670, %v7669
        %7703 = vmatprep.subr.bf16.mxu0 0
        %7704 = vmatpush1.bf16.msra.mxu0 %v7678
        %7705 = vmatprep.subr.bf16.mxu0 0
        %7706 = vmatpush1.bf16.msra.mxu0 %v7677
        %7707 = vmatprep.subr.bf16.mxu0 0
        %7708 = vmatpush1.bf16.msra.mxu0 %v7676
        %7709 = vmatprep.subr.bf16.mxu0 0
        %7710 = vmatpush1.bf16.msra.mxu0 %v7675
        %7711 = vmatprep.subr.bf16.mxu0 0
        %7712 = vmatpush1.bf16.msra.mxu0 %v7674
        %7713 = vmatprep.subr.bf16.mxu0 0
        %7714 = vmatpush1.bf16.msra.mxu0 %v7673
        %7715 = vmatprep.subr.bf16.mxu0 0
        %7716 = vmatpush1.bf16.msra.mxu0 %v7672
        %7717 = vmatprep.subr.bf16.mxu0 0
        %7718 = vmatpush1.bf16.msra.mxu0 %v7671
        %7719 = vmatprep.subr.bf16.mxu0 0
        %7720 = vmatpush2.bf16.msra.mxu0 %v7686
        %7721 = vmatprep.subr.bf16.mxu0 0
        %7722 = vmatpush2.bf16.msra.mxu0 %v7685
        %7723 = vmatprep.subr.bf16.mxu0 0
        %7724 = vmatpush2.bf16.msra.mxu0 %v7684
        %7725 = vmatprep.subr.bf16.mxu0 0
        %7726 = vmatpush2.bf16.msra.mxu0 %v7683
        %7727 = vmatprep.subr.bf16.mxu0 0
        %7728 = vmatpush2.bf16.msra.mxu0 %v7682
        %7729 = vmatprep.subr.bf16.mxu0 0
        %7730 = vmatpush2.bf16.msra.mxu0 %v7681
        %7731 = vmatprep.subr.bf16.mxu0 0
        %7732 = vmatpush2.bf16.msra.mxu0 %v7680
        %7733 = vmatprep.subr.bf16.mxu0 0
        %7734 = vmatpush2.bf16.msra.mxu0 %v7679
        %7735 = vmatprep.mubr.bf16.mxu0 %v7604
        %7736 = vmatmul.mubr.bf16.gmra.mxu0 %v7603
        %v7737 = vpop.f32.mrf.mxu0
        %v7738 = vadd.f32 0.0, %v7737
        %v7739 = vpop.f32.mrf.mxu0
        %v7740 = vpop.f32.mrf.mxu0
        %v7741 = vpop.f32.mrf.mxu0
        %7742 = vdwg.mxu0
        %v7743 = vpack.c.b16 %v7528, %v7528
        %v7744 = vpack.c.b16 %v7529, %v7529
        %v7779 = vunpack.c.l.b16 %v7538
        %v7780 = vunpack.c.l.b16 %v7539
        %v7781 = vunpack.c.l.b16 %v7540
        %v7782 = vunpack.c.l.b16 %v7541
        %v7783 = vunpack.c.l.b16 %v7542
        %v7784 = vunpack.c.l.b16 %v7543
        %v7785 = vunpack.c.l.b16 %v7544
        %v7786 = vunpack.c.l.b16 %v7545
        %v7787 = vunpack.c.l.b16 %v7546
        %v7788 = vunpack.c.l.b16 %v7547
        %v7789 = vunpack.c.l.b16 %v7548
        %v7790 = vunpack.c.l.b16 %v7549
        %v7791 = vunpack.c.l.b16 %v7550
        %v7792 = vunpack.c.l.b16 %v7551
        %v7793 = vunpack.c.l.b16 %v7552
        %v7794 = vunpack.c.l.b16 %v7553
        %v7795 = vunpack.c.l.b16 %v7554
        %v7796 = vunpack.c.l.b16 %v7555
        %v7797 = vunpack.c.l.b16 %v7556
        %v7798 = vunpack.c.l.b16 %v7557
        %v7799 = vunpack.c.l.b16 %v7558
        %v7800 = vunpack.c.l.b16 %v7559
        %v7801 = vunpack.c.l.b16 %v7560
        %v7802 = vunpack.c.l.b16 %v7561
        %v7803 = vunpack.c.l.b16 %v7562
        %v7804 = vunpack.c.l.b16 %v7563
        %v7805 = vunpack.c.l.b16 %v7564
        %v7806 = vunpack.c.l.b16 %v7565
        %v7807 = vunpack.c.l.b16 %v7566
        %v7808 = vunpack.c.l.b16 %v7567
        %v7809 = vunpack.c.l.b16 %v7568
        %v7810 = vunpack.c.l.b16 %v7569
        %v7811 = vpack.c.b16 %v7780, %v7779
        %v7812 = vpack.c.b16 %v7782, %v7781
        %v7813 = vpack.c.b16 %v7784, %v7783
        %v7814 = vpack.c.b16 %v7786, %v7785
        %v7815 = vpack.c.b16 %v7788, %v7787
        %v7816 = vpack.c.b16 %v7790, %v7789
        %v7817 = vpack.c.b16 %v7792, %v7791
        %v7818 = vpack.c.b16 %v7794, %v7793
        %v7819 = vpack.c.b16 %v7796, %v7795
        %v7820 = vpack.c.b16 %v7798, %v7797
        %v7821 = vpack.c.b16 %v7800, %v7799
        %v7822 = vpack.c.b16 %v7802, %v7801
        %v7823 = vpack.c.b16 %v7804, %v7803
        %v7824 = vpack.c.b16 %v7806, %v7805
        %v7825 = vpack.c.b16 %v7808, %v7807
        %v7826 = vpack.c.b16 %v7810, %v7809
        %7843 = vmatprep.subr.bf16.mxu0 0
        %7844 = vmatpush1.bf16.msra.mxu0 %v7818
        %7845 = vmatprep.subr.bf16.mxu0 0
        %7846 = vmatpush1.bf16.msra.mxu0 %v7817
        %7847 = vmatprep.subr.bf16.mxu0 0
        %7848 = vmatpush1.bf16.msra.mxu0 %v7816
        %7849 = vmatprep.subr.bf16.mxu0 0
        %7850 = vmatpush1.bf16.msra.mxu0 %v7815
        %7851 = vmatprep.subr.bf16.mxu0 0
        %7852 = vmatpush1.bf16.msra.mxu0 %v7814
        %7853 = vmatprep.subr.bf16.mxu0 0
        %7854 = vmatpush1.bf16.msra.mxu0 %v7813
        %7855 = vmatprep.subr.bf16.mxu0 0
        %7856 = vmatpush1.bf16.msra.mxu0 %v7812
        %7857 = vmatprep.subr.bf16.mxu0 0
        %7858 = vmatpush1.bf16.msra.mxu0 %v7811
        %7859 = vmatprep.subr.bf16.mxu0 0
        %7860 = vmatpush2.bf16.msra.mxu0 %v7826
        %7861 = vmatprep.subr.bf16.mxu0 0
        %7862 = vmatpush2.bf16.msra.mxu0 %v7825
        %7863 = vmatprep.subr.bf16.mxu0 0
        %7864 = vmatpush2.bf16.msra.mxu0 %v7824
        %7865 = vmatprep.subr.bf16.mxu0 0
        %7866 = vmatpush2.bf16.msra.mxu0 %v7823
        %7867 = vmatprep.subr.bf16.mxu0 0
        %7868 = vmatpush2.bf16.msra.mxu0 %v7822
        %7869 = vmatprep.subr.bf16.mxu0 0
        %7870 = vmatpush2.bf16.msra.mxu0 %v7821
        %7871 = vmatprep.subr.bf16.mxu0 0
        %7872 = vmatpush2.bf16.msra.mxu0 %v7820
        %7873 = vmatprep.subr.bf16.mxu0 0
        %7874 = vmatpush2.bf16.msra.mxu0 %v7819
        %7875 = vmatprep.mubr.bf16.mxu0 %v7744
        %7876 = vmatmul.mubr.bf16.gmra.mxu0 %v7743
        %v7877 = vpop.f32.mrf.mxu0
        %v7878 = vadd.f32 %v7738, %v7877
        %v7879 = vpop.f32.mrf.mxu0
        %v7880 = vpop.f32.mrf.mxu0
        %v7881 = vpop.f32.mrf.mxu0
        %7882 = vdwg.mxu0
        %s7883 = scalar_lea.vmem %s4, 256
        %v7884 = vld [vmem:[%s7883] sm:$0xf]
        %v7885 = vld [vmem:[%s7883 + $0x4] sm:$0xf]
        %v7886 = vld [vmem:[%s7883 + $0x8] sm:$0xf]
        %v7887 = vld [vmem:[%s7883 + $0xc] sm:$0xf]
        %v7888 = vld [vmem:[%s7883 + $0x10] sm:$0xf]
        %v7889 = vld [vmem:[%s7883 + $0x14] sm:$0xf]
        %v7890 = vld [vmem:[%s7883 + $0x18] sm:$0xf]
        %v7891 = vld [vmem:[%s7883 + $0x1c] sm:$0xf]
        %v7892 = vld [vmem:[%s7883 + $0x20] sm:$0xf]
        %v7893 = vld [vmem:[%s7883 + $0x24] sm:$0xf]
        %v7894 = vld [vmem:[%s7883 + $0x28] sm:$0xf]
        %v7895 = vld [vmem:[%s7883 + $0x2c] sm:$0xf]
        %v7896 = vld [vmem:[%s7883 + $0x30] sm:$0xf]
        %v7897 = vld [vmem:[%s7883 + $0x34] sm:$0xf]
        %v7898 = vld [vmem:[%s7883 + $0x38] sm:$0xf]
        %v7899 = vld [vmem:[%s7883 + $0x3c] sm:$0xf]
        %v7900 = vld [vmem:[%s7883 + $0x40] sm:$0xf]
        %v7901 = vld [vmem:[%s7883 + $0x44] sm:$0xf]
        %v7902 = vld [vmem:[%s7883 + $0x48] sm:$0xf]
        %v7903 = vld [vmem:[%s7883 + $0x4c] sm:$0xf]
        %v7904 = vld [vmem:[%s7883 + $0x50] sm:$0xf]
        %v7905 = vld [vmem:[%s7883 + $0x54] sm:$0xf]
        %v7906 = vld [vmem:[%s7883 + $0x58] sm:$0xf]
        %v7907 = vld [vmem:[%s7883 + $0x5c] sm:$0xf]
        %v7908 = vld [vmem:[%s7883 + $0x60] sm:$0xf]
        %v7909 = vld [vmem:[%s7883 + $0x64] sm:$0xf]
        %v7910 = vld [vmem:[%s7883 + $0x68] sm:$0xf]
        %v7911 = vld [vmem:[%s7883 + $0x6c] sm:$0xf]
        %v7912 = vld [vmem:[%s7883 + $0x70] sm:$0xf]
        %v7913 = vld [vmem:[%s7883 + $0x74] sm:$0xf]
        %v7914 = vld [vmem:[%s7883 + $0x78] sm:$0xf]
        %v7915 = vld [vmem:[%s7883 + $0x7c] sm:$0xf]
        %v7916 = vpack.c.b16 %v7532, %v7532
        %v7917 = vpack.c.b16 %v7533, %v7533
        %v7952 = vunpack.c.l.b16 %v7884
        %v7953 = vunpack.c.l.b16 %v7885
        %v7954 = vunpack.c.l.b16 %v7886
        %v7955 = vunpack.c.l.b16 %v7887
        %v7956 = vunpack.c.l.b16 %v7888
        %v7957 = vunpack.c.l.b16 %v7889
        %v7958 = vunpack.c.l.b16 %v7890
        %v7959 = vunpack.c.l.b16 %v7891
        %v7960 = vunpack.c.l.b16 %v7892
        %v7961 = vunpack.c.l.b16 %v7893
        %v7962 = vunpack.c.l.b16 %v7894
        %v7963 = vunpack.c.l.b16 %v7895
        %v7964 = vunpack.c.l.b16 %v7896
        %v7965 = vunpack.c.l.b16 %v7897
        %v7966 = vunpack.c.l.b16 %v7898
        %v7967 = vunpack.c.l.b16 %v7899
        %v7968 = vunpack.c.l.b16 %v7900
        %v7969 = vunpack.c.l.b16 %v7901
        %v7970 = vunpack.c.l.b16 %v7902
        %v7971 = vunpack.c.l.b16 %v7903
        %v7972 = vunpack.c.l.b16 %v7904
        %v7973 = vunpack.c.l.b16 %v7905
        %v7974 = vunpack.c.l.b16 %v7906
        %v7975 = vunpack.c.l.b16 %v7907
        %v7976 = vunpack.c.l.b16 %v7908
        %v7977 = vunpack.c.l.b16 %v7909
        %v7978 = vunpack.c.l.b16 %v7910
        %v7979 = vunpack.c.l.b16 %v7911
        %v7980 = vunpack.c.l.b16 %v7912
        %v7981 = vunpack.c.l.b16 %v7913
        %v7982 = vunpack.c.l.b16 %v7914
        %v7983 = vunpack.c.l.b16 %v7915
        %v7984 = vpack.c.b16 %v7953, %v7952
        %v7985 = vpack.c.b16 %v7955, %v7954
        %v7986 = vpack.c.b16 %v7957, %v7956
        %v7987 = vpack.c.b16 %v7959, %v7958
        %v7988 = vpack.c.b16 %v7961, %v7960
        %v7989 = vpack.c.b16 %v7963, %v7962
        %v7990 = vpack.c.b16 %v7965, %v7964
        %v7991 = vpack.c.b16 %v7967, %v7966
        %v7992 = vpack.c.b16 %v7969, %v7968
        %v7993 = vpack.c.b16 %v7971, %v7970
        %v7994 = vpack.c.b16 %v7973, %v7972
        %v7995 = vpack.c.b16 %v7975, %v7974
        %v7996 = vpack.c.b16 %v7977, %v7976
        %v7997 = vpack.c.b16 %v7979, %v7978
        %v7998 = vpack.c.b16 %v7981, %v7980
        %v7999 = vpack.c.b16 %v7983, %v7982
        %8016 = vmatprep.subr.bf16.mxu0 0
        %8017 = vmatpush1.bf16.msra.mxu0 %v7991
        %8018 = vmatprep.subr.bf16.mxu0 0
        %8019 = vmatpush1.bf16.msra.mxu0 %v7990
        %8020 = vmatprep.subr.bf16.mxu0 0
        %8021 = vmatpush1.bf16.msra.mxu0 %v7989
        %8022 = vmatprep.subr.bf16.mxu0 0
        %8023 = vmatpush1.bf16.msra.mxu0 %v7988
        %8024 = vmatprep.subr.bf16.mxu0 0
        %8025 = vmatpush1.bf16.msra.mxu0 %v7987
        %8026 = vmatprep.subr.bf16.mxu0 0
        %8027 = vmatpush1.bf16.msra.mxu0 %v7986
        %8028 = vmatprep.subr.bf16.mxu0 0
        %8029 = vmatpush1.bf16.msra.mxu0 %v7985
        %8030 = vmatprep.subr.bf16.mxu0 0
        %8031 = vmatpush1.bf16.msra.mxu0 %v7984
        %8032 = vmatprep.subr.bf16.mxu0 0
        %8033 = vmatpush2.bf16.msra.mxu0 %v7999
        %8034 = vmatprep.subr.bf16.mxu0 0
        %8035 = vmatpush2.bf16.msra.mxu0 %v7998
        %8036 = vmatprep.subr.bf16.mxu0 0
        %8037 = vmatpush2.bf16.msra.mxu0 %v7997
        %8038 = vmatprep.subr.bf16.mxu0 0
        %8039 = vmatpush2.bf16.msra.mxu0 %v7996
        %8040 = vmatprep.subr.bf16.mxu0 0
        %8041 = vmatpush2.bf16.msra.mxu0 %v7995
        %8042 = vmatprep.subr.bf16.mxu0 0
        %8043 = vmatpush2.bf16.msra.mxu0 %v7994
        %8044 = vmatprep.subr.bf16.mxu0 0
        %8045 = vmatpush2.bf16.msra.mxu0 %v7993
        %8046 = vmatprep.subr.bf16.mxu0 0
        %8047 = vmatpush2.bf16.msra.mxu0 %v7992
        %8048 = vmatprep.mubr.bf16.mxu0 %v7917
        %8049 = vmatmul.mubr.bf16.gmra.mxu0 %v7916
        %v8050 = vpop.f32.mrf.mxu0
        %v8051 = vadd.f32 0.0, %v8050
        %v8052 = vpop.f32.mrf.mxu0
        %v8053 = vpop.f32.mrf.mxu0
        %v8054 = vpop.f32.mrf.mxu0
        %8055 = vdwg.mxu0
        %v8056 = vadd.f32 %v7878, %v8051
        %s8057 = scalar_lea.vmem %s4, 384
        %v8058 = vld [vmem:[%s8057] sm:$0xf]
        %v8059 = vld [vmem:[%s8057 + $0x4] sm:$0xf]
        %v8060 = vld [vmem:[%s8057 + $0x8] sm:$0xf]
        %v8061 = vld [vmem:[%s8057 + $0xc] sm:$0xf]
        %v8062 = vld [vmem:[%s8057 + $0x10] sm:$0xf]
        %v8063 = vld [vmem:[%s8057 + $0x14] sm:$0xf]
        %v8064 = vld [vmem:[%s8057 + $0x18] sm:$0xf]
        %v8065 = vld [vmem:[%s8057 + $0x1c] sm:$0xf]
        %v8066 = vld [vmem:[%s8057 + $0x20] sm:$0xf]
        %v8067 = vld [vmem:[%s8057 + $0x24] sm:$0xf]
        %v8068 = vld [vmem:[%s8057 + $0x28] sm:$0xf]
        %v8069 = vld [vmem:[%s8057 + $0x2c] sm:$0xf]
        %v8070 = vld [vmem:[%s8057 + $0x30] sm:$0xf]
        %v8071 = vld [vmem:[%s8057 + $0x34] sm:$0xf]
        %v8072 = vld [vmem:[%s8057 + $0x38] sm:$0xf]
        %v8073 = vld [vmem:[%s8057 + $0x3c] sm:$0xf]
        %v8074 = vld [vmem:[%s8057 + $0x40] sm:$0xf]
        %v8075 = vld [vmem:[%s8057 + $0x44] sm:$0xf]
        %v8076 = vld [vmem:[%s8057 + $0x48] sm:$0xf]
        %v8077 = vld [vmem:[%s8057 + $0x4c] sm:$0xf]
        %v8078 = vld [vmem:[%s8057 + $0x50] sm:$0xf]
        %v8079 = vld [vmem:[%s8057 + $0x54] sm:$0xf]
        %v8080 = vld [vmem:[%s8057 + $0x58] sm:$0xf]
        %v8081 = vld [vmem:[%s8057 + $0x5c] sm:$0xf]
        %v8082 = vld [vmem:[%s8057 + $0x60] sm:$0xf]
        %v8083 = vld [vmem:[%s8057 + $0x64] sm:$0xf]
        %v8084 = vld [vmem:[%s8057 + $0x68] sm:$0xf]
        %v8085 = vld [vmem:[%s8057 + $0x6c] sm:$0xf]
        %v8086 = vld [vmem:[%s8057 + $0x70] sm:$0xf]
        %v8087 = vld [vmem:[%s8057 + $0x74] sm:$0xf]
        %v8088 = vld [vmem:[%s8057 + $0x78] sm:$0xf]
        %v8089 = vld [vmem:[%s8057 + $0x7c] sm:$0xf]
        %v8090 = vpack.c.b16 %v7534, %v7534
        %v8091 = vpack.c.b16 %v7535, %v7535
        %v8126 = vunpack.c.l.b16 %v8058
        %v8127 = vunpack.c.l.b16 %v8059
        %v8128 = vunpack.c.l.b16 %v8060
        %v8129 = vunpack.c.l.b16 %v8061
        %v8130 = vunpack.c.l.b16 %v8062
        %v8131 = vunpack.c.l.b16 %v8063
        %v8132 = vunpack.c.l.b16 %v8064
        %v8133 = vunpack.c.l.b16 %v8065
        %v8134 = vunpack.c.l.b16 %v8066
        %v8135 = vunpack.c.l.b16 %v8067
        %v8136 = vunpack.c.l.b16 %v8068
        %v8137 = vunpack.c.l.b16 %v8069
        %v8138 = vunpack.c.l.b16 %v8070
        %v8139 = vunpack.c.l.b16 %v8071
        %v8140 = vunpack.c.l.b16 %v8072
        %v8141 = vunpack.c.l.b16 %v8073
        %v8142 = vunpack.c.l.b16 %v8074
        %v8143 = vunpack.c.l.b16 %v8075
        %v8144 = vunpack.c.l.b16 %v8076
        %v8145 = vunpack.c.l.b16 %v8077
        %v8146 = vunpack.c.l.b16 %v8078
        %v8147 = vunpack.c.l.b16 %v8079
        %v8148 = vunpack.c.l.b16 %v8080
        %v8149 = vunpack.c.l.b16 %v8081
        %v8150 = vunpack.c.l.b16 %v8082
        %v8151 = vunpack.c.l.b16 %v8083
        %v8152 = vunpack.c.l.b16 %v8084
        %v8153 = vunpack.c.l.b16 %v8085
        %v8154 = vunpack.c.l.b16 %v8086
        %v8155 = vunpack.c.l.b16 %v8087
        %v8156 = vunpack.c.l.b16 %v8088
        %v8157 = vunpack.c.l.b16 %v8089
        %v8158 = vpack.c.b16 %v8127, %v8126
        %v8159 = vpack.c.b16 %v8129, %v8128
        %v8160 = vpack.c.b16 %v8131, %v8130
        %v8161 = vpack.c.b16 %v8133, %v8132
        %v8162 = vpack.c.b16 %v8135, %v8134
        %v8163 = vpack.c.b16 %v8137, %v8136
        %v8164 = vpack.c.b16 %v8139, %v8138
        %v8165 = vpack.c.b16 %v8141, %v8140
        %v8166 = vpack.c.b16 %v8143, %v8142
        %v8167 = vpack.c.b16 %v8145, %v8144
        %v8168 = vpack.c.b16 %v8147, %v8146
        %v8169 = vpack.c.b16 %v8149, %v8148
        %v8170 = vpack.c.b16 %v8151, %v8150
        %v8171 = vpack.c.b16 %v8153, %v8152
        %v8172 = vpack.c.b16 %v8155, %v8154
        %v8173 = vpack.c.b16 %v8157, %v8156
        %8190 = vmatprep.subr.bf16.mxu0 0
        %8191 = vmatpush1.bf16.msra.mxu0 %v8165
        %8192 = vmatprep.subr.bf16.mxu0 0
        %8193 = vmatpush1.bf16.msra.mxu0 %v8164
        %8194 = vmatprep.subr.bf16.mxu0 0
        %8195 = vmatpush1.bf16.msra.mxu0 %v8163
        %8196 = vmatprep.subr.bf16.mxu0 0
        %8197 = vmatpush1.bf16.msra.mxu0 %v8162
        %8198 = vmatprep.subr.bf16.mxu0 0
        %8199 = vmatpush1.bf16.msra.mxu0 %v8161
        %8200 = vmatprep.subr.bf16.mxu0 0
        %8201 = vmatpush1.bf16.msra.mxu0 %v8160
        %8202 = vmatprep.subr.bf16.mxu0 0
        %8203 = vmatpush1.bf16.msra.mxu0 %v8159
        %8204 = vmatprep.subr.bf16.mxu0 0
        %8205 = vmatpush1.bf16.msra.mxu0 %v8158
        %8206 = vmatprep.subr.bf16.mxu0 0
        %8207 = vmatpush2.bf16.msra.mxu0 %v8173
        %8208 = vmatprep.subr.bf16.mxu0 0
        %8209 = vmatpush2.bf16.msra.mxu0 %v8172
        %8210 = vmatprep.subr.bf16.mxu0 0
        %8211 = vmatpush2.bf16.msra.mxu0 %v8171
        %8212 = vmatprep.subr.bf16.mxu0 0
        %8213 = vmatpush2.bf16.msra.mxu0 %v8170
        %8214 = vmatprep.subr.bf16.mxu0 0
        %8215 = vmatpush2.bf16.msra.mxu0 %v8169
        %8216 = vmatprep.subr.bf16.mxu0 0
        %8217 = vmatpush2.bf16.msra.mxu0 %v8168
        %8218 = vmatprep.subr.bf16.mxu0 0
        %8219 = vmatpush2.bf16.msra.mxu0 %v8167
        %8220 = vmatprep.subr.bf16.mxu0 0
        %8221 = vmatpush2.bf16.msra.mxu0 %v8166
        %8222 = vmatprep.mubr.bf16.mxu0 %v8091
        %8223 = vmatmul.mubr.bf16.gmra.mxu0 %v8090
        %v8224 = vpop.f32.mrf.mxu0
        %v8225 = vadd.f32 0.0, %v8224
        %v8226 = vpop.f32.mrf.mxu0
        %v8227 = vpop.f32.mrf.mxu0
        %v8228 = vpop.f32.mrf.mxu0
        %8229 = vdwg.mxu0
        %v8230 = vadd.f32 %v8056, %v8225
        %s8231 = scalar_lea.vmem %s4, 512
        %v8232 = vld [vmem:[%s8231] sm:$0xf]
        %v8233 = vld [vmem:[%s8231 + $0x4] sm:$0xf]
        %v8234 = vld [vmem:[%s8231 + $0x8] sm:$0xf]
        %v8235 = vld [vmem:[%s8231 + $0xc] sm:$0xf]
        %v8236 = vld [vmem:[%s8231 + $0x10] sm:$0xf]
        %v8237 = vld [vmem:[%s8231 + $0x14] sm:$0xf]
        %v8238 = vld [vmem:[%s8231 + $0x18] sm:$0xf]
        %v8239 = vld [vmem:[%s8231 + $0x1c] sm:$0xf]
        %v8240 = vld [vmem:[%s8231 + $0x20] sm:$0xf]
        %v8241 = vld [vmem:[%s8231 + $0x24] sm:$0xf]
        %v8242 = vld [vmem:[%s8231 + $0x28] sm:$0xf]
        %v8243 = vld [vmem:[%s8231 + $0x2c] sm:$0xf]
        %v8244 = vld [vmem:[%s8231 + $0x30] sm:$0xf]
        %v8245 = vld [vmem:[%s8231 + $0x34] sm:$0xf]
        %v8246 = vld [vmem:[%s8231 + $0x38] sm:$0xf]
        %v8247 = vld [vmem:[%s8231 + $0x3c] sm:$0xf]
        %v8248 = vld [vmem:[%s8231 + $0x40] sm:$0xf]
        %v8249 = vld [vmem:[%s8231 + $0x44] sm:$0xf]
        %v8250 = vld [vmem:[%s8231 + $0x48] sm:$0xf]
        %v8251 = vld [vmem:[%s8231 + $0x4c] sm:$0xf]
        %v8252 = vld [vmem:[%s8231 + $0x50] sm:$0xf]
        %v8253 = vld [vmem:[%s8231 + $0x54] sm:$0xf]
        %v8254 = vld [vmem:[%s8231 + $0x58] sm:$0xf]
        %v8255 = vld [vmem:[%s8231 + $0x5c] sm:$0xf]
        %v8256 = vld [vmem:[%s8231 + $0x60] sm:$0xf]
        %v8257 = vld [vmem:[%s8231 + $0x64] sm:$0xf]
        %v8258 = vld [vmem:[%s8231 + $0x68] sm:$0xf]
        %v8259 = vld [vmem:[%s8231 + $0x6c] sm:$0xf]
        %v8260 = vld [vmem:[%s8231 + $0x70] sm:$0xf]
        %v8261 = vld [vmem:[%s8231 + $0x74] sm:$0xf]
        %v8262 = vld [vmem:[%s8231 + $0x78] sm:$0xf]
        %v8263 = vld [vmem:[%s8231 + $0x7c] sm:$0xf]
        %v8264 = vpack.c.b16 %v7536, %v7536
        %v8265 = vpack.c.b16 %v7537, %v7537
        %v8300 = vunpack.c.l.b16 %v8232
        %v8301 = vunpack.c.l.b16 %v8233
        %v8302 = vunpack.c.l.b16 %v8234
        %v8303 = vunpack.c.l.b16 %v8235
        %v8304 = vunpack.c.l.b16 %v8236
        %v8305 = vunpack.c.l.b16 %v8237
        %v8306 = vunpack.c.l.b16 %v8238
        %v8307 = vunpack.c.l.b16 %v8239
        %v8308 = vunpack.c.l.b16 %v8240
        %v8309 = vunpack.c.l.b16 %v8241
        %v8310 = vunpack.c.l.b16 %v8242
        %v8311 = vunpack.c.l.b16 %v8243
        %v8312 = vunpack.c.l.b16 %v8244
        %v8313 = vunpack.c.l.b16 %v8245
        %v8314 = vunpack.c.l.b16 %v8246
        %v8315 = vunpack.c.l.b16 %v8247
        %v8316 = vunpack.c.l.b16 %v8248
        %v8317 = vunpack.c.l.b16 %v8249
        %v8318 = vunpack.c.l.b16 %v8250
        %v8319 = vunpack.c.l.b16 %v8251
        %v8320 = vunpack.c.l.b16 %v8252
        %v8321 = vunpack.c.l.b16 %v8253
        %v8322 = vunpack.c.l.b16 %v8254
        %v8323 = vunpack.c.l.b16 %v8255
        %v8324 = vunpack.c.l.b16 %v8256
        %v8325 = vunpack.c.l.b16 %v8257
        %v8326 = vunpack.c.l.b16 %v8258
        %v8327 = vunpack.c.l.b16 %v8259
        %v8328 = vunpack.c.l.b16 %v8260
        %v8329 = vunpack.c.l.b16 %v8261
        %v8330 = vunpack.c.l.b16 %v8262
        %v8331 = vunpack.c.l.b16 %v8263
        %v8332 = vpack.c.b16 %v8301, %v8300
        %v8333 = vpack.c.b16 %v8303, %v8302
        %v8334 = vpack.c.b16 %v8305, %v8304
        %v8335 = vpack.c.b16 %v8307, %v8306
        %v8336 = vpack.c.b16 %v8309, %v8308
        %v8337 = vpack.c.b16 %v8311, %v8310
        %v8338 = vpack.c.b16 %v8313, %v8312
        %v8339 = vpack.c.b16 %v8315, %v8314
        %v8340 = vpack.c.b16 %v8317, %v8316
        %v8341 = vpack.c.b16 %v8319, %v8318
        %v8342 = vpack.c.b16 %v8321, %v8320
        %v8343 = vpack.c.b16 %v8323, %v8322
        %v8344 = vpack.c.b16 %v8325, %v8324
        %v8345 = vpack.c.b16 %v8327, %v8326
        %v8346 = vpack.c.b16 %v8329, %v8328
        %v8347 = vpack.c.b16 %v8331, %v8330
        %8364 = vmatprep.subr.bf16.mxu0 0
        %8365 = vmatpush1.bf16.msra.mxu0 %v8339
        %8366 = vmatprep.subr.bf16.mxu0 0
        %8367 = vmatpush1.bf16.msra.mxu0 %v8338
        %8368 = vmatprep.subr.bf16.mxu0 0
        %8369 = vmatpush1.bf16.msra.mxu0 %v8337
        %8370 = vmatprep.subr.bf16.mxu0 0
        %8371 = vmatpush1.bf16.msra.mxu0 %v8336
        %8372 = vmatprep.subr.bf16.mxu0 0
        %8373 = vmatpush1.bf16.msra.mxu0 %v8335
        %8374 = vmatprep.subr.bf16.mxu0 0
        %8375 = vmatpush1.bf16.msra.mxu0 %v8334
        %8376 = vmatprep.subr.bf16.mxu0 0
        %8377 = vmatpush1.bf16.msra.mxu0 %v8333
        %8378 = vmatprep.subr.bf16.mxu0 0
        %8379 = vmatpush1.bf16.msra.mxu0 %v8332
        %8380 = vmatprep.subr.bf16.mxu0 0
        %8381 = vmatpush2.bf16.msra.mxu0 %v8347
        %8382 = vmatprep.subr.bf16.mxu0 0
        %8383 = vmatpush2.bf16.msra.mxu0 %v8346
        %8384 = vmatprep.subr.bf16.mxu0 0
        %8385 = vmatpush2.bf16.msra.mxu0 %v8345
        %8386 = vmatprep.subr.bf16.mxu0 0
        %8387 = vmatpush2.bf16.msra.mxu0 %v8344
        %8388 = vmatprep.subr.bf16.mxu0 0
        %8389 = vmatpush2.bf16.msra.mxu0 %v8343
        %8390 = vmatprep.subr.bf16.mxu0 0
        %8391 = vmatpush2.bf16.msra.mxu0 %v8342
        %8392 = vmatprep.subr.bf16.mxu0 0
        %8393 = vmatpush2.bf16.msra.mxu0 %v8341
        %8394 = vmatprep.subr.bf16.mxu0 0
        %8395 = vmatpush2.bf16.msra.mxu0 %v8340
        %8396 = vmatprep.mubr.bf16.mxu0 %v8265
        %8397 = vmatmul.mubr.bf16.gmra.mxu0 %v8264
        %v8398 = vpop.f32.mrf.mxu0
        %v8399 = vadd.f32 0.0, %v8398
        %v8400 = vpop.f32.mrf.mxu0
        %v8401 = vpop.f32.mrf.mxu0
        %v8402 = vpop.f32.mrf.mxu0
        %8403 = vdwg.mxu0
        %v8404 = vadd.f32 %v8230, %v8399
        %v8405 = vld [vmem:[%s8] sm:$0x1]
        %v8407 = vlaneseq
        %v8408 = vshrl.u32 %v8407, 7
        %v8409 = vsub.s32 0, %v8408
        %v8410 = vrot.slane %v8405, %v8409
        %v8412 = vadd.f32 %v8404, %v8410
        %v8413 = vxor.u32 %v8412, 2147483648
        %v8414 = vmul.f32 %v8413, 1.442695
        %v8415 = vpow.pop %v8414
        %v8416 = vadd.f32 %v8415, 1.0
        %v8417 = vrcp.pop %v8416
        %v8418 = vmul.f32 1.0, %v8417
        %v8419 = vmul.f32 %v8418, 255.0
        %vm8420 = vcmask 523264
        %8421 = vst.msk [vmem:[%s529] sm:$0xff] %vm8420, %v8419
        %p8422 = scmp.lt.s32.totalorder %s20, 1
        %s8423 = scalar_select %p8422, %s20, 1
        %s8424 = smul.addr %s8423, 8
        %s8425 = scalar_lea.vmem %s9, %s8424
        // Predicated region
        $region98: #{dots_generator_forward.1} parent=92 // pred_check
          %p8426 = pneg %p232
        $region99: #{dots_generator_forward.1} parent=92 // pred_check_branch
          %8428 = sbr.rel (%p8426) target = $region101
        $region100: #{dots_generator_forward.1} parent=92 // pred_region
          _
        $region101: #{dots_generator_forward.1} parent=92 // pred_fallthru
          _
      $region93: #{dots_generator_forward.1} parent=5 // pred_fallthru
        _
      %p8429 = scmp.le.s32.totalorder 2, %s15
      // Predicated region
      $region102: #{dots_generator_forward.1} parent=5 // pred_check
        %p8430 = pneg %p8429
      $region103: #{dots_generator_forward.1} parent=5 // pred_check_branch
        %8432 = sbr.rel (%p8430) target = $region105
      $region104: #{dots_generator_forward.1} parent=5 // pred_region
        %s8433 = ssub.s32 %s15, 2
        // Predicated region
        $region106: #{dots_generator_forward.1} parent=104 // pred_check
          %p8434 = pneg %p238
        $region107: #{dots_generator_forward.1} parent=104 // pred_check_branch
          %8436 = sbr.rel (%p8434) target = $region109
        $region108: #{dots_generator_forward.1} parent=104 // pred_region
          %p8437 = scmp.lt.s32.totalorder %s21, 1
          %s8438 = scalar_select %p8437, %s21, 1
          %s8439 = smul.addr %s8438, 8
          %s8440 = scalar_lea.vmem %s9, %s8439
        $region109: #{dots_generator_forward.1} parent=104 // pred_fallthru
          _
      $region105: #{dots_generator_forward.1} parent=5 // pred_fallthru
        _
    $region6: #{dots_generator_forward.1} parent=1 // loop_footer
      %s19 = sadd.s32 1, %s15
    $region7: #{dots_generator_forward.1} parent=1 // loop_footer_branch
      %14 = sbr.rel target = $region3
    $region8: #{dots_generator_forward.1} parent=1 // loop_exit
      _

</llo_original>
